<compile_context>
chip_gen: v7x
topology: tpu7x:2x2x1
jax: 0.10.0
libtpu: 0.0.40
codegen_flags: <defaults>
</compile_context>

<pallas_src>
import math

import jax
import jax.numpy as jnp
from jax import lax
from jax.experimental import pallas as pl
from jax.experimental.pallas import tpu as pltpu

# ----------------------------- config (small synthetic) -----------------------------
IMG_SIZE = 16
PATCH = 8
N_PATCH = (IMG_SIZE // PATCH) ** 2          # 4 image tokens per featurizer
VIT_DIM = 32                                # per-featurizer embed dim
VIT_HEADS = 4
VIT_HEAD_DIM = VIT_DIM // VIT_HEADS
VIT_DEPTH = 3                               # get_intermediate_layers(n={depth-2}) -> blocks 0..1
VIT_MLP = 4 * VIT_DIM
VISION_DIM = 2 * VIT_DIM                    # fused embed dim (concat of the two towers)
TEXT_DIM = 64
TEXT_HEADS = 4
TEXT_HEAD_DIM = TEXT_DIM // TEXT_HEADS
TEXT_FFN = 128
TEXT_LAYERS = 2
VOCAB = 128
PAD_TOKEN_ID = 7
NEG_INF = -1e30                             # scores stay fp32, so this is safe

_VMEM = pl.BlockSpec(memory_space=pltpu.MemorySpace.VMEM)


# ------------------------------ generic fused-call helper ------------------------------
def fused_call(body, tensor_args, param_tree, out_shape):
    """Run `body(tensor_refs, param_ref_tree, out_ref)` as ONE pallas_call.

    All tensor args and param-tree leaves become VMEM refs (whole-array blocks, no grid);
    everything stays resident in VMEM for the duration of the kernel.
    """
    leaves, treedef = jax.tree_util.tree_flatten(param_tree)
    n_t = len(tensor_args)
    n_p = len(leaves)

    def kernel(*refs):
        t_refs = refs[:n_t]
        p_refs = refs[n_t:n_t + n_p]
        o_ref = refs[-1]
        params = jax.tree_util.tree_unflatten(treedef, list(p_refs))
        body(t_refs, params, o_ref)

    return pl.pallas_call(
        kernel,
        out_shape=out_shape,
        in_specs=[_VMEM] * (n_t + n_p),
        out_specs=_VMEM,
    )(*tensor_args, *leaves)


# ------------------------------ in-kernel compute helpers ------------------------------
def _mm(x, w_ref, b_ref=None):
    """bf16 x bf16 matmul on the MXU with fp32 accumulation; optional fp32 [1, Dout] bias."""
    y = jnp.dot(x.astype(jnp.bfloat16), w_ref[...],
                preferred_element_type=jnp.float32)
    if b_ref is not None:
        y = y + b_ref[...]
    return y


def _layernorm(x, g_ref, b_ref, eps=1e-6):
    xv = x.astype(jnp.float32)
    mu = jnp.mean(xv, axis=-1, keepdims=True)
    var = jnp.mean(jnp.square(xv - mu), axis=-1, keepdims=True)
    return (xv - mu) * lax.rsqrt(var + eps) * g_ref[...] + b_ref[...]


def _rmsnorm(x, g_ref, eps=1e-6):
    xv = x.astype(jnp.float32)
    ms = jnp.mean(jnp.square(xv), axis=-1, keepdims=True)
    return xv * lax.rsqrt(ms + eps) * g_ref[...]


def _softmax(scores):
    m = jnp.max(scores, axis=-1, keepdims=True)
    p = jnp.exp(scores - m)
    return p * pl.reciprocal(jnp.sum(p, axis=-1, keepdims=True), approx=True)


def _rope_rotate(xh, cos, sin):
    """Neox-style rotation of one head slice [T, Dh] with cos/sin tables [T, Dh//2]."""
    half = xh.shape[-1] // 2
    x1, x2 = xh[:, :half], xh[:, half:]
    return jnp.concatenate([x1 * cos - x2 * sin, x2 * cos + x1 * sin], axis=-1)


def _mha(q, k, v, heads, head_dim, causal, cos=None, sin=None):
    """Multi-head attention on [S, H*Dh] fp32 inputs; heads via static lane slices.

    Output is the already-merged, lane-dense [S, H*Dh] fp32 array.
    """
    s = q.shape[0]
    scale = 1.0 / math.sqrt(head_dim)
    if causal:
        ii = lax.broadcasted_iota(jnp.int32, (s, s), 0)
        jj = lax.broadcasted_iota(jnp.int32, (s, s), 1)
        mask = jj <= ii
    outs = []
    for h in range(heads):
        sl = slice(h * head_dim, (h + 1) * head_dim)
        qh, kh, vh = q[:, sl], k[:, sl], v[:, sl]
        if cos is not None:                            # RoPE fused into attention
            qh = _rope_rotate(qh, cos, sin)
            kh = _rope_rotate(kh, cos, sin)
        sc = lax.dot_general(qh.astype(jnp.bfloat16), kh.astype(jnp.bfloat16),
                             (((1,), (1,)), ((), ())),
                             preferred_element_type=jnp.float32) * scale
        if causal:
            sc = jnp.where(mask, sc, NEG_INF)
        p = _softmax(sc)
        outs.append(jnp.dot(p.astype(jnp.bfloat16), vh.astype(jnp.bfloat16),
                            preferred_element_type=jnp.float32))
    return jnp.concatenate(outs, axis=-1)


def _gelu(x):
    # TODO(synk): torch nn.GELU defaults to exact (erf) gelu; tanh approximation used here.
    return jax.nn.gelu(x, approximate=True)


# -------------------------- kernel bodies (run inside pallas_call) --------------------------
def _vit_block(x, p, use_ls):
    h = _layernorm(x, p["ln1_g"], p["ln1_b"])
    qkv = _mm(h, p["wqkv"], p["bqkv"])
    q = qkv[:, :VIT_DIM]
    k = qkv[:, VIT_DIM:2 * VIT_DIM]
    v = qkv[:, 2 * VIT_DIM:]
    a = _mha(q, k, v, VIT_HEADS, VIT_HEAD_DIM, causal=False)
    o = _mm(a, p["wo"], p["bo"])
    if use_ls:                                       # patched LayerScale: x * scale_factor
        o = o * p["ls1"][...]
    x = x + o
    h = _layernorm(x, p["ln2_g"], p["ln2_b"])
    h = _gelu(_mm(h, p["wfc1"], p["bfc1"]))
    h = _mm(h, p["wfc2"], p["bfc2"])
    if use_ls:
        h = h * p["ls2"][...]
    return x + h


def _vit_featurizer(patches, p, use_cls, use_ls):
    """patches: [nP, C*patch*patch] bf16 -> [nP, VIT_DIM] fp32 (block[-2] output, CLS stripped)."""
    x = _mm(patches, p["patch_w"], p["patch_b"])                  # patch embed
    if use_cls:
        x = jnp.concatenate([p["cls"][...], x], axis=0)
    x = x + p["pos_embed"][...]
    # get_intermediate_layers(n={depth-2}): blocks 0..depth-2 only, no final norm
    for blk in p["blocks"]:
        x = _vit_block(x, blk, use_ls)
    if use_cls:
        x = x[1:, :]                                              # strip prefix (CLS) token
    return x


def _vision_projector_body(t_refs, params, o_ref):
    """FusedVisionTower + OpenVLAMultiModalProjector in one kernel."""
    dino_ref, sig_ref = t_refs
    b = dino_ref.shape[0]
    pj = params["projector"]
    outs = []
    for i in range(b):                                            # static loop over images
        feat_d = _vit_featurizer(dino_ref[i], params["featurizer"], True, True)
        feat_s = _vit_featurizer(sig_ref[i], params["fused_featurizer"], False, False)
        feat = jnp.concatenate([feat_d, feat_s], axis=-1)         # [nP, 2*VIT_DIM]
        h = _gelu(_mm(feat, pj["fc1_w"], pj["fc1_b"]))
        h = _gelu(_mm(h, pj["fc2_w"], pj["fc2_b"]))
        h = _mm(h, pj["fc3_w"], pj["fc3_b"])
        outs.append(h)
    o_ref[...] = jnp.concatenate(outs, axis=0).astype(o_ref.dtype)


def _language_model_body(t_refs, params, o_ref):
    """Full LLaMA-style LM: all layers + final RMSNorm, RoPE fused in-kernel."""
    # TODO(synk): vLLM kv_caches / attn_metadata (paged attention) not modeled; full
    #             causal prefill attention over the flattened sequence is used instead.
    x_ref, cos_ref, sin_ref = t_refs
    x = x_ref[...].astype(jnp.float32)                            # residual stream (VMEM, fp32)
    cos = cos_ref[...]
    sin = sin_ref[...]
    for lp in params["layers"]:
        h = _rmsnorm(x, lp["in_norm"])
        qkv = _mm(h, lp["wqkv"])
        q = qkv[:, :TEXT_DIM]
        k = qkv[:, TEXT_DIM:2 * TEXT_DIM]
        v = qkv[:, 2 * TEXT_DIM:]
        a = _mha(q, k, v, TEXT_HEADS, TEXT_HEAD_DIM, causal=True, cos=cos, sin=sin)
        x = x + _mm(a, lp["wo"])
        h = _rmsnorm(x, lp["post_norm"])
        gu = _mm(h, lp["wgu"])                                    # fused gate|up projection
        g, u = gu[:, :TEXT_FFN], gu[:, TEXT_FFN:]
        x = x + _mm(jax.nn.silu(g) * u, lp["wd"])
    o_ref[...] = _rmsnorm(x, params["final_norm"]).astype(o_ref.dtype)


# -------------------------------------- glue (plain JAX) --------------------------------------
def extract_patches(img, patch):
    """NCHW image -> [B, nPatches, C*patch*patch] (matches conv2d stride=kernel=patch)."""
    b, c, h, w = img.shape
    ph, pw = h // patch, w // patch
    x = img.reshape(b, c, ph, patch, pw, patch)
    x = x.transpose(0, 2, 4, 1, 3, 5)            # B, ph, pw, C, p, p
    return x.reshape(b, ph * pw, c * patch * patch)


def rope_tables(positions, head_dim):
    half = head_dim // 2
    inv = 1.0 / (10000.0 ** (jnp.arange(half, dtype=jnp.float32) / half))
    freqs = positions.astype(jnp.float32)[:, None] * inv[None, :]   # [T, half]
    return jnp.cos(freqs), jnp.sin(freqs)


def merge_multimodal_embeddings(input_ids, inputs_embeds, mm_embeds, pad_token_id):
    """Scatter image embeddings into positions where input_ids == pad_token_id."""
    mm_flat = mm_embeds.reshape(-1, mm_embeds.shape[-1])
    mask = input_ids == pad_token_id
    idx = jnp.clip(jnp.cumsum(mask) - 1, 0, mm_flat.shape[0] - 1)
    gathered = mm_flat[idx]
    return jnp.where(mask[:, None], gathered, inputs_embeds)


# ------------------------ param prep (cast to kernel-friendly layout) ------------------------
def _w(x):                       # matmul weight -> bf16 (MXU input)
    return x.astype(jnp.bfloat16)


def _v(x):                       # bias / norm vector -> fp32 row [1, D]
    return x.reshape(1, -1).astype(jnp.float32)


def _prep_vit(p, use_cls, use_ls):
    blocks = []
    for blk in p["blocks"][: VIT_DEPTH - 1]:       # only the blocks that actually run
        nb = dict(
            ln1_g=_v(blk["ln1_g"]), ln1_b=_v(blk["ln1_b"]),
            wqkv=_w(blk["wqkv"]), bqkv=_v(blk["bqkv"]),
            wo=_w(blk["wo"]), bo=_v(blk["bo"]),
            ln2_g=_v(blk["ln2_g"]), ln2_b=_v(blk["ln2_b"]),
            wfc1=_w(blk["wfc1"]), bfc1=_v(blk["bfc1"]),
            wfc2=_w(blk["wfc2"]), bfc2=_v(blk["bfc2"]),
        )
        if use_ls:
            nb["ls1"] = _v(blk["ls1"])
            nb["ls2"] = _v(blk["ls2"])
        blocks.append(nb)
    out = dict(
        patch_w=_w(p["patch_w"]),
        patch_b=_v(p["patch_b"]),
        pos_embed=p["pos_embed"].reshape(-1, VIT_DIM).astype(jnp.float32),
        blocks=blocks,
    )
    if use_cls:
        out["cls"] = p["cls"].reshape(1, VIT_DIM).astype(jnp.float32)
    return out


def _prep_projector(p):
    return dict(
        fc1_w=_w(p["fc1_w"]), fc1_b=_v(p["fc1_b"]),
        fc2_w=_w(p["fc2_w"]), fc2_b=_v(p["fc2_b"]),
        fc3_w=_w(p["fc3_w"]), fc3_b=_v(p["fc3_b"]),
    )


def _prep_lm(p):
    layers = []
    for lp in p["layers"]:
        layers.append(dict(
            in_norm=_v(lp["in_norm"]),
            wqkv=_w(lp["wqkv"]),
            wo=_w(lp["wo"]),
            post_norm=_v(lp["post_norm"]),
            wgu=_w(jnp.concatenate([lp["wg"], lp["wu"]], axis=1)),   # fused gate|up
            wd=_w(lp["wd"]),
        ))
    return dict(layers=layers, final_norm=_v(p["final_norm"]))


# ------------------------------------ top-level forward ------------------------------------
def openvla_forward(params, input_ids, positions, pixel_values):
    """Equivalent of OpenVLAForActionPrediction.forward (prefill path, inputs_embeds=None)."""
    # _image_pixels_to_features: pixel_values.to(bfloat16); vision tower runs in bf16.
    pix = pixel_values.astype(jnp.bfloat16)
    img, img_fused = pix[:, :3], pix[:, 3:]
    patches_d = extract_patches(img, PATCH)          # [B, nP, 3*p*p] bf16
    patches_s = extract_patches(img_fused, PATCH)
    b = patches_d.shape[0]

    vis_params = dict(
        featurizer=_prep_vit(params["vision_backbone"]["featurizer"], True, True),
        fused_featurizer=_prep_vit(params["vision_backbone"]["fused_featurizer"], False, False),
        projector=_prep_projector(params["projector"]),
    )
    # one fused kernel: both ViT featurizers + multimodal projector
    mm_embeds = fused_call(
        _vision_projector_body,
        (patches_d, patches_s),
        vis_params,
        jax.ShapeDtypeStruct((b * N_PATCH, TEXT_DIM), jnp.bfloat16),
    )

    token_embeds = params["lm"]["embed"][input_ids]
    inputs_embeds = merge_multimodal_embeddings(
        input_ids, token_embeds, mm_embeds.astype(jnp.float32), PAD_TOKEN_ID)

    cos, sin = rope_tables(positions, TEXT_HEAD_DIM)
    lm_params = _prep_lm(params["lm"])
    # one fused kernel: the whole language model (all layers + final norm)
    hidden_states = fused_call(
        _language_model_body,
        (inputs_embeds.astype(jnp.bfloat16), cos, sin),
        lm_params,
        jax.ShapeDtypeStruct((input_ids.shape[0], TEXT_DIM), jnp.float32),
    )
    return hidden_states


# ------------------------------- deterministic params -------------------------------
def init_params(key):
    keys = iter(jax.random.split(key, 512))

    def nrm(shape, scale=0.02):
        return scale * jax.random.normal(next(keys), shape, dtype=jnp.float32)

    def vit_params(use_cls, use_ls):
        n_tok = N_PATCH + (1 if use_cls else 0)
        blocks = []
        for _ in range(VIT_DEPTH):
            blk = dict(
                ln1_g=jnp.ones((VIT_DIM,), jnp.float32),
                ln1_b=jnp.zeros((VIT_DIM,), jnp.float32),
                wqkv=nrm((VIT_DIM, 3 * VIT_DIM)),
                bqkv=jnp.zeros((3 * VIT_DIM,), jnp.float32),
                wo=nrm((VIT_DIM, VIT_DIM)),
                bo=jnp.zeros((VIT_DIM,), jnp.float32),
                ln2_g=jnp.ones((VIT_DIM,), jnp.float32),
                ln2_b=jnp.zeros((VIT_DIM,), jnp.float32),
                wfc1=nrm((VIT_DIM, VIT_MLP)),
                bfc1=jnp.zeros((VIT_MLP,), jnp.float32),
                wfc2=nrm((VIT_MLP, VIT_DIM)),
                bfc2=jnp.zeros((VIT_DIM,), jnp.float32),
            )
            if use_ls:  # DINOv2-style LayerScale (patched to scale_factor)
                blk["ls1"] = jnp.full((VIT_DIM,), 1e-5, jnp.float32)
                blk["ls2"] = jnp.full((VIT_DIM,), 1e-5, jnp.float32)
            blocks.append(blk)
        p = dict(
            patch_w=nrm((3 * PATCH * PATCH, VIT_DIM)),
            patch_b=jnp.zeros((VIT_DIM,), jnp.float32),
            pos_embed=nrm((1, n_tok, VIT_DIM)),
            blocks=blocks,
        )
        if use_cls:
            p["cls"] = nrm((1, 1, VIT_DIM))
        return p

    vision = dict(featurizer=vit_params(True, True),
                  fused_featurizer=vit_params(False, False))
    proj = dict(
        fc1_w=nrm((VISION_DIM, 4 * VISION_DIM)),
        fc1_b=jnp.zeros((4 * VISION_DIM,), jnp.float32),
        fc2_w=nrm((4 * VISION_DIM, TEXT_DIM)),
        fc2_b=jnp.zeros((TEXT_DIM,), jnp.float32),
        fc3_w=nrm((TEXT_DIM, TEXT_DIM)),
        fc3_b=jnp.zeros((TEXT_DIM,), jnp.float32),
    )
    layers = []
    for _ in range(TEXT_LAYERS):
        layers.append(dict(
            in_norm=jnp.ones((TEXT_DIM,), jnp.float32),
            wqkv=nrm((TEXT_DIM, 3 * TEXT_DIM)),
            wo=nrm((TEXT_DIM, TEXT_DIM)),
            post_norm=jnp.ones((TEXT_DIM,), jnp.float32),
            wg=nrm((TEXT_DIM, TEXT_FFN)),
            wu=nrm((TEXT_DIM, TEXT_FFN)),
            wd=nrm((TEXT_FFN, TEXT_DIM)),
        ))
    lm = dict(embed=nrm((VOCAB, TEXT_DIM)), layers=layers,
              final_norm=jnp.ones((TEXT_DIM,), jnp.float32))
    return dict(vision_backbone=vision, projector=proj, lm=lm)


# ----------------------------------------- main -----------------------------------------
if __name__ == "__main__":
    key = jax.random.PRNGKey(0)
    kparam, kpix = jax.random.split(key)
    params = init_params(kparam)

    # one image (6 channels = two stacked 3-channel views), flattened token stream of 12
    # containing exactly N_PATCH=4 pad tokens (image placeholders).
    pixel_values = jax.random.normal(kpix, (1, 6, IMG_SIZE, IMG_SIZE), dtype=jnp.float32)
    input_ids = jnp.array([1, PAD_TOKEN_ID, PAD_TOKEN_ID, PAD_TOKEN_ID, PAD_TOKEN_ID,
                           5, 9, 11, 3, 2, 8, 6], dtype=jnp.int32)
    positions = jnp.arange(input_ids.shape[0], dtype=jnp.int32)

    forward = jax.jit(openvla_forward)
    hidden_states = forward(params, input_ids, positions, pixel_values)
    hidden_states = jax.block_until_ready(hidden_states)

    assert hidden_states.shape == (input_ids.shape[0], TEXT_DIM)
    assert bool(jnp.all(jnp.isfinite(hidden_states)))
    print("KERNEL_OK")
</pallas_src>

<mosaic_0001>
module attributes {stable_mosaic.version = 11 : i64} {
  func.func @kernel(%arg0: memref<1x4x192xbf16, #tpu.memory_space<vmem>>, %arg1: memref<1x4x192xbf16, #tpu.memory_space<vmem>>, %arg2: memref<1x128xf32, #tpu.memory_space<vmem>>, %arg3: memref<1x32xf32, #tpu.memory_space<vmem>>, %arg4: memref<1x32xf32, #tpu.memory_space<vmem>>, %arg5: memref<1x96xf32, #tpu.memory_space<vmem>>, %arg6: memref<1x32xf32, #tpu.memory_space<vmem>>, %arg7: memref<1x32xf32, #tpu.memory_space<vmem>>, %arg8: memref<1x32xf32, #tpu.memory_space<vmem>>, %arg9: memref<1x32xf32, #tpu.memory_space<vmem>>, %arg10: memref<1x32xf32, #tpu.memory_space<vmem>>, %arg11: memref<1x32xf32, #tpu.memory_space<vmem>>, %arg12: memref<32x128xbf16, #tpu.memory_space<vmem>>, %arg13: memref<128x32xbf16, #tpu.memory_space<vmem>>, %arg14: memref<32x32xbf16, #tpu.memory_space<vmem>>, %arg15: memref<32x96xbf16, #tpu.memory_space<vmem>>, %arg16: memref<1x128xf32, #tpu.memory_space<vmem>>, %arg17: memref<1x32xf32, #tpu.memory_space<vmem>>, %arg18: memref<1x32xf32, #tpu.memory_space<vmem>>, %arg19: memref<1x96xf32, #tpu.memory_space<vmem>>, %arg20: memref<1x32xf32, #tpu.memory_space<vmem>>, %arg21: memref<1x32xf32, #tpu.memory_space<vmem>>, %arg22: memref<1x32xf32, #tpu.memory_space<vmem>>, %arg23: memref<1x32xf32, #tpu.memory_space<vmem>>, %arg24: memref<1x32xf32, #tpu.memory_space<vmem>>, %arg25: memref<1x32xf32, #tpu.memory_space<vmem>>, %arg26: memref<32x128xbf16, #tpu.memory_space<vmem>>, %arg27: memref<128x32xbf16, #tpu.memory_space<vmem>>, %arg28: memref<32x32xbf16, #tpu.memory_space<vmem>>, %arg29: memref<32x96xbf16, #tpu.memory_space<vmem>>, %arg30: memref<1x32xf32, #tpu.memory_space<vmem>>, %arg31: memref<1x32xf32, #tpu.memory_space<vmem>>, %arg32: memref<192x32xbf16, #tpu.memory_space<vmem>>, %arg33: memref<5x32xf32, #tpu.memory_space<vmem>>, %arg34: memref<1x128xf32, #tpu.memory_space<vmem>>, %arg35: memref<1x32xf32, #tpu.memory_space<vmem>>, %arg36: memref<1x32xf32, #tpu.memory_space<vmem>>, %arg37: memref<1x96xf32, #tpu.memory_space<vmem>>, %arg38: memref<1x32xf32, #tpu.memory_space<vmem>>, %arg39: memref<1x32xf32, #tpu.memory_space<vmem>>, %arg40: memref<1x32xf32, #tpu.memory_space<vmem>>, %arg41: memref<1x32xf32, #tpu.memory_space<vmem>>, %arg42: memref<32x128xbf16, #tpu.memory_space<vmem>>, %arg43: memref<128x32xbf16, #tpu.memory_space<vmem>>, %arg44: memref<32x32xbf16, #tpu.memory_space<vmem>>, %arg45: memref<32x96xbf16, #tpu.memory_space<vmem>>, %arg46: memref<1x128xf32, #tpu.memory_space<vmem>>, %arg47: memref<1x32xf32, #tpu.memory_space<vmem>>, %arg48: memref<1x32xf32, #tpu.memory_space<vmem>>, %arg49: memref<1x96xf32, #tpu.memory_space<vmem>>, %arg50: memref<1x32xf32, #tpu.memory_space<vmem>>, %arg51: memref<1x32xf32, #tpu.memory_space<vmem>>, %arg52: memref<1x32xf32, #tpu.memory_space<vmem>>, %arg53: memref<1x32xf32, #tpu.memory_space<vmem>>, %arg54: memref<32x128xbf16, #tpu.memory_space<vmem>>, %arg55: memref<128x32xbf16, #tpu.memory_space<vmem>>, %arg56: memref<32x32xbf16, #tpu.memory_space<vmem>>, %arg57: memref<32x96xbf16, #tpu.memory_space<vmem>>, %arg58: memref<1x32xf32, #tpu.memory_space<vmem>>, %arg59: memref<192x32xbf16, #tpu.memory_space<vmem>>, %arg60: memref<4x32xf32, #tpu.memory_space<vmem>>, %arg61: memref<1x256xf32, #tpu.memory_space<vmem>>, %arg62: memref<64x256xbf16, #tpu.memory_space<vmem>>, %arg63: memref<1x64xf32, #tpu.memory_space<vmem>>, %arg64: memref<256x64xbf16, #tpu.memory_space<vmem>>, %arg65: memref<1x64xf32, #tpu.memory_space<vmem>>, %arg66: memref<64x64xbf16, #tpu.memory_space<vmem>>, %arg67: memref<4x64xbf16, #tpu.memory_space<vmem>>) attributes {dimension_semantics = [], scalar_prefetch = 0 : i64, scratch_operands = 0 : i64, tpu.core_type = #tpu.core_type<tc>} {
    %c0 = arith.constant 0 : index
    %c0_0 = arith.constant 0 : index
    %c0_1 = arith.constant 0 : index
    %0 = vector.load %arg0[%c0, %c0_0, %c0_1] : memref<1x4x192xbf16, #tpu.memory_space<vmem>>, vector<1x4x192xbf16>
    %1 = vector.shape_cast %0 : vector<1x4x192xbf16> to vector<4x192xbf16>
    %c0_2 = arith.constant 0 : index
    %c0_3 = arith.constant 0 : index
    %2 = vector.load %arg32[%c0_2, %c0_3] : memref<192x32xbf16, #tpu.memory_space<vmem>>, vector<192x32xbf16>
    %cst = arith.constant dense<0.000000e+00> : vector<4x32xf32>
    %3 = tpu.matmul %1, %2, %cst {dimension_numbers = #tpu.dot_dimension_numbers<[1], [0], [0], [1], [0, 0, 1, 1], [], []>} : vector<4x192xbf16>, vector<192x32xbf16>, vector<4x32xf32> -> vector<4x32xf32>
    %c0_4 = arith.constant 0 : index
    %c0_5 = arith.constant 0 : index
    %4 = vector.load %arg31[%c0_4, %c0_5] : memref<1x32xf32, #tpu.memory_space<vmem>>, vector<1x32xf32>
    %5 = vector.broadcast %4 : vector<1x32xf32> to vector<4x32xf32>
    %6 = arith.addf %3, %5 : vector<4x32xf32>
    %c0_6 = arith.constant 0 : index
    %c0_7 = arith.constant 0 : index
    %7 = vector.load %arg30[%c0_6, %c0_7] : memref<1x32xf32, #tpu.memory_space<vmem>>, vector<1x32xf32>
    %8 = tpu.concatenate %7, %6 in 0 : vector<1x32xf32>, vector<4x32xf32> -> vector<5x32xf32>
    %c0_8 = arith.constant 0 : index
    %c0_9 = arith.constant 0 : index
    %9 = vector.load %arg33[%c0_8, %c0_9] : memref<5x32xf32, #tpu.memory_space<vmem>>, vector<5x32xf32>
    %10 = arith.addf %8, %9 : vector<5x32xf32>
    %cst_10 = arith.constant dense<0.000000e+00> : vector<5xf32>
    %11 = vector.multi_reduction <add>, %10, %cst_10 [1] : vector<5x32xf32> to vector<5xf32>
    %12 = vector.shape_cast %11 : vector<5xf32> to vector<5x1xf32>
    %cst_11 = arith.constant 3.200000e+01 : f32
    %13 = vector.broadcast %cst_11 : f32 to vector<5x1xf32>
    %14 = arith.divf %12, %13 : vector<5x1xf32>
    %15 = vector.broadcast %14 : vector<5x1xf32> to vector<5x32xf32>
    %16 = arith.subf %10, %15 : vector<5x32xf32>
    %17 = arith.mulf %16, %16 : vector<5x32xf32>
    %cst_12 = arith.constant dense<0.000000e+00> : vector<5xf32>
    %18 = vector.multi_reduction <add>, %17, %cst_12 [1] : vector<5x32xf32> to vector<5xf32>
    %19 = vector.shape_cast %18 : vector<5xf32> to vector<5x1xf32>
    %cst_13 = arith.constant 3.200000e+01 : f32
    %20 = vector.broadcast %cst_13 : f32 to vector<5x1xf32>
    %21 = arith.divf %19, %20 : vector<5x1xf32>
    %22 = vector.broadcast %14 : vector<5x1xf32> to vector<5x32xf32>
    %23 = arith.subf %10, %22 : vector<5x32xf32>
    %cst_14 = arith.constant 9.99999997E-7 : f32
    %24 = vector.broadcast %cst_14 : f32 to vector<5x1xf32>
    %25 = arith.addf %21, %24 : vector<5x1xf32>
    %26 = math.rsqrt %25 : vector<5x1xf32>
    %27 = vector.broadcast %26 : vector<5x1xf32> to vector<5x32xf32>
    %28 = arith.mulf %23, %27 : vector<5x32xf32>
    %c0_15 = arith.constant 0 : index
    %c0_16 = arith.constant 0 : index
    %29 = vector.load %arg7[%c0_15, %c0_16] : memref<1x32xf32, #tpu.memory_space<vmem>>, vector<1x32xf32>
    %30 = vector.broadcast %29 : vector<1x32xf32> to vector<5x32xf32>
    %31 = arith.mulf %28, %30 : vector<5x32xf32>
    %c0_17 = arith.constant 0 : index
    %c0_18 = arith.constant 0 : index
    %32 = vector.load %arg6[%c0_17, %c0_18] : memref<1x32xf32, #tpu.memory_space<vmem>>, vector<1x32xf32>
    %33 = vector.broadcast %32 : vector<1x32xf32> to vector<5x32xf32>
    %34 = arith.addf %31, %33 : vector<5x32xf32>
    %35 = arith.truncf %34 : vector<5x32xf32> to vector<5x32xbf16>
    %c0_19 = arith.constant 0 : index
    %c0_20 = arith.constant 0 : index
    %36 = vector.load %arg15[%c0_19, %c0_20] : memref<32x96xbf16, #tpu.memory_space<vmem>>, vector<32x96xbf16>
    %cst_21 = arith.constant dense<0.000000e+00> : vector<5x96xf32>
    %37 = tpu.matmul %35, %36, %cst_21 {dimension_numbers = #tpu.dot_dimension_numbers<[1], [0], [0], [1], [0, 0, 1, 1], [], []>} : vector<5x32xbf16>, vector<32x96xbf16>, vector<5x96xf32> -> vector<5x96xf32>
    %c0_22 = arith.constant 0 : index
    %c0_23 = arith.constant 0 : index
    %38 = vector.load %arg5[%c0_22, %c0_23] : memref<1x96xf32, #tpu.memory_space<vmem>>, vector<1x96xf32>
    %39 = vector.broadcast %38 : vector<1x96xf32> to vector<5x96xf32>
    %40 = arith.addf %37, %39 : vector<5x96xf32>
    %41 = vector.extract_strided_slice %40 {offsets = [0, 0], sizes = [5, 32], strides = [1, 1]} : vector<5x96xf32> to vector<5x32xf32>
    %42 = vector.extract_strided_slice %40 {offsets = [0, 32], sizes = [5, 32], strides = [1, 1]} : vector<5x96xf32> to vector<5x32xf32>
    %43 = vector.extract_strided_slice %40 {offsets = [0, 64], sizes = [5, 32], strides = [1, 1]} : vector<5x96xf32> to vector<5x32xf32>
    %44 = vector.extract_strided_slice %41 {offsets = [0, 0], sizes = [5, 8], strides = [1, 1]} : vector<5x32xf32> to vector<5x8xf32>
    %45 = vector.extract_strided_slice %42 {offsets = [0, 0], sizes = [5, 8], strides = [1, 1]} : vector<5x32xf32> to vector<5x8xf32>
    %46 = vector.extract_strided_slice %43 {offsets = [0, 0], sizes = [5, 8], strides = [1, 1]} : vector<5x32xf32> to vector<5x8xf32>
    %47 = arith.truncf %44 : vector<5x8xf32> to vector<5x8xbf16>
    %48 = arith.truncf %45 : vector<5x8xf32> to vector<5x8xbf16>
    %cst_24 = arith.constant dense<0.000000e+00> : vector<5x5xf32>
    %49 = tpu.matmul %47, %48, %cst_24 {dimension_numbers = #tpu.dot_dimension_numbers<[1], [1], [0], [0], [0, 0, 1, 0], [], []>} : vector<5x8xbf16>, vector<5x8xbf16>, vector<5x5xf32> -> vector<5x5xf32>
    %cst_25 = arith.constant 0.353553385 : f32
    %50 = vector.broadcast %cst_25 : f32 to vector<5x5xf32>
    %51 = arith.mulf %49, %50 : vector<5x5xf32>
    %cst_26 = arith.constant dense<0xFF800000> : vector<5xf32>
    %52 = vector.multi_reduction <maximumf>, %51, %cst_26 [1] : vector<5x5xf32> to vector<5xf32>
    %53 = vector.shape_cast %52 : vector<5xf32> to vector<5x1xf32>
    %54 = vector.broadcast %53 : vector<5x1xf32> to vector<5x5xf32>
    %55 = arith.subf %51, %54 : vector<5x5xf32>
    %56 = math.exp %55 : vector<5x5xf32>
    %cst_27 = arith.constant dense<0.000000e+00> : vector<5xf32>
    %57 = vector.multi_reduction <add>, %56, %cst_27 [1] : vector<5x5xf32> to vector<5xf32>
    %58 = vector.shape_cast %57 : vector<5xf32> to vector<5x1xf32>
    %59 = tpu.reciprocal %58 {approx = true} : vector<5x1xf32> -> vector<5x1xf32>
    %60 = vector.broadcast %59 : vector<5x1xf32> to vector<5x5xf32>
    %61 = arith.mulf %56, %60 : vector<5x5xf32>
    %62 = arith.truncf %61 : vector<5x5xf32> to vector<5x5xbf16>
    %63 = arith.truncf %46 : vector<5x8xf32> to vector<5x8xbf16>
    %cst_28 = arith.constant dense<0.000000e+00> : vector<5x8xf32>
    %64 = tpu.matmul %62, %63, %cst_28 {dimension_numbers = #tpu.dot_dimension_numbers<[1], [0], [0], [1], [0, 0, 1, 1], [], []>} : vector<5x5xbf16>, vector<5x8xbf16>, vector<5x8xf32> -> vector<5x8xf32>
    %65 = vector.extract_strided_slice %41 {offsets = [0, 8], sizes = [5, 8], strides = [1, 1]} : vector<5x32xf32> to vector<5x8xf32>
    %66 = vector.extract_strided_slice %42 {offsets = [0, 8], sizes = [5, 8], strides = [1, 1]} : vector<5x32xf32> to vector<5x8xf32>
    %67 = vector.extract_strided_slice %43 {offsets = [0, 8], sizes = [5, 8], strides = [1, 1]} : vector<5x32xf32> to vector<5x8xf32>
    %68 = arith.truncf %65 : vector<5x8xf32> to vector<5x8xbf16>
    %69 = arith.truncf %66 : vector<5x8xf32> to vector<5x8xbf16>
    %cst_29 = arith.constant dense<0.000000e+00> : vector<5x5xf32>
    %70 = tpu.matmul %68, %69, %cst_29 {dimension_numbers = #tpu.dot_dimension_numbers<[1], [1], [0], [0], [0, 0, 1, 0], [], []>} : vector<5x8xbf16>, vector<5x8xbf16>, vector<5x5xf32> -> vector<5x5xf32>
    %cst_30 = arith.constant 0.353553385 : f32
    %71 = vector.broadcast %cst_30 : f32 to vector<5x5xf32>
    %72 = arith.mulf %70, %71 : vector<5x5xf32>
    %cst_31 = arith.constant dense<0xFF800000> : vector<5xf32>
    %73 = vector.multi_reduction <maximumf>, %72, %cst_31 [1] : vector<5x5xf32> to vector<5xf32>
    %74 = vector.shape_cast %73 : vector<5xf32> to vector<5x1xf32>
    %75 = vector.broadcast %74 : vector<5x1xf32> to vector<5x5xf32>
    %76 = arith.subf %72, %75 : vector<5x5xf32>
    %77 = math.exp %76 : vector<5x5xf32>
    %cst_32 = arith.constant dense<0.000000e+00> : vector<5xf32>
    %78 = vector.multi_reduction <add>, %77, %cst_32 [1] : vector<5x5xf32> to vector<5xf32>
    %79 = vector.shape_cast %78 : vector<5xf32> to vector<5x1xf32>
    %80 = tpu.reciprocal %79 {approx = true} : vector<5x1xf32> -> vector<5x1xf32>
    %81 = vector.broadcast %80 : vector<5x1xf32> to vector<5x5xf32>
    %82 = arith.mulf %77, %81 : vector<5x5xf32>
    %83 = arith.truncf %82 : vector<5x5xf32> to vector<5x5xbf16>
    %84 = arith.truncf %67 : vector<5x8xf32> to vector<5x8xbf16>
    %cst_33 = arith.constant dense<0.000000e+00> : vector<5x8xf32>
    %85 = tpu.matmul %83, %84, %cst_33 {dimension_numbers = #tpu.dot_dimension_numbers<[1], [0], [0], [1], [0, 0, 1, 1], [], []>} : vector<5x5xbf16>, vector<5x8xbf16>, vector<5x8xf32> -> vector<5x8xf32>
    %86 = vector.extract_strided_slice %41 {offsets = [0, 16], sizes = [5, 8], strides = [1, 1]} : vector<5x32xf32> to vector<5x8xf32>
    %87 = vector.extract_strided_slice %42 {offsets = [0, 16], sizes = [5, 8], strides = [1, 1]} : vector<5x32xf32> to vector<5x8xf32>
    %88 = vector.extract_strided_slice %43 {offsets = [0, 16], sizes = [5, 8], strides = [1, 1]} : vector<5x32xf32> to vector<5x8xf32>
    %89 = arith.truncf %86 : vector<5x8xf32> to vector<5x8xbf16>
    %90 = arith.truncf %87 : vector<5x8xf32> to vector<5x8xbf16>
    %cst_34 = arith.constant dense<0.000000e+00> : vector<5x5xf32>
    %91 = tpu.matmul %89, %90, %cst_34 {dimension_numbers = #tpu.dot_dimension_numbers<[1], [1], [0], [0], [0, 0, 1, 0], [], []>} : vector<5x8xbf16>, vector<5x8xbf16>, vector<5x5xf32> -> vector<5x5xf32>
    %cst_35 = arith.constant 0.353553385 : f32
    %92 = vector.broadcast %cst_35 : f32 to vector<5x5xf32>
    %93 = arith.mulf %91, %92 : vector<5x5xf32>
    %cst_36 = arith.constant dense<0xFF800000> : vector<5xf32>
    %94 = vector.multi_reduction <maximumf>, %93, %cst_36 [1] : vector<5x5xf32> to vector<5xf32>
    %95 = vector.shape_cast %94 : vector<5xf32> to vector<5x1xf32>
    %96 = vector.broadcast %95 : vector<5x1xf32> to vector<5x5xf32>
    %97 = arith.subf %93, %96 : vector<5x5xf32>
    %98 = math.exp %97 : vector<5x5xf32>
    %cst_37 = arith.constant dense<0.000000e+00> : vector<5xf32>
    %99 = vector.multi_reduction <add>, %98, %cst_37 [1] : vector<5x5xf32> to vector<5xf32>
    %100 = vector.shape_cast %99 : vector<5xf32> to vector<5x1xf32>
    %101 = tpu.reciprocal %100 {approx = true} : vector<5x1xf32> -> vector<5x1xf32>
    %102 = vector.broadcast %101 : vector<5x1xf32> to vector<5x5xf32>
    %103 = arith.mulf %98, %102 : vector<5x5xf32>
    %104 = arith.truncf %103 : vector<5x5xf32> to vector<5x5xbf16>
    %105 = arith.truncf %88 : vector<5x8xf32> to vector<5x8xbf16>
    %cst_38 = arith.constant dense<0.000000e+00> : vector<5x8xf32>
    %106 = tpu.matmul %104, %105, %cst_38 {dimension_numbers = #tpu.dot_dimension_numbers<[1], [0], [0], [1], [0, 0, 1, 1], [], []>} : vector<5x5xbf16>, vector<5x8xbf16>, vector<5x8xf32> -> vector<5x8xf32>
    %107 = vector.extract_strided_slice %41 {offsets = [0, 24], sizes = [5, 8], strides = [1, 1]} : vector<5x32xf32> to vector<5x8xf32>
    %108 = vector.extract_strided_slice %42 {offsets = [0, 24], sizes = [5, 8], strides = [1, 1]} : vector<5x32xf32> to vector<5x8xf32>
    %109 = vector.extract_strided_slice %43 {offsets = [0, 24], sizes = [5, 8], strides = [1, 1]} : vector<5x32xf32> to vector<5x8xf32>
    %110 = arith.truncf %107 : vector<5x8xf32> to vector<5x8xbf16>
    %111 = arith.truncf %108 : vector<5x8xf32> to vector<5x8xbf16>
    %cst_39 = arith.constant dense<0.000000e+00> : vector<5x5xf32>
    %112 = tpu.matmul %110, %111, %cst_39 {dimension_numbers = #tpu.dot_dimension_numbers<[1], [1], [0], [0], [0, 0, 1, 0], [], []>} : vector<5x8xbf16>, vector<5x8xbf16>, vector<5x5xf32> -> vector<5x5xf32>
    %cst_40 = arith.constant 0.353553385 : f32
    %113 = vector.broadcast %cst_40 : f32 to vector<5x5xf32>
    %114 = arith.mulf %112, %113 : vector<5x5xf32>
    %cst_41 = arith.constant dense<0xFF800000> : vector<5xf32>
    %115 = vector.multi_reduction <maximumf>, %114, %cst_41 [1] : vector<5x5xf32> to vector<5xf32>
    %116 = vector.shape_cast %115 : vector<5xf32> to vector<5x1xf32>
    %117 = vector.broadcast %116 : vector<5x1xf32> to vector<5x5xf32>
    %118 = arith.subf %114, %117 : vector<5x5xf32>
    %119 = math.exp %118 : vector<5x5xf32>
    %cst_42 = arith.constant dense<0.000000e+00> : vector<5xf32>
    %120 = vector.multi_reduction <add>, %119, %cst_42 [1] : vector<5x5xf32> to vector<5xf32>
    %121 = vector.shape_cast %120 : vector<5xf32> to vector<5x1xf32>
    %122 = tpu.reciprocal %121 {approx = true} : vector<5x1xf32> -> vector<5x1xf32>
    %123 = vector.broadcast %122 : vector<5x1xf32> to vector<5x5xf32>
    %124 = arith.mulf %119, %123 : vector<5x5xf32>
    %125 = arith.truncf %124 : vector<5x5xf32> to vector<5x5xbf16>
    %126 = arith.truncf %109 : vector<5x8xf32> to vector<5x8xbf16>
    %cst_43 = arith.constant dense<0.000000e+00> : vector<5x8xf32>
    %127 = tpu.matmul %125, %126, %cst_43 {dimension_numbers = #tpu.dot_dimension_numbers<[1], [0], [0], [1], [0, 0, 1, 1], [], []>} : vector<5x5xbf16>, vector<5x8xbf16>, vector<5x8xf32> -> vector<5x8xf32>
    %128 = tpu.concatenate %64, %85, %106, %127 in 1 : vector<5x8xf32>, vector<5x8xf32>, vector<5x8xf32>, vector<5x8xf32> -> vector<5x32xf32>
    %129 = arith.truncf %128 : vector<5x32xf32> to vector<5x32xbf16>
    %c0_44 = arith.constant 0 : index
    %c0_45 = arith.constant 0 : index
    %130 = vector.load %arg14[%c0_44, %c0_45] : memref<32x32xbf16, #tpu.memory_space<vmem>>, vector<32x32xbf16>
    %cst_46 = arith.constant dense<0.000000e+00> : vector<5x32xf32>
    %131 = tpu.matmul %129, %130, %cst_46 {dimension_numbers = #tpu.dot_dimension_numbers<[1], [0], [0], [1], [0, 0, 1, 1], [], []>} : vector<5x32xbf16>, vector<32x32xbf16>, vector<5x32xf32> -> vector<5x32xf32>
    %c0_47 = arith.constant 0 : index
    %c0_48 = arith.constant 0 : index
    %132 = vector.load %arg4[%c0_47, %c0_48] : memref<1x32xf32, #tpu.memory_space<vmem>>, vector<1x32xf32>
    %133 = vector.broadcast %132 : vector<1x32xf32> to vector<5x32xf32>
    %134 = arith.addf %131, %133 : vector<5x32xf32>
    %c0_49 = arith.constant 0 : index
    %c0_50 = arith.constant 0 : index
    %135 = vector.load %arg10[%c0_49, %c0_50] : memref<1x32xf32, #tpu.memory_space<vmem>>, vector<1x32xf32>
    %136 = vector.broadcast %135 : vector<1x32xf32> to vector<5x32xf32>
    %137 = arith.mulf %134, %136 : vector<5x32xf32>
    %138 = arith.addf %10, %137 : vector<5x32xf32>
    %cst_51 = arith.constant dense<0.000000e+00> : vector<5xf32>
    %139 = vector.multi_reduction <add>, %138, %cst_51 [1] : vector<5x32xf32> to vector<5xf32>
    %140 = vector.shape_cast %139 : vector<5xf32> to vector<5x1xf32>
    %cst_52 = arith.constant 3.200000e+01 : f32
    %141 = vector.broadcast %cst_52 : f32 to vector<5x1xf32>
    %142 = arith.divf %140, %141 : vector<5x1xf32>
    %143 = vector.broadcast %142 : vector<5x1xf32> to vector<5x32xf32>
    %144 = arith.subf %138, %143 : vector<5x32xf32>
    %145 = arith.mulf %144, %144 : vector<5x32xf32>
    %cst_53 = arith.constant dense<0.000000e+00> : vector<5xf32>
    %146 = vector.multi_reduction <add>, %145, %cst_53 [1] : vector<5x32xf32> to vector<5xf32>
    %147 = vector.shape_cast %146 : vector<5xf32> to vector<5x1xf32>
    %cst_54 = arith.constant 3.200000e+01 : f32
    %148 = vector.broadcast %cst_54 : f32 to vector<5x1xf32>
    %149 = arith.divf %147, %148 : vector<5x1xf32>
    %150 = vector.broadcast %142 : vector<5x1xf32> to vector<5x32xf32>
    %151 = arith.subf %138, %150 : vector<5x32xf32>
    %cst_55 = arith.constant 9.99999997E-7 : f32
    %152 = vector.broadcast %cst_55 : f32 to vector<5x1xf32>
    %153 = arith.addf %149, %152 : vector<5x1xf32>
    %154 = math.rsqrt %153 : vector<5x1xf32>
    %155 = vector.broadcast %154 : vector<5x1xf32> to vector<5x32xf32>
    %156 = arith.mulf %151, %155 : vector<5x32xf32>
    %c0_56 = arith.constant 0 : index
    %c0_57 = arith.constant 0 : index
    %157 = vector.load %arg9[%c0_56, %c0_57] : memref<1x32xf32, #tpu.memory_space<vmem>>, vector<1x32xf32>
    %158 = vector.broadcast %157 : vector<1x32xf32> to vector<5x32xf32>
    %159 = arith.mulf %156, %158 : vector<5x32xf32>
    %c0_58 = arith.constant 0 : index
    %c0_59 = arith.constant 0 : index
    %160 = vector.load %arg8[%c0_58, %c0_59] : memref<1x32xf32, #tpu.memory_space<vmem>>, vector<1x32xf32>
    %161 = vector.broadcast %160 : vector<1x32xf32> to vector<5x32xf32>
    %162 = arith.addf %159, %161 : vector<5x32xf32>
    %163 = arith.truncf %162 : vector<5x32xf32> to vector<5x32xbf16>
    %c0_60 = arith.constant 0 : index
    %c0_61 = arith.constant 0 : index
    %164 = vector.load %arg12[%c0_60, %c0_61] : memref<32x128xbf16, #tpu.memory_space<vmem>>, vector<32x128xbf16>
    %cst_62 = arith.constant dense<0.000000e+00> : vector<5x128xf32>
    %165 = tpu.matmul %163, %164, %cst_62 {dimension_numbers = #tpu.dot_dimension_numbers<[1], [0], [0], [1], [0, 0, 1, 1], [], []>} : vector<5x32xbf16>, vector<32x128xbf16>, vector<5x128xf32> -> vector<5x128xf32>
    %c0_63 = arith.constant 0 : index
    %c0_64 = arith.constant 0 : index
    %166 = vector.load %arg2[%c0_63, %c0_64] : memref<1x128xf32, #tpu.memory_space<vmem>>, vector<1x128xf32>
    %167 = vector.broadcast %166 : vector<1x128xf32> to vector<5x128xf32>
    %168 = arith.addf %165, %167 : vector<5x128xf32>
    %169 = arith.mulf %168, %168 : vector<5x128xf32>
    %170 = arith.mulf %168, %169 : vector<5x128xf32>
    %cst_65 = arith.constant 4.471500e-02 : f32
    %171 = vector.broadcast %cst_65 : f32 to vector<5x128xf32>
    %172 = arith.mulf %171, %170 : vector<5x128xf32>
    %173 = arith.addf %168, %172 : vector<5x128xf32>
    %cst_66 = arith.constant 0.797884583 : f32
    %174 = vector.broadcast %cst_66 : f32 to vector<5x128xf32>
    %175 = arith.mulf %174, %173 : vector<5x128xf32>
    %176 = math.tanh %175 : vector<5x128xf32>
    %cst_67 = arith.constant 1.000000e+00 : f32
    %177 = vector.broadcast %cst_67 : f32 to vector<5x128xf32>
    %178 = arith.addf %177, %176 : vector<5x128xf32>
    %cst_68 = arith.constant 5.000000e-01 : f32
    %179 = vector.broadcast %cst_68 : f32 to vector<5x128xf32>
    %180 = arith.mulf %179, %178 : vector<5x128xf32>
    %181 = arith.mulf %168, %180 : vector<5x128xf32>
    %182 = arith.truncf %181 : vector<5x128xf32> to vector<5x128xbf16>
    %c0_69 = arith.constant 0 : index
    %c0_70 = arith.constant 0 : index
    %183 = vector.load %arg13[%c0_69, %c0_70] : memref<128x32xbf16, #tpu.memory_space<vmem>>, vector<128x32xbf16>
    %cst_71 = arith.constant dense<0.000000e+00> : vector<5x32xf32>
    %184 = tpu.matmul %182, %183, %cst_71 {dimension_numbers = #tpu.dot_dimension_numbers<[1], [0], [0], [1], [0, 0, 1, 1], [], []>} : vector<5x128xbf16>, vector<128x32xbf16>, vector<5x32xf32> -> vector<5x32xf32>
    %c0_72 = arith.constant 0 : index
    %c0_73 = arith.constant 0 : index
    %185 = vector.load %arg3[%c0_72, %c0_73] : memref<1x32xf32, #tpu.memory_space<vmem>>, vector<1x32xf32>
    %186 = vector.broadcast %185 : vector<1x32xf32> to vector<5x32xf32>
    %187 = arith.addf %184, %186 : vector<5x32xf32>
    %c0_74 = arith.constant 0 : index
    %c0_75 = arith.constant 0 : index
    %188 = vector.load %arg11[%c0_74, %c0_75] : memref<1x32xf32, #tpu.memory_space<vmem>>, vector<1x32xf32>
    %189 = vector.broadcast %188 : vector<1x32xf32> to vector<5x32xf32>
    %190 = arith.mulf %187, %189 : vector<5x32xf32>
    %191 = arith.addf %138, %190 : vector<5x32xf32>
    %cst_76 = arith.constant dense<0.000000e+00> : vector<5xf32>
    %192 = vector.multi_reduction <add>, %191, %cst_76 [1] : vector<5x32xf32> to vector<5xf32>
    %193 = vector.shape_cast %192 : vector<5xf32> to vector<5x1xf32>
    %cst_77 = arith.constant 3.200000e+01 : f32
    %194 = vector.broadcast %cst_77 : f32 to vector<5x1xf32>
    %195 = arith.divf %193, %194 : vector<5x1xf32>
    %196 = vector.broadcast %195 : vector<5x1xf32> to vector<5x32xf32>
    %197 = arith.subf %191, %196 : vector<5x32xf32>
    %198 = arith.mulf %197, %197 : vector<5x32xf32>
    %cst_78 = arith.constant dense<0.000000e+00> : vector<5xf32>
    %199 = vector.multi_reduction <add>, %198, %cst_78 [1] : vector<5x32xf32> to vector<5xf32>
    %200 = vector.shape_cast %199 : vector<5xf32> to vector<5x1xf32>
    %cst_79 = arith.constant 3.200000e+01 : f32
    %201 = vector.broadcast %cst_79 : f32 to vector<5x1xf32>
    %202 = arith.divf %200, %201 : vector<5x1xf32>
    %203 = vector.broadcast %195 : vector<5x1xf32> to vector<5x32xf32>
    %204 = arith.subf %191, %203 : vector<5x32xf32>
    %cst_80 = arith.constant 9.99999997E-7 : f32
    %205 = vector.broadcast %cst_80 : f32 to vector<5x1xf32>
    %206 = arith.addf %202, %205 : vector<5x1xf32>
    %207 = math.rsqrt %206 : vector<5x1xf32>
    %208 = vector.broadcast %207 : vector<5x1xf32> to vector<5x32xf32>
    %209 = arith.mulf %204, %208 : vector<5x32xf32>
    %c0_81 = arith.constant 0 : index
    %c0_82 = arith.constant 0 : index
    %210 = vector.load %arg21[%c0_81, %c0_82] : memref<1x32xf32, #tpu.memory_space<vmem>>, vector<1x32xf32>
    %211 = vector.broadcast %210 : vector<1x32xf32> to vector<5x32xf32>
    %212 = arith.mulf %209, %211 : vector<5x32xf32>
    %c0_83 = arith.constant 0 : index
    %c0_84 = arith.constant 0 : index
    %213 = vector.load %arg20[%c0_83, %c0_84] : memref<1x32xf32, #tpu.memory_space<vmem>>, vector<1x32xf32>
    %214 = vector.broadcast %213 : vector<1x32xf32> to vector<5x32xf32>
    %215 = arith.addf %212, %214 : vector<5x32xf32>
    %216 = arith.truncf %215 : vector<5x32xf32> to vector<5x32xbf16>
    %c0_85 = arith.constant 0 : index
    %c0_86 = arith.constant 0 : index
    %217 = vector.load %arg29[%c0_85, %c0_86] : memref<32x96xbf16, #tpu.memory_space<vmem>>, vector<32x96xbf16>
    %cst_87 = arith.constant dense<0.000000e+00> : vector<5x96xf32>
    %218 = tpu.matmul %216, %217, %cst_87 {dimension_numbers = #tpu.dot_dimension_numbers<[1], [0], [0], [1], [0, 0, 1, 1], [], []>} : vector<5x32xbf16>, vector<32x96xbf16>, vector<5x96xf32> -> vector<5x96xf32>
    %c0_88 = arith.constant 0 : index
    %c0_89 = arith.constant 0 : index
    %219 = vector.load %arg19[%c0_88, %c0_89] : memref<1x96xf32, #tpu.memory_space<vmem>>, vector<1x96xf32>
    %220 = vector.broadcast %219 : vector<1x96xf32> to vector<5x96xf32>
    %221 = arith.addf %218, %220 : vector<5x96xf32>
    %222 = vector.extract_strided_slice %221 {offsets = [0, 0], sizes = [5, 32], strides = [1, 1]} : vector<5x96xf32> to vector<5x32xf32>
    %223 = vector.extract_strided_slice %221 {offsets = [0, 32], sizes = [5, 32], strides = [1, 1]} : vector<5x96xf32> to vector<5x32xf32>
    %224 = vector.extract_strided_slice %221 {offsets = [0, 64], sizes = [5, 32], strides = [1, 1]} : vector<5x96xf32> to vector<5x32xf32>
    %225 = vector.extract_strided_slice %222 {offsets = [0, 0], sizes = [5, 8], strides = [1, 1]} : vector<5x32xf32> to vector<5x8xf32>
    %226 = vector.extract_strided_slice %223 {offsets = [0, 0], sizes = [5, 8], strides = [1, 1]} : vector<5x32xf32> to vector<5x8xf32>
    %227 = vector.extract_strided_slice %224 {offsets = [0, 0], sizes = [5, 8], strides = [1, 1]} : vector<5x32xf32> to vector<5x8xf32>
    %228 = arith.truncf %225 : vector<5x8xf32> to vector<5x8xbf16>
    %229 = arith.truncf %226 : vector<5x8xf32> to vector<5x8xbf16>
    %cst_90 = arith.constant dense<0.000000e+00> : vector<5x5xf32>
    %230 = tpu.matmul %228, %229, %cst_90 {dimension_numbers = #tpu.dot_dimension_numbers<[1], [1], [0], [0], [0, 0, 1, 0], [], []>} : vector<5x8xbf16>, vector<5x8xbf16>, vector<5x5xf32> -> vector<5x5xf32>
    %cst_91 = arith.constant 0.353553385 : f32
    %231 = vector.broadcast %cst_91 : f32 to vector<5x5xf32>
    %232 = arith.mulf %230, %231 : vector<5x5xf32>
    %cst_92 = arith.constant dense<0xFF800000> : vector<5xf32>
    %233 = vector.multi_reduction <maximumf>, %232, %cst_92 [1] : vector<5x5xf32> to vector<5xf32>
    %234 = vector.shape_cast %233 : vector<5xf32> to vector<5x1xf32>
    %235 = vector.broadcast %234 : vector<5x1xf32> to vector<5x5xf32>
    %236 = arith.subf %232, %235 : vector<5x5xf32>
    %237 = math.exp %236 : vector<5x5xf32>
    %cst_93 = arith.constant dense<0.000000e+00> : vector<5xf32>
    %238 = vector.multi_reduction <add>, %237, %cst_93 [1] : vector<5x5xf32> to vector<5xf32>
    %239 = vector.shape_cast %238 : vector<5xf32> to vector<5x1xf32>
    %240 = tpu.reciprocal %239 {approx = true} : vector<5x1xf32> -> vector<5x1xf32>
    %241 = vector.broadcast %240 : vector<5x1xf32> to vector<5x5xf32>
    %242 = arith.mulf %237, %241 : vector<5x5xf32>
    %243 = arith.truncf %242 : vector<5x5xf32> to vector<5x5xbf16>
    %244 = arith.truncf %227 : vector<5x8xf32> to vector<5x8xbf16>
    %cst_94 = arith.constant dense<0.000000e+00> : vector<5x8xf32>
    %245 = tpu.matmul %243, %244, %cst_94 {dimension_numbers = #tpu.dot_dimension_numbers<[1], [0], [0], [1], [0, 0, 1, 1], [], []>} : vector<5x5xbf16>, vector<5x8xbf16>, vector<5x8xf32> -> vector<5x8xf32>
    %246 = vector.extract_strided_slice %222 {offsets = [0, 8], sizes = [5, 8], strides = [1, 1]} : vector<5x32xf32> to vector<5x8xf32>
    %247 = vector.extract_strided_slice %223 {offsets = [0, 8], sizes = [5, 8], strides = [1, 1]} : vector<5x32xf32> to vector<5x8xf32>
    %248 = vector.extract_strided_slice %224 {offsets = [0, 8], sizes = [5, 8], strides = [1, 1]} : vector<5x32xf32> to vector<5x8xf32>
    %249 = arith.truncf %246 : vector<5x8xf32> to vector<5x8xbf16>
    %250 = arith.truncf %247 : vector<5x8xf32> to vector<5x8xbf16>
    %cst_95 = arith.constant dense<0.000000e+00> : vector<5x5xf32>
    %251 = tpu.matmul %249, %250, %cst_95 {dimension_numbers = #tpu.dot_dimension_numbers<[1], [1], [0], [0], [0, 0, 1, 0], [], []>} : vector<5x8xbf16>, vector<5x8xbf16>, vector<5x5xf32> -> vector<5x5xf32>
    %cst_96 = arith.constant 0.353553385 : f32
    %252 = vector.broadcast %cst_96 : f32 to vector<5x5xf32>
    %253 = arith.mulf %251, %252 : vector<5x5xf32>
    %cst_97 = arith.constant dense<0xFF800000> : vector<5xf32>
    %254 = vector.multi_reduction <maximumf>, %253, %cst_97 [1] : vector<5x5xf32> to vector<5xf32>
    %255 = vector.shape_cast %254 : vector<5xf32> to vector<5x1xf32>
    %256 = vector.broadcast %255 : vector<5x1xf32> to vector<5x5xf32>
    %257 = arith.subf %253, %256 : vector<5x5xf32>
    %258 = math.exp %257 : vector<5x5xf32>
    %cst_98 = arith.constant dense<0.000000e+00> : vector<5xf32>
    %259 = vector.multi_reduction <add>, %258, %cst_98 [1] : vector<5x5xf32> to vector<5xf32>
    %260 = vector.shape_cast %259 : vector<5xf32> to vector<5x1xf32>
    %261 = tpu.reciprocal %260 {approx = true} : vector<5x1xf32> -> vector<5x1xf32>
    %262 = vector.broadcast %261 : vector<5x1xf32> to vector<5x5xf32>
    %263 = arith.mulf %258, %262 : vector<5x5xf32>
    %264 = arith.truncf %263 : vector<5x5xf32> to vector<5x5xbf16>
    %265 = arith.truncf %248 : vector<5x8xf32> to vector<5x8xbf16>
    %cst_99 = arith.constant dense<0.000000e+00> : vector<5x8xf32>
    %266 = tpu.matmul %264, %265, %cst_99 {dimension_numbers = #tpu.dot_dimension_numbers<[1], [0], [0], [1], [0, 0, 1, 1], [], []>} : vector<5x5xbf16>, vector<5x8xbf16>, vector<5x8xf32> -> vector<5x8xf32>
    %267 = vector.extract_strided_slice %222 {offsets = [0, 16], sizes = [5, 8], strides = [1, 1]} : vector<5x32xf32> to vector<5x8xf32>
    %268 = vector.extract_strided_slice %223 {offsets = [0, 16], sizes = [5, 8], strides = [1, 1]} : vector<5x32xf32> to vector<5x8xf32>
    %269 = vector.extract_strided_slice %224 {offsets = [0, 16], sizes = [5, 8], strides = [1, 1]} : vector<5x32xf32> to vector<5x8xf32>
    %270 = arith.truncf %267 : vector<5x8xf32> to vector<5x8xbf16>
    %271 = arith.truncf %268 : vector<5x8xf32> to vector<5x8xbf16>
    %cst_100 = arith.constant dense<0.000000e+00> : vector<5x5xf32>
    %272 = tpu.matmul %270, %271, %cst_100 {dimension_numbers = #tpu.dot_dimension_numbers<[1], [1], [0], [0], [0, 0, 1, 0], [], []>} : vector<5x8xbf16>, vector<5x8xbf16>, vector<5x5xf32> -> vector<5x5xf32>
    %cst_101 = arith.constant 0.353553385 : f32
    %273 = vector.broadcast %cst_101 : f32 to vector<5x5xf32>
    %274 = arith.mulf %272, %273 : vector<5x5xf32>
    %cst_102 = arith.constant dense<0xFF800000> : vector<5xf32>
    %275 = vector.multi_reduction <maximumf>, %274, %cst_102 [1] : vector<5x5xf32> to vector<5xf32>
    %276 = vector.shape_cast %275 : vector<5xf32> to vector<5x1xf32>
    %277 = vector.broadcast %276 : vector<5x1xf32> to vector<5x5xf32>
    %278 = arith.subf %274, %277 : vector<5x5xf32>
    %279 = math.exp %278 : vector<5x5xf32>
    %cst_103 = arith.constant dense<0.000000e+00> : vector<5xf32>
    %280 = vector.multi_reduction <add>, %279, %cst_103 [1] : vector<5x5xf32> to vector<5xf32>
    %281 = vector.shape_cast %280 : vector<5xf32> to vector<5x1xf32>
    %282 = tpu.reciprocal %281 {approx = true} : vector<5x1xf32> -> vector<5x1xf32>
    %283 = vector.broadcast %282 : vector<5x1xf32> to vector<5x5xf32>
    %284 = arith.mulf %279, %283 : vector<5x5xf32>
    %285 = arith.truncf %284 : vector<5x5xf32> to vector<5x5xbf16>
    %286 = arith.truncf %269 : vector<5x8xf32> to vector<5x8xbf16>
    %cst_104 = arith.constant dense<0.000000e+00> : vector<5x8xf32>
    %287 = tpu.matmul %285, %286, %cst_104 {dimension_numbers = #tpu.dot_dimension_numbers<[1], [0], [0], [1], [0, 0, 1, 1], [], []>} : vector<5x5xbf16>, vector<5x8xbf16>, vector<5x8xf32> -> vector<5x8xf32>
    %288 = vector.extract_strided_slice %222 {offsets = [0, 24], sizes = [5, 8], strides = [1, 1]} : vector<5x32xf32> to vector<5x8xf32>
    %289 = vector.extract_strided_slice %223 {offsets = [0, 24], sizes = [5, 8], strides = [1, 1]} : vector<5x32xf32> to vector<5x8xf32>
    %290 = vector.extract_strided_slice %224 {offsets = [0, 24], sizes = [5, 8], strides = [1, 1]} : vector<5x32xf32> to vector<5x8xf32>
    %291 = arith.truncf %288 : vector<5x8xf32> to vector<5x8xbf16>
    %292 = arith.truncf %289 : vector<5x8xf32> to vector<5x8xbf16>
    %cst_105 = arith.constant dense<0.000000e+00> : vector<5x5xf32>
    %293 = tpu.matmul %291, %292, %cst_105 {dimension_numbers = #tpu.dot_dimension_numbers<[1], [1], [0], [0], [0, 0, 1, 0], [], []>} : vector<5x8xbf16>, vector<5x8xbf16>, vector<5x5xf32> -> vector<5x5xf32>
    %cst_106 = arith.constant 0.353553385 : f32
    %294 = vector.broadcast %cst_106 : f32 to vector<5x5xf32>
    %295 = arith.mulf %293, %294 : vector<5x5xf32>
    %cst_107 = arith.constant dense<0xFF800000> : vector<5xf32>
    %296 = vector.multi_reduction <maximumf>, %295, %cst_107 [1] : vector<5x5xf32> to vector<5xf32>
    %297 = vector.shape_cast %296 : vector<5xf32> to vector<5x1xf32>
    %298 = vector.broadcast %297 : vector<5x1xf32> to vector<5x5xf32>
    %299 = arith.subf %295, %298 : vector<5x5xf32>
    %300 = math.exp %299 : vector<5x5xf32>
    %cst_108 = arith.constant dense<0.000000e+00> : vector<5xf32>
    %301 = vector.multi_reduction <add>, %300, %cst_108 [1] : vector<5x5xf32> to vector<5xf32>
    %302 = vector.shape_cast %301 : vector<5xf32> to vector<5x1xf32>
    %303 = tpu.reciprocal %302 {approx = true} : vector<5x1xf32> -> vector<5x1xf32>
    %304 = vector.broadcast %303 : vector<5x1xf32> to vector<5x5xf32>
    %305 = arith.mulf %300, %304 : vector<5x5xf32>
    %306 = arith.truncf %305 : vector<5x5xf32> to vector<5x5xbf16>
    %307 = arith.truncf %290 : vector<5x8xf32> to vector<5x8xbf16>
    %cst_109 = arith.constant dense<0.000000e+00> : vector<5x8xf32>
    %308 = tpu.matmul %306, %307, %cst_109 {dimension_numbers = #tpu.dot_dimension_numbers<[1], [0], [0], [1], [0, 0, 1, 1], [], []>} : vector<5x5xbf16>, vector<5x8xbf16>, vector<5x8xf32> -> vector<5x8xf32>
    %309 = tpu.concatenate %245, %266, %287, %308 in 1 : vector<5x8xf32>, vector<5x8xf32>, vector<5x8xf32>, vector<5x8xf32> -> vector<5x32xf32>
    %310 = arith.truncf %309 : vector<5x32xf32> to vector<5x32xbf16>
    %c0_110 = arith.constant 0 : index
    %c0_111 = arith.constant 0 : index
    %311 = vector.load %arg28[%c0_110, %c0_111] : memref<32x32xbf16, #tpu.memory_space<vmem>>, vector<32x32xbf16>
    %cst_112 = arith.constant dense<0.000000e+00> : vector<5x32xf32>
    %312 = tpu.matmul %310, %311, %cst_112 {dimension_numbers = #tpu.dot_dimension_numbers<[1], [0], [0], [1], [0, 0, 1, 1], [], []>} : vector<5x32xbf16>, vector<32x32xbf16>, vector<5x32xf32> -> vector<5x32xf32>
    %c0_113 = arith.constant 0 : index
    %c0_114 = arith.constant 0 : index
    %313 = vector.load %arg18[%c0_113, %c0_114] : memref<1x32xf32, #tpu.memory_space<vmem>>, vector<1x32xf32>
    %314 = vector.broadcast %313 : vector<1x32xf32> to vector<5x32xf32>
    %315 = arith.addf %312, %314 : vector<5x32xf32>
    %c0_115 = arith.constant 0 : index
    %c0_116 = arith.constant 0 : index
    %316 = vector.load %arg24[%c0_115, %c0_116] : memref<1x32xf32, #tpu.memory_space<vmem>>, vector<1x32xf32>
    %317 = vector.broadcast %316 : vector<1x32xf32> to vector<5x32xf32>
    %318 = arith.mulf %315, %317 : vector<5x32xf32>
    %319 = arith.addf %191, %318 : vector<5x32xf32>
    %cst_117 = arith.constant dense<0.000000e+00> : vector<5xf32>
    %320 = vector.multi_reduction <add>, %319, %cst_117 [1] : vector<5x32xf32> to vector<5xf32>
    %321 = vector.shape_cast %320 : vector<5xf32> to vector<5x1xf32>
    %cst_118 = arith.constant 3.200000e+01 : f32
    %322 = vector.broadcast %cst_118 : f32 to vector<5x1xf32>
    %323 = arith.divf %321, %322 : vector<5x1xf32>
    %324 = vector.broadcast %323 : vector<5x1xf32> to vector<5x32xf32>
    %325 = arith.subf %319, %324 : vector<5x32xf32>
    %326 = arith.mulf %325, %325 : vector<5x32xf32>
    %cst_119 = arith.constant dense<0.000000e+00> : vector<5xf32>
    %327 = vector.multi_reduction <add>, %326, %cst_119 [1] : vector<5x32xf32> to vector<5xf32>
    %328 = vector.shape_cast %327 : vector<5xf32> to vector<5x1xf32>
    %cst_120 = arith.constant 3.200000e+01 : f32
    %329 = vector.broadcast %cst_120 : f32 to vector<5x1xf32>
    %330 = arith.divf %328, %329 : vector<5x1xf32>
    %331 = vector.broadcast %323 : vector<5x1xf32> to vector<5x32xf32>
    %332 = arith.subf %319, %331 : vector<5x32xf32>
    %cst_121 = arith.constant 9.99999997E-7 : f32
    %333 = vector.broadcast %cst_121 : f32 to vector<5x1xf32>
    %334 = arith.addf %330, %333 : vector<5x1xf32>
    %335 = math.rsqrt %334 : vector<5x1xf32>
    %336 = vector.broadcast %335 : vector<5x1xf32> to vector<5x32xf32>
    %337 = arith.mulf %332, %336 : vector<5x32xf32>
    %c0_122 = arith.constant 0 : index
    %c0_123 = arith.constant 0 : index
    %338 = vector.load %arg23[%c0_122, %c0_123] : memref<1x32xf32, #tpu.memory_space<vmem>>, vector<1x32xf32>
    %339 = vector.broadcast %338 : vector<1x32xf32> to vector<5x32xf32>
    %340 = arith.mulf %337, %339 : vector<5x32xf32>
    %c0_124 = arith.constant 0 : index
    %c0_125 = arith.constant 0 : index
    %341 = vector.load %arg22[%c0_124, %c0_125] : memref<1x32xf32, #tpu.memory_space<vmem>>, vector<1x32xf32>
    %342 = vector.broadcast %341 : vector<1x32xf32> to vector<5x32xf32>
    %343 = arith.addf %340, %342 : vector<5x32xf32>
    %344 = arith.truncf %343 : vector<5x32xf32> to vector<5x32xbf16>
    %c0_126 = arith.constant 0 : index
    %c0_127 = arith.constant 0 : index
    %345 = vector.load %arg26[%c0_126, %c0_127] : memref<32x128xbf16, #tpu.memory_space<vmem>>, vector<32x128xbf16>
    %cst_128 = arith.constant dense<0.000000e+00> : vector<5x128xf32>
    %346 = tpu.matmul %344, %345, %cst_128 {dimension_numbers = #tpu.dot_dimension_numbers<[1], [0], [0], [1], [0, 0, 1, 1], [], []>} : vector<5x32xbf16>, vector<32x128xbf16>, vector<5x128xf32> -> vector<5x128xf32>
    %c0_129 = arith.constant 0 : index
    %c0_130 = arith.constant 0 : index
    %347 = vector.load %arg16[%c0_129, %c0_130] : memref<1x128xf32, #tpu.memory_space<vmem>>, vector<1x128xf32>
    %348 = vector.broadcast %347 : vector<1x128xf32> to vector<5x128xf32>
    %349 = arith.addf %346, %348 : vector<5x128xf32>
    %350 = arith.mulf %349, %349 : vector<5x128xf32>
    %351 = arith.mulf %349, %350 : vector<5x128xf32>
    %cst_131 = arith.constant 4.471500e-02 : f32
    %352 = vector.broadcast %cst_131 : f32 to vector<5x128xf32>
    %353 = arith.mulf %352, %351 : vector<5x128xf32>
    %354 = arith.addf %349, %353 : vector<5x128xf32>
    %cst_132 = arith.constant 0.797884583 : f32
    %355 = vector.broadcast %cst_132 : f32 to vector<5x128xf32>
    %356 = arith.mulf %355, %354 : vector<5x128xf32>
    %357 = math.tanh %356 : vector<5x128xf32>
    %cst_133 = arith.constant 1.000000e+00 : f32
    %358 = vector.broadcast %cst_133 : f32 to vector<5x128xf32>
    %359 = arith.addf %358, %357 : vector<5x128xf32>
    %cst_134 = arith.constant 5.000000e-01 : f32
    %360 = vector.broadcast %cst_134 : f32 to vector<5x128xf32>
    %361 = arith.mulf %360, %359 : vector<5x128xf32>
    %362 = arith.mulf %349, %361 : vector<5x128xf32>
    %363 = arith.truncf %362 : vector<5x128xf32> to vector<5x128xbf16>
    %c0_135 = arith.constant 0 : index
    %c0_136 = arith.constant 0 : index
    %364 = vector.load %arg27[%c0_135, %c0_136] : memref<128x32xbf16, #tpu.memory_space<vmem>>, vector<128x32xbf16>
    %cst_137 = arith.constant dense<0.000000e+00> : vector<5x32xf32>
    %365 = tpu.matmul %363, %364, %cst_137 {dimension_numbers = #tpu.dot_dimension_numbers<[1], [0], [0], [1], [0, 0, 1, 1], [], []>} : vector<5x128xbf16>, vector<128x32xbf16>, vector<5x32xf32> -> vector<5x32xf32>
    %c0_138 = arith.constant 0 : index
    %c0_139 = arith.constant 0 : index
    %366 = vector.load %arg17[%c0_138, %c0_139] : memref<1x32xf32, #tpu.memory_space<vmem>>, vector<1x32xf32>
    %367 = vector.broadcast %366 : vector<1x32xf32> to vector<5x32xf32>
    %368 = arith.addf %365, %367 : vector<5x32xf32>
    %c0_140 = arith.constant 0 : index
    %c0_141 = arith.constant 0 : index
    %369 = vector.load %arg25[%c0_140, %c0_141] : memref<1x32xf32, #tpu.memory_space<vmem>>, vector<1x32xf32>
    %370 = vector.broadcast %369 : vector<1x32xf32> to vector<5x32xf32>
    %371 = arith.mulf %368, %370 : vector<5x32xf32>
    %372 = arith.addf %319, %371 : vector<5x32xf32>
    %373 = vector.extract_strided_slice %372 {offsets = [1, 0], sizes = [4, 32], strides = [1, 1]} : vector<5x32xf32> to vector<4x32xf32>
    %c0_142 = arith.constant 0 : index
    %c0_143 = arith.constant 0 : index
    %c0_144 = arith.constant 0 : index
    %374 = vector.load %arg1[%c0_142, %c0_143, %c0_144] : memref<1x4x192xbf16, #tpu.memory_space<vmem>>, vector<1x4x192xbf16>
    %375 = vector.shape_cast %374 : vector<1x4x192xbf16> to vector<4x192xbf16>
    %c0_145 = arith.constant 0 : index
    %c0_146 = arith.constant 0 : index
    %376 = vector.load %arg59[%c0_145, %c0_146] : memref<192x32xbf16, #tpu.memory_space<vmem>>, vector<192x32xbf16>
    %cst_147 = arith.constant dense<0.000000e+00> : vector<4x32xf32>
    %377 = tpu.matmul %375, %376, %cst_147 {dimension_numbers = #tpu.dot_dimension_numbers<[1], [0], [0], [1], [0, 0, 1, 1], [], []>} : vector<4x192xbf16>, vector<192x32xbf16>, vector<4x32xf32> -> vector<4x32xf32>
    %c0_148 = arith.constant 0 : index
    %c0_149 = arith.constant 0 : index
    %378 = vector.load %arg58[%c0_148, %c0_149] : memref<1x32xf32, #tpu.memory_space<vmem>>, vector<1x32xf32>
    %379 = vector.broadcast %378 : vector<1x32xf32> to vector<4x32xf32>
    %380 = arith.addf %377, %379 : vector<4x32xf32>
    %c0_150 = arith.constant 0 : index
    %c0_151 = arith.constant 0 : index
    %381 = vector.load %arg60[%c0_150, %c0_151] : memref<4x32xf32, #tpu.memory_space<vmem>>, vector<4x32xf32>
    %382 = arith.addf %380, %381 : vector<4x32xf32>
    %cst_152 = arith.constant dense<0.000000e+00> : vector<4xf32>
    %383 = vector.multi_reduction <add>, %382, %cst_152 [1] : vector<4x32xf32> to vector<4xf32>
    %384 = vector.shape_cast %383 : vector<4xf32> to vector<4x1xf32>
    %cst_153 = arith.constant 3.200000e+01 : f32
    %385 = vector.broadcast %cst_153 : f32 to vector<4x1xf32>
    %386 = arith.divf %384, %385 : vector<4x1xf32>
    %387 = vector.broadcast %386 : vector<4x1xf32> to vector<4x32xf32>
    %388 = arith.subf %382, %387 : vector<4x32xf32>
    %389 = arith.mulf %388, %388 : vector<4x32xf32>
    %cst_154 = arith.constant dense<0.000000e+00> : vector<4xf32>
    %390 = vector.multi_reduction <add>, %389, %cst_154 [1] : vector<4x32xf32> to vector<4xf32>
    %391 = vector.shape_cast %390 : vector<4xf32> to vector<4x1xf32>
    %cst_155 = arith.constant 3.200000e+01 : f32
    %392 = vector.broadcast %cst_155 : f32 to vector<4x1xf32>
    %393 = arith.divf %391, %392 : vector<4x1xf32>
    %394 = vector.broadcast %386 : vector<4x1xf32> to vector<4x32xf32>
    %395 = arith.subf %382, %394 : vector<4x32xf32>
    %cst_156 = arith.constant 9.99999997E-7 : f32
    %396 = vector.broadcast %cst_156 : f32 to vector<4x1xf32>
    %397 = arith.addf %393, %396 : vector<4x1xf32>
    %398 = math.rsqrt %397 : vector<4x1xf32>
    %399 = vector.broadcast %398 : vector<4x1xf32> to vector<4x32xf32>
    %400 = arith.mulf %395, %399 : vector<4x32xf32>
    %c0_157 = arith.constant 0 : index
    %c0_158 = arith.constant 0 : index
    %401 = vector.load %arg39[%c0_157, %c0_158] : memref<1x32xf32, #tpu.memory_space<vmem>>, vector<1x32xf32>
    %402 = vector.broadcast %401 : vector<1x32xf32> to vector<4x32xf32>
    %403 = arith.mulf %400, %402 : vector<4x32xf32>
    %c0_159 = arith.constant 0 : index
    %c0_160 = arith.constant 0 : index
    %404 = vector.load %arg38[%c0_159, %c0_160] : memref<1x32xf32, #tpu.memory_space<vmem>>, vector<1x32xf32>
    %405 = vector.broadcast %404 : vector<1x32xf32> to vector<4x32xf32>
    %406 = arith.addf %403, %405 : vector<4x32xf32>
    %407 = arith.truncf %406 : vector<4x32xf32> to vector<4x32xbf16>
    %c0_161 = arith.constant 0 : index
    %c0_162 = arith.constant 0 : index
    %408 = vector.load %arg45[%c0_161, %c0_162] : memref<32x96xbf16, #tpu.memory_space<vmem>>, vector<32x96xbf16>
    %cst_163 = arith.constant dense<0.000000e+00> : vector<4x96xf32>
    %409 = tpu.matmul %407, %408, %cst_163 {dimension_numbers = #tpu.dot_dimension_numbers<[1], [0], [0], [1], [0, 0, 1, 1], [], []>} : vector<4x32xbf16>, vector<32x96xbf16>, vector<4x96xf32> -> vector<4x96xf32>
    %c0_164 = arith.constant 0 : index
    %c0_165 = arith.constant 0 : index
    %410 = vector.load %arg37[%c0_164, %c0_165] : memref<1x96xf32, #tpu.memory_space<vmem>>, vector<1x96xf32>
    %411 = vector.broadcast %410 : vector<1x96xf32> to vector<4x96xf32>
    %412 = arith.addf %409, %411 : vector<4x96xf32>
    %413 = vector.extract_strided_slice %412 {offsets = [0, 0], sizes = [4, 32], strides = [1, 1]} : vector<4x96xf32> to vector<4x32xf32>
    %414 = vector.extract_strided_slice %412 {offsets = [0, 32], sizes = [4, 32], strides = [1, 1]} : vector<4x96xf32> to vector<4x32xf32>
    %415 = vector.extract_strided_slice %412 {offsets = [0, 64], sizes = [4, 32], strides = [1, 1]} : vector<4x96xf32> to vector<4x32xf32>
    %416 = vector.extract_strided_slice %413 {offsets = [0, 0], sizes = [4, 8], strides = [1, 1]} : vector<4x32xf32> to vector<4x8xf32>
    %417 = vector.extract_strided_slice %414 {offsets = [0, 0], sizes = [4, 8], strides = [1, 1]} : vector<4x32xf32> to vector<4x8xf32>
    %418 = vector.extract_strided_slice %415 {offsets = [0, 0], sizes = [4, 8], strides = [1, 1]} : vector<4x32xf32> to vector<4x8xf32>
    %419 = arith.truncf %416 : vector<4x8xf32> to vector<4x8xbf16>
    %420 = arith.truncf %417 : vector<4x8xf32> to vector<4x8xbf16>
    %cst_166 = arith.constant dense<0.000000e+00> : vector<4x4xf32>
    %421 = tpu.matmul %419, %420, %cst_166 {dimension_numbers = #tpu.dot_dimension_numbers<[1], [1], [0], [0], [0, 0, 1, 0], [], []>} : vector<4x8xbf16>, vector<4x8xbf16>, vector<4x4xf32> -> vector<4x4xf32>
    %cst_167 = arith.constant 0.353553385 : f32
    %422 = vector.broadcast %cst_167 : f32 to vector<4x4xf32>
    %423 = arith.mulf %421, %422 : vector<4x4xf32>
    %cst_168 = arith.constant dense<0xFF800000> : vector<4xf32>
    %424 = vector.multi_reduction <maximumf>, %423, %cst_168 [1] : vector<4x4xf32> to vector<4xf32>
    %425 = vector.shape_cast %424 : vector<4xf32> to vector<4x1xf32>
    %426 = vector.broadcast %425 : vector<4x1xf32> to vector<4x4xf32>
    %427 = arith.subf %423, %426 : vector<4x4xf32>
    %428 = math.exp %427 : vector<4x4xf32>
    %cst_169 = arith.constant dense<0.000000e+00> : vector<4xf32>
    %429 = vector.multi_reduction <add>, %428, %cst_169 [1] : vector<4x4xf32> to vector<4xf32>
    %430 = vector.shape_cast %429 : vector<4xf32> to vector<4x1xf32>
    %431 = tpu.reciprocal %430 {approx = true} : vector<4x1xf32> -> vector<4x1xf32>
    %432 = vector.broadcast %431 : vector<4x1xf32> to vector<4x4xf32>
    %433 = arith.mulf %428, %432 : vector<4x4xf32>
    %434 = arith.truncf %433 : vector<4x4xf32> to vector<4x4xbf16>
    %435 = arith.truncf %418 : vector<4x8xf32> to vector<4x8xbf16>
    %cst_170 = arith.constant dense<0.000000e+00> : vector<4x8xf32>
    %436 = tpu.matmul %434, %435, %cst_170 {dimension_numbers = #tpu.dot_dimension_numbers<[1], [0], [0], [1], [0, 0, 1, 1], [], []>} : vector<4x4xbf16>, vector<4x8xbf16>, vector<4x8xf32> -> vector<4x8xf32>
    %437 = vector.extract_strided_slice %413 {offsets = [0, 8], sizes = [4, 8], strides = [1, 1]} : vector<4x32xf32> to vector<4x8xf32>
    %438 = vector.extract_strided_slice %414 {offsets = [0, 8], sizes = [4, 8], strides = [1, 1]} : vector<4x32xf32> to vector<4x8xf32>
    %439 = vector.extract_strided_slice %415 {offsets = [0, 8], sizes = [4, 8], strides = [1, 1]} : vector<4x32xf32> to vector<4x8xf32>
    %440 = arith.truncf %437 : vector<4x8xf32> to vector<4x8xbf16>
    %441 = arith.truncf %438 : vector<4x8xf32> to vector<4x8xbf16>
    %cst_171 = arith.constant dense<0.000000e+00> : vector<4x4xf32>
    %442 = tpu.matmul %440, %441, %cst_171 {dimension_numbers = #tpu.dot_dimension_numbers<[1], [1], [0], [0], [0, 0, 1, 0], [], []>} : vector<4x8xbf16>, vector<4x8xbf16>, vector<4x4xf32> -> vector<4x4xf32>
    %cst_172 = arith.constant 0.353553385 : f32
    %443 = vector.broadcast %cst_172 : f32 to vector<4x4xf32>
    %444 = arith.mulf %442, %443 : vector<4x4xf32>
    %cst_173 = arith.constant dense<0xFF800000> : vector<4xf32>
    %445 = vector.multi_reduction <maximumf>, %444, %cst_173 [1] : vector<4x4xf32> to vector<4xf32>
    %446 = vector.shape_cast %445 : vector<4xf32> to vector<4x1xf32>
    %447 = vector.broadcast %446 : vector<4x1xf32> to vector<4x4xf32>
    %448 = arith.subf %444, %447 : vector<4x4xf32>
    %449 = math.exp %448 : vector<4x4xf32>
    %cst_174 = arith.constant dense<0.000000e+00> : vector<4xf32>
    %450 = vector.multi_reduction <add>, %449, %cst_174 [1] : vector<4x4xf32> to vector<4xf32>
    %451 = vector.shape_cast %450 : vector<4xf32> to vector<4x1xf32>
    %452 = tpu.reciprocal %451 {approx = true} : vector<4x1xf32> -> vector<4x1xf32>
    %453 = vector.broadcast %452 : vector<4x1xf32> to vector<4x4xf32>
    %454 = arith.mulf %449, %453 : vector<4x4xf32>
    %455 = arith.truncf %454 : vector<4x4xf32> to vector<4x4xbf16>
    %456 = arith.truncf %439 : vector<4x8xf32> to vector<4x8xbf16>
    %cst_175 = arith.constant dense<0.000000e+00> : vector<4x8xf32>
    %457 = tpu.matmul %455, %456, %cst_175 {dimension_numbers = #tpu.dot_dimension_numbers<[1], [0], [0], [1], [0, 0, 1, 1], [], []>} : vector<4x4xbf16>, vector<4x8xbf16>, vector<4x8xf32> -> vector<4x8xf32>
    %458 = vector.extract_strided_slice %413 {offsets = [0, 16], sizes = [4, 8], strides = [1, 1]} : vector<4x32xf32> to vector<4x8xf32>
    %459 = vector.extract_strided_slice %414 {offsets = [0, 16], sizes = [4, 8], strides = [1, 1]} : vector<4x32xf32> to vector<4x8xf32>
    %460 = vector.extract_strided_slice %415 {offsets = [0, 16], sizes = [4, 8], strides = [1, 1]} : vector<4x32xf32> to vector<4x8xf32>
    %461 = arith.truncf %458 : vector<4x8xf32> to vector<4x8xbf16>
    %462 = arith.truncf %459 : vector<4x8xf32> to vector<4x8xbf16>
    %cst_176 = arith.constant dense<0.000000e+00> : vector<4x4xf32>
    %463 = tpu.matmul %461, %462, %cst_176 {dimension_numbers = #tpu.dot_dimension_numbers<[1], [1], [0], [0], [0, 0, 1, 0], [], []>} : vector<4x8xbf16>, vector<4x8xbf16>, vector<4x4xf32> -> vector<4x4xf32>
    %cst_177 = arith.constant 0.353553385 : f32
    %464 = vector.broadcast %cst_177 : f32 to vector<4x4xf32>
    %465 = arith.mulf %463, %464 : vector<4x4xf32>
    %cst_178 = arith.constant dense<0xFF800000> : vector<4xf32>
    %466 = vector.multi_reduction <maximumf>, %465, %cst_178 [1] : vector<4x4xf32> to vector<4xf32>
    %467 = vector.shape_cast %466 : vector<4xf32> to vector<4x1xf32>
    %468 = vector.broadcast %467 : vector<4x1xf32> to vector<4x4xf32>
    %469 = arith.subf %465, %468 : vector<4x4xf32>
    %470 = math.exp %469 : vector<4x4xf32>
    %cst_179 = arith.constant dense<0.000000e+00> : vector<4xf32>
    %471 = vector.multi_reduction <add>, %470, %cst_179 [1] : vector<4x4xf32> to vector<4xf32>
    %472 = vector.shape_cast %471 : vector<4xf32> to vector<4x1xf32>
    %473 = tpu.reciprocal %472 {approx = true} : vector<4x1xf32> -> vector<4x1xf32>
    %474 = vector.broadcast %473 : vector<4x1xf32> to vector<4x4xf32>
    %475 = arith.mulf %470, %474 : vector<4x4xf32>
    %476 = arith.truncf %475 : vector<4x4xf32> to vector<4x4xbf16>
    %477 = arith.truncf %460 : vector<4x8xf32> to vector<4x8xbf16>
    %cst_180 = arith.constant dense<0.000000e+00> : vector<4x8xf32>
    %478 = tpu.matmul %476, %477, %cst_180 {dimension_numbers = #tpu.dot_dimension_numbers<[1], [0], [0], [1], [0, 0, 1, 1], [], []>} : vector<4x4xbf16>, vector<4x8xbf16>, vector<4x8xf32> -> vector<4x8xf32>
    %479 = vector.extract_strided_slice %413 {offsets = [0, 24], sizes = [4, 8], strides = [1, 1]} : vector<4x32xf32> to vector<4x8xf32>
    %480 = vector.extract_strided_slice %414 {offsets = [0, 24], sizes = [4, 8], strides = [1, 1]} : vector<4x32xf32> to vector<4x8xf32>
    %481 = vector.extract_strided_slice %415 {offsets = [0, 24], sizes = [4, 8], strides = [1, 1]} : vector<4x32xf32> to vector<4x8xf32>
    %482 = arith.truncf %479 : vector<4x8xf32> to vector<4x8xbf16>
    %483 = arith.truncf %480 : vector<4x8xf32> to vector<4x8xbf16>
    %cst_181 = arith.constant dense<0.000000e+00> : vector<4x4xf32>
    %484 = tpu.matmul %482, %483, %cst_181 {dimension_numbers = #tpu.dot_dimension_numbers<[1], [1], [0], [0], [0, 0, 1, 0], [], []>} : vector<4x8xbf16>, vector<4x8xbf16>, vector<4x4xf32> -> vector<4x4xf32>
    %cst_182 = arith.constant 0.353553385 : f32
    %485 = vector.broadcast %cst_182 : f32 to vector<4x4xf32>
    %486 = arith.mulf %484, %485 : vector<4x4xf32>
    %cst_183 = arith.constant dense<0xFF800000> : vector<4xf32>
    %487 = vector.multi_reduction <maximumf>, %486, %cst_183 [1] : vector<4x4xf32> to vector<4xf32>
    %488 = vector.shape_cast %487 : vector<4xf32> to vector<4x1xf32>
    %489 = vector.broadcast %488 : vector<4x1xf32> to vector<4x4xf32>
    %490 = arith.subf %486, %489 : vector<4x4xf32>
    %491 = math.exp %490 : vector<4x4xf32>
    %cst_184 = arith.constant dense<0.000000e+00> : vector<4xf32>
    %492 = vector.multi_reduction <add>, %491, %cst_184 [1] : vector<4x4xf32> to vector<4xf32>
    %493 = vector.shape_cast %492 : vector<4xf32> to vector<4x1xf32>
    %494 = tpu.reciprocal %493 {approx = true} : vector<4x1xf32> -> vector<4x1xf32>
    %495 = vector.broadcast %494 : vector<4x1xf32> to vector<4x4xf32>
    %496 = arith.mulf %491, %495 : vector<4x4xf32>
    %497 = arith.truncf %496 : vector<4x4xf32> to vector<4x4xbf16>
    %498 = arith.truncf %481 : vector<4x8xf32> to vector<4x8xbf16>
    %cst_185 = arith.constant dense<0.000000e+00> : vector<4x8xf32>
    %499 = tpu.matmul %497, %498, %cst_185 {dimension_numbers = #tpu.dot_dimension_numbers<[1], [0], [0], [1], [0, 0, 1, 1], [], []>} : vector<4x4xbf16>, vector<4x8xbf16>, vector<4x8xf32> -> vector<4x8xf32>
    %500 = tpu.concatenate %436, %457, %478, %499 in 1 : vector<4x8xf32>, vector<4x8xf32>, vector<4x8xf32>, vector<4x8xf32> -> vector<4x32xf32>
    %501 = arith.truncf %500 : vector<4x32xf32> to vector<4x32xbf16>
    %c0_186 = arith.constant 0 : index
    %c0_187 = arith.constant 0 : index
    %502 = vector.load %arg44[%c0_186, %c0_187] : memref<32x32xbf16, #tpu.memory_space<vmem>>, vector<32x32xbf16>
    %cst_188 = arith.constant dense<0.000000e+00> : vector<4x32xf32>
    %503 = tpu.matmul %501, %502, %cst_188 {dimension_numbers = #tpu.dot_dimension_numbers<[1], [0], [0], [1], [0, 0, 1, 1], [], []>} : vector<4x32xbf16>, vector<32x32xbf16>, vector<4x32xf32> -> vector<4x32xf32>
    %c0_189 = arith.constant 0 : index
    %c0_190 = arith.constant 0 : index
    %504 = vector.load %arg36[%c0_189, %c0_190] : memref<1x32xf32, #tpu.memory_space<vmem>>, vector<1x32xf32>
    %505 = vector.broadcast %504 : vector<1x32xf32> to vector<4x32xf32>
    %506 = arith.addf %503, %505 : vector<4x32xf32>
    %507 = arith.addf %382, %506 : vector<4x32xf32>
    %cst_191 = arith.constant dense<0.000000e+00> : vector<4xf32>
    %508 = vector.multi_reduction <add>, %507, %cst_191 [1] : vector<4x32xf32> to vector<4xf32>
    %509 = vector.shape_cast %508 : vector<4xf32> to vector<4x1xf32>
    %cst_192 = arith.constant 3.200000e+01 : f32
    %510 = vector.broadcast %cst_192 : f32 to vector<4x1xf32>
    %511 = arith.divf %509, %510 : vector<4x1xf32>
    %512 = vector.broadcast %511 : vector<4x1xf32> to vector<4x32xf32>
    %513 = arith.subf %507, %512 : vector<4x32xf32>
    %514 = arith.mulf %513, %513 : vector<4x32xf32>
    %cst_193 = arith.constant dense<0.000000e+00> : vector<4xf32>
    %515 = vector.multi_reduction <add>, %514, %cst_193 [1] : vector<4x32xf32> to vector<4xf32>
    %516 = vector.shape_cast %515 : vector<4xf32> to vector<4x1xf32>
    %cst_194 = arith.constant 3.200000e+01 : f32
    %517 = vector.broadcast %cst_194 : f32 to vector<4x1xf32>
    %518 = arith.divf %516, %517 : vector<4x1xf32>
    %519 = vector.broadcast %511 : vector<4x1xf32> to vector<4x32xf32>
    %520 = arith.subf %507, %519 : vector<4x32xf32>
    %cst_195 = arith.constant 9.99999997E-7 : f32
    %521 = vector.broadcast %cst_195 : f32 to vector<4x1xf32>
    %522 = arith.addf %518, %521 : vector<4x1xf32>
    %523 = math.rsqrt %522 : vector<4x1xf32>
    %524 = vector.broadcast %523 : vector<4x1xf32> to vector<4x32xf32>
    %525 = arith.mulf %520, %524 : vector<4x32xf32>
    %c0_196 = arith.constant 0 : index
    %c0_197 = arith.constant 0 : index
    %526 = vector.load %arg41[%c0_196, %c0_197] : memref<1x32xf32, #tpu.memory_space<vmem>>, vector<1x32xf32>
    %527 = vector.broadcast %526 : vector<1x32xf32> to vector<4x32xf32>
    %528 = arith.mulf %525, %527 : vector<4x32xf32>
    %c0_198 = arith.constant 0 : index
    %c0_199 = arith.constant 0 : index
    %529 = vector.load %arg40[%c0_198, %c0_199] : memref<1x32xf32, #tpu.memory_space<vmem>>, vector<1x32xf32>
    %530 = vector.broadcast %529 : vector<1x32xf32> to vector<4x32xf32>
    %531 = arith.addf %528, %530 : vector<4x32xf32>
    %532 = arith.truncf %531 : vector<4x32xf32> to vector<4x32xbf16>
    %c0_200 = arith.constant 0 : index
    %c0_201 = arith.constant 0 : index
    %533 = vector.load %arg42[%c0_200, %c0_201] : memref<32x128xbf16, #tpu.memory_space<vmem>>, vector<32x128xbf16>
    %cst_202 = arith.constant dense<0.000000e+00> : vector<4x128xf32>
    %534 = tpu.matmul %532, %533, %cst_202 {dimension_numbers = #tpu.dot_dimension_numbers<[1], [0], [0], [1], [0, 0, 1, 1], [], []>} : vector<4x32xbf16>, vector<32x128xbf16>, vector<4x128xf32> -> vector<4x128xf32>
    %c0_203 = arith.constant 0 : index
    %c0_204 = arith.constant 0 : index
    %535 = vector.load %arg34[%c0_203, %c0_204] : memref<1x128xf32, #tpu.memory_space<vmem>>, vector<1x128xf32>
    %536 = vector.broadcast %535 : vector<1x128xf32> to vector<4x128xf32>
    %537 = arith.addf %534, %536 : vector<4x128xf32>
    %538 = arith.mulf %537, %537 : vector<4x128xf32>
    %539 = arith.mulf %537, %538 : vector<4x128xf32>
    %cst_205 = arith.constant 4.471500e-02 : f32
    %540 = vector.broadcast %cst_205 : f32 to vector<4x128xf32>
    %541 = arith.mulf %540, %539 : vector<4x128xf32>
    %542 = arith.addf %537, %541 : vector<4x128xf32>
    %cst_206 = arith.constant 0.797884583 : f32
    %543 = vector.broadcast %cst_206 : f32 to vector<4x128xf32>
    %544 = arith.mulf %543, %542 : vector<4x128xf32>
    %545 = math.tanh %544 : vector<4x128xf32>
    %cst_207 = arith.constant 1.000000e+00 : f32
    %546 = vector.broadcast %cst_207 : f32 to vector<4x128xf32>
    %547 = arith.addf %546, %545 : vector<4x128xf32>
    %cst_208 = arith.constant 5.000000e-01 : f32
    %548 = vector.broadcast %cst_208 : f32 to vector<4x128xf32>
    %549 = arith.mulf %548, %547 : vector<4x128xf32>
    %550 = arith.mulf %537, %549 : vector<4x128xf32>
    %551 = arith.truncf %550 : vector<4x128xf32> to vector<4x128xbf16>
    %c0_209 = arith.constant 0 : index
    %c0_210 = arith.constant 0 : index
    %552 = vector.load %arg43[%c0_209, %c0_210] : memref<128x32xbf16, #tpu.memory_space<vmem>>, vector<128x32xbf16>
    %cst_211 = arith.constant dense<0.000000e+00> : vector<4x32xf32>
    %553 = tpu.matmul %551, %552, %cst_211 {dimension_numbers = #tpu.dot_dimension_numbers<[1], [0], [0], [1], [0, 0, 1, 1], [], []>} : vector<4x128xbf16>, vector<128x32xbf16>, vector<4x32xf32> -> vector<4x32xf32>
    %c0_212 = arith.constant 0 : index
    %c0_213 = arith.constant 0 : index
    %554 = vector.load %arg35[%c0_212, %c0_213] : memref<1x32xf32, #tpu.memory_space<vmem>>, vector<1x32xf32>
    %555 = vector.broadcast %554 : vector<1x32xf32> to vector<4x32xf32>
    %556 = arith.addf %553, %555 : vector<4x32xf32>
    %557 = arith.addf %507, %556 : vector<4x32xf32>
    %cst_214 = arith.constant dense<0.000000e+00> : vector<4xf32>
    %558 = vector.multi_reduction <add>, %557, %cst_214 [1] : vector<4x32xf32> to vector<4xf32>
    %559 = vector.shape_cast %558 : vector<4xf32> to vector<4x1xf32>
    %cst_215 = arith.constant 3.200000e+01 : f32
    %560 = vector.broadcast %cst_215 : f32 to vector<4x1xf32>
    %561 = arith.divf %559, %560 : vector<4x1xf32>
    %562 = vector.broadcast %561 : vector<4x1xf32> to vector<4x32xf32>
    %563 = arith.subf %557, %562 : vector<4x32xf32>
    %564 = arith.mulf %563, %563 : vector<4x32xf32>
    %cst_216 = arith.constant dense<0.000000e+00> : vector<4xf32>
    %565 = vector.multi_reduction <add>, %564, %cst_216 [1] : vector<4x32xf32> to vector<4xf32>
    %566 = vector.shape_cast %565 : vector<4xf32> to vector<4x1xf32>
    %cst_217 = arith.constant 3.200000e+01 : f32
    %567 = vector.broadcast %cst_217 : f32 to vector<4x1xf32>
    %568 = arith.divf %566, %567 : vector<4x1xf32>
    %569 = vector.broadcast %561 : vector<4x1xf32> to vector<4x32xf32>
    %570 = arith.subf %557, %569 : vector<4x32xf32>
    %cst_218 = arith.constant 9.99999997E-7 : f32
    %571 = vector.broadcast %cst_218 : f32 to vector<4x1xf32>
    %572 = arith.addf %568, %571 : vector<4x1xf32>
    %573 = math.rsqrt %572 : vector<4x1xf32>
    %574 = vector.broadcast %573 : vector<4x1xf32> to vector<4x32xf32>
    %575 = arith.mulf %570, %574 : vector<4x32xf32>
    %c0_219 = arith.constant 0 : index
    %c0_220 = arith.constant 0 : index
    %576 = vector.load %arg51[%c0_219, %c0_220] : memref<1x32xf32, #tpu.memory_space<vmem>>, vector<1x32xf32>
    %577 = vector.broadcast %576 : vector<1x32xf32> to vector<4x32xf32>
    %578 = arith.mulf %575, %577 : vector<4x32xf32>
    %c0_221 = arith.constant 0 : index
    %c0_222 = arith.constant 0 : index
    %579 = vector.load %arg50[%c0_221, %c0_222] : memref<1x32xf32, #tpu.memory_space<vmem>>, vector<1x32xf32>
    %580 = vector.broadcast %579 : vector<1x32xf32> to vector<4x32xf32>
    %581 = arith.addf %578, %580 : vector<4x32xf32>
    %582 = arith.truncf %581 : vector<4x32xf32> to vector<4x32xbf16>
    %c0_223 = arith.constant 0 : index
    %c0_224 = arith.constant 0 : index
    %583 = vector.load %arg57[%c0_223, %c0_224] : memref<32x96xbf16, #tpu.memory_space<vmem>>, vector<32x96xbf16>
    %cst_225 = arith.constant dense<0.000000e+00> : vector<4x96xf32>
    %584 = tpu.matmul %582, %583, %cst_225 {dimension_numbers = #tpu.dot_dimension_numbers<[1], [0], [0], [1], [0, 0, 1, 1], [], []>} : vector<4x32xbf16>, vector<32x96xbf16>, vector<4x96xf32> -> vector<4x96xf32>
    %c0_226 = arith.constant 0 : index
    %c0_227 = arith.constant 0 : index
    %585 = vector.load %arg49[%c0_226, %c0_227] : memref<1x96xf32, #tpu.memory_space<vmem>>, vector<1x96xf32>
    %586 = vector.broadcast %585 : vector<1x96xf32> to vector<4x96xf32>
    %587 = arith.addf %584, %586 : vector<4x96xf32>
    %588 = vector.extract_strided_slice %587 {offsets = [0, 0], sizes = [4, 32], strides = [1, 1]} : vector<4x96xf32> to vector<4x32xf32>
    %589 = vector.extract_strided_slice %587 {offsets = [0, 32], sizes = [4, 32], strides = [1, 1]} : vector<4x96xf32> to vector<4x32xf32>
    %590 = vector.extract_strided_slice %587 {offsets = [0, 64], sizes = [4, 32], strides = [1, 1]} : vector<4x96xf32> to vector<4x32xf32>
    %591 = vector.extract_strided_slice %588 {offsets = [0, 0], sizes = [4, 8], strides = [1, 1]} : vector<4x32xf32> to vector<4x8xf32>
    %592 = vector.extract_strided_slice %589 {offsets = [0, 0], sizes = [4, 8], strides = [1, 1]} : vector<4x32xf32> to vector<4x8xf32>
    %593 = vector.extract_strided_slice %590 {offsets = [0, 0], sizes = [4, 8], strides = [1, 1]} : vector<4x32xf32> to vector<4x8xf32>
    %594 = arith.truncf %591 : vector<4x8xf32> to vector<4x8xbf16>
    %595 = arith.truncf %592 : vector<4x8xf32> to vector<4x8xbf16>
    %cst_228 = arith.constant dense<0.000000e+00> : vector<4x4xf32>
    %596 = tpu.matmul %594, %595, %cst_228 {dimension_numbers = #tpu.dot_dimension_numbers<[1], [1], [0], [0], [0, 0, 1, 0], [], []>} : vector<4x8xbf16>, vector<4x8xbf16>, vector<4x4xf32> -> vector<4x4xf32>
    %cst_229 = arith.constant 0.353553385 : f32
    %597 = vector.broadcast %cst_229 : f32 to vector<4x4xf32>
    %598 = arith.mulf %596, %597 : vector<4x4xf32>
    %cst_230 = arith.constant dense<0xFF800000> : vector<4xf32>
    %599 = vector.multi_reduction <maximumf>, %598, %cst_230 [1] : vector<4x4xf32> to vector<4xf32>
    %600 = vector.shape_cast %599 : vector<4xf32> to vector<4x1xf32>
    %601 = vector.broadcast %600 : vector<4x1xf32> to vector<4x4xf32>
    %602 = arith.subf %598, %601 : vector<4x4xf32>
    %603 = math.exp %602 : vector<4x4xf32>
    %cst_231 = arith.constant dense<0.000000e+00> : vector<4xf32>
    %604 = vector.multi_reduction <add>, %603, %cst_231 [1] : vector<4x4xf32> to vector<4xf32>
    %605 = vector.shape_cast %604 : vector<4xf32> to vector<4x1xf32>
    %606 = tpu.reciprocal %605 {approx = true} : vector<4x1xf32> -> vector<4x1xf32>
    %607 = vector.broadcast %606 : vector<4x1xf32> to vector<4x4xf32>
    %608 = arith.mulf %603, %607 : vector<4x4xf32>
    %609 = arith.truncf %608 : vector<4x4xf32> to vector<4x4xbf16>
    %610 = arith.truncf %593 : vector<4x8xf32> to vector<4x8xbf16>
    %cst_232 = arith.constant dense<0.000000e+00> : vector<4x8xf32>
    %611 = tpu.matmul %609, %610, %cst_232 {dimension_numbers = #tpu.dot_dimension_numbers<[1], [0], [0], [1], [0, 0, 1, 1], [], []>} : vector<4x4xbf16>, vector<4x8xbf16>, vector<4x8xf32> -> vector<4x8xf32>
    %612 = vector.extract_strided_slice %588 {offsets = [0, 8], sizes = [4, 8], strides = [1, 1]} : vector<4x32xf32> to vector<4x8xf32>
    %613 = vector.extract_strided_slice %589 {offsets = [0, 8], sizes = [4, 8], strides = [1, 1]} : vector<4x32xf32> to vector<4x8xf32>
    %614 = vector.extract_strided_slice %590 {offsets = [0, 8], sizes = [4, 8], strides = [1, 1]} : vector<4x32xf32> to vector<4x8xf32>
    %615 = arith.truncf %612 : vector<4x8xf32> to vector<4x8xbf16>
    %616 = arith.truncf %613 : vector<4x8xf32> to vector<4x8xbf16>
    %cst_233 = arith.constant dense<0.000000e+00> : vector<4x4xf32>
    %617 = tpu.matmul %615, %616, %cst_233 {dimension_numbers = #tpu.dot_dimension_numbers<[1], [1], [0], [0], [0, 0, 1, 0], [], []>} : vector<4x8xbf16>, vector<4x8xbf16>, vector<4x4xf32> -> vector<4x4xf32>
    %cst_234 = arith.constant 0.353553385 : f32
    %618 = vector.broadcast %cst_234 : f32 to vector<4x4xf32>
    %619 = arith.mulf %617, %618 : vector<4x4xf32>
    %cst_235 = arith.constant dense<0xFF800000> : vector<4xf32>
    %620 = vector.multi_reduction <maximumf>, %619, %cst_235 [1] : vector<4x4xf32> to vector<4xf32>
    %621 = vector.shape_cast %620 : vector<4xf32> to vector<4x1xf32>
    %622 = vector.broadcast %621 : vector<4x1xf32> to vector<4x4xf32>
    %623 = arith.subf %619, %622 : vector<4x4xf32>
    %624 = math.exp %623 : vector<4x4xf32>
    %cst_236 = arith.constant dense<0.000000e+00> : vector<4xf32>
    %625 = vector.multi_reduction <add>, %624, %cst_236 [1] : vector<4x4xf32> to vector<4xf32>
    %626 = vector.shape_cast %625 : vector<4xf32> to vector<4x1xf32>
    %627 = tpu.reciprocal %626 {approx = true} : vector<4x1xf32> -> vector<4x1xf32>
    %628 = vector.broadcast %627 : vector<4x1xf32> to vector<4x4xf32>
    %629 = arith.mulf %624, %628 : vector<4x4xf32>
    %630 = arith.truncf %629 : vector<4x4xf32> to vector<4x4xbf16>
    %631 = arith.truncf %614 : vector<4x8xf32> to vector<4x8xbf16>
    %cst_237 = arith.constant dense<0.000000e+00> : vector<4x8xf32>
    %632 = tpu.matmul %630, %631, %cst_237 {dimension_numbers = #tpu.dot_dimension_numbers<[1], [0], [0], [1], [0, 0, 1, 1], [], []>} : vector<4x4xbf16>, vector<4x8xbf16>, vector<4x8xf32> -> vector<4x8xf32>
    %633 = vector.extract_strided_slice %588 {offsets = [0, 16], sizes = [4, 8], strides = [1, 1]} : vector<4x32xf32> to vector<4x8xf32>
    %634 = vector.extract_strided_slice %589 {offsets = [0, 16], sizes = [4, 8], strides = [1, 1]} : vector<4x32xf32> to vector<4x8xf32>
    %635 = vector.extract_strided_slice %590 {offsets = [0, 16], sizes = [4, 8], strides = [1, 1]} : vector<4x32xf32> to vector<4x8xf32>
    %636 = arith.truncf %633 : vector<4x8xf32> to vector<4x8xbf16>
    %637 = arith.truncf %634 : vector<4x8xf32> to vector<4x8xbf16>
    %cst_238 = arith.constant dense<0.000000e+00> : vector<4x4xf32>
    %638 = tpu.matmul %636, %637, %cst_238 {dimension_numbers = #tpu.dot_dimension_numbers<[1], [1], [0], [0], [0, 0, 1, 0], [], []>} : vector<4x8xbf16>, vector<4x8xbf16>, vector<4x4xf32> -> vector<4x4xf32>
    %cst_239 = arith.constant 0.353553385 : f32
    %639 = vector.broadcast %cst_239 : f32 to vector<4x4xf32>
    %640 = arith.mulf %638, %639 : vector<4x4xf32>
    %cst_240 = arith.constant dense<0xFF800000> : vector<4xf32>
    %641 = vector.multi_reduction <maximumf>, %640, %cst_240 [1] : vector<4x4xf32> to vector<4xf32>
    %642 = vector.shape_cast %641 : vector<4xf32> to vector<4x1xf32>
    %643 = vector.broadcast %642 : vector<4x1xf32> to vector<4x4xf32>
    %644 = arith.subf %640, %643 : vector<4x4xf32>
    %645 = math.exp %644 : vector<4x4xf32>
    %cst_241 = arith.constant dense<0.000000e+00> : vector<4xf32>
    %646 = vector.multi_reduction <add>, %645, %cst_241 [1] : vector<4x4xf32> to vector<4xf32>
    %647 = vector.shape_cast %646 : vector<4xf32> to vector<4x1xf32>
    %648 = tpu.reciprocal %647 {approx = true} : vector<4x1xf32> -> vector<4x1xf32>
    %649 = vector.broadcast %648 : vector<4x1xf32> to vector<4x4xf32>
    %650 = arith.mulf %645, %649 : vector<4x4xf32>
    %651 = arith.truncf %650 : vector<4x4xf32> to vector<4x4xbf16>
    %652 = arith.truncf %635 : vector<4x8xf32> to vector<4x8xbf16>
    %cst_242 = arith.constant dense<0.000000e+00> : vector<4x8xf32>
    %653 = tpu.matmul %651, %652, %cst_242 {dimension_numbers = #tpu.dot_dimension_numbers<[1], [0], [0], [1], [0, 0, 1, 1], [], []>} : vector<4x4xbf16>, vector<4x8xbf16>, vector<4x8xf32> -> vector<4x8xf32>
    %654 = vector.extract_strided_slice %588 {offsets = [0, 24], sizes = [4, 8], strides = [1, 1]} : vector<4x32xf32> to vector<4x8xf32>
    %655 = vector.extract_strided_slice %589 {offsets = [0, 24], sizes = [4, 8], strides = [1, 1]} : vector<4x32xf32> to vector<4x8xf32>
    %656 = vector.extract_strided_slice %590 {offsets = [0, 24], sizes = [4, 8], strides = [1, 1]} : vector<4x32xf32> to vector<4x8xf32>
    %657 = arith.truncf %654 : vector<4x8xf32> to vector<4x8xbf16>
    %658 = arith.truncf %655 : vector<4x8xf32> to vector<4x8xbf16>
    %cst_243 = arith.constant dense<0.000000e+00> : vector<4x4xf32>
    %659 = tpu.matmul %657, %658, %cst_243 {dimension_numbers = #tpu.dot_dimension_numbers<[1], [1], [0], [0], [0, 0, 1, 0], [], []>} : vector<4x8xbf16>, vector<4x8xbf16>, vector<4x4xf32> -> vector<4x4xf32>
    %cst_244 = arith.constant 0.353553385 : f32
    %660 = vector.broadcast %cst_244 : f32 to vector<4x4xf32>
    %661 = arith.mulf %659, %660 : vector<4x4xf32>
    %cst_245 = arith.constant dense<0xFF800000> : vector<4xf32>
    %662 = vector.multi_reduction <maximumf>, %661, %cst_245 [1] : vector<4x4xf32> to vector<4xf32>
    %663 = vector.shape_cast %662 : vector<4xf32> to vector<4x1xf32>
    %664 = vector.broadcast %663 : vector<4x1xf32> to vector<4x4xf32>
    %665 = arith.subf %661, %664 : vector<4x4xf32>
    %666 = math.exp %665 : vector<4x4xf32>
    %cst_246 = arith.constant dense<0.000000e+00> : vector<4xf32>
    %667 = vector.multi_reduction <add>, %666, %cst_246 [1] : vector<4x4xf32> to vector<4xf32>
    %668 = vector.shape_cast %667 : vector<4xf32> to vector<4x1xf32>
    %669 = tpu.reciprocal %668 {approx = true} : vector<4x1xf32> -> vector<4x1xf32>
    %670 = vector.broadcast %669 : vector<4x1xf32> to vector<4x4xf32>
    %671 = arith.mulf %666, %670 : vector<4x4xf32>
    %672 = arith.truncf %671 : vector<4x4xf32> to vector<4x4xbf16>
    %673 = arith.truncf %656 : vector<4x8xf32> to vector<4x8xbf16>
    %cst_247 = arith.constant dense<0.000000e+00> : vector<4x8xf32>
    %674 = tpu.matmul %672, %673, %cst_247 {dimension_numbers = #tpu.dot_dimension_numbers<[1], [0], [0], [1], [0, 0, 1, 1], [], []>} : vector<4x4xbf16>, vector<4x8xbf16>, vector<4x8xf32> -> vector<4x8xf32>
    %675 = tpu.concatenate %611, %632, %653, %674 in 1 : vector<4x8xf32>, vector<4x8xf32>, vector<4x8xf32>, vector<4x8xf32> -> vector<4x32xf32>
    %676 = arith.truncf %675 : vector<4x32xf32> to vector<4x32xbf16>
    %c0_248 = arith.constant 0 : index
    %c0_249 = arith.constant 0 : index
    %677 = vector.load %arg56[%c0_248, %c0_249] : memref<32x32xbf16, #tpu.memory_space<vmem>>, vector<32x32xbf16>
    %cst_250 = arith.constant dense<0.000000e+00> : vector<4x32xf32>
    %678 = tpu.matmul %676, %677, %cst_250 {dimension_numbers = #tpu.dot_dimension_numbers<[1], [0], [0], [1], [0, 0, 1, 1], [], []>} : vector<4x32xbf16>, vector<32x32xbf16>, vector<4x32xf32> -> vector<4x32xf32>
    %c0_251 = arith.constant 0 : index
    %c0_252 = arith.constant 0 : index
    %679 = vector.load %arg48[%c0_251, %c0_252] : memref<1x32xf32, #tpu.memory_space<vmem>>, vector<1x32xf32>
    %680 = vector.broadcast %679 : vector<1x32xf32> to vector<4x32xf32>
    %681 = arith.addf %678, %680 : vector<4x32xf32>
    %682 = arith.addf %557, %681 : vector<4x32xf32>
    %cst_253 = arith.constant dense<0.000000e+00> : vector<4xf32>
    %683 = vector.multi_reduction <add>, %682, %cst_253 [1] : vector<4x32xf32> to vector<4xf32>
    %684 = vector.shape_cast %683 : vector<4xf32> to vector<4x1xf32>
    %cst_254 = arith.constant 3.200000e+01 : f32
    %685 = vector.broadcast %cst_254 : f32 to vector<4x1xf32>
    %686 = arith.divf %684, %685 : vector<4x1xf32>
    %687 = vector.broadcast %686 : vector<4x1xf32> to vector<4x32xf32>
    %688 = arith.subf %682, %687 : vector<4x32xf32>
    %689 = arith.mulf %688, %688 : vector<4x32xf32>
    %cst_255 = arith.constant dense<0.000000e+00> : vector<4xf32>
    %690 = vector.multi_reduction <add>, %689, %cst_255 [1] : vector<4x32xf32> to vector<4xf32>
    %691 = vector.shape_cast %690 : vector<4xf32> to vector<4x1xf32>
    %cst_256 = arith.constant 3.200000e+01 : f32
    %692 = vector.broadcast %cst_256 : f32 to vector<4x1xf32>
    %693 = arith.divf %691, %692 : vector<4x1xf32>
    %694 = vector.broadcast %686 : vector<4x1xf32> to vector<4x32xf32>
    %695 = arith.subf %682, %694 : vector<4x32xf32>
    %cst_257 = arith.constant 9.99999997E-7 : f32
    %696 = vector.broadcast %cst_257 : f32 to vector<4x1xf32>
    %697 = arith.addf %693, %696 : vector<4x1xf32>
    %698 = math.rsqrt %697 : vector<4x1xf32>
    %699 = vector.broadcast %698 : vector<4x1xf32> to vector<4x32xf32>
    %700 = arith.mulf %695, %699 : vector<4x32xf32>
    %c0_258 = arith.constant 0 : index
    %c0_259 = arith.constant 0 : index
    %701 = vector.load %arg53[%c0_258, %c0_259] : memref<1x32xf32, #tpu.memory_space<vmem>>, vector<1x32xf32>
    %702 = vector.broadcast %701 : vector<1x32xf32> to vector<4x32xf32>
    %703 = arith.mulf %700, %702 : vector<4x32xf32>
    %c0_260 = arith.constant 0 : index
    %c0_261 = arith.constant 0 : index
    %704 = vector.load %arg52[%c0_260, %c0_261] : memref<1x32xf32, #tpu.memory_space<vmem>>, vector<1x32xf32>
    %705 = vector.broadcast %704 : vector<1x32xf32> to vector<4x32xf32>
    %706 = arith.addf %703, %705 : vector<4x32xf32>
    %707 = arith.truncf %706 : vector<4x32xf32> to vector<4x32xbf16>
    %c0_262 = arith.constant 0 : index
    %c0_263 = arith.constant 0 : index
    %708 = vector.load %arg54[%c0_262, %c0_263] : memref<32x128xbf16, #tpu.memory_space<vmem>>, vector<32x128xbf16>
    %cst_264 = arith.constant dense<0.000000e+00> : vector<4x128xf32>
    %709 = tpu.matmul %707, %708, %cst_264 {dimension_numbers = #tpu.dot_dimension_numbers<[1], [0], [0], [1], [0, 0, 1, 1], [], []>} : vector<4x32xbf16>, vector<32x128xbf16>, vector<4x128xf32> -> vector<4x128xf32>
    %c0_265 = arith.constant 0 : index
    %c0_266 = arith.constant 0 : index
    %710 = vector.load %arg46[%c0_265, %c0_266] : memref<1x128xf32, #tpu.memory_space<vmem>>, vector<1x128xf32>
    %711 = vector.broadcast %710 : vector<1x128xf32> to vector<4x128xf32>
    %712 = arith.addf %709, %711 : vector<4x128xf32>
    %713 = arith.mulf %712, %712 : vector<4x128xf32>
    %714 = arith.mulf %712, %713 : vector<4x128xf32>
    %cst_267 = arith.constant 4.471500e-02 : f32
    %715 = vector.broadcast %cst_267 : f32 to vector<4x128xf32>
    %716 = arith.mulf %715, %714 : vector<4x128xf32>
    %717 = arith.addf %712, %716 : vector<4x128xf32>
    %cst_268 = arith.constant 0.797884583 : f32
    %718 = vector.broadcast %cst_268 : f32 to vector<4x128xf32>
    %719 = arith.mulf %718, %717 : vector<4x128xf32>
    %720 = math.tanh %719 : vector<4x128xf32>
    %cst_269 = arith.constant 1.000000e+00 : f32
    %721 = vector.broadcast %cst_269 : f32 to vector<4x128xf32>
    %722 = arith.addf %721, %720 : vector<4x128xf32>
    %cst_270 = arith.constant 5.000000e-01 : f32
    %723 = vector.broadcast %cst_270 : f32 to vector<4x128xf32>
    %724 = arith.mulf %723, %722 : vector<4x128xf32>
    %725 = arith.mulf %712, %724 : vector<4x128xf32>
    %726 = arith.truncf %725 : vector<4x128xf32> to vector<4x128xbf16>
    %c0_271 = arith.constant 0 : index
    %c0_272 = arith.constant 0 : index
    %727 = vector.load %arg55[%c0_271, %c0_272] : memref<128x32xbf16, #tpu.memory_space<vmem>>, vector<128x32xbf16>
    %cst_273 = arith.constant dense<0.000000e+00> : vector<4x32xf32>
    %728 = tpu.matmul %726, %727, %cst_273 {dimension_numbers = #tpu.dot_dimension_numbers<[1], [0], [0], [1], [0, 0, 1, 1], [], []>} : vector<4x128xbf16>, vector<128x32xbf16>, vector<4x32xf32> -> vector<4x32xf32>
    %c0_274 = arith.constant 0 : index
    %c0_275 = arith.constant 0 : index
    %729 = vector.load %arg47[%c0_274, %c0_275] : memref<1x32xf32, #tpu.memory_space<vmem>>, vector<1x32xf32>
    %730 = vector.broadcast %729 : vector<1x32xf32> to vector<4x32xf32>
    %731 = arith.addf %728, %730 : vector<4x32xf32>
    %732 = arith.addf %682, %731 : vector<4x32xf32>
    %733 = tpu.concatenate %373, %732 in 1 : vector<4x32xf32>, vector<4x32xf32> -> vector<4x64xf32>
    %734 = arith.truncf %733 : vector<4x64xf32> to vector<4x64xbf16>
    %c0_276 = arith.constant 0 : index
    %c0_277 = arith.constant 0 : index
    %735 = vector.load %arg62[%c0_276, %c0_277] : memref<64x256xbf16, #tpu.memory_space<vmem>>, vector<64x256xbf16>
    %cst_278 = arith.constant dense<0.000000e+00> : vector<4x256xf32>
    %736 = tpu.matmul %734, %735, %cst_278 {dimension_numbers = #tpu.dot_dimension_numbers<[1], [0], [0], [1], [0, 0, 1, 1], [], []>} : vector<4x64xbf16>, vector<64x256xbf16>, vector<4x256xf32> -> vector<4x256xf32>
    %c0_279 = arith.constant 0 : index
    %c0_280 = arith.constant 0 : index
    %737 = vector.load %arg61[%c0_279, %c0_280] : memref<1x256xf32, #tpu.memory_space<vmem>>, vector<1x256xf32>
    %738 = vector.broadcast %737 : vector<1x256xf32> to vector<4x256xf32>
    %739 = arith.addf %736, %738 : vector<4x256xf32>
    %740 = arith.mulf %739, %739 : vector<4x256xf32>
    %741 = arith.mulf %739, %740 : vector<4x256xf32>
    %cst_281 = arith.constant 4.471500e-02 : f32
    %742 = vector.broadcast %cst_281 : f32 to vector<4x256xf32>
    %743 = arith.mulf %742, %741 : vector<4x256xf32>
    %744 = arith.addf %739, %743 : vector<4x256xf32>
    %cst_282 = arith.constant 0.797884583 : f32
    %745 = vector.broadcast %cst_282 : f32 to vector<4x256xf32>
    %746 = arith.mulf %745, %744 : vector<4x256xf32>
    %747 = math.tanh %746 : vector<4x256xf32>
    %cst_283 = arith.constant 1.000000e+00 : f32
    %748 = vector.broadcast %cst_283 : f32 to vector<4x256xf32>
    %749 = arith.addf %748, %747 : vector<4x256xf32>
    %cst_284 = arith.constant 5.000000e-01 : f32
    %750 = vector.broadcast %cst_284 : f32 to vector<4x256xf32>
    %751 = arith.mulf %750, %749 : vector<4x256xf32>
    %752 = arith.mulf %739, %751 : vector<4x256xf32>
    %753 = arith.truncf %752 : vector<4x256xf32> to vector<4x256xbf16>
    %c0_285 = arith.constant 0 : index
    %c0_286 = arith.constant 0 : index
    %754 = vector.load %arg64[%c0_285, %c0_286] : memref<256x64xbf16, #tpu.memory_space<vmem>>, vector<256x64xbf16>
    %cst_287 = arith.constant dense<0.000000e+00> : vector<4x64xf32>
    %755 = tpu.matmul %753, %754, %cst_287 {dimension_numbers = #tpu.dot_dimension_numbers<[1], [0], [0], [1], [0, 0, 1, 1], [], []>} : vector<4x256xbf16>, vector<256x64xbf16>, vector<4x64xf32> -> vector<4x64xf32>
    %c0_288 = arith.constant 0 : index
    %c0_289 = arith.constant 0 : index
    %756 = vector.load %arg63[%c0_288, %c0_289] : memref<1x64xf32, #tpu.memory_space<vmem>>, vector<1x64xf32>
    %757 = vector.broadcast %756 : vector<1x64xf32> to vector<4x64xf32>
    %758 = arith.addf %755, %757 : vector<4x64xf32>
    %759 = arith.mulf %758, %758 : vector<4x64xf32>
    %760 = arith.mulf %758, %759 : vector<4x64xf32>
    %cst_290 = arith.constant 4.471500e-02 : f32
    %761 = vector.broadcast %cst_290 : f32 to vector<4x64xf32>
    %762 = arith.mulf %761, %760 : vector<4x64xf32>
    %763 = arith.addf %758, %762 : vector<4x64xf32>
    %cst_291 = arith.constant 0.797884583 : f32
    %764 = vector.broadcast %cst_291 : f32 to vector<4x64xf32>
    %765 = arith.mulf %764, %763 : vector<4x64xf32>
    %766 = math.tanh %765 : vector<4x64xf32>
    %cst_292 = arith.constant 1.000000e+00 : f32
    %767 = vector.broadcast %cst_292 : f32 to vector<4x64xf32>
    %768 = arith.addf %767, %766 : vector<4x64xf32>
    %cst_293 = arith.constant 5.000000e-01 : f32
    %769 = vector.broadcast %cst_293 : f32 to vector<4x64xf32>
    %770 = arith.mulf %769, %768 : vector<4x64xf32>
    %771 = arith.mulf %758, %770 : vector<4x64xf32>
    %772 = arith.truncf %771 : vector<4x64xf32> to vector<4x64xbf16>
    %c0_294 = arith.constant 0 : index
    %c0_295 = arith.constant 0 : index
    %773 = vector.load %arg66[%c0_294, %c0_295] : memref<64x64xbf16, #tpu.memory_space<vmem>>, vector<64x64xbf16>
    %cst_296 = arith.constant dense<0.000000e+00> : vector<4x64xf32>
    %774 = tpu.matmul %772, %773, %cst_296 {dimension_numbers = #tpu.dot_dimension_numbers<[1], [0], [0], [1], [0, 0, 1, 1], [], []>} : vector<4x64xbf16>, vector<64x64xbf16>, vector<4x64xf32> -> vector<4x64xf32>
    %c0_297 = arith.constant 0 : index
    %c0_298 = arith.constant 0 : index
    %775 = vector.load %arg65[%c0_297, %c0_298] : memref<1x64xf32, #tpu.memory_space<vmem>>, vector<1x64xf32>
    %776 = vector.broadcast %775 : vector<1x64xf32> to vector<4x64xf32>
    %777 = arith.addf %774, %776 : vector<4x64xf32>
    %778 = arith.truncf %777 : vector<4x64xf32> to vector<4x64xbf16>
    %c0_299 = arith.constant 0 : index
    %c0_300 = arith.constant 0 : index
    %779 = vector.load %arg67[%c0_299, %c0_300] : memref<4x64xbf16, #tpu.memory_space<vmem>>, vector<4x64xbf16>
    tpu.vector_store %arg67[%c0_299, %c0_300], %778 {strides = array<i32>} : memref<4x64xbf16, #tpu.memory_space<vmem>>, vector<4x64xbf16>,
    return
  }
}

module attributes {stable_mosaic.version = 11 : i64} {
  func.func @kernel(%arg0: memref<12x64xbf16, #tpu.memory_space<vmem>>, %arg1: memref<12x8xf32, #tpu.memory_space<vmem>>, %arg2: memref<12x8xf32, #tpu.memory_space<vmem>>, %arg3: memref<1x64xf32, #tpu.memory_space<vmem>>, %arg4: memref<1x64xf32, #tpu.memory_space<vmem>>, %arg5: memref<1x64xf32, #tpu.memory_space<vmem>>, %arg6: memref<128x64xbf16, #tpu.memory_space<vmem>>, %arg7: memref<64x256xbf16, #tpu.memory_space<vmem>>, %arg8: memref<64x64xbf16, #tpu.memory_space<vmem>>, %arg9: memref<64x192xbf16, #tpu.memory_space<vmem>>, %arg10: memref<1x64xf32, #tpu.memory_space<vmem>>, %arg11: memref<1x64xf32, #tpu.memory_space<vmem>>, %arg12: memref<128x64xbf16, #tpu.memory_space<vmem>>, %arg13: memref<64x256xbf16, #tpu.memory_space<vmem>>, %arg14: memref<64x64xbf16, #tpu.memory_space<vmem>>, %arg15: memref<64x192xbf16, #tpu.memory_space<vmem>>, %arg16: memref<12x64xf32, #tpu.memory_space<vmem>>) attributes {dimension_semantics = [], scalar_prefetch = 0 : i64, scratch_operands = 0 : i64, tpu.core_type = #tpu.core_type<tc>} {
    %c0 = arith.constant 0 : index
    %c0_0 = arith.constant 0 : index
    %0 = vector.load %arg0[%c0, %c0_0] : memref<12x64xbf16, #tpu.memory_space<vmem>>, vector<12x64xbf16>
    %1 = arith.extf %0 : vector<12x64xbf16> to vector<12x64xf32>
    %c0_1 = arith.constant 0 : index
    %c0_2 = arith.constant 0 : index
    %2 = vector.load %arg1[%c0_1, %c0_2] : memref<12x8xf32, #tpu.memory_space<vmem>>, vector<12x8xf32>
    %c0_3 = arith.constant 0 : index
    %c0_4 = arith.constant 0 : index
    %3 = vector.load %arg2[%c0_3, %c0_4] : memref<12x8xf32, #tpu.memory_space<vmem>>, vector<12x8xf32>
    %4 = arith.mulf %1, %1 : vector<12x64xf32>
    %cst = arith.constant dense<0.000000e+00> : vector<12xf32>
    %5 = vector.multi_reduction <add>, %4, %cst [1] : vector<12x64xf32> to vector<12xf32>
    %6 = vector.shape_cast %5 : vector<12xf32> to vector<12x1xf32>
    %cst_5 = arith.constant 6.400000e+01 : f32
    %7 = vector.broadcast %cst_5 : f32 to vector<12x1xf32>
    %8 = arith.divf %6, %7 : vector<12x1xf32>
    %cst_6 = arith.constant 9.99999997E-7 : f32
    %9 = vector.broadcast %cst_6 : f32 to vector<12x1xf32>
    %10 = arith.addf %8, %9 : vector<12x1xf32>
    %11 = math.rsqrt %10 : vector<12x1xf32>
    %12 = vector.broadcast %11 : vector<12x1xf32> to vector<12x64xf32>
    %13 = arith.mulf %1, %12 : vector<12x64xf32>
    %c0_7 = arith.constant 0 : index
    %c0_8 = arith.constant 0 : index
    %14 = vector.load %arg4[%c0_7, %c0_8] : memref<1x64xf32, #tpu.memory_space<vmem>>, vector<1x64xf32>
    %15 = vector.broadcast %14 : vector<1x64xf32> to vector<12x64xf32>
    %16 = arith.mulf %13, %15 : vector<12x64xf32>
    %17 = arith.truncf %16 : vector<12x64xf32> to vector<12x64xbf16>
    %c0_9 = arith.constant 0 : index
    %c0_10 = arith.constant 0 : index
    %18 = vector.load %arg9[%c0_9, %c0_10] : memref<64x192xbf16, #tpu.memory_space<vmem>>, vector<64x192xbf16>
    %cst_11 = arith.constant dense<0.000000e+00> : vector<12x192xf32>
    %19 = tpu.matmul %17, %18, %cst_11 {dimension_numbers = #tpu.dot_dimension_numbers<[1], [0], [0], [1], [0, 0, 1, 1], [], []>} : vector<12x64xbf16>, vector<64x192xbf16>, vector<12x192xf32> -> vector<12x192xf32>
    %20 = vector.extract_strided_slice %19 {offsets = [0, 0], sizes = [12, 64], strides = [1, 1]} : vector<12x192xf32> to vector<12x64xf32>
    %21 = vector.extract_strided_slice %19 {offsets = [0, 64], sizes = [12, 64], strides = [1, 1]} : vector<12x192xf32> to vector<12x64xf32>
    %22 = vector.extract_strided_slice %19 {offsets = [0, 128], sizes = [12, 64], strides = [1, 1]} : vector<12x192xf32> to vector<12x64xf32>
    %23 = tpu.iota {dimensions = array<i32: 0>} : vector<12x12xi32>
    %24 = tpu.iota {dimensions = array<i32: 1>} : vector<12x12xi32>
    %25 = arith.cmpi sle, %24, %23 : vector<12x12xi32>
    %26 = vector.extract_strided_slice %20 {offsets = [0, 0], sizes = [12, 16], strides = [1, 1]} : vector<12x64xf32> to vector<12x16xf32>
    %27 = vector.extract_strided_slice %21 {offsets = [0, 0], sizes = [12, 16], strides = [1, 1]} : vector<12x64xf32> to vector<12x16xf32>
    %28 = vector.extract_strided_slice %22 {offsets = [0, 0], sizes = [12, 16], strides = [1, 1]} : vector<12x64xf32> to vector<12x16xf32>
    %29 = vector.extract_strided_slice %26 {offsets = [0, 0], sizes = [12, 8], strides = [1, 1]} : vector<12x16xf32> to vector<12x8xf32>
    %30 = vector.extract_strided_slice %26 {offsets = [0, 8], sizes = [12, 8], strides = [1, 1]} : vector<12x16xf32> to vector<12x8xf32>
    %31 = arith.mulf %29, %2 : vector<12x8xf32>
    %32 = arith.mulf %30, %3 : vector<12x8xf32>
    %33 = arith.subf %31, %32 : vector<12x8xf32>
    %34 = arith.mulf %30, %2 : vector<12x8xf32>
    %35 = arith.mulf %29, %3 : vector<12x8xf32>
    %36 = arith.addf %34, %35 : vector<12x8xf32>
    %37 = tpu.concatenate %33, %36 in 1 : vector<12x8xf32>, vector<12x8xf32> -> vector<12x16xf32>
    %38 = vector.extract_strided_slice %27 {offsets = [0, 0], sizes = [12, 8], strides = [1, 1]} : vector<12x16xf32> to vector<12x8xf32>
    %39 = vector.extract_strided_slice %27 {offsets = [0, 8], sizes = [12, 8], strides = [1, 1]} : vector<12x16xf32> to vector<12x8xf32>
    %40 = arith.mulf %38, %2 : vector<12x8xf32>
    %41 = arith.mulf %39, %3 : vector<12x8xf32>
    %42 = arith.subf %40, %41 : vector<12x8xf32>
    %43 = arith.mulf %39, %2 : vector<12x8xf32>
    %44 = arith.mulf %38, %3 : vector<12x8xf32>
    %45 = arith.addf %43, %44 : vector<12x8xf32>
    %46 = tpu.concatenate %42, %45 in 1 : vector<12x8xf32>, vector<12x8xf32> -> vector<12x16xf32>
    %47 = arith.truncf %37 : vector<12x16xf32> to vector<12x16xbf16>
    %48 = arith.truncf %46 : vector<12x16xf32> to vector<12x16xbf16>
    %cst_12 = arith.constant dense<0.000000e+00> : vector<12x12xf32>
    %49 = tpu.matmul %47, %48, %cst_12 {dimension_numbers = #tpu.dot_dimension_numbers<[1], [1], [0], [0], [0, 0, 1, 0], [], []>} : vector<12x16xbf16>, vector<12x16xbf16>, vector<12x12xf32> -> vector<12x12xf32>
    %cst_13 = arith.constant 2.500000e-01 : f32
    %50 = vector.broadcast %cst_13 : f32 to vector<12x12xf32>
    %51 = arith.mulf %49, %50 : vector<12x12xf32>
    %cst_14 = arith.constant -1.000000e+30 : f32
    %52 = vector.broadcast %cst_14 : f32 to vector<12x12xf32>
    %53 = arith.select %25, %51, %52 : vector<12x12xi1>, vector<12x12xf32>
    %cst_15 = arith.constant dense<0xFF800000> : vector<12xf32>
    %54 = vector.multi_reduction <maximumf>, %53, %cst_15 [1] : vector<12x12xf32> to vector<12xf32>
    %55 = vector.shape_cast %54 : vector<12xf32> to vector<12x1xf32>
    %56 = vector.broadcast %55 : vector<12x1xf32> to vector<12x12xf32>
    %57 = arith.subf %53, %56 : vector<12x12xf32>
    %58 = math.exp %57 : vector<12x12xf32>
    %cst_16 = arith.constant dense<0.000000e+00> : vector<12xf32>
    %59 = vector.multi_reduction <add>, %58, %cst_16 [1] : vector<12x12xf32> to vector<12xf32>
    %60 = vector.shape_cast %59 : vector<12xf32> to vector<12x1xf32>
    %61 = tpu.reciprocal %60 {approx = true} : vector<12x1xf32> -> vector<12x1xf32>
    %62 = vector.broadcast %61 : vector<12x1xf32> to vector<12x12xf32>
    %63 = arith.mulf %58, %62 : vector<12x12xf32>
    %64 = arith.truncf %63 : vector<12x12xf32> to vector<12x12xbf16>
    %65 = arith.truncf %28 : vector<12x16xf32> to vector<12x16xbf16>
    %cst_17 = arith.constant dense<0.000000e+00> : vector<12x16xf32>
    %66 = tpu.matmul %64, %65, %cst_17 {dimension_numbers = #tpu.dot_dimension_numbers<[1], [0], [0], [1], [0, 0, 1, 1], [], []>} : vector<12x12xbf16>, vector<12x16xbf16>, vector<12x16xf32> -> vector<12x16xf32>
    %67 = vector.extract_strided_slice %20 {offsets = [0, 16], sizes = [12, 16], strides = [1, 1]} : vector<12x64xf32> to vector<12x16xf32>
    %68 = vector.extract_strided_slice %21 {offsets = [0, 16], sizes = [12, 16], strides = [1, 1]} : vector<12x64xf32> to vector<12x16xf32>
    %69 = vector.extract_strided_slice %22 {offsets = [0, 16], sizes = [12, 16], strides = [1, 1]} : vector<12x64xf32> to vector<12x16xf32>
    %70 = vector.extract_strided_slice %67 {offsets = [0, 0], sizes = [12, 8], strides = [1, 1]} : vector<12x16xf32> to vector<12x8xf32>
    %71 = vector.extract_strided_slice %67 {offsets = [0, 8], sizes = [12, 8], strides = [1, 1]} : vector<12x16xf32> to vector<12x8xf32>
    %72 = arith.mulf %70, %2 : vector<12x8xf32>
    %73 = arith.mulf %71, %3 : vector<12x8xf32>
    %74 = arith.subf %72, %73 : vector<12x8xf32>
    %75 = arith.mulf %71, %2 : vector<12x8xf32>
    %76 = arith.mulf %70, %3 : vector<12x8xf32>
    %77 = arith.addf %75, %76 : vector<12x8xf32>
    %78 = tpu.concatenate %74, %77 in 1 : vector<12x8xf32>, vector<12x8xf32> -> vector<12x16xf32>
    %79 = vector.extract_strided_slice %68 {offsets = [0, 0], sizes = [12, 8], strides = [1, 1]} : vector<12x16xf32> to vector<12x8xf32>
    %80 = vector.extract_strided_slice %68 {offsets = [0, 8], sizes = [12, 8], strides = [1, 1]} : vector<12x16xf32> to vector<12x8xf32>
    %81 = arith.mulf %79, %2 : vector<12x8xf32>
    %82 = arith.mulf %80, %3 : vector<12x8xf32>
    %83 = arith.subf %81, %82 : vector<12x8xf32>
    %84 = arith.mulf %80, %2 : vector<12x8xf32>
    %85 = arith.mulf %79, %3 : vector<12x8xf32>
    %86 = arith.addf %84, %85 : vector<12x8xf32>
    %87 = tpu.concatenate %83, %86 in 1 : vector<12x8xf32>, vector<12x8xf32> -> vector<12x16xf32>
    %88 = arith.truncf %78 : vector<12x16xf32> to vector<12x16xbf16>
    %89 = arith.truncf %87 : vector<12x16xf32> to vector<12x16xbf16>
    %cst_18 = arith.constant dense<0.000000e+00> : vector<12x12xf32>
    %90 = tpu.matmul %88, %89, %cst_18 {dimension_numbers = #tpu.dot_dimension_numbers<[1], [1], [0], [0], [0, 0, 1, 0], [], []>} : vector<12x16xbf16>, vector<12x16xbf16>, vector<12x12xf32> -> vector<12x12xf32>
    %cst_19 = arith.constant 2.500000e-01 : f32
    %91 = vector.broadcast %cst_19 : f32 to vector<12x12xf32>
    %92 = arith.mulf %90, %91 : vector<12x12xf32>
    %cst_20 = arith.constant -1.000000e+30 : f32
    %93 = vector.broadcast %cst_20 : f32 to vector<12x12xf32>
    %94 = arith.select %25, %92, %93 : vector<12x12xi1>, vector<12x12xf32>
    %cst_21 = arith.constant dense<0xFF800000> : vector<12xf32>
    %95 = vector.multi_reduction <maximumf>, %94, %cst_21 [1] : vector<12x12xf32> to vector<12xf32>
    %96 = vector.shape_cast %95 : vector<12xf32> to vector<12x1xf32>
    %97 = vector.broadcast %96 : vector<12x1xf32> to vector<12x12xf32>
    %98 = arith.subf %94, %97 : vector<12x12xf32>
    %99 = math.exp %98 : vector<12x12xf32>
    %cst_22 = arith.constant dense<0.000000e+00> : vector<12xf32>
    %100 = vector.multi_reduction <add>, %99, %cst_22 [1] : vector<12x12xf32> to vector<12xf32>
    %101 = vector.shape_cast %100 : vector<12xf32> to vector<12x1xf32>
    %102 = tpu.reciprocal %101 {approx = true} : vector<12x1xf32> -> vector<12x1xf32>
    %103 = vector.broadcast %102 : vector<12x1xf32> to vector<12x12xf32>
    %104 = arith.mulf %99, %103 : vector<12x12xf32>
    %105 = arith.truncf %104 : vector<12x12xf32> to vector<12x12xbf16>
    %106 = arith.truncf %69 : vector<12x16xf32> to vector<12x16xbf16>
    %cst_23 = arith.constant dense<0.000000e+00> : vector<12x16xf32>
    %107 = tpu.matmul %105, %106, %cst_23 {dimension_numbers = #tpu.dot_dimension_numbers<[1], [0], [0], [1], [0, 0, 1, 1], [], []>} : vector<12x12xbf16>, vector<12x16xbf16>, vector<12x16xf32> -> vector<12x16xf32>
    %108 = vector.extract_strided_slice %20 {offsets = [0, 32], sizes = [12, 16], strides = [1, 1]} : vector<12x64xf32> to vector<12x16xf32>
    %109 = vector.extract_strided_slice %21 {offsets = [0, 32], sizes = [12, 16], strides = [1, 1]} : vector<12x64xf32> to vector<12x16xf32>
    %110 = vector.extract_strided_slice %22 {offsets = [0, 32], sizes = [12, 16], strides = [1, 1]} : vector<12x64xf32> to vector<12x16xf32>
    %111 = vector.extract_strided_slice %108 {offsets = [0, 0], sizes = [12, 8], strides = [1, 1]} : vector<12x16xf32> to vector<12x8xf32>
    %112 = vector.extract_strided_slice %108 {offsets = [0, 8], sizes = [12, 8], strides = [1, 1]} : vector<12x16xf32> to vector<12x8xf32>
    %113 = arith.mulf %111, %2 : vector<12x8xf32>
    %114 = arith.mulf %112, %3 : vector<12x8xf32>
    %115 = arith.subf %113, %114 : vector<12x8xf32>
    %116 = arith.mulf %112, %2 : vector<12x8xf32>
    %117 = arith.mulf %111, %3 : vector<12x8xf32>
    %118 = arith.addf %116, %117 : vector<12x8xf32>
    %119 = tpu.concatenate %115, %118 in 1 : vector<12x8xf32>, vector<12x8xf32> -> vector<12x16xf32>
    %120 = vector.extract_strided_slice %109 {offsets = [0, 0], sizes = [12, 8], strides = [1, 1]} : vector<12x16xf32> to vector<12x8xf32>
    %121 = vector.extract_strided_slice %109 {offsets = [0, 8], sizes = [12, 8], strides = [1, 1]} : vector<12x16xf32> to vector<12x8xf32>
    %122 = arith.mulf %120, %2 : vector<12x8xf32>
    %123 = arith.mulf %121, %3 : vector<12x8xf32>
    %124 = arith.subf %122, %123 : vector<12x8xf32>
    %125 = arith.mulf %121, %2 : vector<12x8xf32>
    %126 = arith.mulf %120, %3 : vector<12x8xf32>
    %127 = arith.addf %125, %126 : vector<12x8xf32>
    %128 = tpu.concatenate %124, %127 in 1 : vector<12x8xf32>, vector<12x8xf32> -> vector<12x16xf32>
    %129 = arith.truncf %119 : vector<12x16xf32> to vector<12x16xbf16>
    %130 = arith.truncf %128 : vector<12x16xf32> to vector<12x16xbf16>
    %cst_24 = arith.constant dense<0.000000e+00> : vector<12x12xf32>
    %131 = tpu.matmul %129, %130, %cst_24 {dimension_numbers = #tpu.dot_dimension_numbers<[1], [1], [0], [0], [0, 0, 1, 0], [], []>} : vector<12x16xbf16>, vector<12x16xbf16>, vector<12x12xf32> -> vector<12x12xf32>
    %cst_25 = arith.constant 2.500000e-01 : f32
    %132 = vector.broadcast %cst_25 : f32 to vector<12x12xf32>
    %133 = arith.mulf %131, %132 : vector<12x12xf32>
    %cst_26 = arith.constant -1.000000e+30 : f32
    %134 = vector.broadcast %cst_26 : f32 to vector<12x12xf32>
    %135 = arith.select %25, %133, %134 : vector<12x12xi1>, vector<12x12xf32>
    %cst_27 = arith.constant dense<0xFF800000> : vector<12xf32>
    %136 = vector.multi_reduction <maximumf>, %135, %cst_27 [1] : vector<12x12xf32> to vector<12xf32>
    %137 = vector.shape_cast %136 : vector<12xf32> to vector<12x1xf32>
    %138 = vector.broadcast %137 : vector<12x1xf32> to vector<12x12xf32>
    %139 = arith.subf %135, %138 : vector<12x12xf32>
    %140 = math.exp %139 : vector<12x12xf32>
    %cst_28 = arith.constant dense<0.000000e+00> : vector<12xf32>
    %141 = vector.multi_reduction <add>, %140, %cst_28 [1] : vector<12x12xf32> to vector<12xf32>
    %142 = vector.shape_cast %141 : vector<12xf32> to vector<12x1xf32>
    %143 = tpu.reciprocal %142 {approx = true} : vector<12x1xf32> -> vector<12x1xf32>
    %144 = vector.broadcast %143 : vector<12x1xf32> to vector<12x12xf32>
    %145 = arith.mulf %140, %144 : vector<12x12xf32>
    %146 = arith.truncf %145 : vector<12x12xf32> to vector<12x12xbf16>
    %147 = arith.truncf %110 : vector<12x16xf32> to vector<12x16xbf16>
    %cst_29 = arith.constant dense<0.000000e+00> : vector<12x16xf32>
    %148 = tpu.matmul %146, %147, %cst_29 {dimension_numbers = #tpu.dot_dimension_numbers<[1], [0], [0], [1], [0, 0, 1, 1], [], []>} : vector<12x12xbf16>, vector<12x16xbf16>, vector<12x16xf32> -> vector<12x16xf32>
    %149 = vector.extract_strided_slice %20 {offsets = [0, 48], sizes = [12, 16], strides = [1, 1]} : vector<12x64xf32> to vector<12x16xf32>
    %150 = vector.extract_strided_slice %21 {offsets = [0, 48], sizes = [12, 16], strides = [1, 1]} : vector<12x64xf32> to vector<12x16xf32>
    %151 = vector.extract_strided_slice %22 {offsets = [0, 48], sizes = [12, 16], strides = [1, 1]} : vector<12x64xf32> to vector<12x16xf32>
    %152 = vector.extract_strided_slice %149 {offsets = [0, 0], sizes = [12, 8], strides = [1, 1]} : vector<12x16xf32> to vector<12x8xf32>
    %153 = vector.extract_strided_slice %149 {offsets = [0, 8], sizes = [12, 8], strides = [1, 1]} : vector<12x16xf32> to vector<12x8xf32>
    %154 = arith.mulf %152, %2 : vector<12x8xf32>
    %155 = arith.mulf %153, %3 : vector<12x8xf32>
    %156 = arith.subf %154, %155 : vector<12x8xf32>
    %157 = arith.mulf %153, %2 : vector<12x8xf32>
    %158 = arith.mulf %152, %3 : vector<12x8xf32>
    %159 = arith.addf %157, %158 : vector<12x8xf32>
    %160 = tpu.concatenate %156, %159 in 1 : vector<12x8xf32>, vector<12x8xf32> -> vector<12x16xf32>
    %161 = vector.extract_strided_slice %150 {offsets = [0, 0], sizes = [12, 8], strides = [1, 1]} : vector<12x16xf32> to vector<12x8xf32>
    %162 = vector.extract_strided_slice %150 {offsets = [0, 8], sizes = [12, 8], strides = [1, 1]} : vector<12x16xf32> to vector<12x8xf32>
    %163 = arith.mulf %161, %2 : vector<12x8xf32>
    %164 = arith.mulf %162, %3 : vector<12x8xf32>
    %165 = arith.subf %163, %164 : vector<12x8xf32>
    %166 = arith.mulf %162, %2 : vector<12x8xf32>
    %167 = arith.mulf %161, %3 : vector<12x8xf32>
    %168 = arith.addf %166, %167 : vector<12x8xf32>
    %169 = tpu.concatenate %165, %168 in 1 : vector<12x8xf32>, vector<12x8xf32> -> vector<12x16xf32>
    %170 = arith.truncf %160 : vector<12x16xf32> to vector<12x16xbf16>
    %171 = arith.truncf %169 : vector<12x16xf32> to vector<12x16xbf16>
    %cst_30 = arith.constant dense<0.000000e+00> : vector<12x12xf32>
    %172 = tpu.matmul %170, %171, %cst_30 {dimension_numbers = #tpu.dot_dimension_numbers<[1], [1], [0], [0], [0, 0, 1, 0], [], []>} : vector<12x16xbf16>, vector<12x16xbf16>, vector<12x12xf32> -> vector<12x12xf32>
    %cst_31 = arith.constant 2.500000e-01 : f32
    %173 = vector.broadcast %cst_31 : f32 to vector<12x12xf32>
    %174 = arith.mulf %172, %173 : vector<12x12xf32>
    %cst_32 = arith.constant -1.000000e+30 : f32
    %175 = vector.broadcast %cst_32 : f32 to vector<12x12xf32>
    %176 = arith.select %25, %174, %175 : vector<12x12xi1>, vector<12x12xf32>
    %cst_33 = arith.constant dense<0xFF800000> : vector<12xf32>
    %177 = vector.multi_reduction <maximumf>, %176, %cst_33 [1] : vector<12x12xf32> to vector<12xf32>
    %178 = vector.shape_cast %177 : vector<12xf32> to vector<12x1xf32>
    %179 = vector.broadcast %178 : vector<12x1xf32> to vector<12x12xf32>
    %180 = arith.subf %176, %179 : vector<12x12xf32>
    %181 = math.exp %180 : vector<12x12xf32>
    %cst_34 = arith.constant dense<0.000000e+00> : vector<12xf32>
    %182 = vector.multi_reduction <add>, %181, %cst_34 [1] : vector<12x12xf32> to vector<12xf32>
    %183 = vector.shape_cast %182 : vector<12xf32> to vector<12x1xf32>
    %184 = tpu.reciprocal %183 {approx = true} : vector<12x1xf32> -> vector<12x1xf32>
    %185 = vector.broadcast %184 : vector<12x1xf32> to vector<12x12xf32>
    %186 = arith.mulf %181, %185 : vector<12x12xf32>
    %187 = arith.truncf %186 : vector<12x12xf32> to vector<12x12xbf16>
    %188 = arith.truncf %151 : vector<12x16xf32> to vector<12x16xbf16>
    %cst_35 = arith.constant dense<0.000000e+00> : vector<12x16xf32>
    %189 = tpu.matmul %187, %188, %cst_35 {dimension_numbers = #tpu.dot_dimension_numbers<[1], [0], [0], [1], [0, 0, 1, 1], [], []>} : vector<12x12xbf16>, vector<12x16xbf16>, vector<12x16xf32> -> vector<12x16xf32>
    %190 = tpu.concatenate %66, %107, %148, %189 in 1 : vector<12x16xf32>, vector<12x16xf32>, vector<12x16xf32>, vector<12x16xf32> -> vector<12x64xf32>
    %191 = arith.truncf %190 : vector<12x64xf32> to vector<12x64xbf16>
    %c0_36 = arith.constant 0 : index
    %c0_37 = arith.constant 0 : index
    %192 = vector.load %arg8[%c0_36, %c0_37] : memref<64x64xbf16, #tpu.memory_space<vmem>>, vector<64x64xbf16>
    %cst_38 = arith.constant dense<0.000000e+00> : vector<12x64xf32>
    %193 = tpu.matmul %191, %192, %cst_38 {dimension_numbers = #tpu.dot_dimension_numbers<[1], [0], [0], [1], [0, 0, 1, 1], [], []>} : vector<12x64xbf16>, vector<64x64xbf16>, vector<12x64xf32> -> vector<12x64xf32>
    %194 = arith.addf %1, %193 : vector<12x64xf32>
    %195 = arith.mulf %194, %194 : vector<12x64xf32>
    %cst_39 = arith.constant dense<0.000000e+00> : vector<12xf32>
    %196 = vector.multi_reduction <add>, %195, %cst_39 [1] : vector<12x64xf32> to vector<12xf32>
    %197 = vector.shape_cast %196 : vector<12xf32> to vector<12x1xf32>
    %cst_40 = arith.constant 6.400000e+01 : f32
    %198 = vector.broadcast %cst_40 : f32 to vector<12x1xf32>
    %199 = arith.divf %197, %198 : vector<12x1xf32>
    %cst_41 = arith.constant 9.99999997E-7 : f32
    %200 = vector.broadcast %cst_41 : f32 to vector<12x1xf32>
    %201 = arith.addf %199, %200 : vector<12x1xf32>
    %202 = math.rsqrt %201 : vector<12x1xf32>
    %203 = vector.broadcast %202 : vector<12x1xf32> to vector<12x64xf32>
    %204 = arith.mulf %194, %203 : vector<12x64xf32>
    %c0_42 = arith.constant 0 : index
    %c0_43 = arith.constant 0 : index
    %205 = vector.load %arg5[%c0_42, %c0_43] : memref<1x64xf32, #tpu.memory_space<vmem>>, vector<1x64xf32>
    %206 = vector.broadcast %205 : vector<1x64xf32> to vector<12x64xf32>
    %207 = arith.mulf %204, %206 : vector<12x64xf32>
    %208 = arith.truncf %207 : vector<12x64xf32> to vector<12x64xbf16>
    %c0_44 = arith.constant 0 : index
    %c0_45 = arith.constant 0 : index
    %209 = vector.load %arg7[%c0_44, %c0_45] : memref<64x256xbf16, #tpu.memory_space<vmem>>, vector<64x256xbf16>
    %cst_46 = arith.constant dense<0.000000e+00> : vector<12x256xf32>
    %210 = tpu.matmul %208, %209, %cst_46 {dimension_numbers = #tpu.dot_dimension_numbers<[1], [0], [0], [1], [0, 0, 1, 1], [], []>} : vector<12x64xbf16>, vector<64x256xbf16>, vector<12x256xf32> -> vector<12x256xf32>
    %211 = vector.extract_strided_slice %210 {offsets = [0, 0], sizes = [12, 128], strides = [1, 1]} : vector<12x256xf32> to vector<12x128xf32>
    %212 = vector.extract_strided_slice %210 {offsets = [0, 128], sizes = [12, 128], strides = [1, 1]} : vector<12x256xf32> to vector<12x128xf32>
    %213 = arith.negf %211 : vector<12x128xf32>
    %214 = math.exp %213 : vector<12x128xf32>
    %cst_47 = arith.constant 1.000000e+00 : f32
    %215 = vector.broadcast %cst_47 : f32 to vector<12x128xf32>
    %216 = arith.addf %215, %214 : vector<12x128xf32>
    %217 = arith.divf %215, %216 : vector<12x128xf32>
    %218 = arith.mulf %211, %217 : vector<12x128xf32>
    %219 = arith.mulf %218, %212 : vector<12x128xf32>
    %220 = arith.truncf %219 : vector<12x128xf32> to vector<12x128xbf16>
    %c0_48 = arith.constant 0 : index
    %c0_49 = arith.constant 0 : index
    %221 = vector.load %arg6[%c0_48, %c0_49] : memref<128x64xbf16, #tpu.memory_space<vmem>>, vector<128x64xbf16>
    %cst_50 = arith.constant dense<0.000000e+00> : vector<12x64xf32>
    %222 = tpu.matmul %220, %221, %cst_50 {dimension_numbers = #tpu.dot_dimension_numbers<[1], [0], [0], [1], [0, 0, 1, 1], [], []>} : vector<12x128xbf16>, vector<128x64xbf16>, vector<12x64xf32> -> vector<12x64xf32>
    %223 = arith.addf %194, %222 : vector<12x64xf32>
    %224 = arith.mulf %223, %223 : vector<12x64xf32>
    %cst_51 = arith.constant dense<0.000000e+00> : vector<12xf32>
    %225 = vector.multi_reduction <add>, %224, %cst_51 [1] : vector<12x64xf32> to vector<12xf32>
    %226 = vector.shape_cast %225 : vector<12xf32> to vector<12x1xf32>
    %cst_52 = arith.constant 6.400000e+01 : f32
    %227 = vector.broadcast %cst_52 : f32 to vector<12x1xf32>
    %228 = arith.divf %226, %227 : vector<12x1xf32>
    %cst_53 = arith.constant 9.99999997E-7 : f32
    %229 = vector.broadcast %cst_53 : f32 to vector<12x1xf32>
    %230 = arith.addf %228, %229 : vector<12x1xf32>
    %231 = math.rsqrt %230 : vector<12x1xf32>
    %232 = vector.broadcast %231 : vector<12x1xf32> to vector<12x64xf32>
    %233 = arith.mulf %223, %232 : vector<12x64xf32>
    %c0_54 = arith.constant 0 : index
    %c0_55 = arith.constant 0 : index
    %234 = vector.load %arg10[%c0_54, %c0_55] : memref<1x64xf32, #tpu.memory_space<vmem>>, vector<1x64xf32>
    %235 = vector.broadcast %234 : vector<1x64xf32> to vector<12x64xf32>
    %236 = arith.mulf %233, %235 : vector<12x64xf32>
    %237 = arith.truncf %236 : vector<12x64xf32> to vector<12x64xbf16>
    %c0_56 = arith.constant 0 : index
    %c0_57 = arith.constant 0 : index
    %238 = vector.load %arg15[%c0_56, %c0_57] : memref<64x192xbf16, #tpu.memory_space<vmem>>, vector<64x192xbf16>
    %cst_58 = arith.constant dense<0.000000e+00> : vector<12x192xf32>
    %239 = tpu.matmul %237, %238, %cst_58 {dimension_numbers = #tpu.dot_dimension_numbers<[1], [0], [0], [1], [0, 0, 1, 1], [], []>} : vector<12x64xbf16>, vector<64x192xbf16>, vector<12x192xf32> -> vector<12x192xf32>
    %240 = vector.extract_strided_slice %239 {offsets = [0, 0], sizes = [12, 64], strides = [1, 1]} : vector<12x192xf32> to vector<12x64xf32>
    %241 = vector.extract_strided_slice %239 {offsets = [0, 64], sizes = [12, 64], strides = [1, 1]} : vector<12x192xf32> to vector<12x64xf32>
    %242 = vector.extract_strided_slice %239 {offsets = [0, 128], sizes = [12, 64], strides = [1, 1]} : vector<12x192xf32> to vector<12x64xf32>
    %243 = tpu.iota {dimensions = array<i32: 0>} : vector<12x12xi32>
    %244 = tpu.iota {dimensions = array<i32: 1>} : vector<12x12xi32>
    %245 = arith.cmpi sle, %244, %243 : vector<12x12xi32>
    %246 = vector.extract_strided_slice %240 {offsets = [0, 0], sizes = [12, 16], strides = [1, 1]} : vector<12x64xf32> to vector<12x16xf32>
    %247 = vector.extract_strided_slice %241 {offsets = [0, 0], sizes = [12, 16], strides = [1, 1]} : vector<12x64xf32> to vector<12x16xf32>
    %248 = vector.extract_strided_slice %242 {offsets = [0, 0], sizes = [12, 16], strides = [1, 1]} : vector<12x64xf32> to vector<12x16xf32>
    %249 = vector.extract_strided_slice %246 {offsets = [0, 0], sizes = [12, 8], strides = [1, 1]} : vector<12x16xf32> to vector<12x8xf32>
    %250 = vector.extract_strided_slice %246 {offsets = [0, 8], sizes = [12, 8], strides = [1, 1]} : vector<12x16xf32> to vector<12x8xf32>
    %251 = arith.mulf %249, %2 : vector<12x8xf32>
    %252 = arith.mulf %250, %3 : vector<12x8xf32>
    %253 = arith.subf %251, %252 : vector<12x8xf32>
    %254 = arith.mulf %250, %2 : vector<12x8xf32>
    %255 = arith.mulf %249, %3 : vector<12x8xf32>
    %256 = arith.addf %254, %255 : vector<12x8xf32>
    %257 = tpu.concatenate %253, %256 in 1 : vector<12x8xf32>, vector<12x8xf32> -> vector<12x16xf32>
    %258 = vector.extract_strided_slice %247 {offsets = [0, 0], sizes = [12, 8], strides = [1, 1]} : vector<12x16xf32> to vector<12x8xf32>
    %259 = vector.extract_strided_slice %247 {offsets = [0, 8], sizes = [12, 8], strides = [1, 1]} : vector<12x16xf32> to vector<12x8xf32>
    %260 = arith.mulf %258, %2 : vector<12x8xf32>
    %261 = arith.mulf %259, %3 : vector<12x8xf32>
    %262 = arith.subf %260, %261 : vector<12x8xf32>
    %263 = arith.mulf %259, %2 : vector<12x8xf32>
    %264 = arith.mulf %258, %3 : vector<12x8xf32>
    %265 = arith.addf %263, %264 : vector<12x8xf32>
    %266 = tpu.concatenate %262, %265 in 1 : vector<12x8xf32>, vector<12x8xf32> -> vector<12x16xf32>
    %267 = arith.truncf %257 : vector<12x16xf32> to vector<12x16xbf16>
    %268 = arith.truncf %266 : vector<12x16xf32> to vector<12x16xbf16>
    %cst_59 = arith.constant dense<0.000000e+00> : vector<12x12xf32>
    %269 = tpu.matmul %267, %268, %cst_59 {dimension_numbers = #tpu.dot_dimension_numbers<[1], [1], [0], [0], [0, 0, 1, 0], [], []>} : vector<12x16xbf16>, vector<12x16xbf16>, vector<12x12xf32> -> vector<12x12xf32>
    %cst_60 = arith.constant 2.500000e-01 : f32
    %270 = vector.broadcast %cst_60 : f32 to vector<12x12xf32>
    %271 = arith.mulf %269, %270 : vector<12x12xf32>
    %cst_61 = arith.constant -1.000000e+30 : f32
    %272 = vector.broadcast %cst_61 : f32 to vector<12x12xf32>
    %273 = arith.select %245, %271, %272 : vector<12x12xi1>, vector<12x12xf32>
    %cst_62 = arith.constant dense<0xFF800000> : vector<12xf32>
    %274 = vector.multi_reduction <maximumf>, %273, %cst_62 [1] : vector<12x12xf32> to vector<12xf32>
    %275 = vector.shape_cast %274 : vector<12xf32> to vector<12x1xf32>
    %276 = vector.broadcast %275 : vector<12x1xf32> to vector<12x12xf32>
    %277 = arith.subf %273, %276 : vector<12x12xf32>
    %278 = math.exp %277 : vector<12x12xf32>
    %cst_63 = arith.constant dense<0.000000e+00> : vector<12xf32>
    %279 = vector.multi_reduction <add>, %278, %cst_63 [1] : vector<12x12xf32> to vector<12xf32>
    %280 = vector.shape_cast %279 : vector<12xf32> to vector<12x1xf32>
    %281 = tpu.reciprocal %280 {approx = true} : vector<12x1xf32> -> vector<12x1xf32>
    %282 = vector.broadcast %281 : vector<12x1xf32> to vector<12x12xf32>
    %283 = arith.mulf %278, %282 : vector<12x12xf32>
    %284 = arith.truncf %283 : vector<12x12xf32> to vector<12x12xbf16>
    %285 = arith.truncf %248 : vector<12x16xf32> to vector<12x16xbf16>
    %cst_64 = arith.constant dense<0.000000e+00> : vector<12x16xf32>
    %286 = tpu.matmul %284, %285, %cst_64 {dimension_numbers = #tpu.dot_dimension_numbers<[1], [0], [0], [1], [0, 0, 1, 1], [], []>} : vector<12x12xbf16>, vector<12x16xbf16>, vector<12x16xf32> -> vector<12x16xf32>
    %287 = vector.extract_strided_slice %240 {offsets = [0, 16], sizes = [12, 16], strides = [1, 1]} : vector<12x64xf32> to vector<12x16xf32>
    %288 = vector.extract_strided_slice %241 {offsets = [0, 16], sizes = [12, 16], strides = [1, 1]} : vector<12x64xf32> to vector<12x16xf32>
    %289 = vector.extract_strided_slice %242 {offsets = [0, 16], sizes = [12, 16], strides = [1, 1]} : vector<12x64xf32> to vector<12x16xf32>
    %290 = vector.extract_strided_slice %287 {offsets = [0, 0], sizes = [12, 8], strides = [1, 1]} : vector<12x16xf32> to vector<12x8xf32>
    %291 = vector.extract_strided_slice %287 {offsets = [0, 8], sizes = [12, 8], strides = [1, 1]} : vector<12x16xf32> to vector<12x8xf32>
    %292 = arith.mulf %290, %2 : vector<12x8xf32>
    %293 = arith.mulf %291, %3 : vector<12x8xf32>
    %294 = arith.subf %292, %293 : vector<12x8xf32>
    %295 = arith.mulf %291, %2 : vector<12x8xf32>
    %296 = arith.mulf %290, %3 : vector<12x8xf32>
    %297 = arith.addf %295, %296 : vector<12x8xf32>
    %298 = tpu.concatenate %294, %297 in 1 : vector<12x8xf32>, vector<12x8xf32> -> vector<12x16xf32>
    %299 = vector.extract_strided_slice %288 {offsets = [0, 0], sizes = [12, 8], strides = [1, 1]} : vector<12x16xf32> to vector<12x8xf32>
    %300 = vector.extract_strided_slice %288 {offsets = [0, 8], sizes = [12, 8], strides = [1, 1]} : vector<12x16xf32> to vector<12x8xf32>
    %301 = arith.mulf %299, %2 : vector<12x8xf32>
    %302 = arith.mulf %300, %3 : vector<12x8xf32>
    %303 = arith.subf %301, %302 : vector<12x8xf32>
    %304 = arith.mulf %300, %2 : vector<12x8xf32>
    %305 = arith.mulf %299, %3 : vector<12x8xf32>
    %306 = arith.addf %304, %305 : vector<12x8xf32>
    %307 = tpu.concatenate %303, %306 in 1 : vector<12x8xf32>, vector<12x8xf32> -> vector<12x16xf32>
    %308 = arith.truncf %298 : vector<12x16xf32> to vector<12x16xbf16>
    %309 = arith.truncf %307 : vector<12x16xf32> to vector<12x16xbf16>
    %cst_65 = arith.constant dense<0.000000e+00> : vector<12x12xf32>
    %310 = tpu.matmul %308, %309, %cst_65 {dimension_numbers = #tpu.dot_dimension_numbers<[1], [1], [0], [0], [0, 0, 1, 0], [], []>} : vector<12x16xbf16>, vector<12x16xbf16>, vector<12x12xf32> -> vector<12x12xf32>
    %cst_66 = arith.constant 2.500000e-01 : f32
    %311 = vector.broadcast %cst_66 : f32 to vector<12x12xf32>
    %312 = arith.mulf %310, %311 : vector<12x12xf32>
    %cst_67 = arith.constant -1.000000e+30 : f32
    %313 = vector.broadcast %cst_67 : f32 to vector<12x12xf32>
    %314 = arith.select %245, %312, %313 : vector<12x12xi1>, vector<12x12xf32>
    %cst_68 = arith.constant dense<0xFF800000> : vector<12xf32>
    %315 = vector.multi_reduction <maximumf>, %314, %cst_68 [1] : vector<12x12xf32> to vector<12xf32>
    %316 = vector.shape_cast %315 : vector<12xf32> to vector<12x1xf32>
    %317 = vector.broadcast %316 : vector<12x1xf32> to vector<12x12xf32>
    %318 = arith.subf %314, %317 : vector<12x12xf32>
    %319 = math.exp %318 : vector<12x12xf32>
    %cst_69 = arith.constant dense<0.000000e+00> : vector<12xf32>
    %320 = vector.multi_reduction <add>, %319, %cst_69 [1] : vector<12x12xf32> to vector<12xf32>
    %321 = vector.shape_cast %320 : vector<12xf32> to vector<12x1xf32>
    %322 = tpu.reciprocal %321 {approx = true} : vector<12x1xf32> -> vector<12x1xf32>
    %323 = vector.broadcast %322 : vector<12x1xf32> to vector<12x12xf32>
    %324 = arith.mulf %319, %323 : vector<12x12xf32>
    %325 = arith.truncf %324 : vector<12x12xf32> to vector<12x12xbf16>
    %326 = arith.truncf %289 : vector<12x16xf32> to vector<12x16xbf16>
    %cst_70 = arith.constant dense<0.000000e+00> : vector<12x16xf32>
    %327 = tpu.matmul %325, %326, %cst_70 {dimension_numbers = #tpu.dot_dimension_numbers<[1], [0], [0], [1], [0, 0, 1, 1], [], []>} : vector<12x12xbf16>, vector<12x16xbf16>, vector<12x16xf32> -> vector<12x16xf32>
    %328 = vector.extract_strided_slice %240 {offsets = [0, 32], sizes = [12, 16], strides = [1, 1]} : vector<12x64xf32> to vector<12x16xf32>
    %329 = vector.extract_strided_slice %241 {offsets = [0, 32], sizes = [12, 16], strides = [1, 1]} : vector<12x64xf32> to vector<12x16xf32>
    %330 = vector.extract_strided_slice %242 {offsets = [0, 32], sizes = [12, 16], strides = [1, 1]} : vector<12x64xf32> to vector<12x16xf32>
    %331 = vector.extract_strided_slice %328 {offsets = [0, 0], sizes = [12, 8], strides = [1, 1]} : vector<12x16xf32> to vector<12x8xf32>
    %332 = vector.extract_strided_slice %328 {offsets = [0, 8], sizes = [12, 8], strides = [1, 1]} : vector<12x16xf32> to vector<12x8xf32>
    %333 = arith.mulf %331, %2 : vector<12x8xf32>
    %334 = arith.mulf %332, %3 : vector<12x8xf32>
    %335 = arith.subf %333, %334 : vector<12x8xf32>
    %336 = arith.mulf %332, %2 : vector<12x8xf32>
    %337 = arith.mulf %331, %3 : vector<12x8xf32>
    %338 = arith.addf %336, %337 : vector<12x8xf32>
    %339 = tpu.concatenate %335, %338 in 1 : vector<12x8xf32>, vector<12x8xf32> -> vector<12x16xf32>
    %340 = vector.extract_strided_slice %329 {offsets = [0, 0], sizes = [12, 8], strides = [1, 1]} : vector<12x16xf32> to vector<12x8xf32>
    %341 = vector.extract_strided_slice %329 {offsets = [0, 8], sizes = [12, 8], strides = [1, 1]} : vector<12x16xf32> to vector<12x8xf32>
    %342 = arith.mulf %340, %2 : vector<12x8xf32>
    %343 = arith.mulf %341, %3 : vector<12x8xf32>
    %344 = arith.subf %342, %343 : vector<12x8xf32>
    %345 = arith.mulf %341, %2 : vector<12x8xf32>
    %346 = arith.mulf %340, %3 : vector<12x8xf32>
    %347 = arith.addf %345, %346 : vector<12x8xf32>
    %348 = tpu.concatenate %344, %347 in 1 : vector<12x8xf32>, vector<12x8xf32> -> vector<12x16xf32>
    %349 = arith.truncf %339 : vector<12x16xf32> to vector<12x16xbf16>
    %350 = arith.truncf %348 : vector<12x16xf32> to vector<12x16xbf16>
    %cst_71 = arith.constant dense<0.000000e+00> : vector<12x12xf32>
    %351 = tpu.matmul %349, %350, %cst_71 {dimension_numbers = #tpu.dot_dimension_numbers<[1], [1], [0], [0], [0, 0, 1, 0], [], []>} : vector<12x16xbf16>, vector<12x16xbf16>, vector<12x12xf32> -> vector<12x12xf32>
    %cst_72 = arith.constant 2.500000e-01 : f32
    %352 = vector.broadcast %cst_72 : f32 to vector<12x12xf32>
    %353 = arith.mulf %351, %352 : vector<12x12xf32>
    %cst_73 = arith.constant -1.000000e+30 : f32
    %354 = vector.broadcast %cst_73 : f32 to vector<12x12xf32>
    %355 = arith.select %245, %353, %354 : vector<12x12xi1>, vector<12x12xf32>
    %cst_74 = arith.constant dense<0xFF800000> : vector<12xf32>
    %356 = vector.multi_reduction <maximumf>, %355, %cst_74 [1] : vector<12x12xf32> to vector<12xf32>
    %357 = vector.shape_cast %356 : vector<12xf32> to vector<12x1xf32>
    %358 = vector.broadcast %357 : vector<12x1xf32> to vector<12x12xf32>
    %359 = arith.subf %355, %358 : vector<12x12xf32>
    %360 = math.exp %359 : vector<12x12xf32>
    %cst_75 = arith.constant dense<0.000000e+00> : vector<12xf32>
    %361 = vector.multi_reduction <add>, %360, %cst_75 [1] : vector<12x12xf32> to vector<12xf32>
    %362 = vector.shape_cast %361 : vector<12xf32> to vector<12x1xf32>
    %363 = tpu.reciprocal %362 {approx = true} : vector<12x1xf32> -> vector<12x1xf32>
    %364 = vector.broadcast %363 : vector<12x1xf32> to vector<12x12xf32>
    %365 = arith.mulf %360, %364 : vector<12x12xf32>
    %366 = arith.truncf %365 : vector<12x12xf32> to vector<12x12xbf16>
    %367 = arith.truncf %330 : vector<12x16xf32> to vector<12x16xbf16>
    %cst_76 = arith.constant dense<0.000000e+00> : vector<12x16xf32>
    %368 = tpu.matmul %366, %367, %cst_76 {dimension_numbers = #tpu.dot_dimension_numbers<[1], [0], [0], [1], [0, 0, 1, 1], [], []>} : vector<12x12xbf16>, vector<12x16xbf16>, vector<12x16xf32> -> vector<12x16xf32>
    %369 = vector.extract_strided_slice %240 {offsets = [0, 48], sizes = [12, 16], strides = [1, 1]} : vector<12x64xf32> to vector<12x16xf32>
    %370 = vector.extract_strided_slice %241 {offsets = [0, 48], sizes = [12, 16], strides = [1, 1]} : vector<12x64xf32> to vector<12x16xf32>
    %371 = vector.extract_strided_slice %242 {offsets = [0, 48], sizes = [12, 16], strides = [1, 1]} : vector<12x64xf32> to vector<12x16xf32>
    %372 = vector.extract_strided_slice %369 {offsets = [0, 0], sizes = [12, 8], strides = [1, 1]} : vector<12x16xf32> to vector<12x8xf32>
    %373 = vector.extract_strided_slice %369 {offsets = [0, 8], sizes = [12, 8], strides = [1, 1]} : vector<12x16xf32> to vector<12x8xf32>
    %374 = arith.mulf %372, %2 : vector<12x8xf32>
    %375 = arith.mulf %373, %3 : vector<12x8xf32>
    %376 = arith.subf %374, %375 : vector<12x8xf32>
    %377 = arith.mulf %373, %2 : vector<12x8xf32>
    %378 = arith.mulf %372, %3 : vector<12x8xf32>
    %379 = arith.addf %377, %378 : vector<12x8xf32>
    %380 = tpu.concatenate %376, %379 in 1 : vector<12x8xf32>, vector<12x8xf32> -> vector<12x16xf32>
    %381 = vector.extract_strided_slice %370 {offsets = [0, 0], sizes = [12, 8], strides = [1, 1]} : vector<12x16xf32> to vector<12x8xf32>
    %382 = vector.extract_strided_slice %370 {offsets = [0, 8], sizes = [12, 8], strides = [1, 1]} : vector<12x16xf32> to vector<12x8xf32>
    %383 = arith.mulf %381, %2 : vector<12x8xf32>
    %384 = arith.mulf %382, %3 : vector<12x8xf32>
    %385 = arith.subf %383, %384 : vector<12x8xf32>
    %386 = arith.mulf %382, %2 : vector<12x8xf32>
    %387 = arith.mulf %381, %3 : vector<12x8xf32>
    %388 = arith.addf %386, %387 : vector<12x8xf32>
    %389 = tpu.concatenate %385, %388 in 1 : vector<12x8xf32>, vector<12x8xf32> -> vector<12x16xf32>
    %390 = arith.truncf %380 : vector<12x16xf32> to vector<12x16xbf16>
    %391 = arith.truncf %389 : vector<12x16xf32> to vector<12x16xbf16>
    %cst_77 = arith.constant dense<0.000000e+00> : vector<12x12xf32>
    %392 = tpu.matmul %390, %391, %cst_77 {dimension_numbers = #tpu.dot_dimension_numbers<[1], [1], [0], [0], [0, 0, 1, 0], [], []>} : vector<12x16xbf16>, vector<12x16xbf16>, vector<12x12xf32> -> vector<12x12xf32>
    %cst_78 = arith.constant 2.500000e-01 : f32
    %393 = vector.broadcast %cst_78 : f32 to vector<12x12xf32>
    %394 = arith.mulf %392, %393 : vector<12x12xf32>
    %cst_79 = arith.constant -1.000000e+30 : f32
    %395 = vector.broadcast %cst_79 : f32 to vector<12x12xf32>
    %396 = arith.select %245, %394, %395 : vector<12x12xi1>, vector<12x12xf32>
    %cst_80 = arith.constant dense<0xFF800000> : vector<12xf32>
    %397 = vector.multi_reduction <maximumf>, %396, %cst_80 [1] : vector<12x12xf32> to vector<12xf32>
    %398 = vector.shape_cast %397 : vector<12xf32> to vector<12x1xf32>
    %399 = vector.broadcast %398 : vector<12x1xf32> to vector<12x12xf32>
    %400 = arith.subf %396, %399 : vector<12x12xf32>
    %401 = math.exp %400 : vector<12x12xf32>
    %cst_81 = arith.constant dense<0.000000e+00> : vector<12xf32>
    %402 = vector.multi_reduction <add>, %401, %cst_81 [1] : vector<12x12xf32> to vector<12xf32>
    %403 = vector.shape_cast %402 : vector<12xf32> to vector<12x1xf32>
    %404 = tpu.reciprocal %403 {approx = true} : vector<12x1xf32> -> vector<12x1xf32>
    %405 = vector.broadcast %404 : vector<12x1xf32> to vector<12x12xf32>
    %406 = arith.mulf %401, %405 : vector<12x12xf32>
    %407 = arith.truncf %406 : vector<12x12xf32> to vector<12x12xbf16>
    %408 = arith.truncf %371 : vector<12x16xf32> to vector<12x16xbf16>
    %cst_82 = arith.constant dense<0.000000e+00> : vector<12x16xf32>
    %409 = tpu.matmul %407, %408, %cst_82 {dimension_numbers = #tpu.dot_dimension_numbers<[1], [0], [0], [1], [0, 0, 1, 1], [], []>} : vector<12x12xbf16>, vector<12x16xbf16>, vector<12x16xf32> -> vector<12x16xf32>
    %410 = tpu.concatenate %286, %327, %368, %409 in 1 : vector<12x16xf32>, vector<12x16xf32>, vector<12x16xf32>, vector<12x16xf32> -> vector<12x64xf32>
    %411 = arith.truncf %410 : vector<12x64xf32> to vector<12x64xbf16>
    %c0_83 = arith.constant 0 : index
    %c0_84 = arith.constant 0 : index
    %412 = vector.load %arg14[%c0_83, %c0_84] : memref<64x64xbf16, #tpu.memory_space<vmem>>, vector<64x64xbf16>
    %cst_85 = arith.constant dense<0.000000e+00> : vector<12x64xf32>
    %413 = tpu.matmul %411, %412, %cst_85 {dimension_numbers = #tpu.dot_dimension_numbers<[1], [0], [0], [1], [0, 0, 1, 1], [], []>} : vector<12x64xbf16>, vector<64x64xbf16>, vector<12x64xf32> -> vector<12x64xf32>
    %414 = arith.addf %223, %413 : vector<12x64xf32>
    %415 = arith.mulf %414, %414 : vector<12x64xf32>
    %cst_86 = arith.constant dense<0.000000e+00> : vector<12xf32>
    %416 = vector.multi_reduction <add>, %415, %cst_86 [1] : vector<12x64xf32> to vector<12xf32>
    %417 = vector.shape_cast %416 : vector<12xf32> to vector<12x1xf32>
    %cst_87 = arith.constant 6.400000e+01 : f32
    %418 = vector.broadcast %cst_87 : f32 to vector<12x1xf32>
    %419 = arith.divf %417, %418 : vector<12x1xf32>
    %cst_88 = arith.constant 9.99999997E-7 : f32
    %420 = vector.broadcast %cst_88 : f32 to vector<12x1xf32>
    %421 = arith.addf %419, %420 : vector<12x1xf32>
    %422 = math.rsqrt %421 : vector<12x1xf32>
    %423 = vector.broadcast %422 : vector<12x1xf32> to vector<12x64xf32>
    %424 = arith.mulf %414, %423 : vector<12x64xf32>
    %c0_89 = arith.constant 0 : index
    %c0_90 = arith.constant 0 : index
    %425 = vector.load %arg11[%c0_89, %c0_90] : memref<1x64xf32, #tpu.memory_space<vmem>>, vector<1x64xf32>
    %426 = vector.broadcast %425 : vector<1x64xf32> to vector<12x64xf32>
    %427 = arith.mulf %424, %426 : vector<12x64xf32>
    %428 = arith.truncf %427 : vector<12x64xf32> to vector<12x64xbf16>
    %c0_91 = arith.constant 0 : index
    %c0_92 = arith.constant 0 : index
    %429 = vector.load %arg13[%c0_91, %c0_92] : memref<64x256xbf16, #tpu.memory_space<vmem>>, vector<64x256xbf16>
    %cst_93 = arith.constant dense<0.000000e+00> : vector<12x256xf32>
    %430 = tpu.matmul %428, %429, %cst_93 {dimension_numbers = #tpu.dot_dimension_numbers<[1], [0], [0], [1], [0, 0, 1, 1], [], []>} : vector<12x64xbf16>, vector<64x256xbf16>, vector<12x256xf32> -> vector<12x256xf32>
    %431 = vector.extract_strided_slice %430 {offsets = [0, 0], sizes = [12, 128], strides = [1, 1]} : vector<12x256xf32> to vector<12x128xf32>
    %432 = vector.extract_strided_slice %430 {offsets = [0, 128], sizes = [12, 128], strides = [1, 1]} : vector<12x256xf32> to vector<12x128xf32>
    %433 = arith.negf %431 : vector<12x128xf32>
    %434 = math.exp %433 : vector<12x128xf32>
    %cst_94 = arith.constant 1.000000e+00 : f32
    %435 = vector.broadcast %cst_94 : f32 to vector<12x128xf32>
    %436 = arith.addf %435, %434 : vector<12x128xf32>
    %437 = arith.divf %435, %436 : vector<12x128xf32>
    %438 = arith.mulf %431, %437 : vector<12x128xf32>
    %439 = arith.mulf %438, %432 : vector<12x128xf32>
    %440 = arith.truncf %439 : vector<12x128xf32> to vector<12x128xbf16>
    %c0_95 = arith.constant 0 : index
    %c0_96 = arith.constant 0 : index
    %441 = vector.load %arg12[%c0_95, %c0_96] : memref<128x64xbf16, #tpu.memory_space<vmem>>, vector<128x64xbf16>
    %cst_97 = arith.constant dense<0.000000e+00> : vector<12x64xf32>
    %442 = tpu.matmul %440, %441, %cst_97 {dimension_numbers = #tpu.dot_dimension_numbers<[1], [0], [0], [1], [0, 0, 1, 1], [], []>} : vector<12x128xbf16>, vector<128x64xbf16>, vector<12x64xf32> -> vector<12x64xf32>
    %443 = arith.addf %414, %442 : vector<12x64xf32>
    %444 = arith.mulf %443, %443 : vector<12x64xf32>
    %cst_98 = arith.constant dense<0.000000e+00> : vector<12xf32>
    %445 = vector.multi_reduction <add>, %444, %cst_98 [1] : vector<12x64xf32> to vector<12xf32>
    %446 = vector.shape_cast %445 : vector<12xf32> to vector<12x1xf32>
    %cst_99 = arith.constant 6.400000e+01 : f32
    %447 = vector.broadcast %cst_99 : f32 to vector<12x1xf32>
    %448 = arith.divf %446, %447 : vector<12x1xf32>
    %cst_100 = arith.constant 9.99999997E-7 : f32
    %449 = vector.broadcast %cst_100 : f32 to vector<12x1xf32>
    %450 = arith.addf %448, %449 : vector<12x1xf32>
    %451 = math.rsqrt %450 : vector<12x1xf32>
    %452 = vector.broadcast %451 : vector<12x1xf32> to vector<12x64xf32>
    %453 = arith.mulf %443, %452 : vector<12x64xf32>
    %c0_101 = arith.constant 0 : index
    %c0_102 = arith.constant 0 : index
    %454 = vector.load %arg3[%c0_101, %c0_102] : memref<1x64xf32, #tpu.memory_space<vmem>>, vector<1x64xf32>
    %455 = vector.broadcast %454 : vector<1x64xf32> to vector<12x64xf32>
    %456 = arith.mulf %453, %455 : vector<12x64xf32>
    %c0_103 = arith.constant 0 : index
    %c0_104 = arith.constant 0 : index
    %457 = vector.load %arg16[%c0_103, %c0_104] : memref<12x64xf32, #tpu.memory_space<vmem>>, vector<12x64xf32>
    tpu.vector_store %arg16[%c0_103, %c0_104], %456 {strides = array<i32>} : memref<12x64xf32, #tpu.memory_space<vmem>>, vector<12x64xf32>,
    return
  }
}

</mosaic_0001>

<llo_original>
// kernel: openvla_forward.3
$region0: #{openvla_forward.3}
  #allocation0 [shape = 'u32[]', space=smem, size = 0x4, offset = 0x4, fixed_abs, tag = 'smem constant byte address 0x4 - core index']
  #allocation1 [shape = 'u32[144,128]{1,0:T(1,128)}', space=vmem, size = 0x12000, scoped, tag = 'internal scratch']
  %s0 = inlined_call_operand.vmem [shape: bf16[12,64], index: 0, kind: input, shape index: {}]
  %s1 = inlined_call_operand.vmem [shape: f32[12,8], index: 1, kind: input, shape index: {}]
  %s2 = inlined_call_operand.vmem [shape: f32[12,8], index: 2, kind: input, shape index: {}]
  %s3 = inlined_call_operand.vmem [shape: f32[1,64], index: 3, kind: input, shape index: {}]
  %s4 = inlined_call_operand.vmem [shape: f32[1,64], index: 4, kind: input, shape index: {}]
  %s5 = inlined_call_operand.vmem [shape: f32[1,64], index: 5, kind: input, shape index: {}]
  %s6 = inlined_call_operand.vmem [shape: bf16[128,64], index: 6, kind: input, shape index: {}]
  %s7 = inlined_call_operand.vmem [shape: bf16[64,256], index: 7, kind: input, shape index: {}]
  %s8 = inlined_call_operand.vmem [shape: bf16[64,64], index: 8, kind: input, shape index: {}]
  %s9 = inlined_call_operand.vmem [shape: bf16[64,192], index: 9, kind: input, shape index: {}]
  %s10 = inlined_call_operand.vmem [shape: f32[1,64], index: 10, kind: input, shape index: {}]
  %s11 = inlined_call_operand.vmem [shape: f32[1,64], index: 11, kind: input, shape index: {}]
  %s12 = inlined_call_operand.vmem [shape: bf16[128,64], index: 12, kind: input, shape index: {}]
  %s13 = inlined_call_operand.vmem [shape: bf16[64,256], index: 13, kind: input, shape index: {}]
  %s14 = inlined_call_operand.vmem [shape: bf16[64,64], index: 14, kind: input, shape index: {}]
  %s15 = inlined_call_operand.vmem [shape: bf16[64,192], index: 15, kind: input, shape index: {}]
  %s16 = inlined_call_operand.hbm [shape: f32[12,64], index: 16, kind: output, shape index: {}]
  %s17 = sld [smem:[#allocation0]]
  $region74: #{openvla_forward.3} parent=0
    _
  %s19 = ssub.s32 1, %s17
  %s20 = scalar_select 0, %s19, %s17
  $region1: #{openvla_forward.3} parent=0
    #allocation2 [shape = 'u8[8192]{0}', space=vmem, size = 0x2000, scoped, tag = 'output window, operand 0, single buffered']
    #allocation3 [shape = 's32[1]{0}', space=sflag, size = 0x4, scoped, tag = 'scoped memory for openvla_forward.3']
    %21 = vsyncpa [#allocation3], 0
    // Predicated region
    $region2: #{openvla_forward.3} parent=1 // pred_check
      _
    $region3: #{openvla_forward.3} parent=1 // pred_check_branch
      %23 = sbr.rel (0) target = $region5
    $region4: #{openvla_forward.3} parent=1 // pred_region
      _
    $region5: #{openvla_forward.3} parent=1 // pred_fallthru
      _
    // Predicated region
    $region6: #{openvla_forward.3} parent=1 // pred_check
      _
    $region7: #{openvla_forward.3} parent=1 // pred_check_branch
      %25 = sbr.rel (0) target = $region9
    $region8: #{openvla_forward.3} parent=1 // pred_region
      _
    $region9: #{openvla_forward.3} parent=1 // pred_fallthru
      _
    // Predicated region
    $region10: #{openvla_forward.3} parent=1 // pred_check
      _
    $region11: #{openvla_forward.3} parent=1 // pred_check_branch
      %27 = sbr.rel (0) target = $region13
    $region12: #{openvla_forward.3} parent=1 // pred_region
      _
    $region13: #{openvla_forward.3} parent=1 // pred_fallthru
      _
    // Predicated region
    $region14: #{openvla_forward.3} parent=1 // pred_check
      _
    $region15: #{openvla_forward.3} parent=1 // pred_check_branch
      %29 = sbr.rel (0) target = $region17
    $region16: #{openvla_forward.3} parent=1 // pred_region
      _
    $region17: #{openvla_forward.3} parent=1 // pred_fallthru
      _
    // Predicated region
    $region18: #{openvla_forward.3} parent=1 // pred_check
      _
    $region19: #{openvla_forward.3} parent=1 // pred_check_branch
      %31 = sbr.rel (0) target = $region21
    $region20: #{openvla_forward.3} parent=1 // pred_region
      _
    $region21: #{openvla_forward.3} parent=1 // pred_fallthru
      _
    // Predicated region
    $region22: #{openvla_forward.3} parent=1 // pred_check
      _
    $region23: #{openvla_forward.3} parent=1 // pred_check_branch
      %33 = sbr.rel (0) target = $region25
    $region24: #{openvla_forward.3} parent=1 // pred_region
      _
    $region25: #{openvla_forward.3} parent=1 // pred_fallthru
      _
    // Predicated region
    $region26: #{openvla_forward.3} parent=1 // pred_check
      _
    $region27: #{openvla_forward.3} parent=1 // pred_check_branch
      %35 = sbr.rel (0) target = $region29
    $region28: #{openvla_forward.3} parent=1 // pred_region
      _
    $region29: #{openvla_forward.3} parent=1 // pred_fallthru
      _
    // Predicated region
    $region30: #{openvla_forward.3} parent=1 // pred_check
      _
    $region31: #{openvla_forward.3} parent=1 // pred_check_branch
      %37 = sbr.rel (0) target = $region33
    $region32: #{openvla_forward.3} parent=1 // pred_region
      _
    $region33: #{openvla_forward.3} parent=1 // pred_fallthru
      _
    // Predicated region
    $region34: #{openvla_forward.3} parent=1 // pred_check
      _
    $region35: #{openvla_forward.3} parent=1 // pred_check_branch
      %39 = sbr.rel (0) target = $region37
    $region36: #{openvla_forward.3} parent=1 // pred_region
      _
    $region37: #{openvla_forward.3} parent=1 // pred_fallthru
      _
    // Predicated region
    $region38: #{openvla_forward.3} parent=1 // pred_check
      _
    $region39: #{openvla_forward.3} parent=1 // pred_check_branch
      %41 = sbr.rel (0) target = $region41
    $region40: #{openvla_forward.3} parent=1 // pred_region
      _
    $region41: #{openvla_forward.3} parent=1 // pred_fallthru
      _
    // Predicated region
    $region42: #{openvla_forward.3} parent=1 // pred_check
      _
    $region43: #{openvla_forward.3} parent=1 // pred_check_branch
      %43 = sbr.rel (0) target = $region45
    $region44: #{openvla_forward.3} parent=1 // pred_region
      _
    $region45: #{openvla_forward.3} parent=1 // pred_fallthru
      _
    // Predicated region
    $region46: #{openvla_forward.3} parent=1 // pred_check
      _
    $region47: #{openvla_forward.3} parent=1 // pred_check_branch
      %45 = sbr.rel (0) target = $region49
    $region48: #{openvla_forward.3} parent=1 // pred_region
      _
    $region49: #{openvla_forward.3} parent=1 // pred_fallthru
      _
    // Predicated region
    $region50: #{openvla_forward.3} parent=1 // pred_check
      _
    $region51: #{openvla_forward.3} parent=1 // pred_check_branch
      %47 = sbr.rel (0) target = $region53
    $region52: #{openvla_forward.3} parent=1 // pred_region
      _
    $region53: #{openvla_forward.3} parent=1 // pred_fallthru
      _
    // Predicated region
    $region54: #{openvla_forward.3} parent=1 // pred_check
      _
    $region55: #{openvla_forward.3} parent=1 // pred_check_branch
      %49 = sbr.rel (0) target = $region57
    $region56: #{openvla_forward.3} parent=1 // pred_region
      _
    $region57: #{openvla_forward.3} parent=1 // pred_fallthru
      _
    // Predicated region
    $region58: #{openvla_forward.3} parent=1 // pred_check
      _
    $region59: #{openvla_forward.3} parent=1 // pred_check_branch
      %51 = sbr.rel (0) target = $region61
    $region60: #{openvla_forward.3} parent=1 // pred_region
      _
    $region61: #{openvla_forward.3} parent=1 // pred_fallthru
      _
    // Predicated region
    $region62: #{openvla_forward.3} parent=1 // pred_check
      _
    $region63: #{openvla_forward.3} parent=1 // pred_check_branch
      %53 = sbr.rel (0) target = $region65
    $region64: #{openvla_forward.3} parent=1 // pred_region
      _
    $region65: #{openvla_forward.3} parent=1 // pred_fallthru
      _
    %v55 = vld [vmem:[%s0] sm:$0xf]
    %v56 = vld [vmem:[%s0 + $0x4] sm:$0x3]
    %v57 = vunpack.c.l.bf16 %v55
    %v58 = vunpack.c.l.bf16 %v56
    %v59 = vld [vmem:[%s1] sm:$0xff]
    %v60 = vld [vmem:[%s1 + $0x8] sm:$0xf]
    %v61 = vld [vmem:[%s2] sm:$0xff]
    %v62 = vld [vmem:[%s2 + $0x8] sm:$0xf]
    %v63 = vmul.f32 %v57, %v57
    %v64 = vmul.f32 %v58, %v58
    %vm65 = vcmask 523264
    %v66 = vsel %vm65, %v63, 0.0
    %67 = vadd.xlane.f32.xlu0 %v66
    %v68 = vpop.xlane.xlu0 %67
    %vm69 = vcmask 519168
    %v70 = vsel %vm69, %v64, 0.0
    %71 = vadd.xlane.f32.xlu0 %v70
    %v72 = vpop.xlane.xlu0 %71
    %v73 = vrcp.pop 64.0
    %v74 = vmul.f32 %v68, %v73
    %v75 = vmul.f32 %v72, %v73
    %v76 = vadd.f32 %v74, 1e-06
    %v77 = vadd.f32 %v75, 1e-06
    %v78 = vrsqrt.pop %v76
    %v79 = vrsqrt.pop %v77
    %v80 = vmul.f32 %v57, %v78
    %v81 = vmul.f32 %v58, %v79
    %v82 = vld [vmem:[%s4] sm:$0x1]
    %v84 = vlaneseq
    %v85 = vshrl.u32 %v84, 7
    %v86 = vsub.s32 0, %v85
    %v87 = vrot.slane %v82, %v86
    %v89 = vmul.f32 %v80, %v87
    %v90 = vmul.f32 %v81, %v87
    %v91 = vpack.c.bf16 %v90, %v89
    %v92 = vld [vmem:[%s9] sm:$0xff]
    %v93 = vld [vmem:[%s9 + $0x8] sm:$0xff]
    %v94 = vld [vmem:[%s9 + $0x10] sm:$0xff]
    %v95 = vld [vmem:[%s9 + $0x18] sm:$0xff]
    %v96 = vld [vmem:[%s9 + $0x20] sm:$0xff]
    %v97 = vld [vmem:[%s9 + $0x28] sm:$0xff]
    %v98 = vld [vmem:[%s9 + $0x30] sm:$0xff]
    %v99 = vld [vmem:[%s9 + $0x38] sm:$0xff]
    %v108 = vunpack.c.l.b16 %v92
    %v109 = vunpack.c.h.b16 %v92
    %v110 = vunpack.c.l.b16 %v93
    %v111 = vunpack.c.h.b16 %v93
    %v112 = vunpack.c.l.b16 %v94
    %v113 = vunpack.c.h.b16 %v94
    %v114 = vunpack.c.l.b16 %v95
    %v115 = vunpack.c.h.b16 %v95
    %v116 = vunpack.c.l.b16 %v96
    %v117 = vunpack.c.h.b16 %v96
    %v118 = vunpack.c.l.b16 %v97
    %v119 = vunpack.c.h.b16 %v97
    %v120 = vunpack.c.l.b16 %v98
    %v121 = vunpack.c.h.b16 %v98
    %v122 = vunpack.c.l.b16 %v99
    %v123 = vunpack.c.h.b16 %v99
    %v124 = vpack.c.b16 %v110, %v108
    %v125 = vpack.c.b16 %v111, %v109
    %v126 = vpack.c.b16 %v114, %v112
    %v127 = vpack.c.b16 %v115, %v113
    %v128 = vpack.c.b16 %v118, %v116
    %v129 = vpack.c.b16 %v119, %v117
    %v130 = vpack.c.b16 %v122, %v120
    %v131 = vpack.c.b16 %v123, %v121
    %v141 = vsel %vm65, %v91, 0
    %143 = vmatprep.subr.bf16.mxu0 %v125
    %144 = vmatpush1.bf16.msra.mxu0 %v124
    %145 = vmatprep.subr.bf16.mxu0 %v127
    %146 = vmatpush1.bf16.msra.mxu0 %v126
    %147 = vmatprep.subr.bf16.mxu0 %v129
    %148 = vmatpush1.bf16.msra.mxu0 %v128
    %149 = vmatprep.subr.bf16.mxu0 %v131
    %150 = vmatpush1.bf16.msra.mxu0 %v130
    %151 = vmatprep.subr.bf16.mxu0 0
    %152 = vmatpush1.bf16.msra.mxu0 0
    %153 = vmatprep.subr.bf16.mxu0 0
    %154 = vmatpush1.bf16.msra.mxu0 0
    %155 = vmatprep.subr.bf16.mxu0 0
    %156 = vmatpush1.bf16.msra.mxu0 0
    %157 = vmatprep.subr.bf16.mxu0 0
    %158 = vmatpush1.bf16.msra.mxu0 0
    %159 = vmatprep.subr.bf16.mxu0 0
    %160 = vmatpush1.bf16.msra.mxu0 0
    %161 = vmatprep.subr.bf16.mxu0 0
    %162 = vmatpush1.bf16.msra.mxu0 0
    %163 = vmatprep.subr.bf16.mxu0 0
    %164 = vmatpush1.bf16.msra.mxu0 0
    %165 = vmatprep.subr.bf16.mxu0 0
    %166 = vmatpush1.bf16.msra.mxu0 0
    %167 = vmatprep.subr.bf16.mxu0 0
    %168 = vmatpush1.bf16.msra.mxu0 0
    %169 = vmatprep.subr.bf16.mxu0 0
    %170 = vmatpush1.bf16.msra.mxu0 0
    %171 = vmatprep.subr.bf16.mxu0 0
    %172 = vmatpush1.bf16.msra.mxu0 0
    %173 = vmatprep.subr.bf16.mxu0 0
    %174 = vmatpush1.bf16.msra.mxu0 0
    %175 = vmatprep.mubr.bf16.mxu0 0
    %176 = vmatmul.mubr.bf16.gmra.mrb[0].mxu0 %v141
    %v177 = vpop.f32.mrb[0].mxu0
    %v178 = vadd.f32 0.0, %v177
    %v179 = vpop.f32.mrb[0].mxu0
    %v180 = vadd.f32 0.0, %v179
    %v181 = vpop.f32.mrb[0].mxu0
    %v182 = vadd.f32 0.0, %v181
    %v183 = vpop.f32.mrb[0].mxu0
    %v184 = vadd.f32 0.0, %v183
    %185 = vdwg.mxu0
    %v186 = vlaneseq
    %v187 = vshrl.u32 %v186, 7
    %v188 = vadd.s32 %v187, 8
    %v189 = vlaneseq
    %v190 = vand.u32 %v189, 127
    %vm191 = vcmp.le.s32.totalorder %v190, %v187
    %vm192 = vcmp.le.s32.totalorder %v190, %v188
    %v193 = vmul.f32 %v178, %v59
    %v194 = vmul.f32 %v182, %v60
    %197 = vrot.lane.b32.xlu0 %v61, 8
    %v198 = vpop.permute.xlu0 %197
    %199 = vrot.lane.b32.xlu0 %v62, 8
    %v200 = vpop.permute.xlu0 %199
    %v203 = vmul.f32 %v178, %v198
    %v204 = vmul.f32 %v182, %v200
    %207 = vrot.lane.b32.xlu0 %v203, 120
    %v208 = vpop.permute.xlu0 %207
    %209 = vrot.lane.b32.xlu0 %v204, 120
    %v210 = vpop.permute.xlu0 %209
    %v213 = vsub.f32 %v193, %v208
    %v214 = vsub.f32 %v194, %v210
    %217 = vrot.lane.b32.xlu0 %v59, 8
    %v218 = vpop.permute.xlu0 %217
    %219 = vrot.lane.b32.xlu0 %v60, 8
    %v220 = vpop.permute.xlu0 %219
    %v223 = vmul.f32 %v178, %v218
    %v224 = vmul.f32 %v182, %v220
    %v225 = vmul.f32 %v178, %v61
    %v226 = vmul.f32 %v182, %v62
    %229 = vrot.lane.b32.xlu0 %v225, 8
    %v230 = vpop.permute.xlu0 %229
    %231 = vrot.lane.b32.xlu0 %v226, 8
    %v232 = vpop.permute.xlu0 %231
    %v235 = vadd.f32 %v223, %v230
    %v236 = vadd.f32 %v224, %v232
    %vm237 = vcmask 64512
    %v238 = vsel %vm237, %v213, %v235
    %v239 = vsel %vm237, %v214, %v236
    %240 = vrot.lane.b32.xlu0 %v59, 64
    %v241 = vpop.permute.xlu0 %240
    %242 = vrot.lane.b32.xlu0 %v60, 64
    %v243 = vpop.permute.xlu0 %242
    %v246 = vmul.f32 %v178, %v241
    %v247 = vmul.f32 %v182, %v243
    %248 = vrot.lane.b32.xlu0 %v61, 72
    %v249 = vpop.permute.xlu0 %248
    %250 = vrot.lane.b32.xlu0 %v62, 72
    %v251 = vpop.permute.xlu0 %250
    %v254 = vmul.f32 %v178, %v249
    %v255 = vmul.f32 %v182, %v251
    %258 = vrot.lane.b32.xlu0 %v254, 120
    %v259 = vpop.permute.xlu0 %258
    %260 = vrot.lane.b32.xlu0 %v255, 120
    %v261 = vpop.permute.xlu0 %260
    %v264 = vsub.f32 %v246, %v259
    %v265 = vsub.f32 %v247, %v261
    %266 = vrot.lane.b32.xlu0 %v59, 72
    %v267 = vpop.permute.xlu0 %266
    %268 = vrot.lane.b32.xlu0 %v60, 72
    %v269 = vpop.permute.xlu0 %268
    %v272 = vmul.f32 %v178, %v267
    %v273 = vmul.f32 %v182, %v269
    %274 = vrot.lane.b32.xlu0 %v61, 64
    %v275 = vpop.permute.xlu0 %274
    %276 = vrot.lane.b32.xlu0 %v62, 64
    %v277 = vpop.permute.xlu0 %276
    %v280 = vmul.f32 %v178, %v275
    %v281 = vmul.f32 %v182, %v277
    %284 = vrot.lane.b32.xlu0 %v280, 8
    %v285 = vpop.permute.xlu0 %284
    %286 = vrot.lane.b32.xlu0 %v281, 8
    %v287 = vpop.permute.xlu0 %286
    %v290 = vadd.f32 %v272, %v285
    %v291 = vadd.f32 %v273, %v287
    %294 = vrot.lane.b32.xlu0 %v264, 64
    %v295 = vpop.permute.xlu0 %294
    %296 = vrot.lane.b32.xlu0 %v265, 64
    %v297 = vpop.permute.xlu0 %296
    %302 = vrot.lane.b32.xlu0 %v290, 64
    %v303 = vpop.permute.xlu0 %302
    %304 = vrot.lane.b32.xlu0 %v291, 64
    %v305 = vpop.permute.xlu0 %304
    %v308 = vsel %vm237, %v295, %v303
    %v309 = vsel %vm237, %v297, %v305
    %v310 = vpack.c.bf16 %v239, %v238
    %v311 = vpack.c.bf16 %v309, %v308
    %vm312 = vcmask 130048
    %v314 = vsel %vm312, %v310, 0
    %v317 = vsel %vm312, %v311, 0
    %319 = vmatprep.subr.bf16.mxu0 0
    %320 = vmatpush1.bf16.xpose.msra.mxu0 %v317
    %321 = vmatprep.subr.bf16.mxu0 0
    %322 = vmatpush1.bf16.xpose.msra.mxu0 0
    %323 = vmatprep.subr.bf16.mxu0 0
    %324 = vmatpush1.bf16.xpose.msra.mxu0 0
    %325 = vmatprep.subr.bf16.mxu0 0
    %326 = vmatpush1.bf16.xpose.msra.mxu0 0
    %327 = vmatprep.subr.bf16.mxu0 0
    %328 = vmatpush1.bf16.xpose.msra.mxu0 0
    %329 = vmatprep.subr.bf16.mxu0 0
    %330 = vmatpush1.bf16.xpose.msra.mxu0 0
    %331 = vmatprep.subr.bf16.mxu0 0
    %332 = vmatpush1.bf16.xpose.msra.mxu0 0
    %333 = vmatprep.subr.bf16.mxu0 0
    %334 = vmatpush1.bf16.xpose.msra.mxu0 0
    %335 = vmatprep.subr.bf16.mxu0 0
    %336 = vmatpush1.bf16.xpose.msra.mxu0 0
    %337 = vmatprep.subr.bf16.mxu0 0
    %338 = vmatpush1.bf16.xpose.msra.mxu0 0
    %339 = vmatprep.subr.bf16.mxu0 0
    %340 = vmatpush1.bf16.xpose.msra.mxu0 0
    %341 = vmatprep.subr.bf16.mxu0 0
    %342 = vmatpush1.bf16.xpose.msra.mxu0 0
    %343 = vmatprep.subr.bf16.mxu0 0
    %344 = vmatpush1.bf16.xpose.msra.mxu0 0
    %345 = vmatprep.subr.bf16.mxu0 0
    %346 = vmatpush1.bf16.xpose.msra.mxu0 0
    %347 = vmatprep.subr.bf16.mxu0 0
    %348 = vmatpush1.bf16.xpose.msra.mxu0 0
    %349 = vmatprep.subr.bf16.mxu0 0
    %350 = vmatpush1.bf16.xpose.msra.mxu0 0
    %351 = vmatprep.mubr.bf16.mxu0 0
    %352 = vmatmul.mubr.bf16.gmra.mrb[0].mxu0 %v314
    %v353 = vpop.f32.mrb[0].mxu0
    %v354 = vadd.f32 0.0, %v353
    %v355 = vpop.f32.mrb[0].mxu0
    %v356 = vpop.f32.mrb[0].mxu0
    %v357 = vadd.f32 0.0, %v356
    %v358 = vpop.f32.mrb[0].mxu0
    %359 = vdwg.mxu0
    %v360 = vmul.f32 %v354, 0.25
    %v361 = vmul.f32 %v357, 0.25
    %v362 = vsel %vm191, %v360, -1e+30
    %v363 = vsel %vm192, %v361, -1e+30
    %vm364 = vcmask 97280
    %v365 = vsel %vm364, %v362, -inf
    %366 = vmax.xlane.f32.xlu0 %v365
    %v367 = vpop.xlane.xlu0 %366
    %vm368 = vcmask 93184
    %v369 = vsel %vm368, %v363, -inf
    %370 = vmax.xlane.f32.xlu0 %v369
    %v371 = vpop.xlane.xlu0 %370
    %v372 = vsub.f32 %v362, %v367
    %v373 = vsub.f32 %v363, %v371
    %v374 = vmul.f32 %v372, 1.442695
    %v375 = vpow.pop %v374
    %v376 = vmul.f32 %v373, 1.442695
    %v377 = vpow.pop %v376
    %v378 = vsel %vm364, %v375, 0.0
    %379 = vadd.xlane.f32.xlu0 %v378
    %v380 = vpop.xlane.xlu0 %379
    %v381 = vsel %vm368, %v377, 0.0
    %382 = vadd.xlane.f32.xlu0 %v381
    %v383 = vpop.xlane.xlu0 %382
    %v384 = vrcp.pop %v380
    %v385 = vrcp.pop %v383
    %v386 = vmul.f32 %v375, %v384
    %v387 = vmul.f32 %v377, %v385
    %v388 = vpack.c.bf16 %v387, %v386
    %v389 = vpack.c.bf16 %v184, %v180
    %v391 = vsel %vm364, %v388, 0
    %vm393 = vcmask 1045504
    %v395 = vsel %vm393, %v389, 0
    %397 = vmatprep.subr.bf16.mxu0 0
    %398 = vmatpush1.bf16.msra.mxu0 %v395
    %399 = vmatprep.subr.bf16.mxu0 0
    %400 = vmatpush1.bf16.msra.mxu0 0
    %401 = vmatprep.subr.bf16.mxu0 0
    %402 = vmatpush1.bf16.msra.mxu0 0
    %403 = vmatprep.subr.bf16.mxu0 0
    %404 = vmatpush1.bf16.msra.mxu0 0
    %405 = vmatprep.subr.bf16.mxu0 0
    %406 = vmatpush1.bf16.msra.mxu0 0
    %407 = vmatprep.subr.bf16.mxu0 0
    %408 = vmatpush1.bf16.msra.mxu0 0
    %409 = vmatprep.subr.bf16.mxu0 0
    %410 = vmatpush1.bf16.msra.mxu0 0
    %411 = vmatprep.subr.bf16.mxu0 0
    %412 = vmatpush1.bf16.msra.mxu0 0
    %413 = vmatprep.subr.bf16.mxu0 0
    %414 = vmatpush1.bf16.msra.mxu0 0
    %415 = vmatprep.subr.bf16.mxu0 0
    %416 = vmatpush1.bf16.msra.mxu0 0
    %417 = vmatprep.subr.bf16.mxu0 0
    %418 = vmatpush1.bf16.msra.mxu0 0
    %419 = vmatprep.subr.bf16.mxu0 0
    %420 = vmatpush1.bf16.msra.mxu0 0
    %421 = vmatprep.subr.bf16.mxu0 0
    %422 = vmatpush1.bf16.msra.mxu0 0
    %423 = vmatprep.subr.bf16.mxu0 0
    %424 = vmatpush1.bf16.msra.mxu0 0
    %425 = vmatprep.subr.bf16.mxu0 0
    %426 = vmatpush1.bf16.msra.mxu0 0
    %427 = vmatprep.subr.bf16.mxu0 0
    %428 = vmatpush1.bf16.msra.mxu0 0
    %429 = vmatprep.mubr.bf16.mxu0 0
    %430 = vmatmul.mubr.bf16.gmra.mrb[0].mxu0 %v391
    %v431 = vpop.f32.mrb[0].mxu0
    %v432 = vadd.f32 0.0, %v431
    %v433 = vpop.f32.mrb[0].mxu0
    %v434 = vpop.f32.mrb[0].mxu0
    %v435 = vadd.f32 0.0, %v434
    %v436 = vpop.f32.mrb[0].mxu0
    %437 = vdwg.mxu0
    %438 = vrot.lane.b32.xlu0 %v59, 16
    %v439 = vpop.permute.xlu0 %438
    %440 = vrot.lane.b32.xlu0 %v60, 16
    %v441 = vpop.permute.xlu0 %440
    %v444 = vmul.f32 %v178, %v439
    %v445 = vmul.f32 %v182, %v441
    %446 = vrot.lane.b32.xlu0 %v61, 24
    %v447 = vpop.permute.xlu0 %446
    %448 = vrot.lane.b32.xlu0 %v62, 24
    %v449 = vpop.permute.xlu0 %448
    %v452 = vmul.f32 %v178, %v447
    %v453 = vmul.f32 %v182, %v449
    %456 = vrot.lane.b32.xlu0 %v452, 120
    %v457 = vpop.permute.xlu0 %456
    %458 = vrot.lane.b32.xlu0 %v453, 120
    %v459 = vpop.permute.xlu0 %458
    %v462 = vsub.f32 %v444, %v457
    %v463 = vsub.f32 %v445, %v459
    %464 = vrot.lane.b32.xlu0 %v59, 24
    %v465 = vpop.permute.xlu0 %464
    %466 = vrot.lane.b32.xlu0 %v60, 24
    %v467 = vpop.permute.xlu0 %466
    %v470 = vmul.f32 %v178, %v465
    %v471 = vmul.f32 %v182, %v467
    %472 = vrot.lane.b32.xlu0 %v61, 16
    %v473 = vpop.permute.xlu0 %472
    %474 = vrot.lane.b32.xlu0 %v62, 16
    %v475 = vpop.permute.xlu0 %474
    %v478 = vmul.f32 %v178, %v473
    %v479 = vmul.f32 %v182, %v475
    %482 = vrot.lane.b32.xlu0 %v478, 8
    %v483 = vpop.permute.xlu0 %482
    %484 = vrot.lane.b32.xlu0 %v479, 8
    %v485 = vpop.permute.xlu0 %484
    %v488 = vadd.f32 %v470, %v483
    %v489 = vadd.f32 %v471, %v485
    %492 = vrot.lane.b32.xlu0 %v462, 112
    %v493 = vpop.permute.xlu0 %492
    %494 = vrot.lane.b32.xlu0 %v463, 112
    %v495 = vpop.permute.xlu0 %494
    %500 = vrot.lane.b32.xlu0 %v488, 112
    %v501 = vpop.permute.xlu0 %500
    %502 = vrot.lane.b32.xlu0 %v489, 112
    %v503 = vpop.permute.xlu0 %502
    %v506 = vsel %vm237, %v493, %v501
    %v507 = vsel %vm237, %v495, %v503
    %508 = vrot.lane.b32.xlu0 %v59, 80
    %v509 = vpop.permute.xlu0 %508
    %510 = vrot.lane.b32.xlu0 %v60, 80
    %v511 = vpop.permute.xlu0 %510
    %v514 = vmul.f32 %v178, %v509
    %v515 = vmul.f32 %v182, %v511
    %516 = vrot.lane.b32.xlu0 %v61, 88
    %v517 = vpop.permute.xlu0 %516
    %518 = vrot.lane.b32.xlu0 %v62, 88
    %v519 = vpop.permute.xlu0 %518
    %v522 = vmul.f32 %v178, %v517
    %v523 = vmul.f32 %v182, %v519
    %526 = vrot.lane.b32.xlu0 %v522, 120
    %v527 = vpop.permute.xlu0 %526
    %528 = vrot.lane.b32.xlu0 %v523, 120
    %v529 = vpop.permute.xlu0 %528
    %v532 = vsub.f32 %v514, %v527
    %v533 = vsub.f32 %v515, %v529
    %534 = vrot.lane.b32.xlu0 %v59, 88
    %v535 = vpop.permute.xlu0 %534
    %536 = vrot.lane.b32.xlu0 %v60, 88
    %v537 = vpop.permute.xlu0 %536
    %v540 = vmul.f32 %v178, %v535
    %v541 = vmul.f32 %v182, %v537
    %542 = vrot.lane.b32.xlu0 %v61, 80
    %v543 = vpop.permute.xlu0 %542
    %544 = vrot.lane.b32.xlu0 %v62, 80
    %v545 = vpop.permute.xlu0 %544
    %v548 = vmul.f32 %v178, %v543
    %v549 = vmul.f32 %v182, %v545
    %552 = vrot.lane.b32.xlu0 %v548, 8
    %v553 = vpop.permute.xlu0 %552
    %554 = vrot.lane.b32.xlu0 %v549, 8
    %v555 = vpop.permute.xlu0 %554
    %v558 = vadd.f32 %v540, %v553
    %v559 = vadd.f32 %v541, %v555
    %562 = vrot.lane.b32.xlu0 %v532, 48
    %v563 = vpop.permute.xlu0 %562
    %564 = vrot.lane.b32.xlu0 %v533, 48
    %v565 = vpop.permute.xlu0 %564
    %570 = vrot.lane.b32.xlu0 %v558, 48
    %v571 = vpop.permute.xlu0 %570
    %572 = vrot.lane.b32.xlu0 %v559, 48
    %v573 = vpop.permute.xlu0 %572
    %v576 = vsel %vm237, %v563, %v571
    %v577 = vsel %vm237, %v565, %v573
    %v578 = vpack.c.bf16 %v507, %v506
    %v579 = vpack.c.bf16 %v577, %v576
    %v581 = vsel %vm312, %v578, 0
    %v584 = vsel %vm312, %v579, 0
    %586 = vmatprep.subr.bf16.mxu0 0
    %587 = vmatpush1.bf16.xpose.msra.mxu0 %v584
    %588 = vmatprep.subr.bf16.mxu0 0
    %589 = vmatpush1.bf16.xpose.msra.mxu0 0
    %590 = vmatprep.subr.bf16.mxu0 0
    %591 = vmatpush1.bf16.xpose.msra.mxu0 0
    %592 = vmatprep.subr.bf16.mxu0 0
    %593 = vmatpush1.bf16.xpose.msra.mxu0 0
    %594 = vmatprep.subr.bf16.mxu0 0
    %595 = vmatpush1.bf16.xpose.msra.mxu0 0
    %596 = vmatprep.subr.bf16.mxu0 0
    %597 = vmatpush1.bf16.xpose.msra.mxu0 0
    %598 = vmatprep.subr.bf16.mxu0 0
    %599 = vmatpush1.bf16.xpose.msra.mxu0 0
    %600 = vmatprep.subr.bf16.mxu0 0
    %601 = vmatpush1.bf16.xpose.msra.mxu0 0
    %602 = vmatprep.subr.bf16.mxu0 0
    %603 = vmatpush1.bf16.xpose.msra.mxu0 0
    %604 = vmatprep.subr.bf16.mxu0 0
    %605 = vmatpush1.bf16.xpose.msra.mxu0 0
    %606 = vmatprep.subr.bf16.mxu0 0
    %607 = vmatpush1.bf16.xpose.msra.mxu0 0
    %608 = vmatprep.subr.bf16.mxu0 0
    %609 = vmatpush1.bf16.xpose.msra.mxu0 0
    %610 = vmatprep.subr.bf16.mxu0 0
    %611 = vmatpush1.bf16.xpose.msra.mxu0 0
    %612 = vmatprep.subr.bf16.mxu0 0
    %613 = vmatpush1.bf16.xpose.msra.mxu0 0
    %614 = vmatprep.subr.bf16.mxu0 0
    %615 = vmatpush1.bf16.xpose.msra.mxu0 0
    %616 = vmatprep.subr.bf16.mxu0 0
    %617 = vmatpush1.bf16.xpose.msra.mxu0 0
    %618 = vmatprep.mubr.bf16.mxu0 0
    %619 = vmatmul.mubr.bf16.gmra.mrb[0].mxu0 %v581
    %v620 = vpop.f32.mrb[0].mxu0
    %v621 = vadd.f32 0.0, %v620
    %v622 = vpop.f32.mrb[0].mxu0
    %v623 = vpop.f32.mrb[0].mxu0
    %v624 = vadd.f32 0.0, %v623
    %v625 = vpop.f32.mrb[0].mxu0
    %626 = vdwg.mxu0
    %v627 = vmul.f32 %v621, 0.25
    %v628 = vmul.f32 %v624, 0.25
    %v629 = vsel %vm191, %v627, -1e+30
    %v630 = vsel %vm192, %v628, -1e+30
    %v631 = vsel %vm364, %v629, -inf
    %632 = vmax.xlane.f32.xlu0 %v631
    %v633 = vpop.xlane.xlu0 %632
    %v634 = vsel %vm368, %v630, -inf
    %635 = vmax.xlane.f32.xlu0 %v634
    %v636 = vpop.xlane.xlu0 %635
    %v637 = vsub.f32 %v629, %v633
    %v638 = vsub.f32 %v630, %v636
    %v639 = vmul.f32 %v637, 1.442695
    %v640 = vpow.pop %v639
    %v641 = vmul.f32 %v638, 1.442695
    %v642 = vpow.pop %v641
    %v643 = vsel %vm364, %v640, 0.0
    %644 = vadd.xlane.f32.xlu0 %v643
    %v645 = vpop.xlane.xlu0 %644
    %v646 = vsel %vm368, %v642, 0.0
    %647 = vadd.xlane.f32.xlu0 %v646
    %v648 = vpop.xlane.xlu0 %647
    %v649 = vrcp.pop %v645
    %v650 = vrcp.pop %v648
    %v651 = vmul.f32 %v640, %v649
    %v652 = vmul.f32 %v642, %v650
    %v653 = vpack.c.bf16 %v652, %v651
    %655 = vrot.lane.b32.xlu0 %v389, 112
    %v656 = vpop.permute.xlu0 %655
    %v658 = vsel %vm364, %v653, 0
    %v661 = vsel %vm393, %v656, 0
    %663 = vmatprep.subr.bf16.mxu0 0
    %664 = vmatpush1.bf16.msra.mxu0 %v661
    %665 = vmatprep.subr.bf16.mxu0 0
    %666 = vmatpush1.bf16.msra.mxu0 0
    %667 = vmatprep.subr.bf16.mxu0 0
    %668 = vmatpush1.bf16.msra.mxu0 0
    %669 = vmatprep.subr.bf16.mxu0 0
    %670 = vmatpush1.bf16.msra.mxu0 0
    %671 = vmatprep.subr.bf16.mxu0 0
    %672 = vmatpush1.bf16.msra.mxu0 0
    %673 = vmatprep.subr.bf16.mxu0 0
    %674 = vmatpush1.bf16.msra.mxu0 0
    %675 = vmatprep.subr.bf16.mxu0 0
    %676 = vmatpush1.bf16.msra.mxu0 0
    %677 = vmatprep.subr.bf16.mxu0 0
    %678 = vmatpush1.bf16.msra.mxu0 0
    %679 = vmatprep.subr.bf16.mxu0 0
    %680 = vmatpush1.bf16.msra.mxu0 0
    %681 = vmatprep.subr.bf16.mxu0 0
    %682 = vmatpush1.bf16.msra.mxu0 0
    %683 = vmatprep.subr.bf16.mxu0 0
    %684 = vmatpush1.bf16.msra.mxu0 0
    %685 = vmatprep.subr.bf16.mxu0 0
    %686 = vmatpush1.bf16.msra.mxu0 0
    %687 = vmatprep.subr.bf16.mxu0 0
    %688 = vmatpush1.bf16.msra.mxu0 0
    %689 = vmatprep.subr.bf16.mxu0 0
    %690 = vmatpush1.bf16.msra.mxu0 0
    %691 = vmatprep.subr.bf16.mxu0 0
    %692 = vmatpush1.bf16.msra.mxu0 0
    %693 = vmatprep.subr.bf16.mxu0 0
    %694 = vmatpush1.bf16.msra.mxu0 0
    %695 = vmatprep.mubr.bf16.mxu0 0
    %696 = vmatmul.mubr.bf16.gmra.mrb[0].mxu0 %v658
    %v697 = vpop.f32.mrb[0].mxu0
    %v698 = vadd.f32 0.0, %v697
    %v699 = vpop.f32.mrb[0].mxu0
    %v700 = vpop.f32.mrb[0].mxu0
    %v701 = vadd.f32 0.0, %v700
    %v702 = vpop.f32.mrb[0].mxu0
    %703 = vdwg.mxu0
    %704 = vrot.lane.b32.xlu0 %v59, 32
    %v705 = vpop.permute.xlu0 %704
    %706 = vrot.lane.b32.xlu0 %v60, 32
    %v707 = vpop.permute.xlu0 %706
    %v710 = vmul.f32 %v178, %v705
    %v711 = vmul.f32 %v182, %v707
    %712 = vrot.lane.b32.xlu0 %v61, 40
    %v713 = vpop.permute.xlu0 %712
    %714 = vrot.lane.b32.xlu0 %v62, 40
    %v715 = vpop.permute.xlu0 %714
    %v718 = vmul.f32 %v178, %v713
    %v719 = vmul.f32 %v182, %v715
    %722 = vrot.lane.b32.xlu0 %v718, 120
    %v723 = vpop.permute.xlu0 %722
    %724 = vrot.lane.b32.xlu0 %v719, 120
    %v725 = vpop.permute.xlu0 %724
    %v728 = vsub.f32 %v710, %v723
    %v729 = vsub.f32 %v711, %v725
    %730 = vrot.lane.b32.xlu0 %v59, 40
    %v731 = vpop.permute.xlu0 %730
    %732 = vrot.lane.b32.xlu0 %v60, 40
    %v733 = vpop.permute.xlu0 %732
    %v736 = vmul.f32 %v178, %v731
    %v737 = vmul.f32 %v182, %v733
    %738 = vrot.lane.b32.xlu0 %v61, 32
    %v739 = vpop.permute.xlu0 %738
    %740 = vrot.lane.b32.xlu0 %v62, 32
    %v741 = vpop.permute.xlu0 %740
    %v744 = vmul.f32 %v178, %v739
    %v745 = vmul.f32 %v182, %v741
    %748 = vrot.lane.b32.xlu0 %v744, 8
    %v749 = vpop.permute.xlu0 %748
    %750 = vrot.lane.b32.xlu0 %v745, 8
    %v751 = vpop.permute.xlu0 %750
    %v754 = vadd.f32 %v736, %v749
    %v755 = vadd.f32 %v737, %v751
    %758 = vrot.lane.b32.xlu0 %v728, 96
    %v759 = vpop.permute.xlu0 %758
    %760 = vrot.lane.b32.xlu0 %v729, 96
    %v761 = vpop.permute.xlu0 %760
    %766 = vrot.lane.b32.xlu0 %v754, 96
    %v767 = vpop.permute.xlu0 %766
    %768 = vrot.lane.b32.xlu0 %v755, 96
    %v769 = vpop.permute.xlu0 %768
    %v772 = vsel %vm237, %v759, %v767
    %v773 = vsel %vm237, %v761, %v769
    %774 = vrot.lane.b32.xlu0 %v59, 96
    %v775 = vpop.permute.xlu0 %774
    %776 = vrot.lane.b32.xlu0 %v60, 96
    %v777 = vpop.permute.xlu0 %776
    %v780 = vmul.f32 %v178, %v775
    %v781 = vmul.f32 %v182, %v777
    %782 = vrot.lane.b32.xlu0 %v61, 104
    %v783 = vpop.permute.xlu0 %782
    %784 = vrot.lane.b32.xlu0 %v62, 104
    %v785 = vpop.permute.xlu0 %784
    %v788 = vmul.f32 %v178, %v783
    %v789 = vmul.f32 %v182, %v785
    %792 = vrot.lane.b32.xlu0 %v788, 120
    %v793 = vpop.permute.xlu0 %792
    %794 = vrot.lane.b32.xlu0 %v789, 120
    %v795 = vpop.permute.xlu0 %794
    %v798 = vsub.f32 %v780, %v793
    %v799 = vsub.f32 %v781, %v795
    %800 = vrot.lane.b32.xlu0 %v59, 104
    %v801 = vpop.permute.xlu0 %800
    %802 = vrot.lane.b32.xlu0 %v60, 104
    %v803 = vpop.permute.xlu0 %802
    %v806 = vmul.f32 %v178, %v801
    %v807 = vmul.f32 %v182, %v803
    %808 = vrot.lane.b32.xlu0 %v61, 96
    %v809 = vpop.permute.xlu0 %808
    %810 = vrot.lane.b32.xlu0 %v62, 96
    %v811 = vpop.permute.xlu0 %810
    %v814 = vmul.f32 %v178, %v809
    %v815 = vmul.f32 %v182, %v811
    %818 = vrot.lane.b32.xlu0 %v814, 8
    %v819 = vpop.permute.xlu0 %818
    %820 = vrot.lane.b32.xlu0 %v815, 8
    %v821 = vpop.permute.xlu0 %820
    %v824 = vadd.f32 %v806, %v819
    %v825 = vadd.f32 %v807, %v821
    %828 = vrot.lane.b32.xlu0 %v798, 32
    %v829 = vpop.permute.xlu0 %828
    %830 = vrot.lane.b32.xlu0 %v799, 32
    %v831 = vpop.permute.xlu0 %830
    %836 = vrot.lane.b32.xlu0 %v824, 32
    %v837 = vpop.permute.xlu0 %836
    %838 = vrot.lane.b32.xlu0 %v825, 32
    %v839 = vpop.permute.xlu0 %838
    %v842 = vsel %vm237, %v829, %v837
    %v843 = vsel %vm237, %v831, %v839
    %v844 = vpack.c.bf16 %v773, %v772
    %v845 = vpack.c.bf16 %v843, %v842
    %v847 = vsel %vm312, %v844, 0
    %v850 = vsel %vm312, %v845, 0
    %852 = vmatprep.subr.bf16.mxu0 0
    %853 = vmatpush1.bf16.xpose.msra.mxu0 %v850
    %854 = vmatprep.subr.bf16.mxu0 0
    %855 = vmatpush1.bf16.xpose.msra.mxu0 0
    %856 = vmatprep.subr.bf16.mxu0 0
    %857 = vmatpush1.bf16.xpose.msra.mxu0 0
    %858 = vmatprep.subr.bf16.mxu0 0
    %859 = vmatpush1.bf16.xpose.msra.mxu0 0
    %860 = vmatprep.subr.bf16.mxu0 0
    %861 = vmatpush1.bf16.xpose.msra.mxu0 0
    %862 = vmatprep.subr.bf16.mxu0 0
    %863 = vmatpush1.bf16.xpose.msra.mxu0 0
    %864 = vmatprep.subr.bf16.mxu0 0
    %865 = vmatpush1.bf16.xpose.msra.mxu0 0
    %866 = vmatprep.subr.bf16.mxu0 0
    %867 = vmatpush1.bf16.xpose.msra.mxu0 0
    %868 = vmatprep.subr.bf16.mxu0 0
    %869 = vmatpush1.bf16.xpose.msra.mxu0 0
    %870 = vmatprep.subr.bf16.mxu0 0
    %871 = vmatpush1.bf16.xpose.msra.mxu0 0
    %872 = vmatprep.subr.bf16.mxu0 0
    %873 = vmatpush1.bf16.xpose.msra.mxu0 0
    %874 = vmatprep.subr.bf16.mxu0 0
    %875 = vmatpush1.bf16.xpose.msra.mxu0 0
    %876 = vmatprep.subr.bf16.mxu0 0
    %877 = vmatpush1.bf16.xpose.msra.mxu0 0
    %878 = vmatprep.subr.bf16.mxu0 0
    %879 = vmatpush1.bf16.xpose.msra.mxu0 0
    %880 = vmatprep.subr.bf16.mxu0 0
    %881 = vmatpush1.bf16.xpose.msra.mxu0 0
    %882 = vmatprep.subr.bf16.mxu0 0
    %883 = vmatpush1.bf16.xpose.msra.mxu0 0
    %884 = vmatprep.mubr.bf16.mxu0 0
    %885 = vmatmul.mubr.bf16.gmra.mrb[0].mxu0 %v847
    %v886 = vpop.f32.mrb[0].mxu0
    %v887 = vadd.f32 0.0, %v886
    %v888 = vpop.f32.mrb[0].mxu0
    %v889 = vpop.f32.mrb[0].mxu0
    %v890 = vadd.f32 0.0, %v889
    %v891 = vpop.f32.mrb[0].mxu0
    %892 = vdwg.mxu0
    %v893 = vmul.f32 %v887, 0.25
    %v894 = vmul.f32 %v890, 0.25
    %v895 = vsel %vm191, %v893, -1e+30
    %v896 = vsel %vm192, %v894, -1e+30
    %v897 = vsel %vm364, %v895, -inf
    %898 = vmax.xlane.f32.xlu0 %v897
    %v899 = vpop.xlane.xlu0 %898
    %v900 = vsel %vm368, %v896, -inf
    %901 = vmax.xlane.f32.xlu0 %v900
    %v902 = vpop.xlane.xlu0 %901
    %v903 = vsub.f32 %v895, %v899
    %v904 = vsub.f32 %v896, %v902
    %v905 = vmul.f32 %v903, 1.442695
    %v906 = vpow.pop %v905
    %v907 = vmul.f32 %v904, 1.442695
    %v908 = vpow.pop %v907
    %v909 = vsel %vm364, %v906, 0.0
    %910 = vadd.xlane.f32.xlu0 %v909
    %v911 = vpop.xlane.xlu0 %910
    %v912 = vsel %vm368, %v908, 0.0
    %913 = vadd.xlane.f32.xlu0 %v912
    %v914 = vpop.xlane.xlu0 %913
    %v915 = vrcp.pop %v911
    %v916 = vrcp.pop %v914
    %v917 = vmul.f32 %v906, %v915
    %v918 = vmul.f32 %v908, %v916
    %v919 = vpack.c.bf16 %v918, %v917
    %920 = vrot.lane.b32.xlu0 %v389, 96
    %v921 = vpop.permute.xlu0 %920
    %v923 = vsel %vm364, %v919, 0
    %v926 = vsel %vm393, %v921, 0
    %928 = vmatprep.subr.bf16.mxu0 0
    %929 = vmatpush1.bf16.msra.mxu0 %v926
    %930 = vmatprep.subr.bf16.mxu0 0
    %931 = vmatpush1.bf16.msra.mxu0 0
    %932 = vmatprep.subr.bf16.mxu0 0
    %933 = vmatpush1.bf16.msra.mxu0 0
    %934 = vmatprep.subr.bf16.mxu0 0
    %935 = vmatpush1.bf16.msra.mxu0 0
    %936 = vmatprep.subr.bf16.mxu0 0
    %937 = vmatpush1.bf16.msra.mxu0 0
    %938 = vmatprep.subr.bf16.mxu0 0
    %939 = vmatpush1.bf16.msra.mxu0 0
    %940 = vmatprep.subr.bf16.mxu0 0
    %941 = vmatpush1.bf16.msra.mxu0 0
    %942 = vmatprep.subr.bf16.mxu0 0
    %943 = vmatpush1.bf16.msra.mxu0 0
    %944 = vmatprep.subr.bf16.mxu0 0
    %945 = vmatpush1.bf16.msra.mxu0 0
    %946 = vmatprep.subr.bf16.mxu0 0
    %947 = vmatpush1.bf16.msra.mxu0 0
    %948 = vmatprep.subr.bf16.mxu0 0
    %949 = vmatpush1.bf16.msra.mxu0 0
    %950 = vmatprep.subr.bf16.mxu0 0
    %951 = vmatpush1.bf16.msra.mxu0 0
    %952 = vmatprep.subr.bf16.mxu0 0
    %953 = vmatpush1.bf16.msra.mxu0 0
    %954 = vmatprep.subr.bf16.mxu0 0
    %955 = vmatpush1.bf16.msra.mxu0 0
    %956 = vmatprep.subr.bf16.mxu0 0
    %957 = vmatpush1.bf16.msra.mxu0 0
    %958 = vmatprep.subr.bf16.mxu0 0
    %959 = vmatpush1.bf16.msra.mxu0 0
    %960 = vmatprep.mubr.bf16.mxu0 0
    %961 = vmatmul.mubr.bf16.gmra.mrb[0].mxu0 %v923
    %v962 = vpop.f32.mrb[0].mxu0
    %v963 = vadd.f32 0.0, %v962
    %v964 = vpop.f32.mrb[0].mxu0
    %v965 = vpop.f32.mrb[0].mxu0
    %v966 = vadd.f32 0.0, %v965
    %v967 = vpop.f32.mrb[0].mxu0
    %968 = vdwg.mxu0
    %969 = vrot.lane.b32.xlu0 %v59, 48
    %v970 = vpop.permute.xlu0 %969
    %971 = vrot.lane.b32.xlu0 %v60, 48
    %v972 = vpop.permute.xlu0 %971
    %v975 = vmul.f32 %v178, %v970
    %v976 = vmul.f32 %v182, %v972
    %977 = vrot.lane.b32.xlu0 %v61, 56
    %v978 = vpop.permute.xlu0 %977
    %979 = vrot.lane.b32.xlu0 %v62, 56
    %v980 = vpop.permute.xlu0 %979
    %v983 = vmul.f32 %v178, %v978
    %v984 = vmul.f32 %v182, %v980
    %987 = vrot.lane.b32.xlu0 %v983, 120
    %v988 = vpop.permute.xlu0 %987
    %989 = vrot.lane.b32.xlu0 %v984, 120
    %v990 = vpop.permute.xlu0 %989
    %v993 = vsub.f32 %v975, %v988
    %v994 = vsub.f32 %v976, %v990
    %995 = vrot.lane.b32.xlu0 %v59, 56
    %v996 = vpop.permute.xlu0 %995
    %997 = vrot.lane.b32.xlu0 %v60, 56
    %v998 = vpop.permute.xlu0 %997
    %v1001 = vmul.f32 %v178, %v996
    %v1002 = vmul.f32 %v182, %v998
    %1003 = vrot.lane.b32.xlu0 %v61, 48
    %v1004 = vpop.permute.xlu0 %1003
    %1005 = vrot.lane.b32.xlu0 %v62, 48
    %v1006 = vpop.permute.xlu0 %1005
    %v1009 = vmul.f32 %v178, %v1004
    %v1010 = vmul.f32 %v182, %v1006
    %1013 = vrot.lane.b32.xlu0 %v1009, 8
    %v1014 = vpop.permute.xlu0 %1013
    %1015 = vrot.lane.b32.xlu0 %v1010, 8
    %v1016 = vpop.permute.xlu0 %1015
    %v1019 = vadd.f32 %v1001, %v1014
    %v1020 = vadd.f32 %v1002, %v1016
    %1023 = vrot.lane.b32.xlu0 %v993, 80
    %v1024 = vpop.permute.xlu0 %1023
    %1025 = vrot.lane.b32.xlu0 %v994, 80
    %v1026 = vpop.permute.xlu0 %1025
    %1031 = vrot.lane.b32.xlu0 %v1019, 80
    %v1032 = vpop.permute.xlu0 %1031
    %1033 = vrot.lane.b32.xlu0 %v1020, 80
    %v1034 = vpop.permute.xlu0 %1033
    %v1037 = vsel %vm237, %v1024, %v1032
    %v1038 = vsel %vm237, %v1026, %v1034
    %1039 = vrot.lane.b32.xlu0 %v59, 112
    %v1040 = vpop.permute.xlu0 %1039
    %1041 = vrot.lane.b32.xlu0 %v60, 112
    %v1042 = vpop.permute.xlu0 %1041
    %v1045 = vmul.f32 %v178, %v1040
    %v1046 = vmul.f32 %v182, %v1042
    %1047 = vrot.lane.b32.xlu0 %v61, 120
    %v1048 = vpop.permute.xlu0 %1047
    %1049 = vrot.lane.b32.xlu0 %v62, 120
    %v1050 = vpop.permute.xlu0 %1049
    %v1053 = vmul.f32 %v178, %v1048
    %v1054 = vmul.f32 %v182, %v1050
    %1057 = vrot.lane.b32.xlu0 %v1053, 120
    %v1058 = vpop.permute.xlu0 %1057
    %1059 = vrot.lane.b32.xlu0 %v1054, 120
    %v1060 = vpop.permute.xlu0 %1059
    %v1063 = vsub.f32 %v1045, %v1058
    %v1064 = vsub.f32 %v1046, %v1060
    %1065 = vrot.lane.b32.xlu0 %v59, 120
    %v1066 = vpop.permute.xlu0 %1065
    %1067 = vrot.lane.b32.xlu0 %v60, 120
    %v1068 = vpop.permute.xlu0 %1067
    %v1071 = vmul.f32 %v178, %v1066
    %v1072 = vmul.f32 %v182, %v1068
    %1073 = vrot.lane.b32.xlu0 %v61, 112
    %v1074 = vpop.permute.xlu0 %1073
    %1075 = vrot.lane.b32.xlu0 %v62, 112
    %v1076 = vpop.permute.xlu0 %1075
    %v1079 = vmul.f32 %v178, %v1074
    %v1080 = vmul.f32 %v182, %v1076
    %1083 = vrot.lane.b32.xlu0 %v1079, 8
    %v1084 = vpop.permute.xlu0 %1083
    %1085 = vrot.lane.b32.xlu0 %v1080, 8
    %v1086 = vpop.permute.xlu0 %1085
    %v1089 = vadd.f32 %v1071, %v1084
    %v1090 = vadd.f32 %v1072, %v1086
    %1093 = vrot.lane.b32.xlu0 %v1063, 16
    %v1094 = vpop.permute.xlu0 %1093
    %1095 = vrot.lane.b32.xlu0 %v1064, 16
    %v1096 = vpop.permute.xlu0 %1095
    %1101 = vrot.lane.b32.xlu0 %v1089, 16
    %v1102 = vpop.permute.xlu0 %1101
    %1103 = vrot.lane.b32.xlu0 %v1090, 16
    %v1104 = vpop.permute.xlu0 %1103
    %v1107 = vsel %vm237, %v1094, %v1102
    %v1108 = vsel %vm237, %v1096, %v1104
    %v1109 = vpack.c.bf16 %v1038, %v1037
    %v1110 = vpack.c.bf16 %v1108, %v1107
    %v1112 = vsel %vm312, %v1109, 0
    %v1115 = vsel %vm312, %v1110, 0
    %1117 = vmatprep.subr.bf16.mxu0 0
    %1118 = vmatpush1.bf16.xpose.msra.mxu0 %v1115
    %1119 = vmatprep.subr.bf16.mxu0 0
    %1120 = vmatpush1.bf16.xpose.msra.mxu0 0
    %1121 = vmatprep.subr.bf16.mxu0 0
    %1122 = vmatpush1.bf16.xpose.msra.mxu0 0
    %1123 = vmatprep.subr.bf16.mxu0 0
    %1124 = vmatpush1.bf16.xpose.msra.mxu0 0
    %1125 = vmatprep.subr.bf16.mxu0 0
    %1126 = vmatpush1.bf16.xpose.msra.mxu0 0
    %1127 = vmatprep.subr.bf16.mxu0 0
    %1128 = vmatpush1.bf16.xpose.msra.mxu0 0
    %1129 = vmatprep.subr.bf16.mxu0 0
    %1130 = vmatpush1.bf16.xpose.msra.mxu0 0
    %1131 = vmatprep.subr.bf16.mxu0 0
    %1132 = vmatpush1.bf16.xpose.msra.mxu0 0
    %1133 = vmatprep.subr.bf16.mxu0 0
    %1134 = vmatpush1.bf16.xpose.msra.mxu0 0
    %1135 = vmatprep.subr.bf16.mxu0 0
    %1136 = vmatpush1.bf16.xpose.msra.mxu0 0
    %1137 = vmatprep.subr.bf16.mxu0 0
    %1138 = vmatpush1.bf16.xpose.msra.mxu0 0
    %1139 = vmatprep.subr.bf16.mxu0 0
    %1140 = vmatpush1.bf16.xpose.msra.mxu0 0
    %1141 = vmatprep.subr.bf16.mxu0 0
    %1142 = vmatpush1.bf16.xpose.msra.mxu0 0
    %1143 = vmatprep.subr.bf16.mxu0 0
    %1144 = vmatpush1.bf16.xpose.msra.mxu0 0
    %1145 = vmatprep.subr.bf16.mxu0 0
    %1146 = vmatpush1.bf16.xpose.msra.mxu0 0
    %1147 = vmatprep.subr.bf16.mxu0 0
    %1148 = vmatpush1.bf16.xpose.msra.mxu0 0
    %1149 = vmatprep.mubr.bf16.mxu0 0
    %1150 = vmatmul.mubr.bf16.gmra.mrb[0].mxu0 %v1112
    %v1151 = vpop.f32.mrb[0].mxu0
    %v1152 = vadd.f32 0.0, %v1151
    %v1153 = vpop.f32.mrb[0].mxu0
    %v1154 = vpop.f32.mrb[0].mxu0
    %v1155 = vadd.f32 0.0, %v1154
    %v1156 = vpop.f32.mrb[0].mxu0
    %1157 = vdwg.mxu0
    %v1158 = vmul.f32 %v1152, 0.25
    %v1159 = vmul.f32 %v1155, 0.25
    %v1160 = vsel %vm191, %v1158, -1e+30
    %v1161 = vsel %vm192, %v1159, -1e+30
    %v1162 = vsel %vm364, %v1160, -inf
    %1163 = vmax.xlane.f32.xlu0 %v1162
    %v1164 = vpop.xlane.xlu0 %1163
    %v1165 = vsel %vm368, %v1161, -inf
    %1166 = vmax.xlane.f32.xlu0 %v1165
    %v1167 = vpop.xlane.xlu0 %1166
    %v1168 = vsub.f32 %v1160, %v1164
    %v1169 = vsub.f32 %v1161, %v1167
    %v1170 = vmul.f32 %v1168, 1.442695
    %v1171 = vpow.pop %v1170
    %v1172 = vmul.f32 %v1169, 1.442695
    %v1173 = vpow.pop %v1172
    %v1174 = vsel %vm364, %v1171, 0.0
    %1175 = vadd.xlane.f32.xlu0 %v1174
    %v1176 = vpop.xlane.xlu0 %1175
    %v1177 = vsel %vm368, %v1173, 0.0
    %1178 = vadd.xlane.f32.xlu0 %v1177
    %v1179 = vpop.xlane.xlu0 %1178
    %v1180 = vrcp.pop %v1176
    %v1181 = vrcp.pop %v1179
    %v1182 = vmul.f32 %v1171, %v1180
    %v1183 = vmul.f32 %v1173, %v1181
    %v1184 = vpack.c.bf16 %v1183, %v1182
    %1185 = vrot.lane.b32.xlu0 %v389, 80
    %v1186 = vpop.permute.xlu0 %1185
    %v1188 = vsel %vm364, %v1184, 0
    %v1191 = vsel %vm393, %v1186, 0
    %1193 = vmatprep.subr.bf16.mxu0 0
    %1194 = vmatpush1.bf16.msra.mxu0 %v1191
    %1195 = vmatprep.subr.bf16.mxu0 0
    %1196 = vmatpush1.bf16.msra.mxu0 0
    %1197 = vmatprep.subr.bf16.mxu0 0
    %1198 = vmatpush1.bf16.msra.mxu0 0
    %1199 = vmatprep.subr.bf16.mxu0 0
    %1200 = vmatpush1.bf16.msra.mxu0 0
    %1201 = vmatprep.subr.bf16.mxu0 0
    %1202 = vmatpush1.bf16.msra.mxu0 0
    %1203 = vmatprep.subr.bf16.mxu0 0
    %1204 = vmatpush1.bf16.msra.mxu0 0
    %1205 = vmatprep.subr.bf16.mxu0 0
    %1206 = vmatpush1.bf16.msra.mxu0 0
    %1207 = vmatprep.subr.bf16.mxu0 0
    %1208 = vmatpush1.bf16.msra.mxu0 0
    %1209 = vmatprep.subr.bf16.mxu0 0
    %1210 = vmatpush1.bf16.msra.mxu0 0
    %1211 = vmatprep.subr.bf16.mxu0 0
    %1212 = vmatpush1.bf16.msra.mxu0 0
    %1213 = vmatprep.subr.bf16.mxu0 0
    %1214 = vmatpush1.bf16.msra.mxu0 0
    %1215 = vmatprep.subr.bf16.mxu0 0
    %1216 = vmatpush1.bf16.msra.mxu0 0
    %1217 = vmatprep.subr.bf16.mxu0 0
    %1218 = vmatpush1.bf16.msra.mxu0 0
    %1219 = vmatprep.subr.bf16.mxu0 0
    %1220 = vmatpush1.bf16.msra.mxu0 0
    %1221 = vmatprep.subr.bf16.mxu0 0
    %1222 = vmatpush1.bf16.msra.mxu0 0
    %1223 = vmatprep.subr.bf16.mxu0 0
    %1224 = vmatpush1.bf16.msra.mxu0 0
    %1225 = vmatprep.mubr.bf16.mxu0 0
    %1226 = vmatmul.mubr.bf16.gmra.mrb[0].mxu0 %v1188
    %v1227 = vpop.f32.mrb[0].mxu0
    %v1228 = vadd.f32 0.0, %v1227
    %v1229 = vpop.f32.mrb[0].mxu0
    %v1230 = vpop.f32.mrb[0].mxu0
    %v1231 = vadd.f32 0.0, %v1230
    %v1232 = vpop.f32.mrb[0].mxu0
    %1233 = vdwg.mxu0
    %1236 = vrot.lane.b32.xlu0 %v698, 16
    %v1237 = vpop.permute.xlu0 %1236
    %1238 = vrot.lane.b32.xlu0 %v701, 16
    %v1239 = vpop.permute.xlu0 %1238
    %1244 = vrot.lane.b32.xlu0 %v963, 32
    %v1245 = vpop.permute.xlu0 %1244
    %1246 = vrot.lane.b32.xlu0 %v966, 32
    %v1247 = vpop.permute.xlu0 %1246
    %1252 = vrot.lane.b32.xlu0 %v1228, 48
    %v1253 = vpop.permute.xlu0 %1252
    %1254 = vrot.lane.b32.xlu0 %v1231, 48
    %v1255 = vpop.permute.xlu0 %1254
    %v1258 = vsel %vm312, %v432, %v1237
    %v1259 = vsel %vm312, %v435, %v1239
    %vm1260 = vcmask 261120
    %v1261 = vsel %vm1260, %v1258, %v1245
    %v1262 = vsel %vm1260, %v1259, %v1247
    %vm1263 = vcmask 392192
    %v1264 = vsel %vm1263, %v1261, %v1253
    %v1265 = vsel %vm1263, %v1262, %v1255
    %v1266 = vpack.c.bf16 %v1265, %v1264
    %v1267 = vld [vmem:[%s8] sm:$0xf]
    %v1268 = vld [vmem:[%s8 + $0x4] sm:$0xf]
    %v1269 = vld [vmem:[%s8 + $0x8] sm:$0xf]
    %v1270 = vld [vmem:[%s8 + $0xc] sm:$0xf]
    %v1271 = vld [vmem:[%s8 + $0x10] sm:$0xf]
    %v1272 = vld [vmem:[%s8 + $0x14] sm:$0xf]
    %v1273 = vld [vmem:[%s8 + $0x18] sm:$0xf]
    %v1274 = vld [vmem:[%s8 + $0x1c] sm:$0xf]
    %v1283 = vunpack.c.l.b16 %v1267
    %v1284 = vunpack.c.l.b16 %v1268
    %v1285 = vunpack.c.l.b16 %v1269
    %v1286 = vunpack.c.l.b16 %v1270
    %v1287 = vunpack.c.l.b16 %v1271
    %v1288 = vunpack.c.l.b16 %v1272
    %v1289 = vunpack.c.l.b16 %v1273
    %v1290 = vunpack.c.l.b16 %v1274
    %v1291 = vpack.c.b16 %v1284, %v1283
    %v1292 = vpack.c.b16 %v1286, %v1285
    %v1293 = vpack.c.b16 %v1288, %v1287
    %v1294 = vpack.c.b16 %v1290, %v1289
    %v1300 = vsel %vm65, %v1266, 0
    %1302 = vmatprep.subr.bf16.mxu0 0
    %1303 = vmatpush1.bf16.msra.mxu0 %v1291
    %1304 = vmatprep.subr.bf16.mxu0 0
    %1305 = vmatpush1.bf16.msra.mxu0 %v1292
    %1306 = vmatprep.subr.bf16.mxu0 0
    %1307 = vmatpush1.bf16.msra.mxu0 %v1293
    %1308 = vmatprep.subr.bf16.mxu0 0
    %1309 = vmatpush1.bf16.msra.mxu0 %v1294
    %1310 = vmatprep.subr.bf16.mxu0 0
    %1311 = vmatpush1.bf16.msra.mxu0 0
    %1312 = vmatprep.subr.bf16.mxu0 0
    %1313 = vmatpush1.bf16.msra.mxu0 0
    %1314 = vmatprep.subr.bf16.mxu0 0
    %1315 = vmatpush1.bf16.msra.mxu0 0
    %1316 = vmatprep.subr.bf16.mxu0 0
    %1317 = vmatpush1.bf16.msra.mxu0 0
    %1318 = vmatprep.subr.bf16.mxu0 0
    %1319 = vmatpush1.bf16.msra.mxu0 0
    %1320 = vmatprep.subr.bf16.mxu0 0
    %1321 = vmatpush1.bf16.msra.mxu0 0
    %1322 = vmatprep.subr.bf16.mxu0 0
    %1323 = vmatpush1.bf16.msra.mxu0 0
    %1324 = vmatprep.subr.bf16.mxu0 0
    %1325 = vmatpush1.bf16.msra.mxu0 0
    %1326 = vmatprep.subr.bf16.mxu0 0
    %1327 = vmatpush1.bf16.msra.mxu0 0
    %1328 = vmatprep.subr.bf16.mxu0 0
    %1329 = vmatpush1.bf16.msra.mxu0 0
    %1330 = vmatprep.subr.bf16.mxu0 0
    %1331 = vmatpush1.bf16.msra.mxu0 0
    %1332 = vmatprep.subr.bf16.mxu0 0
    %1333 = vmatpush1.bf16.msra.mxu0 0
    %1334 = vmatprep.mubr.bf16.mxu0 0
    %1335 = vmatmul.mubr.bf16.gmra.mrb[0].mxu0 %v1300
    %v1336 = vpop.f32.mrb[0].mxu0
    %v1337 = vadd.f32 0.0, %v1336
    %v1338 = vpop.f32.mrb[0].mxu0
    %v1339 = vpop.f32.mrb[0].mxu0
    %v1340 = vadd.f32 0.0, %v1339
    %v1341 = vpop.f32.mrb[0].mxu0
    %1342 = vdwg.mxu0
    %v1343 = vadd.f32 %v57, %v1337
    %v1344 = vadd.f32 %v58, %v1340
    %v1345 = vmul.f32 %v1343, %v1343
    %v1346 = vmul.f32 %v1344, %v1344
    %v1347 = vsel %vm65, %v1345, 0.0
    %1348 = vadd.xlane.f32.xlu0 %v1347
    %v1349 = vpop.xlane.xlu0 %1348
    %v1350 = vsel %vm69, %v1346, 0.0
    %1351 = vadd.xlane.f32.xlu0 %v1350
    %v1352 = vpop.xlane.xlu0 %1351
    %v1353 = vmul.f32 %v1349, %v73
    %v1354 = vmul.f32 %v1352, %v73
    %v1355 = vadd.f32 %v1353, 1e-06
    %v1356 = vadd.f32 %v1354, 1e-06
    %v1357 = vrsqrt.pop %v1355
    %v1358 = vrsqrt.pop %v1356
    %v1359 = vmul.f32 %v1343, %v1357
    %v1360 = vmul.f32 %v1344, %v1358
    %v1361 = vld [vmem:[%s5] sm:$0x1]
    %v1363 = vlaneseq
    %v1364 = vshrl.u32 %v1363, 7
    %v1365 = vsub.s32 0, %v1364
    %v1366 = vrot.slane %v1361, %v1365
    %v1368 = vmul.f32 %v1359, %v1366
    %v1369 = vmul.f32 %v1360, %v1366
    %v1370 = vpack.c.bf16 %v1369, %v1368
    %v1371 = vld [vmem:[%s7] sm:$0xff]
    %v1372 = vld [vmem:[%s7 + $0x8] sm:$0xff]
    %v1373 = vld [vmem:[%s7 + $0x10] sm:$0xff]
    %v1374 = vld [vmem:[%s7 + $0x18] sm:$0xff]
    %v1375 = vld [vmem:[%s7 + $0x20] sm:$0xff]
    %v1376 = vld [vmem:[%s7 + $0x28] sm:$0xff]
    %v1377 = vld [vmem:[%s7 + $0x30] sm:$0xff]
    %v1378 = vld [vmem:[%s7 + $0x38] sm:$0xff]
    %v1387 = vunpack.c.l.b16 %v1371
    %v1388 = vunpack.c.h.b16 %v1371
    %v1389 = vunpack.c.l.b16 %v1372
    %v1390 = vunpack.c.h.b16 %v1372
    %v1391 = vunpack.c.l.b16 %v1373
    %v1392 = vunpack.c.h.b16 %v1373
    %v1393 = vunpack.c.l.b16 %v1374
    %v1394 = vunpack.c.h.b16 %v1374
    %v1395 = vunpack.c.l.b16 %v1375
    %v1396 = vunpack.c.h.b16 %v1375
    %v1397 = vunpack.c.l.b16 %v1376
    %v1398 = vunpack.c.h.b16 %v1376
    %v1399 = vunpack.c.l.b16 %v1377
    %v1400 = vunpack.c.h.b16 %v1377
    %v1401 = vunpack.c.l.b16 %v1378
    %v1402 = vunpack.c.h.b16 %v1378
    %v1403 = vpack.c.b16 %v1389, %v1387
    %v1404 = vpack.c.b16 %v1390, %v1388
    %v1405 = vpack.c.b16 %v1393, %v1391
    %v1406 = vpack.c.b16 %v1394, %v1392
    %v1407 = vpack.c.b16 %v1397, %v1395
    %v1408 = vpack.c.b16 %v1398, %v1396
    %v1409 = vpack.c.b16 %v1401, %v1399
    %v1410 = vpack.c.b16 %v1402, %v1400
    %v1420 = vsel %vm65, %v1370, 0
    %1422 = vmatprep.subr.bf16.mxu0 %v1404
    %1423 = vmatpush1.bf16.msra.mxu0 %v1403
    %1424 = vmatprep.subr.bf16.mxu0 %v1406
    %1425 = vmatpush1.bf16.msra.mxu0 %v1405
    %1426 = vmatprep.subr.bf16.mxu0 %v1408
    %1427 = vmatpush1.bf16.msra.mxu0 %v1407
    %1428 = vmatprep.subr.bf16.mxu0 %v1410
    %1429 = vmatpush1.bf16.msra.mxu0 %v1409
    %1430 = vmatprep.subr.bf16.mxu0 0
    %1431 = vmatpush1.bf16.msra.mxu0 0
    %1432 = vmatprep.subr.bf16.mxu0 0
    %1433 = vmatpush1.bf16.msra.mxu0 0
    %1434 = vmatprep.subr.bf16.mxu0 0
    %1435 = vmatpush1.bf16.msra.mxu0 0
    %1436 = vmatprep.subr.bf16.mxu0 0
    %1437 = vmatpush1.bf16.msra.mxu0 0
    %1438 = vmatprep.subr.bf16.mxu0 0
    %1439 = vmatpush1.bf16.msra.mxu0 0
    %1440 = vmatprep.subr.bf16.mxu0 0
    %1441 = vmatpush1.bf16.msra.mxu0 0
    %1442 = vmatprep.subr.bf16.mxu0 0
    %1443 = vmatpush1.bf16.msra.mxu0 0
    %1444 = vmatprep.subr.bf16.mxu0 0
    %1445 = vmatpush1.bf16.msra.mxu0 0
    %1446 = vmatprep.subr.bf16.mxu0 0
    %1447 = vmatpush1.bf16.msra.mxu0 0
    %1448 = vmatprep.subr.bf16.mxu0 0
    %1449 = vmatpush1.bf16.msra.mxu0 0
    %1450 = vmatprep.subr.bf16.mxu0 0
    %1451 = vmatpush1.bf16.msra.mxu0 0
    %1452 = vmatprep.subr.bf16.mxu0 0
    %1453 = vmatpush1.bf16.msra.mxu0 0
    %1454 = vmatprep.mubr.bf16.mxu0 0
    %1455 = vmatmul.mubr.bf16.gmra.mrb[0].mxu0 %v1420
    %v1456 = vpop.f32.mrb[0].mxu0
    %v1457 = vadd.f32 0.0, %v1456
    %v1458 = vpop.f32.mrb[0].mxu0
    %v1459 = vadd.f32 0.0, %v1458
    %v1460 = vpop.f32.mrb[0].mxu0
    %v1461 = vadd.f32 0.0, %v1460
    %v1462 = vpop.f32.mrb[0].mxu0
    %v1463 = vadd.f32 0.0, %v1462
    %1464 = vdwg.mxu0
    %v1465 = vxor.u32 %v1457, 2147483648
    %v1466 = vxor.u32 %v1461, 2147483648
    %v1467 = vmul.f32 %v1465, 1.442695
    %v1468 = vpow.pop %v1467
    %v1469 = vmul.f32 %v1466, 1.442695
    %v1470 = vpow.pop %v1469
    %v1471 = vadd.f32 %v1468, 1.0
    %v1472 = vadd.f32 %v1470, 1.0
    %v1473 = vrcp.pop %v1471
    %v1474 = vmul.f32 1.0, %v1473
    %v1475 = vrcp.pop %v1472
    %v1476 = vmul.f32 1.0, %v1475
    %v1477 = vmul.f32 %v1457, %v1474
    %v1478 = vmul.f32 %v1461, %v1476
    %v1479 = vmul.f32 %v1477, %v1459
    %v1480 = vmul.f32 %v1478, %v1463
    %v1481 = vpack.c.bf16 %v1480, %v1479
    %v1482 = vld [vmem:[%s6] sm:$0xf]
    %v1483 = vld [vmem:[%s6 + $0x4] sm:$0xf]
    %v1484 = vld [vmem:[%s6 + $0x8] sm:$0xf]
    %v1485 = vld [vmem:[%s6 + $0xc] sm:$0xf]
    %v1486 = vld [vmem:[%s6 + $0x10] sm:$0xf]
    %v1487 = vld [vmem:[%s6 + $0x14] sm:$0xf]
    %v1488 = vld [vmem:[%s6 + $0x18] sm:$0xf]
    %v1489 = vld [vmem:[%s6 + $0x1c] sm:$0xf]
    %v1490 = vld [vmem:[%s6 + $0x20] sm:$0xf]
    %v1491 = vld [vmem:[%s6 + $0x24] sm:$0xf]
    %v1492 = vld [vmem:[%s6 + $0x28] sm:$0xf]
    %v1493 = vld [vmem:[%s6 + $0x2c] sm:$0xf]
    %v1494 = vld [vmem:[%s6 + $0x30] sm:$0xf]
    %v1495 = vld [vmem:[%s6 + $0x34] sm:$0xf]
    %v1496 = vld [vmem:[%s6 + $0x38] sm:$0xf]
    %v1497 = vld [vmem:[%s6 + $0x3c] sm:$0xf]
    %v1514 = vunpack.c.l.b16 %v1482
    %v1515 = vunpack.c.l.b16 %v1483
    %v1516 = vunpack.c.l.b16 %v1484
    %v1517 = vunpack.c.l.b16 %v1485
    %v1518 = vunpack.c.l.b16 %v1486
    %v1519 = vunpack.c.l.b16 %v1487
    %v1520 = vunpack.c.l.b16 %v1488
    %v1521 = vunpack.c.l.b16 %v1489
    %v1522 = vunpack.c.l.b16 %v1490
    %v1523 = vunpack.c.l.b16 %v1491
    %v1524 = vunpack.c.l.b16 %v1492
    %v1525 = vunpack.c.l.b16 %v1493
    %v1526 = vunpack.c.l.b16 %v1494
    %v1527 = vunpack.c.l.b16 %v1495
    %v1528 = vunpack.c.l.b16 %v1496
    %v1529 = vunpack.c.l.b16 %v1497
    %v1530 = vpack.c.b16 %v1515, %v1514
    %v1531 = vpack.c.b16 %v1517, %v1516
    %v1532 = vpack.c.b16 %v1519, %v1518
    %v1533 = vpack.c.b16 %v1521, %v1520
    %v1534 = vpack.c.b16 %v1523, %v1522
    %v1535 = vpack.c.b16 %v1525, %v1524
    %v1536 = vpack.c.b16 %v1527, %v1526
    %v1537 = vpack.c.b16 %v1529, %v1528
    %1546 = vmatprep.subr.bf16.mxu0 0
    %1547 = vmatpush1.bf16.msra.mxu0 %v1530
    %1548 = vmatprep.subr.bf16.mxu0 0
    %1549 = vmatpush1.bf16.msra.mxu0 %v1531
    %1550 = vmatprep.subr.bf16.mxu0 0
    %1551 = vmatpush1.bf16.msra.mxu0 %v1532
    %1552 = vmatprep.subr.bf16.mxu0 0
    %1553 = vmatpush1.bf16.msra.mxu0 %v1533
    %1554 = vmatprep.subr.bf16.mxu0 0
    %1555 = vmatpush1.bf16.msra.mxu0 %v1534
    %1556 = vmatprep.subr.bf16.mxu0 0
    %1557 = vmatpush1.bf16.msra.mxu0 %v1535
    %1558 = vmatprep.subr.bf16.mxu0 0
    %1559 = vmatpush1.bf16.msra.mxu0 %v1536
    %1560 = vmatprep.subr.bf16.mxu0 0
    %1561 = vmatpush1.bf16.msra.mxu0 %v1537
    %1562 = vmatprep.subr.bf16.mxu0 0
    %1563 = vmatpush1.bf16.msra.mxu0 0
    %1564 = vmatprep.subr.bf16.mxu0 0
    %1565 = vmatpush1.bf16.msra.mxu0 0
    %1566 = vmatprep.subr.bf16.mxu0 0
    %1567 = vmatpush1.bf16.msra.mxu0 0
    %1568 = vmatprep.subr.bf16.mxu0 0
    %1569 = vmatpush1.bf16.msra.mxu0 0
    %1570 = vmatprep.subr.bf16.mxu0 0
    %1571 = vmatpush1.bf16.msra.mxu0 0
    %1572 = vmatprep.subr.bf16.mxu0 0
    %1573 = vmatpush1.bf16.msra.mxu0 0
    %1574 = vmatprep.subr.bf16.mxu0 0
    %1575 = vmatpush1.bf16.msra.mxu0 0
    %1576 = vmatprep.subr.bf16.mxu0 0
    %1577 = vmatpush1.bf16.msra.mxu0 0
    %1578 = vmatprep.mubr.bf16.mxu0 0
    %1579 = vmatmul.mubr.bf16.gmra.mrb[0].mxu0 %v1481
    %v1580 = vpop.f32.mrb[0].mxu0
    %v1581 = vadd.f32 0.0, %v1580
    %v1582 = vpop.f32.mrb[0].mxu0
    %v1583 = vpop.f32.mrb[0].mxu0
    %v1584 = vadd.f32 0.0, %v1583
    %v1585 = vpop.f32.mrb[0].mxu0
    %1586 = vdwg.mxu0
    %v1587 = vadd.f32 %v1343, %v1581
    %v1588 = vadd.f32 %v1344, %v1584
    %v1589 = vmul.f32 %v1587, %v1587
    %v1590 = vmul.f32 %v1588, %v1588
    %v1591 = vsel %vm65, %v1589, 0.0
    %1592 = vadd.xlane.f32.xlu0 %v1591
    %v1593 = vpop.xlane.xlu0 %1592
    %v1594 = vsel %vm69, %v1590, 0.0
    %1595 = vadd.xlane.f32.xlu0 %v1594
    %v1596 = vpop.xlane.xlu0 %1595
    %v1597 = vmul.f32 %v1593, %v73
    %v1598 = vmul.f32 %v1596, %v73
    %v1599 = vadd.f32 %v1597, 1e-06
    %v1600 = vadd.f32 %v1598, 1e-06
    %v1601 = vrsqrt.pop %v1599
    %v1602 = vrsqrt.pop %v1600
    %v1603 = vmul.f32 %v1587, %v1601
    %v1604 = vmul.f32 %v1588, %v1602
    %v1605 = vld [vmem:[%s10] sm:$0x1]
    %v1607 = vlaneseq
    %v1608 = vshrl.u32 %v1607, 7
    %v1609 = vsub.s32 0, %v1608
    %v1610 = vrot.slane %v1605, %v1609
    %v1612 = vmul.f32 %v1603, %v1610
    %v1613 = vmul.f32 %v1604, %v1610
    %v1614 = vpack.c.bf16 %v1613, %v1612
    %v1615 = vld [vmem:[%s15] sm:$0xff]
    %v1616 = vld [vmem:[%s15 + $0x8] sm:$0xff]
    %v1617 = vld [vmem:[%s15 + $0x10] sm:$0xff]
    %v1618 = vld [vmem:[%s15 + $0x18] sm:$0xff]
    %v1619 = vld [vmem:[%s15 + $0x20] sm:$0xff]
    %v1620 = vld [vmem:[%s15 + $0x28] sm:$0xff]
    %v1621 = vld [vmem:[%s15 + $0x30] sm:$0xff]
    %v1622 = vld [vmem:[%s15 + $0x38] sm:$0xff]
    %v1631 = vunpack.c.l.b16 %v1615
    %v1632 = vunpack.c.h.b16 %v1615
    %v1633 = vunpack.c.l.b16 %v1616
    %v1634 = vunpack.c.h.b16 %v1616
    %v1635 = vunpack.c.l.b16 %v1617
    %v1636 = vunpack.c.h.b16 %v1617
    %v1637 = vunpack.c.l.b16 %v1618
    %v1638 = vunpack.c.h.b16 %v1618
    %v1639 = vunpack.c.l.b16 %v1619
    %v1640 = vunpack.c.h.b16 %v1619
    %v1641 = vunpack.c.l.b16 %v1620
    %v1642 = vunpack.c.h.b16 %v1620
    %v1643 = vunpack.c.l.b16 %v1621
    %v1644 = vunpack.c.h.b16 %v1621
    %v1645 = vunpack.c.l.b16 %v1622
    %v1646 = vunpack.c.h.b16 %v1622
    %v1647 = vpack.c.b16 %v1633, %v1631
    %v1648 = vpack.c.b16 %v1634, %v1632
    %v1649 = vpack.c.b16 %v1637, %v1635
    %v1650 = vpack.c.b16 %v1638, %v1636
    %v1651 = vpack.c.b16 %v1641, %v1639
    %v1652 = vpack.c.b16 %v1642, %v1640
    %v1653 = vpack.c.b16 %v1645, %v1643
    %v1654 = vpack.c.b16 %v1646, %v1644
    %v1664 = vsel %vm65, %v1614, 0
    %1666 = vmatprep.subr.bf16.mxu0 %v1648
    %1667 = vmatpush1.bf16.msra.mxu0 %v1647
    %1668 = vmatprep.subr.bf16.mxu0 %v1650
    %1669 = vmatpush1.bf16.msra.mxu0 %v1649
    %1670 = vmatprep.subr.bf16.mxu0 %v1652
    %1671 = vmatpush1.bf16.msra.mxu0 %v1651
    %1672 = vmatprep.subr.bf16.mxu0 %v1654
    %1673 = vmatpush1.bf16.msra.mxu0 %v1653
    %1674 = vmatprep.subr.bf16.mxu0 0
    %1675 = vmatpush1.bf16.msra.mxu0 0
    %1676 = vmatprep.subr.bf16.mxu0 0
    %1677 = vmatpush1.bf16.msra.mxu0 0
    %1678 = vmatprep.subr.bf16.mxu0 0
    %1679 = vmatpush1.bf16.msra.mxu0 0
    %1680 = vmatprep.subr.bf16.mxu0 0
    %1681 = vmatpush1.bf16.msra.mxu0 0
    %1682 = vmatprep.subr.bf16.mxu0 0
    %1683 = vmatpush1.bf16.msra.mxu0 0
    %1684 = vmatprep.subr.bf16.mxu0 0
    %1685 = vmatpush1.bf16.msra.mxu0 0
    %1686 = vmatprep.subr.bf16.mxu0 0
    %1687 = vmatpush1.bf16.msra.mxu0 0
    %1688 = vmatprep.subr.bf16.mxu0 0
    %1689 = vmatpush1.bf16.msra.mxu0 0
    %1690 = vmatprep.subr.bf16.mxu0 0
    %1691 = vmatpush1.bf16.msra.mxu0 0
    %1692 = vmatprep.subr.bf16.mxu0 0
    %1693 = vmatpush1.bf16.msra.mxu0 0
    %1694 = vmatprep.subr.bf16.mxu0 0
    %1695 = vmatpush1.bf16.msra.mxu0 0
    %1696 = vmatprep.subr.bf16.mxu0 0
    %1697 = vmatpush1.bf16.msra.mxu0 0
    %1698 = vmatprep.mubr.bf16.mxu0 0
    %1699 = vmatmul.mubr.bf16.gmra.mrb[0].mxu0 %v1664
    %v1700 = vpop.f32.mrb[0].mxu0
    %v1701 = vadd.f32 0.0, %v1700
    %v1702 = vpop.f32.mrb[0].mxu0
    %v1703 = vadd.f32 0.0, %v1702
    %v1704 = vpop.f32.mrb[0].mxu0
    %v1705 = vadd.f32 0.0, %v1704
    %v1706 = vpop.f32.mrb[0].mxu0
    %v1707 = vadd.f32 0.0, %v1706
    %1708 = vdwg.mxu0
    %v1709 = vmul.f32 %v1701, %v59
    %v1710 = vmul.f32 %v1705, %v60
    %v1711 = vmul.f32 %v1701, %v198
    %v1712 = vmul.f32 %v1705, %v200
    %1715 = vrot.lane.b32.xlu0 %v1711, 120
    %v1716 = vpop.permute.xlu0 %1715
    %1717 = vrot.lane.b32.xlu0 %v1712, 120
    %v1718 = vpop.permute.xlu0 %1717
    %v1721 = vsub.f32 %v1709, %v1716
    %v1722 = vsub.f32 %v1710, %v1718
    %v1723 = vmul.f32 %v1701, %v218
    %v1724 = vmul.f32 %v1705, %v220
    %v1725 = vmul.f32 %v1701, %v61
    %v1726 = vmul.f32 %v1705, %v62
    %1729 = vrot.lane.b32.xlu0 %v1725, 8
    %v1730 = vpop.permute.xlu0 %1729
    %1731 = vrot.lane.b32.xlu0 %v1726, 8
    %v1732 = vpop.permute.xlu0 %1731
    %v1735 = vadd.f32 %v1723, %v1730
    %v1736 = vadd.f32 %v1724, %v1732
    %v1737 = vsel %vm237, %v1721, %v1735
    %v1738 = vsel %vm237, %v1722, %v1736
    %v1739 = vmul.f32 %v1701, %v241
    %v1740 = vmul.f32 %v1705, %v243
    %v1741 = vmul.f32 %v1701, %v249
    %v1742 = vmul.f32 %v1705, %v251
    %1745 = vrot.lane.b32.xlu0 %v1741, 120
    %v1746 = vpop.permute.xlu0 %1745
    %1747 = vrot.lane.b32.xlu0 %v1742, 120
    %v1748 = vpop.permute.xlu0 %1747
    %v1751 = vsub.f32 %v1739, %v1746
    %v1752 = vsub.f32 %v1740, %v1748
    %v1753 = vmul.f32 %v1701, %v267
    %v1754 = vmul.f32 %v1705, %v269
    %v1755 = vmul.f32 %v1701, %v275
    %v1756 = vmul.f32 %v1705, %v277
    %1759 = vrot.lane.b32.xlu0 %v1755, 8
    %v1760 = vpop.permute.xlu0 %1759
    %1761 = vrot.lane.b32.xlu0 %v1756, 8
    %v1762 = vpop.permute.xlu0 %1761
    %v1765 = vadd.f32 %v1753, %v1760
    %v1766 = vadd.f32 %v1754, %v1762
    %1769 = vrot.lane.b32.xlu0 %v1751, 64
    %v1770 = vpop.permute.xlu0 %1769
    %1771 = vrot.lane.b32.xlu0 %v1752, 64
    %v1772 = vpop.permute.xlu0 %1771
    %1777 = vrot.lane.b32.xlu0 %v1765, 64
    %v1778 = vpop.permute.xlu0 %1777
    %1779 = vrot.lane.b32.xlu0 %v1766, 64
    %v1780 = vpop.permute.xlu0 %1779
    %v1783 = vsel %vm237, %v1770, %v1778
    %v1784 = vsel %vm237, %v1772, %v1780
    %v1785 = vpack.c.bf16 %v1738, %v1737
    %v1786 = vpack.c.bf16 %v1784, %v1783
    %v1788 = vsel %vm312, %v1785, 0
    %v1791 = vsel %vm312, %v1786, 0
    %1793 = vmatprep.subr.bf16.mxu0 0
    %1794 = vmatpush1.bf16.xpose.msra.mxu0 %v1791
    %1795 = vmatprep.subr.bf16.mxu0 0
    %1796 = vmatpush1.bf16.xpose.msra.mxu0 0
    %1797 = vmatprep.subr.bf16.mxu0 0
    %1798 = vmatpush1.bf16.xpose.msra.mxu0 0
    %1799 = vmatprep.subr.bf16.mxu0 0
    %1800 = vmatpush1.bf16.xpose.msra.mxu0 0
    %1801 = vmatprep.subr.bf16.mxu0 0
    %1802 = vmatpush1.bf16.xpose.msra.mxu0 0
    %1803 = vmatprep.subr.bf16.mxu0 0
    %1804 = vmatpush1.bf16.xpose.msra.mxu0 0
    %1805 = vmatprep.subr.bf16.mxu0 0
    %1806 = vmatpush1.bf16.xpose.msra.mxu0 0
    %1807 = vmatprep.subr.bf16.mxu0 0
    %1808 = vmatpush1.bf16.xpose.msra.mxu0 0
    %1809 = vmatprep.subr.bf16.mxu0 0
    %1810 = vmatpush1.bf16.xpose.msra.mxu0 0
    %1811 = vmatprep.subr.bf16.mxu0 0
    %1812 = vmatpush1.bf16.xpose.msra.mxu0 0
    %1813 = vmatprep.subr.bf16.mxu0 0
    %1814 = vmatpush1.bf16.xpose.msra.mxu0 0
    %1815 = vmatprep.subr.bf16.mxu0 0
    %1816 = vmatpush1.bf16.xpose.msra.mxu0 0
    %1817 = vmatprep.subr.bf16.mxu0 0
    %1818 = vmatpush1.bf16.xpose.msra.mxu0 0
    %1819 = vmatprep.subr.bf16.mxu0 0
    %1820 = vmatpush1.bf16.xpose.msra.mxu0 0
    %1821 = vmatprep.subr.bf16.mxu0 0
    %1822 = vmatpush1.bf16.xpose.msra.mxu0 0
    %1823 = vmatprep.subr.bf16.mxu0 0
    %1824 = vmatpush1.bf16.xpose.msra.mxu0 0
    %1825 = vmatprep.mubr.bf16.mxu0 0
    %1826 = vmatmul.mubr.bf16.gmra.mrb[0].mxu0 %v1788
    %v1827 = vpop.f32.mrb[0].mxu0
    %v1828 = vadd.f32 0.0, %v1827
    %v1829 = vpop.f32.mrb[0].mxu0
    %v1830 = vpop.f32.mrb[0].mxu0
    %v1831 = vadd.f32 0.0, %v1830
    %v1832 = vpop.f32.mrb[0].mxu0
    %1833 = vdwg.mxu0
    %v1834 = vmul.f32 %v1828, 0.25
    %v1835 = vmul.f32 %v1831, 0.25
    %v1836 = vsel %vm191, %v1834, -1e+30
    %v1837 = vsel %vm192, %v1835, -1e+30
    %v1838 = vsel %vm364, %v1836, -inf
    %1839 = vmax.xlane.f32.xlu0 %v1838
    %v1840 = vpop.xlane.xlu0 %1839
    %v1841 = vsel %vm368, %v1837, -inf
    %1842 = vmax.xlane.f32.xlu0 %v1841
    %v1843 = vpop.xlane.xlu0 %1842
    %v1844 = vsub.f32 %v1836, %v1840
    %v1845 = vsub.f32 %v1837, %v1843
    %v1846 = vmul.f32 %v1844, 1.442695
    %v1847 = vpow.pop %v1846
    %v1848 = vmul.f32 %v1845, 1.442695
    %v1849 = vpow.pop %v1848
    %v1850 = vsel %vm364, %v1847, 0.0
    %1851 = vadd.xlane.f32.xlu0 %v1850
    %v1852 = vpop.xlane.xlu0 %1851
    %v1853 = vsel %vm368, %v1849, 0.0
    %1854 = vadd.xlane.f32.xlu0 %v1853
    %v1855 = vpop.xlane.xlu0 %1854
    %v1856 = vrcp.pop %v1852
    %v1857 = vrcp.pop %v1855
    %v1858 = vmul.f32 %v1847, %v1856
    %v1859 = vmul.f32 %v1849, %v1857
    %v1860 = vpack.c.bf16 %v1859, %v1858
    %v1861 = vpack.c.bf16 %v1707, %v1703
    %v1863 = vsel %vm364, %v1860, 0
    %v1866 = vsel %vm393, %v1861, 0
    %1868 = vmatprep.subr.bf16.mxu0 0
    %1869 = vmatpush1.bf16.msra.mxu0 %v1866
    %1870 = vmatprep.subr.bf16.mxu0 0
    %1871 = vmatpush1.bf16.msra.mxu0 0
    %1872 = vmatprep.subr.bf16.mxu0 0
    %1873 = vmatpush1.bf16.msra.mxu0 0
    %1874 = vmatprep.subr.bf16.mxu0 0
    %1875 = vmatpush1.bf16.msra.mxu0 0
    %1876 = vmatprep.subr.bf16.mxu0 0
    %1877 = vmatpush1.bf16.msra.mxu0 0
    %1878 = vmatprep.subr.bf16.mxu0 0
    %1879 = vmatpush1.bf16.msra.mxu0 0
    %1880 = vmatprep.subr.bf16.mxu0 0
    %1881 = vmatpush1.bf16.msra.mxu0 0
    %1882 = vmatprep.subr.bf16.mxu0 0
    %1883 = vmatpush1.bf16.msra.mxu0 0
    %1884 = vmatprep.subr.bf16.mxu0 0
    %1885 = vmatpush1.bf16.msra.mxu0 0
    %1886 = vmatprep.subr.bf16.mxu0 0
    %1887 = vmatpush1.bf16.msra.mxu0 0
    %1888 = vmatprep.subr.bf16.mxu0 0
    %1889 = vmatpush1.bf16.msra.mxu0 0
    %1890 = vmatprep.subr.bf16.mxu0 0
    %1891 = vmatpush1.bf16.msra.mxu0 0
    %1892 = vmatprep.subr.bf16.mxu0 0
    %1893 = vmatpush1.bf16.msra.mxu0 0
    %1894 = vmatprep.subr.bf16.mxu0 0
    %1895 = vmatpush1.bf16.msra.mxu0 0
    %1896 = vmatprep.subr.bf16.mxu0 0
    %1897 = vmatpush1.bf16.msra.mxu0 0
    %1898 = vmatprep.subr.bf16.mxu0 0
    %1899 = vmatpush1.bf16.msra.mxu0 0
    %1900 = vmatprep.mubr.bf16.mxu0 0
    %1901 = vmatmul.mubr.bf16.gmra.mrb[0].mxu0 %v1863
    %v1902 = vpop.f32.mrb[0].mxu0
    %v1903 = vadd.f32 0.0, %v1902
    %v1904 = vpop.f32.mrb[0].mxu0
    %v1905 = vpop.f32.mrb[0].mxu0
    %v1906 = vadd.f32 0.0, %v1905
    %v1907 = vpop.f32.mrb[0].mxu0
    %1908 = vdwg.mxu0
    %v1909 = vmul.f32 %v1701, %v439
    %v1910 = vmul.f32 %v1705, %v441
    %v1911 = vmul.f32 %v1701, %v447
    %v1912 = vmul.f32 %v1705, %v449
    %1915 = vrot.lane.b32.xlu0 %v1911, 120
    %v1916 = vpop.permute.xlu0 %1915
    %1917 = vrot.lane.b32.xlu0 %v1912, 120
    %v1918 = vpop.permute.xlu0 %1917
    %v1921 = vsub.f32 %v1909, %v1916
    %v1922 = vsub.f32 %v1910, %v1918
    %v1923 = vmul.f32 %v1701, %v465
    %v1924 = vmul.f32 %v1705, %v467
    %v1925 = vmul.f32 %v1701, %v473
    %v1926 = vmul.f32 %v1705, %v475
    %1929 = vrot.lane.b32.xlu0 %v1925, 8
    %v1930 = vpop.permute.xlu0 %1929
    %1931 = vrot.lane.b32.xlu0 %v1926, 8
    %v1932 = vpop.permute.xlu0 %1931
    %v1935 = vadd.f32 %v1923, %v1930
    %v1936 = vadd.f32 %v1924, %v1932
    %1939 = vrot.lane.b32.xlu0 %v1921, 112
    %v1940 = vpop.permute.xlu0 %1939
    %1941 = vrot.lane.b32.xlu0 %v1922, 112
    %v1942 = vpop.permute.xlu0 %1941
    %1947 = vrot.lane.b32.xlu0 %v1935, 112
    %v1948 = vpop.permute.xlu0 %1947
    %1949 = vrot.lane.b32.xlu0 %v1936, 112
    %v1950 = vpop.permute.xlu0 %1949
    %v1953 = vsel %vm237, %v1940, %v1948
    %v1954 = vsel %vm237, %v1942, %v1950
    %v1955 = vmul.f32 %v1701, %v509
    %v1956 = vmul.f32 %v1705, %v511
    %v1957 = vmul.f32 %v1701, %v517
    %v1958 = vmul.f32 %v1705, %v519
    %1961 = vrot.lane.b32.xlu0 %v1957, 120
    %v1962 = vpop.permute.xlu0 %1961
    %1963 = vrot.lane.b32.xlu0 %v1958, 120
    %v1964 = vpop.permute.xlu0 %1963
    %v1967 = vsub.f32 %v1955, %v1962
    %v1968 = vsub.f32 %v1956, %v1964
    %v1969 = vmul.f32 %v1701, %v535
    %v1970 = vmul.f32 %v1705, %v537
    %v1971 = vmul.f32 %v1701, %v543
    %v1972 = vmul.f32 %v1705, %v545
    %1975 = vrot.lane.b32.xlu0 %v1971, 8
    %v1976 = vpop.permute.xlu0 %1975
    %1977 = vrot.lane.b32.xlu0 %v1972, 8
    %v1978 = vpop.permute.xlu0 %1977
    %v1981 = vadd.f32 %v1969, %v1976
    %v1982 = vadd.f32 %v1970, %v1978
    %1985 = vrot.lane.b32.xlu0 %v1967, 48
    %v1986 = vpop.permute.xlu0 %1985
    %1987 = vrot.lane.b32.xlu0 %v1968, 48
    %v1988 = vpop.permute.xlu0 %1987
    %1993 = vrot.lane.b32.xlu0 %v1981, 48
    %v1994 = vpop.permute.xlu0 %1993
    %1995 = vrot.lane.b32.xlu0 %v1982, 48
    %v1996 = vpop.permute.xlu0 %1995
    %v1999 = vsel %vm237, %v1986, %v1994
    %v2000 = vsel %vm237, %v1988, %v1996
    %v2001 = vpack.c.bf16 %v1954, %v1953
    %v2002 = vpack.c.bf16 %v2000, %v1999
    %v2004 = vsel %vm312, %v2001, 0
    %v2007 = vsel %vm312, %v2002, 0
    %2009 = vmatprep.subr.bf16.mxu0 0
    %2010 = vmatpush1.bf16.xpose.msra.mxu0 %v2007
    %2011 = vmatprep.subr.bf16.mxu0 0
    %2012 = vmatpush1.bf16.xpose.msra.mxu0 0
    %2013 = vmatprep.subr.bf16.mxu0 0
    %2014 = vmatpush1.bf16.xpose.msra.mxu0 0
    %2015 = vmatprep.subr.bf16.mxu0 0
    %2016 = vmatpush1.bf16.xpose.msra.mxu0 0
    %2017 = vmatprep.subr.bf16.mxu0 0
    %2018 = vmatpush1.bf16.xpose.msra.mxu0 0
    %2019 = vmatprep.subr.bf16.mxu0 0
    %2020 = vmatpush1.bf16.xpose.msra.mxu0 0
    %2021 = vmatprep.subr.bf16.mxu0 0
    %2022 = vmatpush1.bf16.xpose.msra.mxu0 0
    %2023 = vmatprep.subr.bf16.mxu0 0
    %2024 = vmatpush1.bf16.xpose.msra.mxu0 0
    %2025 = vmatprep.subr.bf16.mxu0 0
    %2026 = vmatpush1.bf16.xpose.msra.mxu0 0
    %2027 = vmatprep.subr.bf16.mxu0 0
    %2028 = vmatpush1.bf16.xpose.msra.mxu0 0
    %2029 = vmatprep.subr.bf16.mxu0 0
    %2030 = vmatpush1.bf16.xpose.msra.mxu0 0
    %2031 = vmatprep.subr.bf16.mxu0 0
    %2032 = vmatpush1.bf16.xpose.msra.mxu0 0
    %2033 = vmatprep.subr.bf16.mxu0 0
    %2034 = vmatpush1.bf16.xpose.msra.mxu0 0
    %2035 = vmatprep.subr.bf16.mxu0 0
    %2036 = vmatpush1.bf16.xpose.msra.mxu0 0
    %2037 = vmatprep.subr.bf16.mxu0 0
    %2038 = vmatpush1.bf16.xpose.msra.mxu0 0
    %2039 = vmatprep.subr.bf16.mxu0 0
    %2040 = vmatpush1.bf16.xpose.msra.mxu0 0
    %2041 = vmatprep.mubr.bf16.mxu0 0
    %2042 = vmatmul.mubr.bf16.gmra.mrb[0].mxu0 %v2004
    %v2043 = vpop.f32.mrb[0].mxu0
    %v2044 = vadd.f32 0.0, %v2043
    %v2045 = vpop.f32.mrb[0].mxu0
    %v2046 = vpop.f32.mrb[0].mxu0
    %v2047 = vadd.f32 0.0, %v2046
    %v2048 = vpop.f32.mrb[0].mxu0
    %2049 = vdwg.mxu0
    %v2050 = vmul.f32 %v2044, 0.25
    %v2051 = vmul.f32 %v2047, 0.25
    %v2052 = vsel %vm191, %v2050, -1e+30
    %v2053 = vsel %vm192, %v2051, -1e+30
    %v2054 = vsel %vm364, %v2052, -inf
    %2055 = vmax.xlane.f32.xlu0 %v2054
    %v2056 = vpop.xlane.xlu0 %2055
    %v2057 = vsel %vm368, %v2053, -inf
    %2058 = vmax.xlane.f32.xlu0 %v2057
    %v2059 = vpop.xlane.xlu0 %2058
    %v2060 = vsub.f32 %v2052, %v2056
    %v2061 = vsub.f32 %v2053, %v2059
    %v2062 = vmul.f32 %v2060, 1.442695
    %v2063 = vpow.pop %v2062
    %v2064 = vmul.f32 %v2061, 1.442695
    %v2065 = vpow.pop %v2064
    %v2066 = vsel %vm364, %v2063, 0.0
    %2067 = vadd.xlane.f32.xlu0 %v2066
    %v2068 = vpop.xlane.xlu0 %2067
    %v2069 = vsel %vm368, %v2065, 0.0
    %2070 = vadd.xlane.f32.xlu0 %v2069
    %v2071 = vpop.xlane.xlu0 %2070
    %v2072 = vrcp.pop %v2068
    %v2073 = vrcp.pop %v2071
    %v2074 = vmul.f32 %v2063, %v2072
    %v2075 = vmul.f32 %v2065, %v2073
    %v2076 = vpack.c.bf16 %v2075, %v2074
    %2078 = vrot.lane.b32.xlu0 %v1861, 112
    %v2079 = vpop.permute.xlu0 %2078
    %v2081 = vsel %vm364, %v2076, 0
    %v2084 = vsel %vm393, %v2079, 0
    %2086 = vmatprep.subr.bf16.mxu0 0
    %2087 = vmatpush1.bf16.msra.mxu0 %v2084
    %2088 = vmatprep.subr.bf16.mxu0 0
    %2089 = vmatpush1.bf16.msra.mxu0 0
    %2090 = vmatprep.subr.bf16.mxu0 0
    %2091 = vmatpush1.bf16.msra.mxu0 0
    %2092 = vmatprep.subr.bf16.mxu0 0
    %2093 = vmatpush1.bf16.msra.mxu0 0
    %2094 = vmatprep.subr.bf16.mxu0 0
    %2095 = vmatpush1.bf16.msra.mxu0 0
    %2096 = vmatprep.subr.bf16.mxu0 0
    %2097 = vmatpush1.bf16.msra.mxu0 0
    %2098 = vmatprep.subr.bf16.mxu0 0
    %2099 = vmatpush1.bf16.msra.mxu0 0
    %2100 = vmatprep.subr.bf16.mxu0 0
    %2101 = vmatpush1.bf16.msra.mxu0 0
    %2102 = vmatprep.subr.bf16.mxu0 0
    %2103 = vmatpush1.bf16.msra.mxu0 0
    %2104 = vmatprep.subr.bf16.mxu0 0
    %2105 = vmatpush1.bf16.msra.mxu0 0
    %2106 = vmatprep.subr.bf16.mxu0 0
    %2107 = vmatpush1.bf16.msra.mxu0 0
    %2108 = vmatprep.subr.bf16.mxu0 0
    %2109 = vmatpush1.bf16.msra.mxu0 0
    %2110 = vmatprep.subr.bf16.mxu0 0
    %2111 = vmatpush1.bf16.msra.mxu0 0
    %2112 = vmatprep.subr.bf16.mxu0 0
    %2113 = vmatpush1.bf16.msra.mxu0 0
    %2114 = vmatprep.subr.bf16.mxu0 0
    %2115 = vmatpush1.bf16.msra.mxu0 0
    %2116 = vmatprep.subr.bf16.mxu0 0
    %2117 = vmatpush1.bf16.msra.mxu0 0
    %2118 = vmatprep.mubr.bf16.mxu0 0
    %2119 = vmatmul.mubr.bf16.gmra.mrb[0].mxu0 %v2081
    %v2120 = vpop.f32.mrb[0].mxu0
    %v2121 = vadd.f32 0.0, %v2120
    %v2122 = vpop.f32.mrb[0].mxu0
    %v2123 = vpop.f32.mrb[0].mxu0
    %v2124 = vadd.f32 0.0, %v2123
    %v2125 = vpop.f32.mrb[0].mxu0
    %2126 = vdwg.mxu0
    %v2127 = vmul.f32 %v1701, %v705
    %v2128 = vmul.f32 %v1705, %v707
    %v2129 = vmul.f32 %v1701, %v713
    %v2130 = vmul.f32 %v1705, %v715
    %2133 = vrot.lane.b32.xlu0 %v2129, 120
    %v2134 = vpop.permute.xlu0 %2133
    %2135 = vrot.lane.b32.xlu0 %v2130, 120
    %v2136 = vpop.permute.xlu0 %2135
    %v2139 = vsub.f32 %v2127, %v2134
    %v2140 = vsub.f32 %v2128, %v2136
    %v2141 = vmul.f32 %v1701, %v731
    %v2142 = vmul.f32 %v1705, %v733
    %v2143 = vmul.f32 %v1701, %v739
    %v2144 = vmul.f32 %v1705, %v741
    %2147 = vrot.lane.b32.xlu0 %v2143, 8
    %v2148 = vpop.permute.xlu0 %2147
    %2149 = vrot.lane.b32.xlu0 %v2144, 8
    %v2150 = vpop.permute.xlu0 %2149
    %v2153 = vadd.f32 %v2141, %v2148
    %v2154 = vadd.f32 %v2142, %v2150
    %2157 = vrot.lane.b32.xlu0 %v2139, 96
    %v2158 = vpop.permute.xlu0 %2157
    %2159 = vrot.lane.b32.xlu0 %v2140, 96
    %v2160 = vpop.permute.xlu0 %2159
    %2165 = vrot.lane.b32.xlu0 %v2153, 96
    %v2166 = vpop.permute.xlu0 %2165
    %2167 = vrot.lane.b32.xlu0 %v2154, 96
    %v2168 = vpop.permute.xlu0 %2167
    %v2171 = vsel %vm237, %v2158, %v2166
    %v2172 = vsel %vm237, %v2160, %v2168
    %v2173 = vmul.f32 %v1701, %v775
    %v2174 = vmul.f32 %v1705, %v777
    %v2175 = vmul.f32 %v1701, %v783
    %v2176 = vmul.f32 %v1705, %v785
    %2179 = vrot.lane.b32.xlu0 %v2175, 120
    %v2180 = vpop.permute.xlu0 %2179
    %2181 = vrot.lane.b32.xlu0 %v2176, 120
    %v2182 = vpop.permute.xlu0 %2181
    %v2185 = vsub.f32 %v2173, %v2180
    %v2186 = vsub.f32 %v2174, %v2182
    %v2187 = vmul.f32 %v1701, %v801
    %v2188 = vmul.f32 %v1705, %v803
    %v2189 = vmul.f32 %v1701, %v809
    %v2190 = vmul.f32 %v1705, %v811
    %2193 = vrot.lane.b32.xlu0 %v2189, 8
    %v2194 = vpop.permute.xlu0 %2193
    %2195 = vrot.lane.b32.xlu0 %v2190, 8
    %v2196 = vpop.permute.xlu0 %2195
    %v2199 = vadd.f32 %v2187, %v2194
    %v2200 = vadd.f32 %v2188, %v2196
    %2203 = vrot.lane.b32.xlu0 %v2185, 32
    %v2204 = vpop.permute.xlu0 %2203
    %2205 = vrot.lane.b32.xlu0 %v2186, 32
    %v2206 = vpop.permute.xlu0 %2205
    %2211 = vrot.lane.b32.xlu0 %v2199, 32
    %v2212 = vpop.permute.xlu0 %2211
    %2213 = vrot.lane.b32.xlu0 %v2200, 32
    %v2214 = vpop.permute.xlu0 %2213
    %v2217 = vsel %vm237, %v2204, %v2212
    %v2218 = vsel %vm237, %v2206, %v2214
    %v2219 = vpack.c.bf16 %v2172, %v2171
    %v2220 = vpack.c.bf16 %v2218, %v2217
    %v2222 = vsel %vm312, %v2219, 0
    %v2225 = vsel %vm312, %v2220, 0
    %2227 = vmatprep.subr.bf16.mxu0 0
    %2228 = vmatpush1.bf16.xpose.msra.mxu0 %v2225
    %2229 = vmatprep.subr.bf16.mxu0 0
    %2230 = vmatpush1.bf16.xpose.msra.mxu0 0
    %2231 = vmatprep.subr.bf16.mxu0 0
    %2232 = vmatpush1.bf16.xpose.msra.mxu0 0
    %2233 = vmatprep.subr.bf16.mxu0 0
    %2234 = vmatpush1.bf16.xpose.msra.mxu0 0
    %2235 = vmatprep.subr.bf16.mxu0 0
    %2236 = vmatpush1.bf16.xpose.msra.mxu0 0
    %2237 = vmatprep.subr.bf16.mxu0 0
    %2238 = vmatpush1.bf16.xpose.msra.mxu0 0
    %2239 = vmatprep.subr.bf16.mxu0 0
    %2240 = vmatpush1.bf16.xpose.msra.mxu0 0
    %2241 = vmatprep.subr.bf16.mxu0 0
    %2242 = vmatpush1.bf16.xpose.msra.mxu0 0
    %2243 = vmatprep.subr.bf16.mxu0 0
    %2244 = vmatpush1.bf16.xpose.msra.mxu0 0
    %2245 = vmatprep.subr.bf16.mxu0 0
    %2246 = vmatpush1.bf16.xpose.msra.mxu0 0
    %2247 = vmatprep.subr.bf16.mxu0 0
    %2248 = vmatpush1.bf16.xpose.msra.mxu0 0
    %2249 = vmatprep.subr.bf16.mxu0 0
    %2250 = vmatpush1.bf16.xpose.msra.mxu0 0
    %2251 = vmatprep.subr.bf16.mxu0 0
    %2252 = vmatpush1.bf16.xpose.msra.mxu0 0
    %2253 = vmatprep.subr.bf16.mxu0 0
    %2254 = vmatpush1.bf16.xpose.msra.mxu0 0
    %2255 = vmatprep.subr.bf16.mxu0 0
    %2256 = vmatpush1.bf16.xpose.msra.mxu0 0
    %2257 = vmatprep.subr.bf16.mxu0 0
    %2258 = vmatpush1.bf16.xpose.msra.mxu0 0
    %2259 = vmatprep.mubr.bf16.mxu0 0
    %2260 = vmatmul.mubr.bf16.gmra.mrb[0].mxu0 %v2222
    %v2261 = vpop.f32.mrb[0].mxu0
    %v2262 = vadd.f32 0.0, %v2261
    %v2263 = vpop.f32.mrb[0].mxu0
    %v2264 = vpop.f32.mrb[0].mxu0
    %v2265 = vadd.f32 0.0, %v2264
    %v2266 = vpop.f32.mrb[0].mxu0
    %2267 = vdwg.mxu0
    %v2268 = vmul.f32 %v2262, 0.25
    %v2269 = vmul.f32 %v2265, 0.25
    %v2270 = vsel %vm191, %v2268, -1e+30
    %v2271 = vsel %vm192, %v2269, -1e+30
    %v2272 = vsel %vm364, %v2270, -inf
    %2273 = vmax.xlane.f32.xlu0 %v2272
    %v2274 = vpop.xlane.xlu0 %2273
    %v2275 = vsel %vm368, %v2271, -inf
    %2276 = vmax.xlane.f32.xlu0 %v2275
    %v2277 = vpop.xlane.xlu0 %2276
    %v2278 = vsub.f32 %v2270, %v2274
    %v2279 = vsub.f32 %v2271, %v2277
    %v2280 = vmul.f32 %v2278, 1.442695
    %v2281 = vpow.pop %v2280
    %v2282 = vmul.f32 %v2279, 1.442695
    %v2283 = vpow.pop %v2282
    %v2284 = vsel %vm364, %v2281, 0.0
    %2285 = vadd.xlane.f32.xlu0 %v2284
    %v2286 = vpop.xlane.xlu0 %2285
    %v2287 = vsel %vm368, %v2283, 0.0
    %2288 = vadd.xlane.f32.xlu0 %v2287
    %v2289 = vpop.xlane.xlu0 %2288
    %v2290 = vrcp.pop %v2286
    %v2291 = vrcp.pop %v2289
    %v2292 = vmul.f32 %v2281, %v2290
    %v2293 = vmul.f32 %v2283, %v2291
    %v2294 = vpack.c.bf16 %v2293, %v2292
    %2295 = vrot.lane.b32.xlu0 %v1861, 96
    %v2296 = vpop.permute.xlu0 %2295
    %v2298 = vsel %vm364, %v2294, 0
    %v2301 = vsel %vm393, %v2296, 0
    %2303 = vmatprep.subr.bf16.mxu0 0
    %2304 = vmatpush1.bf16.msra.mxu0 %v2301
    %2305 = vmatprep.subr.bf16.mxu0 0
    %2306 = vmatpush1.bf16.msra.mxu0 0
    %2307 = vmatprep.subr.bf16.mxu0 0
    %2308 = vmatpush1.bf16.msra.mxu0 0
    %2309 = vmatprep.subr.bf16.mxu0 0
    %2310 = vmatpush1.bf16.msra.mxu0 0
    %2311 = vmatprep.subr.bf16.mxu0 0
    %2312 = vmatpush1.bf16.msra.mxu0 0
    %2313 = vmatprep.subr.bf16.mxu0 0
    %2314 = vmatpush1.bf16.msra.mxu0 0
    %2315 = vmatprep.subr.bf16.mxu0 0
    %2316 = vmatpush1.bf16.msra.mxu0 0
    %2317 = vmatprep.subr.bf16.mxu0 0
    %2318 = vmatpush1.bf16.msra.mxu0 0
    %2319 = vmatprep.subr.bf16.mxu0 0
    %2320 = vmatpush1.bf16.msra.mxu0 0
    %2321 = vmatprep.subr.bf16.mxu0 0
    %2322 = vmatpush1.bf16.msra.mxu0 0
    %2323 = vmatprep.subr.bf16.mxu0 0
    %2324 = vmatpush1.bf16.msra.mxu0 0
    %2325 = vmatprep.subr.bf16.mxu0 0
    %2326 = vmatpush1.bf16.msra.mxu0 0
    %2327 = vmatprep.subr.bf16.mxu0 0
    %2328 = vmatpush1.bf16.msra.mxu0 0
    %2329 = vmatprep.subr.bf16.mxu0 0
    %2330 = vmatpush1.bf16.msra.mxu0 0
    %2331 = vmatprep.subr.bf16.mxu0 0
    %2332 = vmatpush1.bf16.msra.mxu0 0
    %2333 = vmatprep.subr.bf16.mxu0 0
    %2334 = vmatpush1.bf16.msra.mxu0 0
    %2335 = vmatprep.mubr.bf16.mxu0 0
    %2336 = vmatmul.mubr.bf16.gmra.mrb[0].mxu0 %v2298
    %v2337 = vpop.f32.mrb[0].mxu0
    %v2338 = vadd.f32 0.0, %v2337
    %v2339 = vpop.f32.mrb[0].mxu0
    %v2340 = vpop.f32.mrb[0].mxu0
    %v2341 = vadd.f32 0.0, %v2340
    %v2342 = vpop.f32.mrb[0].mxu0
    %2343 = vdwg.mxu0
    %v2344 = vmul.f32 %v1701, %v970
    %v2345 = vmul.f32 %v1705, %v972
    %v2346 = vmul.f32 %v1701, %v978
    %v2347 = vmul.f32 %v1705, %v980
    %2350 = vrot.lane.b32.xlu0 %v2346, 120
    %v2351 = vpop.permute.xlu0 %2350
    %2352 = vrot.lane.b32.xlu0 %v2347, 120
    %v2353 = vpop.permute.xlu0 %2352
    %v2356 = vsub.f32 %v2344, %v2351
    %v2357 = vsub.f32 %v2345, %v2353
    %v2358 = vmul.f32 %v1701, %v996
    %v2359 = vmul.f32 %v1705, %v998
    %v2360 = vmul.f32 %v1701, %v1004
    %v2361 = vmul.f32 %v1705, %v1006
    %2364 = vrot.lane.b32.xlu0 %v2360, 8
    %v2365 = vpop.permute.xlu0 %2364
    %2366 = vrot.lane.b32.xlu0 %v2361, 8
    %v2367 = vpop.permute.xlu0 %2366
    %v2370 = vadd.f32 %v2358, %v2365
    %v2371 = vadd.f32 %v2359, %v2367
    %2374 = vrot.lane.b32.xlu0 %v2356, 80
    %v2375 = vpop.permute.xlu0 %2374
    %2376 = vrot.lane.b32.xlu0 %v2357, 80
    %v2377 = vpop.permute.xlu0 %2376
    %2382 = vrot.lane.b32.xlu0 %v2370, 80
    %v2383 = vpop.permute.xlu0 %2382
    %2384 = vrot.lane.b32.xlu0 %v2371, 80
    %v2385 = vpop.permute.xlu0 %2384
    %v2388 = vsel %vm237, %v2375, %v2383
    %v2389 = vsel %vm237, %v2377, %v2385
    %v2390 = vmul.f32 %v1701, %v1040
    %v2391 = vmul.f32 %v1705, %v1042
    %v2392 = vmul.f32 %v1701, %v1048
    %v2393 = vmul.f32 %v1705, %v1050
    %2396 = vrot.lane.b32.xlu0 %v2392, 120
    %v2397 = vpop.permute.xlu0 %2396
    %2398 = vrot.lane.b32.xlu0 %v2393, 120
    %v2399 = vpop.permute.xlu0 %2398
    %v2402 = vsub.f32 %v2390, %v2397
    %v2403 = vsub.f32 %v2391, %v2399
    %v2404 = vmul.f32 %v1701, %v1066
    %v2405 = vmul.f32 %v1705, %v1068
    %v2406 = vmul.f32 %v1701, %v1074
    %v2407 = vmul.f32 %v1705, %v1076
    %2410 = vrot.lane.b32.xlu0 %v2406, 8
    %v2411 = vpop.permute.xlu0 %2410
    %2412 = vrot.lane.b32.xlu0 %v2407, 8
    %v2413 = vpop.permute.xlu0 %2412
    %v2416 = vadd.f32 %v2404, %v2411
    %v2417 = vadd.f32 %v2405, %v2413
    %2420 = vrot.lane.b32.xlu0 %v2402, 16
    %v2421 = vpop.permute.xlu0 %2420
    %2422 = vrot.lane.b32.xlu0 %v2403, 16
    %v2423 = vpop.permute.xlu0 %2422
    %2428 = vrot.lane.b32.xlu0 %v2416, 16
    %v2429 = vpop.permute.xlu0 %2428
    %2430 = vrot.lane.b32.xlu0 %v2417, 16
    %v2431 = vpop.permute.xlu0 %2430
    %v2434 = vsel %vm237, %v2421, %v2429
    %v2435 = vsel %vm237, %v2423, %v2431
    %v2436 = vpack.c.bf16 %v2389, %v2388
    %v2437 = vpack.c.bf16 %v2435, %v2434
    %v2439 = vsel %vm312, %v2436, 0
    %v2442 = vsel %vm312, %v2437, 0
    %2444 = vmatprep.subr.bf16.mxu0 0
    %2445 = vmatpush1.bf16.xpose.msra.mxu0 %v2442
    %2446 = vmatprep.subr.bf16.mxu0 0
    %2447 = vmatpush1.bf16.xpose.msra.mxu0 0
    %2448 = vmatprep.subr.bf16.mxu0 0
    %2449 = vmatpush1.bf16.xpose.msra.mxu0 0
    %2450 = vmatprep.subr.bf16.mxu0 0
    %2451 = vmatpush1.bf16.xpose.msra.mxu0 0
    %2452 = vmatprep.subr.bf16.mxu0 0
    %2453 = vmatpush1.bf16.xpose.msra.mxu0 0
    %2454 = vmatprep.subr.bf16.mxu0 0
    %2455 = vmatpush1.bf16.xpose.msra.mxu0 0
    %2456 = vmatprep.subr.bf16.mxu0 0
    %2457 = vmatpush1.bf16.xpose.msra.mxu0 0
    %2458 = vmatprep.subr.bf16.mxu0 0
    %2459 = vmatpush1.bf16.xpose.msra.mxu0 0
    %2460 = vmatprep.subr.bf16.mxu0 0
    %2461 = vmatpush1.bf16.xpose.msra.mxu0 0
    %2462 = vmatprep.subr.bf16.mxu0 0
    %2463 = vmatpush1.bf16.xpose.msra.mxu0 0
    %2464 = vmatprep.subr.bf16.mxu0 0
    %2465 = vmatpush1.bf16.xpose.msra.mxu0 0
    %2466 = vmatprep.subr.bf16.mxu0 0
    %2467 = vmatpush1.bf16.xpose.msra.mxu0 0
    %2468 = vmatprep.subr.bf16.mxu0 0
    %2469 = vmatpush1.bf16.xpose.msra.mxu0 0
    %2470 = vmatprep.subr.bf16.mxu0 0
    %2471 = vmatpush1.bf16.xpose.msra.mxu0 0
    %2472 = vmatprep.subr.bf16.mxu0 0
    %2473 = vmatpush1.bf16.xpose.msra.mxu0 0
    %2474 = vmatprep.subr.bf16.mxu0 0
    %2475 = vmatpush1.bf16.xpose.msra.mxu0 0
    %2476 = vmatprep.mubr.bf16.mxu0 0
    %2477 = vmatmul.mubr.bf16.gmra.mrb[0].mxu0 %v2439
    %v2478 = vpop.f32.mrb[0].mxu0
    %v2479 = vadd.f32 0.0, %v2478
    %v2480 = vpop.f32.mrb[0].mxu0
    %v2481 = vpop.f32.mrb[0].mxu0
    %v2482 = vadd.f32 0.0, %v2481
    %v2483 = vpop.f32.mrb[0].mxu0
    %2484 = vdwg.mxu0
    %v2485 = vmul.f32 %v2479, 0.25
    %v2486 = vmul.f32 %v2482, 0.25
    %v2487 = vsel %vm191, %v2485, -1e+30
    %v2488 = vsel %vm192, %v2486, -1e+30
    %v2489 = vsel %vm364, %v2487, -inf
    %2490 = vmax.xlane.f32.xlu0 %v2489
    %v2491 = vpop.xlane.xlu0 %2490
    %v2492 = vsel %vm368, %v2488, -inf
    %2493 = vmax.xlane.f32.xlu0 %v2492
    %v2494 = vpop.xlane.xlu0 %2493
    %v2495 = vsub.f32 %v2487, %v2491
    %v2496 = vsub.f32 %v2488, %v2494
    %v2497 = vmul.f32 %v2495, 1.442695
    %v2498 = vpow.pop %v2497
    %v2499 = vmul.f32 %v2496, 1.442695
    %v2500 = vpow.pop %v2499
    %v2501 = vsel %vm364, %v2498, 0.0
    %2502 = vadd.xlane.f32.xlu0 %v2501
    %v2503 = vpop.xlane.xlu0 %2502
    %v2504 = vsel %vm368, %v2500, 0.0
    %2505 = vadd.xlane.f32.xlu0 %v2504
    %v2506 = vpop.xlane.xlu0 %2505
    %v2507 = vrcp.pop %v2503
    %v2508 = vrcp.pop %v2506
    %v2509 = vmul.f32 %v2498, %v2507
    %v2510 = vmul.f32 %v2500, %v2508
    %v2511 = vpack.c.bf16 %v2510, %v2509
    %2512 = vrot.lane.b32.xlu0 %v1861, 80
    %v2513 = vpop.permute.xlu0 %2512
    %v2515 = vsel %vm364, %v2511, 0
    %v2518 = vsel %vm393, %v2513, 0
    %2520 = vmatprep.subr.bf16.mxu0 0
    %2521 = vmatpush1.bf16.msra.mxu0 %v2518
    %2522 = vmatprep.subr.bf16.mxu0 0
    %2523 = vmatpush1.bf16.msra.mxu0 0
    %2524 = vmatprep.subr.bf16.mxu0 0
    %2525 = vmatpush1.bf16.msra.mxu0 0
    %2526 = vmatprep.subr.bf16.mxu0 0
    %2527 = vmatpush1.bf16.msra.mxu0 0
    %2528 = vmatprep.subr.bf16.mxu0 0
    %2529 = vmatpush1.bf16.msra.mxu0 0
    %2530 = vmatprep.subr.bf16.mxu0 0
    %2531 = vmatpush1.bf16.msra.mxu0 0
    %2532 = vmatprep.subr.bf16.mxu0 0
    %2533 = vmatpush1.bf16.msra.mxu0 0
    %2534 = vmatprep.subr.bf16.mxu0 0
    %2535 = vmatpush1.bf16.msra.mxu0 0
    %2536 = vmatprep.subr.bf16.mxu0 0
    %2537 = vmatpush1.bf16.msra.mxu0 0
    %2538 = vmatprep.subr.bf16.mxu0 0
    %2539 = vmatpush1.bf16.msra.mxu0 0
    %2540 = vmatprep.subr.bf16.mxu0 0
    %2541 = vmatpush1.bf16.msra.mxu0 0
    %2542 = vmatprep.subr.bf16.mxu0 0
    %2543 = vmatpush1.bf16.msra.mxu0 0
    %2544 = vmatprep.subr.bf16.mxu0 0
    %2545 = vmatpush1.bf16.msra.mxu0 0
    %2546 = vmatprep.subr.bf16.mxu0 0
    %2547 = vmatpush1.bf16.msra.mxu0 0
    %2548 = vmatprep.subr.bf16.mxu0 0
    %2549 = vmatpush1.bf16.msra.mxu0 0
    %2550 = vmatprep.subr.bf16.mxu0 0
    %2551 = vmatpush1.bf16.msra.mxu0 0
    %2552 = vmatprep.mubr.bf16.mxu0 0
    %2553 = vmatmul.mubr.bf16.gmra.mrb[0].mxu0 %v2515
    %v2554 = vpop.f32.mrb[0].mxu0
    %v2555 = vadd.f32 0.0, %v2554
    %v2556 = vpop.f32.mrb[0].mxu0
    %v2557 = vpop.f32.mrb[0].mxu0
    %v2558 = vadd.f32 0.0, %v2557
    %v2559 = vpop.f32.mrb[0].mxu0
    %2560 = vdwg.mxu0
    %2563 = vrot.lane.b32.xlu0 %v2121, 16
    %v2564 = vpop.permute.xlu0 %2563
    %2565 = vrot.lane.b32.xlu0 %v2124, 16
    %v2566 = vpop.permute.xlu0 %2565
    %2571 = vrot.lane.b32.xlu0 %v2338, 32
    %v2572 = vpop.permute.xlu0 %2571
    %2573 = vrot.lane.b32.xlu0 %v2341, 32
    %v2574 = vpop.permute.xlu0 %2573
    %2579 = vrot.lane.b32.xlu0 %v2555, 48
    %v2580 = vpop.permute.xlu0 %2579
    %2581 = vrot.lane.b32.xlu0 %v2558, 48
    %v2582 = vpop.permute.xlu0 %2581
    %v2585 = vsel %vm312, %v1903, %v2564
    %v2586 = vsel %vm312, %v1906, %v2566
    %v2587 = vsel %vm1260, %v2585, %v2572
    %v2588 = vsel %vm1260, %v2586, %v2574
    %v2589 = vsel %vm1263, %v2587, %v2580
    %v2590 = vsel %vm1263, %v2588, %v2582
    %v2591 = vpack.c.bf16 %v2590, %v2589
    %v2592 = vld [vmem:[%s14] sm:$0xf]
    %v2593 = vld [vmem:[%s14 + $0x4] sm:$0xf]
    %v2594 = vld [vmem:[%s14 + $0x8] sm:$0xf]
    %v2595 = vld [vmem:[%s14 + $0xc] sm:$0xf]
    %v2596 = vld [vmem:[%s14 + $0x10] sm:$0xf]
    %v2597 = vld [vmem:[%s14 + $0x14] sm:$0xf]
    %v2598 = vld [vmem:[%s14 + $0x18] sm:$0xf]
    %v2599 = vld [vmem:[%s14 + $0x1c] sm:$0xf]
    %v2608 = vunpack.c.l.b16 %v2592
    %v2609 = vunpack.c.l.b16 %v2593
    %v2610 = vunpack.c.l.b16 %v2594
    %v2611 = vunpack.c.l.b16 %v2595
    %v2612 = vunpack.c.l.b16 %v2596
    %v2613 = vunpack.c.l.b16 %v2597
    %v2614 = vunpack.c.l.b16 %v2598
    %v2615 = vunpack.c.l.b16 %v2599
    %v2616 = vpack.c.b16 %v2609, %v2608
    %v2617 = vpack.c.b16 %v2611, %v2610
    %v2618 = vpack.c.b16 %v2613, %v2612
    %v2619 = vpack.c.b16 %v2615, %v2614
    %v2625 = vsel %vm65, %v2591, 0
    %2627 = vmatprep.subr.bf16.mxu0 0
    %2628 = vmatpush1.bf16.msra.mxu0 %v2616
    %2629 = vmatprep.subr.bf16.mxu0 0
    %2630 = vmatpush1.bf16.msra.mxu0 %v2617
    %2631 = vmatprep.subr.bf16.mxu0 0
    %2632 = vmatpush1.bf16.msra.mxu0 %v2618
    %2633 = vmatprep.subr.bf16.mxu0 0
    %2634 = vmatpush1.bf16.msra.mxu0 %v2619
    %2635 = vmatprep.subr.bf16.mxu0 0
    %2636 = vmatpush1.bf16.msra.mxu0 0
    %2637 = vmatprep.subr.bf16.mxu0 0
    %2638 = vmatpush1.bf16.msra.mxu0 0
    %2639 = vmatprep.subr.bf16.mxu0 0
    %2640 = vmatpush1.bf16.msra.mxu0 0
    %2641 = vmatprep.subr.bf16.mxu0 0
    %2642 = vmatpush1.bf16.msra.mxu0 0
    %2643 = vmatprep.subr.bf16.mxu0 0
    %2644 = vmatpush1.bf16.msra.mxu0 0
    %2645 = vmatprep.subr.bf16.mxu0 0
    %2646 = vmatpush1.bf16.msra.mxu0 0
    %2647 = vmatprep.subr.bf16.mxu0 0
    %2648 = vmatpush1.bf16.msra.mxu0 0
    %2649 = vmatprep.subr.bf16.mxu0 0
    %2650 = vmatpush1.bf16.msra.mxu0 0
    %2651 = vmatprep.subr.bf16.mxu0 0
    %2652 = vmatpush1.bf16.msra.mxu0 0
    %2653 = vmatprep.subr.bf16.mxu0 0
    %2654 = vmatpush1.bf16.msra.mxu0 0
    %2655 = vmatprep.subr.bf16.mxu0 0
    %2656 = vmatpush1.bf16.msra.mxu0 0
    %2657 = vmatprep.subr.bf16.mxu0 0
    %2658 = vmatpush1.bf16.msra.mxu0 0
    %2659 = vmatprep.mubr.bf16.mxu0 0
    %2660 = vmatmul.mubr.bf16.gmra.mrb[0].mxu0 %v2625
    %v2661 = vpop.f32.mrb[0].mxu0
    %v2662 = vadd.f32 0.0, %v2661
    %v2663 = vpop.f32.mrb[0].mxu0
    %v2664 = vpop.f32.mrb[0].mxu0
    %v2665 = vadd.f32 0.0, %v2664
    %v2666 = vpop.f32.mrb[0].mxu0
    %2667 = vdwg.mxu0
    %v2668 = vadd.f32 %v1587, %v2662
    %v2669 = vadd.f32 %v1588, %v2665
    %v2670 = vmul.f32 %v2668, %v2668
    %v2671 = vmul.f32 %v2669, %v2669
    %v2672 = vsel %vm65, %v2670, 0.0
    %2673 = vadd.xlane.f32.xlu0 %v2672
    %v2674 = vpop.xlane.xlu0 %2673
    %v2675 = vsel %vm69, %v2671, 0.0
    %2676 = vadd.xlane.f32.xlu0 %v2675
    %v2677 = vpop.xlane.xlu0 %2676
    %v2678 = vmul.f32 %v2674, %v73
    %v2679 = vmul.f32 %v2677, %v73
    %v2680 = vadd.f32 %v2678, 1e-06
    %v2681 = vadd.f32 %v2679, 1e-06
    %v2682 = vrsqrt.pop %v2680
    %v2683 = vrsqrt.pop %v2681
    %v2684 = vmul.f32 %v2668, %v2682
    %v2685 = vmul.f32 %v2669, %v2683
    %v2686 = vld [vmem:[%s11] sm:$0x1]
    %v2688 = vlaneseq
    %v2689 = vshrl.u32 %v2688, 7
    %v2690 = vsub.s32 0, %v2689
    %v2691 = vrot.slane %v2686, %v2690
    %v2693 = vmul.f32 %v2684, %v2691
    %v2694 = vmul.f32 %v2685, %v2691
    %v2695 = vpack.c.bf16 %v2694, %v2693
    %v2696 = vld [vmem:[%s13] sm:$0xff]
    %v2697 = vld [vmem:[%s13 + $0x8] sm:$0xff]
    %v2698 = vld [vmem:[%s13 + $0x10] sm:$0xff]
    %v2699 = vld [vmem:[%s13 + $0x18] sm:$0xff]
    %v2700 = vld [vmem:[%s13 + $0x20] sm:$0xff]
    %v2701 = vld [vmem:[%s13 + $0x28] sm:$0xff]
    %v2702 = vld [vmem:[%s13 + $0x30] sm:$0xff]
    %v2703 = vld [vmem:[%s13 + $0x38] sm:$0xff]
    %v2712 = vunpack.c.l.b16 %v2696
    %v2713 = vunpack.c.h.b16 %v2696
    %v2714 = vunpack.c.l.b16 %v2697
    %v2715 = vunpack.c.h.b16 %v2697
    %v2716 = vunpack.c.l.b16 %v2698
    %v2717 = vunpack.c.h.b16 %v2698
    %v2718 = vunpack.c.l.b16 %v2699
    %v2719 = vunpack.c.h.b16 %v2699
    %v2720 = vunpack.c.l.b16 %v2700
    %v2721 = vunpack.c.h.b16 %v2700
    %v2722 = vunpack.c.l.b16 %v2701
    %v2723 = vunpack.c.h.b16 %v2701
    %v2724 = vunpack.c.l.b16 %v2702
    %v2725 = vunpack.c.h.b16 %v2702
    %v2726 = vunpack.c.l.b16 %v2703
    %v2727 = vunpack.c.h.b16 %v2703
    %v2728 = vpack.c.b16 %v2714, %v2712
    %v2729 = vpack.c.b16 %v2715, %v2713
    %v2730 = vpack.c.b16 %v2718, %v2716
    %v2731 = vpack.c.b16 %v2719, %v2717
    %v2732 = vpack.c.b16 %v2722, %v2720
    %v2733 = vpack.c.b16 %v2723, %v2721
    %v2734 = vpack.c.b16 %v2726, %v2724
    %v2735 = vpack.c.b16 %v2727, %v2725
    %v2745 = vsel %vm65, %v2695, 0
    %2747 = vmatprep.subr.bf16.mxu0 %v2729
    %2748 = vmatpush1.bf16.msra.mxu0 %v2728
    %2749 = vmatprep.subr.bf16.mxu0 %v2731
    %2750 = vmatpush1.bf16.msra.mxu0 %v2730
    %2751 = vmatprep.subr.bf16.mxu0 %v2733
    %2752 = vmatpush1.bf16.msra.mxu0 %v2732
    %2753 = vmatprep.subr.bf16.mxu0 %v2735
    %2754 = vmatpush1.bf16.msra.mxu0 %v2734
    %2755 = vmatprep.subr.bf16.mxu0 0
    %2756 = vmatpush1.bf16.msra.mxu0 0
    %2757 = vmatprep.subr.bf16.mxu0 0
    %2758 = vmatpush1.bf16.msra.mxu0 0
    %2759 = vmatprep.subr.bf16.mxu0 0
    %2760 = vmatpush1.bf16.msra.mxu0 0
    %2761 = vmatprep.subr.bf16.mxu0 0
    %2762 = vmatpush1.bf16.msra.mxu0 0
    %2763 = vmatprep.subr.bf16.mxu0 0
    %2764 = vmatpush1.bf16.msra.mxu0 0
    %2765 = vmatprep.subr.bf16.mxu0 0
    %2766 = vmatpush1.bf16.msra.mxu0 0
    %2767 = vmatprep.subr.bf16.mxu0 0
    %2768 = vmatpush1.bf16.msra.mxu0 0
    %2769 = vmatprep.subr.bf16.mxu0 0
    %2770 = vmatpush1.bf16.msra.mxu0 0
    %2771 = vmatprep.subr.bf16.mxu0 0
    %2772 = vmatpush1.bf16.msra.mxu0 0
    %2773 = vmatprep.subr.bf16.mxu0 0
    %2774 = vmatpush1.bf16.msra.mxu0 0
    %2775 = vmatprep.subr.bf16.mxu0 0
    %2776 = vmatpush1.bf16.msra.mxu0 0
    %2777 = vmatprep.subr.bf16.mxu0 0
    %2778 = vmatpush1.bf16.msra.mxu0 0
    %2779 = vmatprep.mubr.bf16.mxu0 0
    %2780 = vmatmul.mubr.bf16.gmra.mrb[0].mxu0 %v2745
    %v2781 = vpop.f32.mrb[0].mxu0
    %v2782 = vadd.f32 0.0, %v2781
    %v2783 = vpop.f32.mrb[0].mxu0
    %v2784 = vadd.f32 0.0, %v2783
    %v2785 = vpop.f32.mrb[0].mxu0
    %v2786 = vadd.f32 0.0, %v2785
    %v2787 = vpop.f32.mrb[0].mxu0
    %v2788 = vadd.f32 0.0, %v2787
    %2789 = vdwg.mxu0
    %v2790 = vxor.u32 %v2782, 2147483648
    %v2791 = vxor.u32 %v2786, 2147483648
    %v2792 = vmul.f32 %v2790, 1.442695
    %v2793 = vpow.pop %v2792
    %v2794 = vmul.f32 %v2791, 1.442695
    %v2795 = vpow.pop %v2794
    %v2796 = vadd.f32 %v2793, 1.0
    %v2797 = vadd.f32 %v2795, 1.0
    %v2798 = vrcp.pop %v2796
    %v2799 = vmul.f32 1.0, %v2798
    %v2800 = vrcp.pop %v2797
    %v2801 = vmul.f32 1.0, %v2800
    %v2802 = vmul.f32 %v2782, %v2799
    %v2803 = vmul.f32 %v2786, %v2801
    %v2804 = vmul.f32 %v2802, %v2784
    %v2805 = vmul.f32 %v2803, %v2788
    %v2806 = vpack.c.bf16 %v2805, %v2804
    %v2807 = vld [vmem:[%s12] sm:$0xf]
    %v2808 = vld [vmem:[%s12 + $0x4] sm:$0xf]
    %v2809 = vld [vmem:[%s12 + $0x8] sm:$0xf]
    %v2810 = vld [vmem:[%s12 + $0xc] sm:$0xf]
    %v2811 = vld [vmem:[%s12 + $0x10] sm:$0xf]
    %v2812 = vld [vmem:[%s12 + $0x14] sm:$0xf]
    %v2813 = vld [vmem:[%s12 + $0x18] sm:$0xf]
    %v2814 = vld [vmem:[%s12 + $0x1c] sm:$0xf]
    %v2815 = vld [vmem:[%s12 + $0x20] sm:$0xf]
    %v2816 = vld [vmem:[%s12 + $0x24] sm:$0xf]
    %v2817 = vld [vmem:[%s12 + $0x28] sm:$0xf]
    %v2818 = vld [vmem:[%s12 + $0x2c] sm:$0xf]
    %v2819 = vld [vmem:[%s12 + $0x30] sm:$0xf]
    %v2820 = vld [vmem:[%s12 + $0x34] sm:$0xf]
    %v2821 = vld [vmem:[%s12 + $0x38] sm:$0xf]
    %v2822 = vld [vmem:[%s12 + $0x3c] sm:$0xf]
    %v2839 = vunpack.c.l.b16 %v2807
    %v2840 = vunpack.c.l.b16 %v2808
    %v2841 = vunpack.c.l.b16 %v2809
    %v2842 = vunpack.c.l.b16 %v2810
    %v2843 = vunpack.c.l.b16 %v2811
    %v2844 = vunpack.c.l.b16 %v2812
    %v2845 = vunpack.c.l.b16 %v2813
    %v2846 = vunpack.c.l.b16 %v2814
    %v2847 = vunpack.c.l.b16 %v2815
    %v2848 = vunpack.c.l.b16 %v2816
    %v2849 = vunpack.c.l.b16 %v2817
    %v2850 = vunpack.c.l.b16 %v2818
    %v2851 = vunpack.c.l.b16 %v2819
    %v2852 = vunpack.c.l.b16 %v2820
    %v2853 = vunpack.c.l.b16 %v2821
    %v2854 = vunpack.c.l.b16 %v2822
    %v2855 = vpack.c.b16 %v2840, %v2839
    %v2856 = vpack.c.b16 %v2842, %v2841
    %v2857 = vpack.c.b16 %v2844, %v2843
    %v2858 = vpack.c.b16 %v2846, %v2845
    %v2859 = vpack.c.b16 %v2848, %v2847
    %v2860 = vpack.c.b16 %v2850, %v2849
    %v2861 = vpack.c.b16 %v2852, %v2851
    %v2862 = vpack.c.b16 %v2854, %v2853
    %2871 = vmatprep.subr.bf16.mxu0 0
    %2872 = vmatpush1.bf16.msra.mxu0 %v2855
    %2873 = vmatprep.subr.bf16.mxu0 0
    %2874 = vmatpush1.bf16.msra.mxu0 %v2856
    %2875 = vmatprep.subr.bf16.mxu0 0
    %2876 = vmatpush1.bf16.msra.mxu0 %v2857
    %2877 = vmatprep.subr.bf16.mxu0 0
    %2878 = vmatpush1.bf16.msra.mxu0 %v2858
    %2879 = vmatprep.subr.bf16.mxu0 0
    %2880 = vmatpush1.bf16.msra.mxu0 %v2859
    %2881 = vmatprep.subr.bf16.mxu0 0
    %2882 = vmatpush1.bf16.msra.mxu0 %v2860
    %2883 = vmatprep.subr.bf16.mxu0 0
    %2884 = vmatpush1.bf16.msra.mxu0 %v2861
    %2885 = vmatprep.subr.bf16.mxu0 0
    %2886 = vmatpush1.bf16.msra.mxu0 %v2862
    %2887 = vmatprep.subr.bf16.mxu0 0
    %2888 = vmatpush1.bf16.msra.mxu0 0
    %2889 = vmatprep.subr.bf16.mxu0 0
    %2890 = vmatpush1.bf16.msra.mxu0 0
    %2891 = vmatprep.subr.bf16.mxu0 0
    %2892 = vmatpush1.bf16.msra.mxu0 0
    %2893 = vmatprep.subr.bf16.mxu0 0
    %2894 = vmatpush1.bf16.msra.mxu0 0
    %2895 = vmatprep.subr.bf16.mxu0 0
    %2896 = vmatpush1.bf16.msra.mxu0 0
    %2897 = vmatprep.subr.bf16.mxu0 0
    %2898 = vmatpush1.bf16.msra.mxu0 0
    %2899 = vmatprep.subr.bf16.mxu0 0
    %2900 = vmatpush1.bf16.msra.mxu0 0
    %2901 = vmatprep.subr.bf16.mxu0 0
    %2902 = vmatpush1.bf16.msra.mxu0 0
    %2903 = vmatprep.mubr.bf16.mxu0 0
    %2904 = vmatmul.mubr.bf16.gmra.mrb[0].mxu0 %v2806
    %v2905 = vpop.f32.mrb[0].mxu0
    %v2906 = vadd.f32 0.0, %v2905
    %v2907 = vpop.f32.mrb[0].mxu0
    %v2908 = vpop.f32.mrb[0].mxu0
    %v2909 = vadd.f32 0.0, %v2908
    %v2910 = vpop.f32.mrb[0].mxu0
    %2911 = vdwg.mxu0
    %v2912 = vadd.f32 %v2668, %v2906
    %v2913 = vadd.f32 %v2669, %v2909
    %v2914 = vmul.f32 %v2912, %v2912
    %v2915 = vmul.f32 %v2913, %v2913
    %v2916 = vsel %vm65, %v2914, 0.0
    %2917 = vadd.xlane.f32.xlu0 %v2916
    %v2918 = vpop.xlane.xlu0 %2917
    %v2919 = vsel %vm69, %v2915, 0.0
    %2920 = vadd.xlane.f32.xlu0 %v2919
    %v2921 = vpop.xlane.xlu0 %2920
    %v2922 = vmul.f32 %v2918, %v73
    %v2923 = vmul.f32 %v2921, %v73
    %v2924 = vadd.f32 %v2922, 1e-06
    %v2925 = vadd.f32 %v2923, 1e-06
    %v2926 = vrsqrt.pop %v2924
    %v2927 = vrsqrt.pop %v2925
    %v2928 = vmul.f32 %v2912, %v2926
    %v2929 = vmul.f32 %v2913, %v2927
    %v2930 = vld [vmem:[%s3] sm:$0x1]
    %v2932 = vlaneseq
    %v2933 = vshrl.u32 %v2932, 7
    %v2934 = vsub.s32 0, %v2933
    %v2935 = vrot.slane %v2930, %v2934
    %v2937 = vmul.f32 %v2928, %v2935
    %v2938 = vmul.f32 %v2929, %v2935
    %2939 = vst.msk [vmem:[#allocation2] sm:$0xff] %vm65, %v2937
    %2940 = vst.msk [vmem:[#allocation2 + $0x8] sm:$0xf] %vm69, %v2938
    // Predicated region
    $region66: #{openvla_forward.3} parent=1 // pred_check
      _
    $region67: #{openvla_forward.3} parent=1 // pred_check_branch
      %2942 = sbr.rel (0) target = $region69
    $region68: #{openvla_forward.3} parent=1 // pred_region
      %s2944 = ssub.s32 256, 256
      %2945 = vsyncadd [#allocation3], %s2944
      %s2946 = sshll.u32 [#allocation2], 4
      %s2947 = int_to_ptr.vmem [resolvable:$true] %s2946
      %2952 = dma.vmem_to_hbm [thread:$0]  %s2947, 256, %s16, [#allocation3], 128, 128, 8
    $region69: #{openvla_forward.3} parent=1 // pred_fallthru
      _
    // Predicated region
    $region70: #{openvla_forward.3} parent=1 // pred_check
      _
    $region71: #{openvla_forward.3} parent=1 // pred_check_branch
      %2954 = sbr.rel (0) target = $region73
    $region72: #{openvla_forward.3} parent=1 // pred_region
      %2955 = dma.done [#allocation3], 256
    $region73: #{openvla_forward.3} parent=1 // pred_fallthru
      _
    %2956 = vsyncpa [#allocation3], 1

// kernel: openvla_forward.2
$region0: #{openvla_forward.2}
  #allocation0 [shape = 'u32[]', space=smem, size = 0x4, offset = 0x4, fixed_abs, tag = 'smem constant byte address 0x4 - core index']
  #allocation1 [shape = 'u32[144,128]{1,0:T(1,128)}', space=vmem, size = 0x12000, scoped, tag = 'internal scratch']
  %s0 = inlined_call_operand.smem [shape: u32[68], index: -1, kind: input, shape index: {}]
  %s1 = sld [smem:[%s0]]
  %s2 = scalar_lea.smem %s0, 1
  %s3 = sld [smem:[%s2]]
  %s4 = scalar_lea.smem %s0, 2
  %s5 = sld [smem:[%s4]]
  %s6 = scalar_lea.smem %s0, 3
  %s7 = sld [smem:[%s6]]
  %s8 = scalar_lea.smem %s0, 4
  %s9 = sld [smem:[%s8]]
  %s10 = scalar_lea.smem %s0, 5
  %s11 = sld [smem:[%s10]]
  %s12 = scalar_lea.smem %s0, 6
  %s13 = sld [smem:[%s12]]
  %s14 = scalar_lea.smem %s0, 7
  %s15 = sld [smem:[%s14]]
  %s16 = scalar_lea.smem %s0, 8
  %s17 = sld [smem:[%s16]]
  %s18 = scalar_lea.smem %s0, 9
  %s19 = sld [smem:[%s18]]
  %s20 = scalar_lea.smem %s0, 10
  %s21 = sld [smem:[%s20]]
  %s22 = scalar_lea.smem %s0, 11
  %s23 = sld [smem:[%s22]]
  %s24 = scalar_lea.smem %s0, 12
  %s25 = sld [smem:[%s24]]
  %s26 = scalar_lea.smem %s0, 13
  %s27 = sld [smem:[%s26]]
  %s28 = scalar_lea.smem %s0, 14
  %s29 = sld [smem:[%s28]]
  %s30 = scalar_lea.smem %s0, 15
  %s31 = sld [smem:[%s30]]
  %s32 = scalar_lea.smem %s0, 16
  %s33 = sld [smem:[%s32]]
  %s34 = scalar_lea.smem %s0, 17
  %s35 = sld [smem:[%s34]]
  %s36 = scalar_lea.smem %s0, 18
  %s37 = sld [smem:[%s36]]
  %s38 = scalar_lea.smem %s0, 19
  %s39 = sld [smem:[%s38]]
  %s40 = scalar_lea.smem %s0, 20
  %s41 = sld [smem:[%s40]]
  %s42 = scalar_lea.smem %s0, 21
  %s43 = sld [smem:[%s42]]
  %s44 = scalar_lea.smem %s0, 22
  %s45 = sld [smem:[%s44]]
  %s46 = scalar_lea.smem %s0, 23
  %s47 = sld [smem:[%s46]]
  %s48 = scalar_lea.smem %s0, 24
  %s49 = sld [smem:[%s48]]
  %s50 = scalar_lea.smem %s0, 25
  %s51 = sld [smem:[%s50]]
  %s52 = scalar_lea.smem %s0, 26
  %s53 = sld [smem:[%s52]]
  %s54 = scalar_lea.smem %s0, 27
  %s55 = sld [smem:[%s54]]
  %s56 = scalar_lea.smem %s0, 28
  %s57 = sld [smem:[%s56]]
  %s58 = scalar_lea.smem %s0, 29
  %s59 = sld [smem:[%s58]]
  %s60 = scalar_lea.smem %s0, 30
  %s61 = sld [smem:[%s60]]
  %s62 = scalar_lea.smem %s0, 31
  %s63 = sld [smem:[%s62]]
  %s64 = scalar_lea.smem %s0, 32
  %s65 = sld [smem:[%s64]]
  %s66 = scalar_lea.smem %s0, 33
  %s67 = sld [smem:[%s66]]
  %s68 = scalar_lea.smem %s0, 34
  %s69 = sld [smem:[%s68]]
  %s70 = scalar_lea.smem %s0, 35
  %s71 = sld [smem:[%s70]]
  %s72 = scalar_lea.smem %s0, 36
  %s73 = sld [smem:[%s72]]
  %s74 = scalar_lea.smem %s0, 37
  %s75 = sld [smem:[%s74]]
  %s76 = scalar_lea.smem %s0, 38
  %s77 = sld [smem:[%s76]]
  %s78 = scalar_lea.smem %s0, 39
  %s79 = sld [smem:[%s78]]
  %s80 = scalar_lea.smem %s0, 40
  %s81 = sld [smem:[%s80]]
  %s82 = scalar_lea.smem %s0, 41
  %s83 = sld [smem:[%s82]]
  %s84 = scalar_lea.smem %s0, 42
  %s85 = sld [smem:[%s84]]
  %s86 = scalar_lea.smem %s0, 43
  %s87 = sld [smem:[%s86]]
  %s88 = scalar_lea.smem %s0, 44
  %s89 = sld [smem:[%s88]]
  %s90 = scalar_lea.smem %s0, 45
  %s91 = sld [smem:[%s90]]
  %s92 = scalar_lea.smem %s0, 46
  %s93 = sld [smem:[%s92]]
  %s94 = scalar_lea.smem %s0, 47
  %s95 = sld [smem:[%s94]]
  %s96 = scalar_lea.smem %s0, 48
  %s97 = sld [smem:[%s96]]
  %s98 = scalar_lea.smem %s0, 49
  %s99 = sld [smem:[%s98]]
  %s100 = scalar_lea.smem %s0, 50
  %s101 = sld [smem:[%s100]]
  %s102 = scalar_lea.smem %s0, 51
  %s103 = sld [smem:[%s102]]
  %s104 = scalar_lea.smem %s0, 52
  %s105 = sld [smem:[%s104]]
  %s106 = scalar_lea.smem %s0, 53
  %s107 = sld [smem:[%s106]]
  %s108 = scalar_lea.smem %s0, 54
  %s109 = sld [smem:[%s108]]
  %s110 = scalar_lea.smem %s0, 55
  %s111 = sld [smem:[%s110]]
  %s112 = scalar_lea.smem %s0, 56
  %s113 = sld [smem:[%s112]]
  %s114 = scalar_lea.smem %s0, 57
  %s115 = sld [smem:[%s114]]
  %s116 = scalar_lea.smem %s0, 58
  %s117 = sld [smem:[%s116]]
  %s118 = scalar_lea.smem %s0, 59
  %s119 = sld [smem:[%s118]]
  %s120 = scalar_lea.smem %s0, 60
  %s121 = sld [smem:[%s120]]
  %s122 = scalar_lea.smem %s0, 61
  %s123 = sld [smem:[%s122]]
  %s124 = scalar_lea.smem %s0, 62
  %s125 = sld [smem:[%s124]]
  %s126 = scalar_lea.smem %s0, 63
  %s127 = sld [smem:[%s126]]
  %s128 = scalar_lea.smem %s0, 64
  %s129 = sld [smem:[%s128]]
  %s130 = scalar_lea.smem %s0, 65
  %s131 = sld [smem:[%s130]]
  %s132 = scalar_lea.smem %s0, 66
  %s133 = sld [smem:[%s132]]
  %s134 = scalar_lea.smem %s0, 67
  %s135 = sld [smem:[%s134]]
  %s136 = sld [smem:[#allocation0]]
  $region290: #{openvla_forward.2} parent=0
    _
  %s138 = ssub.s32 1, %s136
  %s139 = scalar_select 0, %s138, %s136
  $region1: #{openvla_forward.2} parent=0
    #allocation2 [shape = 'u8[512]{0}', space=vmem, size = 0x400, scoped, tag = 'input window, operand 58, single buffered']
    #allocation3 [shape = 's32[1]{0}', space=sflag, size = 0x4, scoped, tag = 'scoped memory for openvla_forward.2']
    #allocation4 [shape = 'u8[512]{0}', space=vmem, size = 0x400, scoped, tag = 'input window, operand 63, single buffered']
    #allocation5 [shape = 's32[1]{0}', space=sflag, size = 0x4, scoped, tag = 'scoped memory for openvla_forward.2']
    #allocation6 [shape = 'u8[512]{0}', space=vmem, size = 0x400, scoped, tag = 'input window, operand 65, single buffered']
    %140 = vsyncpa [#allocation3], 0
    %141 = vsyncpa [#allocation5], 0
    // Predicated region
    $region2: #{openvla_forward.2} parent=1 // pred_check
      _
    $region3: #{openvla_forward.2} parent=1 // pred_check_branch
      %143 = sbr.rel (0) target = $region5
    $region4: #{openvla_forward.2} parent=1 // pred_region
      _
    $region5: #{openvla_forward.2} parent=1 // pred_fallthru
      _
    // Predicated region
    $region6: #{openvla_forward.2} parent=1 // pred_check
      _
    $region7: #{openvla_forward.2} parent=1 // pred_check_branch
      %145 = sbr.rel (0) target = $region9
    $region8: #{openvla_forward.2} parent=1 // pred_region
      _
    $region9: #{openvla_forward.2} parent=1 // pred_fallthru
      _
    // Predicated region
    $region10: #{openvla_forward.2} parent=1 // pred_check
      _
    $region11: #{openvla_forward.2} parent=1 // pred_check_branch
      %147 = sbr.rel (0) target = $region13
    $region12: #{openvla_forward.2} parent=1 // pred_region
      _
    $region13: #{openvla_forward.2} parent=1 // pred_fallthru
      _
    // Predicated region
    $region14: #{openvla_forward.2} parent=1 // pred_check
      _
    $region15: #{openvla_forward.2} parent=1 // pred_check_branch
      %149 = sbr.rel (0) target = $region17
    $region16: #{openvla_forward.2} parent=1 // pred_region
      _
    $region17: #{openvla_forward.2} parent=1 // pred_fallthru
      _
    // Predicated region
    $region18: #{openvla_forward.2} parent=1 // pred_check
      _
    $region19: #{openvla_forward.2} parent=1 // pred_check_branch
      %151 = sbr.rel (0) target = $region21
    $region20: #{openvla_forward.2} parent=1 // pred_region
      _
    $region21: #{openvla_forward.2} parent=1 // pred_fallthru
      _
    // Predicated region
    $region22: #{openvla_forward.2} parent=1 // pred_check
      _
    $region23: #{openvla_forward.2} parent=1 // pred_check_branch
      %153 = sbr.rel (0) target = $region25
    $region24: #{openvla_forward.2} parent=1 // pred_region
      _
    $region25: #{openvla_forward.2} parent=1 // pred_fallthru
      _
    // Predicated region
    $region26: #{openvla_forward.2} parent=1 // pred_check
      _
    $region27: #{openvla_forward.2} parent=1 // pred_check_branch
      %155 = sbr.rel (0) target = $region29
    $region28: #{openvla_forward.2} parent=1 // pred_region
      _
    $region29: #{openvla_forward.2} parent=1 // pred_fallthru
      _
    // Predicated region
    $region30: #{openvla_forward.2} parent=1 // pred_check
      _
    $region31: #{openvla_forward.2} parent=1 // pred_check_branch
      %157 = sbr.rel (0) target = $region33
    $region32: #{openvla_forward.2} parent=1 // pred_region
      _
    $region33: #{openvla_forward.2} parent=1 // pred_fallthru
      _
    // Predicated region
    $region34: #{openvla_forward.2} parent=1 // pred_check
      _
    $region35: #{openvla_forward.2} parent=1 // pred_check_branch
      %159 = sbr.rel (0) target = $region37
    $region36: #{openvla_forward.2} parent=1 // pred_region
      _
    $region37: #{openvla_forward.2} parent=1 // pred_fallthru
      _
    // Predicated region
    $region38: #{openvla_forward.2} parent=1 // pred_check
      _
    $region39: #{openvla_forward.2} parent=1 // pred_check_branch
      %161 = sbr.rel (0) target = $region41
    $region40: #{openvla_forward.2} parent=1 // pred_region
      _
    $region41: #{openvla_forward.2} parent=1 // pred_fallthru
      _
    // Predicated region
    $region42: #{openvla_forward.2} parent=1 // pred_check
      _
    $region43: #{openvla_forward.2} parent=1 // pred_check_branch
      %163 = sbr.rel (0) target = $region45
    $region44: #{openvla_forward.2} parent=1 // pred_region
      _
    $region45: #{openvla_forward.2} parent=1 // pred_fallthru
      _
    // Predicated region
    $region46: #{openvla_forward.2} parent=1 // pred_check
      _
    $region47: #{openvla_forward.2} parent=1 // pred_check_branch
      %165 = sbr.rel (0) target = $region49
    $region48: #{openvla_forward.2} parent=1 // pred_region
      _
    $region49: #{openvla_forward.2} parent=1 // pred_fallthru
      _
    // Predicated region
    $region50: #{openvla_forward.2} parent=1 // pred_check
      _
    $region51: #{openvla_forward.2} parent=1 // pred_check_branch
      %167 = sbr.rel (0) target = $region53
    $region52: #{openvla_forward.2} parent=1 // pred_region
      _
    $region53: #{openvla_forward.2} parent=1 // pred_fallthru
      _
    // Predicated region
    $region54: #{openvla_forward.2} parent=1 // pred_check
      _
    $region55: #{openvla_forward.2} parent=1 // pred_check_branch
      %169 = sbr.rel (0) target = $region57
    $region56: #{openvla_forward.2} parent=1 // pred_region
      _
    $region57: #{openvla_forward.2} parent=1 // pred_fallthru
      _
    // Predicated region
    $region58: #{openvla_forward.2} parent=1 // pred_check
      _
    $region59: #{openvla_forward.2} parent=1 // pred_check_branch
      %171 = sbr.rel (0) target = $region61
    $region60: #{openvla_forward.2} parent=1 // pred_region
      _
    $region61: #{openvla_forward.2} parent=1 // pred_fallthru
      _
    // Predicated region
    $region62: #{openvla_forward.2} parent=1 // pred_check
      _
    $region63: #{openvla_forward.2} parent=1 // pred_check_branch
      %173 = sbr.rel (0) target = $region65
    $region64: #{openvla_forward.2} parent=1 // pred_region
      _
    $region65: #{openvla_forward.2} parent=1 // pred_fallthru
      _
    // Predicated region
    $region66: #{openvla_forward.2} parent=1 // pred_check
      _
    $region67: #{openvla_forward.2} parent=1 // pred_check_branch
      %175 = sbr.rel (0) target = $region69
    $region68: #{openvla_forward.2} parent=1 // pred_region
      _
    $region69: #{openvla_forward.2} parent=1 // pred_fallthru
      _
    // Predicated region
    $region70: #{openvla_forward.2} parent=1 // pred_check
      _
    $region71: #{openvla_forward.2} parent=1 // pred_check_branch
      %177 = sbr.rel (0) target = $region73
    $region72: #{openvla_forward.2} parent=1 // pred_region
      _
    $region73: #{openvla_forward.2} parent=1 // pred_fallthru
      _
    // Predicated region
    $region74: #{openvla_forward.2} parent=1 // pred_check
      _
    $region75: #{openvla_forward.2} parent=1 // pred_check_branch
      %179 = sbr.rel (0) target = $region77
    $region76: #{openvla_forward.2} parent=1 // pred_region
      _
    $region77: #{openvla_forward.2} parent=1 // pred_fallthru
      _
    // Predicated region
    $region78: #{openvla_forward.2} parent=1 // pred_check
      _
    $region79: #{openvla_forward.2} parent=1 // pred_check_branch
      %181 = sbr.rel (0) target = $region81
    $region80: #{openvla_forward.2} parent=1 // pred_region
      _
    $region81: #{openvla_forward.2} parent=1 // pred_fallthru
      _
    // Predicated region
    $region82: #{openvla_forward.2} parent=1 // pred_check
      _
    $region83: #{openvla_forward.2} parent=1 // pred_check_branch
      %183 = sbr.rel (0) target = $region85
    $region84: #{openvla_forward.2} parent=1 // pred_region
      _
    $region85: #{openvla_forward.2} parent=1 // pred_fallthru
      _
    // Predicated region
    $region86: #{openvla_forward.2} parent=1 // pred_check
      _
    $region87: #{openvla_forward.2} parent=1 // pred_check_branch
      %185 = sbr.rel (0) target = $region89
    $region88: #{openvla_forward.2} parent=1 // pred_region
      _
    $region89: #{openvla_forward.2} parent=1 // pred_fallthru
      _
    // Predicated region
    $region90: #{openvla_forward.2} parent=1 // pred_check
      _
    $region91: #{openvla_forward.2} parent=1 // pred_check_branch
      %187 = sbr.rel (0) target = $region93
    $region92: #{openvla_forward.2} parent=1 // pred_region
      _
    $region93: #{openvla_forward.2} parent=1 // pred_fallthru
      _
    // Predicated region
    $region94: #{openvla_forward.2} parent=1 // pred_check
      _
    $region95: #{openvla_forward.2} parent=1 // pred_check_branch
      %189 = sbr.rel (0) target = $region97
    $region96: #{openvla_forward.2} parent=1 // pred_region
      _
    $region97: #{openvla_forward.2} parent=1 // pred_fallthru
      _
    // Predicated region
    $region98: #{openvla_forward.2} parent=1 // pred_check
      _
    $region99: #{openvla_forward.2} parent=1 // pred_check_branch
      %191 = sbr.rel (0) target = $region101
    $region100: #{openvla_forward.2} parent=1 // pred_region
      _
    $region101: #{openvla_forward.2} parent=1 // pred_fallthru
      _
    // Predicated region
    $region102: #{openvla_forward.2} parent=1 // pred_check
      _
    $region103: #{openvla_forward.2} parent=1 // pred_check_branch
      %193 = sbr.rel (0) target = $region105
    $region104: #{openvla_forward.2} parent=1 // pred_region
      _
    $region105: #{openvla_forward.2} parent=1 // pred_fallthru
      _
    // Predicated region
    $region106: #{openvla_forward.2} parent=1 // pred_check
      _
    $region107: #{openvla_forward.2} parent=1 // pred_check_branch
      %195 = sbr.rel (0) target = $region109
    $region108: #{openvla_forward.2} parent=1 // pred_region
      _
    $region109: #{openvla_forward.2} parent=1 // pred_fallthru
      _
    // Predicated region
    $region110: #{openvla_forward.2} parent=1 // pred_check
      _
    $region111: #{openvla_forward.2} parent=1 // pred_check_branch
      %197 = sbr.rel (0) target = $region113
    $region112: #{openvla_forward.2} parent=1 // pred_region
      _
    $region113: #{openvla_forward.2} parent=1 // pred_fallthru
      _
    // Predicated region
    $region114: #{openvla_forward.2} parent=1 // pred_check
      _
    $region115: #{openvla_forward.2} parent=1 // pred_check_branch
      %199 = sbr.rel (0) target = $region117
    $region116: #{openvla_forward.2} parent=1 // pred_region
      _
    $region117: #{openvla_forward.2} parent=1 // pred_fallthru
      _
    // Predicated region
    $region118: #{openvla_forward.2} parent=1 // pred_check
      _
    $region119: #{openvla_forward.2} parent=1 // pred_check_branch
      %201 = sbr.rel (0) target = $region121
    $region120: #{openvla_forward.2} parent=1 // pred_region
      _
    $region121: #{openvla_forward.2} parent=1 // pred_fallthru
      _
    // Predicated region
    $region122: #{openvla_forward.2} parent=1 // pred_check
      _
    $region123: #{openvla_forward.2} parent=1 // pred_check_branch
      %203 = sbr.rel (0) target = $region125
    $region124: #{openvla_forward.2} parent=1 // pred_region
      _
    $region125: #{openvla_forward.2} parent=1 // pred_fallthru
      _
    // Predicated region
    $region126: #{openvla_forward.2} parent=1 // pred_check
      _
    $region127: #{openvla_forward.2} parent=1 // pred_check_branch
      %205 = sbr.rel (0) target = $region129
    $region128: #{openvla_forward.2} parent=1 // pred_region
      _
    $region129: #{openvla_forward.2} parent=1 // pred_fallthru
      _
    // Predicated region
    $region130: #{openvla_forward.2} parent=1 // pred_check
      _
    $region131: #{openvla_forward.2} parent=1 // pred_check_branch
      %207 = sbr.rel (0) target = $region133
    $region132: #{openvla_forward.2} parent=1 // pred_region
      _
    $region133: #{openvla_forward.2} parent=1 // pred_fallthru
      _
    // Predicated region
    $region134: #{openvla_forward.2} parent=1 // pred_check
      _
    $region135: #{openvla_forward.2} parent=1 // pred_check_branch
      %209 = sbr.rel (0) target = $region137
    $region136: #{openvla_forward.2} parent=1 // pred_region
      _
    $region137: #{openvla_forward.2} parent=1 // pred_fallthru
      _
    // Predicated region
    $region138: #{openvla_forward.2} parent=1 // pred_check
      _
    $region139: #{openvla_forward.2} parent=1 // pred_check_branch
      %211 = sbr.rel (0) target = $region141
    $region140: #{openvla_forward.2} parent=1 // pred_region
      _
    $region141: #{openvla_forward.2} parent=1 // pred_fallthru
      _
    // Predicated region
    $region142: #{openvla_forward.2} parent=1 // pred_check
      _
    $region143: #{openvla_forward.2} parent=1 // pred_check_branch
      %213 = sbr.rel (0) target = $region145
    $region144: #{openvla_forward.2} parent=1 // pred_region
      _
    $region145: #{openvla_forward.2} parent=1 // pred_fallthru
      _
    // Predicated region
    $region146: #{openvla_forward.2} parent=1 // pred_check
      _
    $region147: #{openvla_forward.2} parent=1 // pred_check_branch
      %215 = sbr.rel (0) target = $region149
    $region148: #{openvla_forward.2} parent=1 // pred_region
      _
    $region149: #{openvla_forward.2} parent=1 // pred_fallthru
      _
    // Predicated region
    $region150: #{openvla_forward.2} parent=1 // pred_check
      _
    $region151: #{openvla_forward.2} parent=1 // pred_check_branch
      %217 = sbr.rel (0) target = $region153
    $region152: #{openvla_forward.2} parent=1 // pred_region
      _
    $region153: #{openvla_forward.2} parent=1 // pred_fallthru
      _
    // Predicated region
    $region154: #{openvla_forward.2} parent=1 // pred_check
      _
    $region155: #{openvla_forward.2} parent=1 // pred_check_branch
      %219 = sbr.rel (0) target = $region157
    $region156: #{openvla_forward.2} parent=1 // pred_region
      _
    $region157: #{openvla_forward.2} parent=1 // pred_fallthru
      _
    // Predicated region
    $region158: #{openvla_forward.2} parent=1 // pred_check
      _
    $region159: #{openvla_forward.2} parent=1 // pred_check_branch
      %221 = sbr.rel (0) target = $region161
    $region160: #{openvla_forward.2} parent=1 // pred_region
      _
    $region161: #{openvla_forward.2} parent=1 // pred_fallthru
      _
    // Predicated region
    $region162: #{openvla_forward.2} parent=1 // pred_check
      _
    $region163: #{openvla_forward.2} parent=1 // pred_check_branch
      %223 = sbr.rel (0) target = $region165
    $region164: #{openvla_forward.2} parent=1 // pred_region
      _
    $region165: #{openvla_forward.2} parent=1 // pred_fallthru
      _
    // Predicated region
    $region166: #{openvla_forward.2} parent=1 // pred_check
      _
    $region167: #{openvla_forward.2} parent=1 // pred_check_branch
      %225 = sbr.rel (0) target = $region169
    $region168: #{openvla_forward.2} parent=1 // pred_region
      _
    $region169: #{openvla_forward.2} parent=1 // pred_fallthru
      _
    // Predicated region
    $region170: #{openvla_forward.2} parent=1 // pred_check
      _
    $region171: #{openvla_forward.2} parent=1 // pred_check_branch
      %227 = sbr.rel (0) target = $region173
    $region172: #{openvla_forward.2} parent=1 // pred_region
      _
    $region173: #{openvla_forward.2} parent=1 // pred_fallthru
      _
    // Predicated region
    $region174: #{openvla_forward.2} parent=1 // pred_check
      _
    $region175: #{openvla_forward.2} parent=1 // pred_check_branch
      %229 = sbr.rel (0) target = $region177
    $region176: #{openvla_forward.2} parent=1 // pred_region
      _
    $region177: #{openvla_forward.2} parent=1 // pred_fallthru
      _
    // Predicated region
    $region178: #{openvla_forward.2} parent=1 // pred_check
      _
    $region179: #{openvla_forward.2} parent=1 // pred_check_branch
      %231 = sbr.rel (0) target = $region181
    $region180: #{openvla_forward.2} parent=1 // pred_region
      _
    $region181: #{openvla_forward.2} parent=1 // pred_fallthru
      _
    // Predicated region
    $region182: #{openvla_forward.2} parent=1 // pred_check
      _
    $region183: #{openvla_forward.2} parent=1 // pred_check_branch
      %233 = sbr.rel (0) target = $region185
    $region184: #{openvla_forward.2} parent=1 // pred_region
      _
    $region185: #{openvla_forward.2} parent=1 // pred_fallthru
      _
    // Predicated region
    $region186: #{openvla_forward.2} parent=1 // pred_check
      _
    $region187: #{openvla_forward.2} parent=1 // pred_check_branch
      %235 = sbr.rel (0) target = $region189
    $region188: #{openvla_forward.2} parent=1 // pred_region
      _
    $region189: #{openvla_forward.2} parent=1 // pred_fallthru
      _
    // Predicated region
    $region190: #{openvla_forward.2} parent=1 // pred_check
      _
    $region191: #{openvla_forward.2} parent=1 // pred_check_branch
      %237 = sbr.rel (0) target = $region193
    $region192: #{openvla_forward.2} parent=1 // pred_region
      _
    $region193: #{openvla_forward.2} parent=1 // pred_fallthru
      _
    // Predicated region
    $region194: #{openvla_forward.2} parent=1 // pred_check
      _
    $region195: #{openvla_forward.2} parent=1 // pred_check_branch
      %239 = sbr.rel (0) target = $region197
    $region196: #{openvla_forward.2} parent=1 // pred_region
      _
    $region197: #{openvla_forward.2} parent=1 // pred_fallthru
      _
    // Predicated region
    $region198: #{openvla_forward.2} parent=1 // pred_check
      _
    $region199: #{openvla_forward.2} parent=1 // pred_check_branch
      %241 = sbr.rel (0) target = $region201
    $region200: #{openvla_forward.2} parent=1 // pred_region
      _
    $region201: #{openvla_forward.2} parent=1 // pred_fallthru
      _
    // Predicated region
    $region202: #{openvla_forward.2} parent=1 // pred_check
      _
    $region203: #{openvla_forward.2} parent=1 // pred_check_branch
      %243 = sbr.rel (0) target = $region205
    $region204: #{openvla_forward.2} parent=1 // pred_region
      _
    $region205: #{openvla_forward.2} parent=1 // pred_fallthru
      _
    // Predicated region
    $region206: #{openvla_forward.2} parent=1 // pred_check
      _
    $region207: #{openvla_forward.2} parent=1 // pred_check_branch
      %245 = sbr.rel (0) target = $region209
    $region208: #{openvla_forward.2} parent=1 // pred_region
      _
    $region209: #{openvla_forward.2} parent=1 // pred_fallthru
      _
    // Predicated region
    $region210: #{openvla_forward.2} parent=1 // pred_check
      _
    $region211: #{openvla_forward.2} parent=1 // pred_check_branch
      %247 = sbr.rel (0) target = $region213
    $region212: #{openvla_forward.2} parent=1 // pred_region
      _
    $region213: #{openvla_forward.2} parent=1 // pred_fallthru
      _
    // Predicated region
    $region214: #{openvla_forward.2} parent=1 // pred_check
      _
    $region215: #{openvla_forward.2} parent=1 // pred_check_branch
      %249 = sbr.rel (0) target = $region217
    $region216: #{openvla_forward.2} parent=1 // pred_region
      _
    $region217: #{openvla_forward.2} parent=1 // pred_fallthru
      _
    // Predicated region
    $region218: #{openvla_forward.2} parent=1 // pred_check
      _
    $region219: #{openvla_forward.2} parent=1 // pred_check_branch
      %251 = sbr.rel (0) target = $region221
    $region220: #{openvla_forward.2} parent=1 // pred_region
      _
    $region221: #{openvla_forward.2} parent=1 // pred_fallthru
      _
    // Predicated region
    $region222: #{openvla_forward.2} parent=1 // pred_check
      _
    $region223: #{openvla_forward.2} parent=1 // pred_check_branch
      %253 = sbr.rel (0) target = $region225
    $region224: #{openvla_forward.2} parent=1 // pred_region
      _
    $region225: #{openvla_forward.2} parent=1 // pred_fallthru
      _
    // Predicated region
    $region226: #{openvla_forward.2} parent=1 // pred_check
      _
    $region227: #{openvla_forward.2} parent=1 // pred_check_branch
      %255 = sbr.rel (0) target = $region229
    $region228: #{openvla_forward.2} parent=1 // pred_region
      _
    $region229: #{openvla_forward.2} parent=1 // pred_fallthru
      _
    // Predicated region
    $region230: #{openvla_forward.2} parent=1 // pred_check
      _
    $region231: #{openvla_forward.2} parent=1 // pred_check_branch
      %257 = sbr.rel (0) target = $region233
    $region232: #{openvla_forward.2} parent=1 // pred_region
      _
    $region233: #{openvla_forward.2} parent=1 // pred_fallthru
      _
    // Predicated region
    $region234: #{openvla_forward.2} parent=1 // pred_check
      _
    $region235: #{openvla_forward.2} parent=1 // pred_check_branch
      %259 = sbr.rel (0) target = $region237
    $region236: #{openvla_forward.2} parent=1 // pred_region
      %s261 = ssub.s32 16, 16
      %262 = vsyncadd [#allocation3], %s261
      %s264 = sshll.u32 [#allocation2], 4
      %s265 = int_to_ptr.vmem [resolvable:$true] %s264
      %267 = dma.hbm_to_vmem [thread:$0]  %s117, 16, %s265, [#allocation3]
    $region237: #{openvla_forward.2} parent=1 // pred_fallthru
      _
    // Predicated region
    $region238: #{openvla_forward.2} parent=1 // pred_check
      _
    $region239: #{openvla_forward.2} parent=1 // pred_check_branch
      %269 = sbr.rel (0) target = $region241
    $region240: #{openvla_forward.2} parent=1 // pred_region
      _
    $region241: #{openvla_forward.2} parent=1 // pred_fallthru
      _
    // Predicated region
    $region242: #{openvla_forward.2} parent=1 // pred_check
      _
    $region243: #{openvla_forward.2} parent=1 // pred_check_branch
      %271 = sbr.rel (0) target = $region245
    $region244: #{openvla_forward.2} parent=1 // pred_region
      _
    $region245: #{openvla_forward.2} parent=1 // pred_fallthru
      _
    // Predicated region
    $region246: #{openvla_forward.2} parent=1 // pred_check
      _
    $region247: #{openvla_forward.2} parent=1 // pred_check_branch
      %273 = sbr.rel (0) target = $region249
    $region248: #{openvla_forward.2} parent=1 // pred_region
      _
    $region249: #{openvla_forward.2} parent=1 // pred_fallthru
      _
    // Predicated region
    $region250: #{openvla_forward.2} parent=1 // pred_check
      _
    $region251: #{openvla_forward.2} parent=1 // pred_check_branch
      %275 = sbr.rel (0) target = $region253
    $region252: #{openvla_forward.2} parent=1 // pred_region
      _
    $region253: #{openvla_forward.2} parent=1 // pred_fallthru
      _
    // Predicated region
    $region254: #{openvla_forward.2} parent=1 // pred_check
      _
    $region255: #{openvla_forward.2} parent=1 // pred_check_branch
      %277 = sbr.rel (0) target = $region257
    $region256: #{openvla_forward.2} parent=1 // pred_region
      %s279 = ssub.s32 16, 16
      %280 = vsyncadd [#allocation5], %s279
      %s282 = sshll.u32 [#allocation4], 4
      %s283 = int_to_ptr.vmem [resolvable:$true] %s282
      %285 = dma.hbm_to_vmem [thread:$0]  %s127, 16, %s283, [#allocation5]
    $region257: #{openvla_forward.2} parent=1 // pred_fallthru
      _
    // Predicated region
    $region258: #{openvla_forward.2} parent=1 // pred_check
      _
    $region259: #{openvla_forward.2} parent=1 // pred_check_branch
      %287 = sbr.rel (0) target = $region261
    $region260: #{openvla_forward.2} parent=1 // pred_region
      _
    $region261: #{openvla_forward.2} parent=1 // pred_fallthru
      _
    // Predicated region
    $region262: #{openvla_forward.2} parent=1 // pred_check
      _
    $region263: #{openvla_forward.2} parent=1 // pred_check_branch
      %289 = sbr.rel (0) target = $region265
    $region264: #{openvla_forward.2} parent=1 // pred_region
      %s291 = ssub.s32 16, 16
      %292 = vsyncadd [#allocation5], %s291
      %s294 = sshll.u32 [#allocation6], 4
      %s295 = int_to_ptr.vmem [resolvable:$true] %s294
      %297 = dma.hbm_to_vmem [thread:$0]  %s131, 16, %s295, [#allocation5]
    $region265: #{openvla_forward.2} parent=1 // pred_fallthru
      _
    // Predicated region
    $region266: #{openvla_forward.2} parent=1 // pred_check
      _
    $region267: #{openvla_forward.2} parent=1 // pred_check_branch
      %299 = sbr.rel (0) target = $region269
    $region268: #{openvla_forward.2} parent=1 // pred_region
      _
    $region269: #{openvla_forward.2} parent=1 // pred_fallthru
      _
    // Predicated region
    $region270: #{openvla_forward.2} parent=1 // pred_check
      _
    $region271: #{openvla_forward.2} parent=1 // pred_check_branch
      %301 = sbr.rel (0) target = $region273
    $region272: #{openvla_forward.2} parent=1 // pred_region
      %302 = dma.done [#allocation3], 16
    $region273: #{openvla_forward.2} parent=1 // pred_fallthru
      _
    // Predicated region
    $region274: #{openvla_forward.2} parent=1 // pred_check
      _
    $region275: #{openvla_forward.2} parent=1 // pred_check_branch
      %304 = sbr.rel (0) target = $region277
    $region276: #{openvla_forward.2} parent=1 // pred_region
      %305 = dma.done [#allocation5], 16
    $region277: #{openvla_forward.2} parent=1 // pred_fallthru
      _
    // Predicated region
    $region278: #{openvla_forward.2} parent=1 // pred_check
      _
    $region279: #{openvla_forward.2} parent=1 // pred_check_branch
      %307 = sbr.rel (0) target = $region281
    $region280: #{openvla_forward.2} parent=1 // pred_region
      %308 = dma.done [#allocation5], 16
    $region281: #{openvla_forward.2} parent=1 // pred_fallthru
      _
    %v310 = vld [vmem:[%s1] sm:$0xf]
    %v311 = vld [vmem:[%s65] sm:$0xf]
    %v312 = vld [vmem:[%s65 + $0x4] sm:$0xf]
    %v313 = vld [vmem:[%s65 + $0x8] sm:$0xf]
    %v314 = vld [vmem:[%s65 + $0xc] sm:$0xf]
    %v315 = vld [vmem:[%s65 + $0x10] sm:$0xf]
    %v316 = vld [vmem:[%s65 + $0x14] sm:$0xf]
    %v317 = vld [vmem:[%s65 + $0x18] sm:$0xf]
    %v318 = vld [vmem:[%s65 + $0x1c] sm:$0xf]
    %v319 = vld [vmem:[%s65 + $0x20] sm:$0xf]
    %v320 = vld [vmem:[%s65 + $0x24] sm:$0xf]
    %v321 = vld [vmem:[%s65 + $0x28] sm:$0xf]
    %v322 = vld [vmem:[%s65 + $0x2c] sm:$0xf]
    %v323 = vld [vmem:[%s65 + $0x30] sm:$0xf]
    %v324 = vld [vmem:[%s65 + $0x34] sm:$0xf]
    %v325 = vld [vmem:[%s65 + $0x38] sm:$0xf]
    %v326 = vld [vmem:[%s65 + $0x3c] sm:$0xf]
    %v327 = vld [vmem:[%s65 + $0x40] sm:$0xf]
    %v328 = vld [vmem:[%s65 + $0x44] sm:$0xf]
    %v329 = vld [vmem:[%s65 + $0x48] sm:$0xf]
    %v330 = vld [vmem:[%s65 + $0x4c] sm:$0xf]
    %v331 = vld [vmem:[%s65 + $0x50] sm:$0xf]
    %v332 = vld [vmem:[%s65 + $0x54] sm:$0xf]
    %v333 = vld [vmem:[%s65 + $0x58] sm:$0xf]
    %v334 = vld [vmem:[%s65 + $0x5c] sm:$0xf]
    %v335 = vld [vmem:[%s63] sm:$0x1]
    %v337 = vlaneseq
    %v338 = vshrl.u32 %v337, 7
    %v339 = vsub.s32 0, %v338
    %v340 = vrot.slane %v335, %v339
    %v344 = vunpack.c.l.s4 1983009808
    %v345 = vunpack.c.0.s8 %v344
    %v346 = vlaneseq
    %v347 = vshrl.u32 %v346, 7
    %v348 = vsub.s32 %v345, %v347
    %v349 = vrot.slane %v310, %v348
    %v350 = vcombine.high %v349, %v349
    %v376 = vunpack.c.l.b16 %v311
    %v377 = vunpack.c.l.b16 %v312
    %v378 = vunpack.c.l.b16 %v313
    %v379 = vunpack.c.l.b16 %v314
    %v380 = vunpack.c.l.b16 %v315
    %v381 = vunpack.c.l.b16 %v316
    %v382 = vunpack.c.l.b16 %v317
    %v383 = vunpack.c.l.b16 %v318
    %v384 = vunpack.c.l.b16 %v319
    %v385 = vunpack.c.l.b16 %v320
    %v386 = vunpack.c.l.b16 %v321
    %v387 = vunpack.c.l.b16 %v322
    %v388 = vunpack.c.l.b16 %v323
    %v389 = vunpack.c.l.b16 %v324
    %v390 = vunpack.c.l.b16 %v325
    %v391 = vunpack.c.l.b16 %v326
    %v392 = vunpack.c.l.b16 %v327
    %v393 = vunpack.c.l.b16 %v328
    %v394 = vunpack.c.l.b16 %v329
    %v395 = vunpack.c.l.b16 %v330
    %v396 = vunpack.c.l.b16 %v331
    %v397 = vunpack.c.l.b16 %v332
    %v398 = vunpack.c.l.b16 %v333
    %v399 = vunpack.c.l.b16 %v334
    %v400 = vpack.c.b16 %v377, %v376
    %v401 = vpack.c.b16 %v379, %v378
    %v402 = vpack.c.b16 %v381, %v380
    %v403 = vpack.c.b16 %v383, %v382
    %v404 = vpack.c.b16 %v385, %v384
    %v405 = vpack.c.b16 %v387, %v386
    %v406 = vpack.c.b16 %v389, %v388
    %v407 = vpack.c.b16 %v391, %v390
    %v408 = vpack.c.b16 %v393, %v392
    %v409 = vpack.c.b16 %v395, %v394
    %v410 = vpack.c.b16 %v397, %v396
    %v411 = vpack.c.b16 %v399, %v398
    %vm424 = vcmask 523264
    %v426 = vsel %vm424, %v350, 0
    %428 = vmatprep.subr.bf16.mxu0 0
    %429 = vmatpush1.bf16.msra.mxu0 %v400
    %430 = vmatprep.subr.bf16.mxu0 0
    %431 = vmatpush1.bf16.msra.mxu0 %v401
    %432 = vmatprep.subr.bf16.mxu0 0
    %433 = vmatpush1.bf16.msra.mxu0 %v402
    %434 = vmatprep.subr.bf16.mxu0 0
    %435 = vmatpush1.bf16.msra.mxu0 %v403
    %436 = vmatprep.subr.bf16.mxu0 0
    %437 = vmatpush1.bf16.msra.mxu0 %v404
    %438 = vmatprep.subr.bf16.mxu0 0
    %439 = vmatpush1.bf16.msra.mxu0 %v405
    %440 = vmatprep.subr.bf16.mxu0 0
    %441 = vmatpush1.bf16.msra.mxu0 %v406
    %442 = vmatprep.subr.bf16.mxu0 0
    %443 = vmatpush1.bf16.msra.mxu0 %v407
    %444 = vmatprep.subr.bf16.mxu0 0
    %445 = vmatpush1.bf16.msra.mxu0 %v408
    %446 = vmatprep.subr.bf16.mxu0 0
    %447 = vmatpush1.bf16.msra.mxu0 %v409
    %448 = vmatprep.subr.bf16.mxu0 0
    %449 = vmatpush1.bf16.msra.mxu0 %v410
    %450 = vmatprep.subr.bf16.mxu0 0
    %451 = vmatpush1.bf16.msra.mxu0 %v411
    %452 = vmatprep.subr.bf16.mxu0 0
    %453 = vmatpush1.bf16.msra.mxu0 0
    %454 = vmatprep.subr.bf16.mxu0 0
    %455 = vmatpush1.bf16.msra.mxu0 0
    %456 = vmatprep.subr.bf16.mxu0 0
    %457 = vmatpush1.bf16.msra.mxu0 0
    %458 = vmatprep.subr.bf16.mxu0 0
    %459 = vmatpush1.bf16.msra.mxu0 0
    %460 = vmatprep.mubr.bf16.mxu0 %v426
    %461 = vmatmul.mubr.bf16.gmra.mrb[0].mxu0 %v349
    %v462 = vpop.f32.mrb[0].mxu0
    %v463 = vadd.f32 %v340, %v462
    %v464 = vpop.f32.mrb[0].mxu0
    %v465 = vpop.f32.mrb[0].mxu0
    %v466 = vpop.f32.mrb[0].mxu0
    %467 = vdwg.mxu0
    %v468 = vld [vmem:[%s61] sm:$0x1]
    %v470 = vrot.slane %v463, 7
    %vm472 = vcmask 1040384
    %v473 = vsel %vm472, %v468, %v470
    %v474 = vld [vmem:[%s67] sm:$0x1f]
    %v475 = vadd.f32 %v473, %v474
    %vm476 = vcmask 258048
    %v477 = vsel %vm476, %v475, 0.0
    %478 = vadd.xlane.f32.xlu0 %v477
    %v479 = vpop.xlane.xlu0 %478
    %v480 = vrcp.pop 32.0
    %v481 = vmul.f32 %v479, %v480
    %v482 = vsub.f32 %v475, %v481
    %v483 = vmul.f32 %v482, %v482
    %v484 = vsel %vm476, %v483, 0.0
    %485 = vadd.xlane.f32.xlu0 %v484
    %v486 = vpop.xlane.xlu0 %485
    %v487 = vmul.f32 %v486, %v480
    %v488 = vadd.f32 %v487, 1e-06
    %v489 = vrsqrt.pop %v488
    %v490 = vmul.f32 %v482, %v489
    %v491 = vld [vmem:[%s15] sm:$0x1]
    %v493 = vlaneseq
    %v494 = vshrl.u32 %v493, 7
    %v495 = vsub.s32 0, %v494
    %v496 = vrot.slane %v491, %v495
    %v498 = vmul.f32 %v490, %v496
    %v499 = vld [vmem:[%s13] sm:$0x1]
    %v501 = vlaneseq
    %v502 = vshrl.u32 %v501, 7
    %v503 = vsub.s32 0, %v502
    %v504 = vrot.slane %v499, %v503
    %v506 = vadd.f32 %v498, %v504
    %v507 = vpack.c.bf16 %v506, %v506
    %v508 = vld [vmem:[%s31] sm:$0xf]
    %v509 = vld [vmem:[%s31 + $0x4] sm:$0xf]
    %v510 = vld [vmem:[%s31 + $0x8] sm:$0xf]
    %v511 = vld [vmem:[%s31 + $0xc] sm:$0xf]
    %v512 = vld [vmem:[%s11] sm:$0x1]
    %v514 = vlaneseq
    %v515 = vshrl.u32 %v514, 7
    %v516 = vsub.s32 0, %v515
    %v517 = vrot.slane %v512, %v516
    %v523 = vunpack.c.l.b16 %v508
    %v524 = vunpack.c.l.b16 %v509
    %v525 = vunpack.c.l.b16 %v510
    %v526 = vunpack.c.l.b16 %v511
    %v527 = vpack.c.b16 %v524, %v523
    %v528 = vpack.c.b16 %v526, %v525
    %vm531 = vcmask 261120
    %v533 = vsel %vm531, %v507, 0
    %535 = vmatprep.subr.bf16.mxu0 0
    %536 = vmatpush1.bf16.msra.mxu0 %v527
    %537 = vmatprep.subr.bf16.mxu0 0
    %538 = vmatpush1.bf16.msra.mxu0 %v528
    %539 = vmatprep.subr.bf16.mxu0 0
    %540 = vmatpush1.bf16.msra.mxu0 0
    %541 = vmatprep.subr.bf16.mxu0 0
    %542 = vmatpush1.bf16.msra.mxu0 0
    %543 = vmatprep.subr.bf16.mxu0 0
    %544 = vmatpush1.bf16.msra.mxu0 0
    %545 = vmatprep.subr.bf16.mxu0 0
    %546 = vmatpush1.bf16.msra.mxu0 0
    %547 = vmatprep.subr.bf16.mxu0 0
    %548 = vmatpush1.bf16.msra.mxu0 0
    %549 = vmatprep.subr.bf16.mxu0 0
    %550 = vmatpush1.bf16.msra.mxu0 0
    %551 = vmatprep.subr.bf16.mxu0 0
    %552 = vmatpush1.bf16.msra.mxu0 0
    %553 = vmatprep.subr.bf16.mxu0 0
    %554 = vmatpush1.bf16.msra.mxu0 0
    %555 = vmatprep.subr.bf16.mxu0 0
    %556 = vmatpush1.bf16.msra.mxu0 0
    %557 = vmatprep.subr.bf16.mxu0 0
    %558 = vmatpush1.bf16.msra.mxu0 0
    %559 = vmatprep.subr.bf16.mxu0 0
    %560 = vmatpush1.bf16.msra.mxu0 0
    %561 = vmatprep.subr.bf16.mxu0 0
    %562 = vmatpush1.bf16.msra.mxu0 0
    %563 = vmatprep.subr.bf16.mxu0 0
    %564 = vmatpush1.bf16.msra.mxu0 0
    %565 = vmatprep.subr.bf16.mxu0 0
    %566 = vmatpush1.bf16.msra.mxu0 0
    %567 = vmatprep.mubr.bf16.mxu0 0
    %568 = vmatmul.mubr.bf16.gmra.mrb[0].mxu0 %v533
    %v569 = vpop.f32.mrb[0].mxu0
    %v570 = vadd.f32 %v517, %v569
    %v571 = vpop.f32.mrb[0].mxu0
    %v572 = vpop.f32.mrb[0].mxu0
    %v573 = vpop.f32.mrb[0].mxu0
    %574 = vdwg.mxu0
    %v575 = vpack.c.bf16 %v570, %v570
    %577 = vrot.lane.b32.xlu0 %v575, 96
    %v578 = vpop.permute.xlu0 %577
    %vm579 = vcmask 64512
    %v581 = vsel %vm579, %v575, 0
    %v584 = vsel %vm579, %v578, 0
    %586 = vmatprep.subr.bf16.mxu0 0
    %587 = vmatpush1.bf16.xpose.msra.mxu0 %v584
    %588 = vmatprep.subr.bf16.mxu0 0
    %589 = vmatpush1.bf16.xpose.msra.mxu0 0
    %590 = vmatprep.subr.bf16.mxu0 0
    %591 = vmatpush1.bf16.xpose.msra.mxu0 0
    %592 = vmatprep.subr.bf16.mxu0 0
    %593 = vmatpush1.bf16.xpose.msra.mxu0 0
    %594 = vmatprep.subr.bf16.mxu0 0
    %595 = vmatpush1.bf16.xpose.msra.mxu0 0
    %596 = vmatprep.subr.bf16.mxu0 0
    %597 = vmatpush1.bf16.xpose.msra.mxu0 0
    %598 = vmatprep.subr.bf16.mxu0 0
    %599 = vmatpush1.bf16.xpose.msra.mxu0 0
    %600 = vmatprep.subr.bf16.mxu0 0
    %601 = vmatpush1.bf16.xpose.msra.mxu0 0
    %602 = vmatprep.subr.bf16.mxu0 0
    %603 = vmatpush1.bf16.xpose.msra.mxu0 0
    %604 = vmatprep.subr.bf16.mxu0 0
    %605 = vmatpush1.bf16.xpose.msra.mxu0 0
    %606 = vmatprep.subr.bf16.mxu0 0
    %607 = vmatpush1.bf16.xpose.msra.mxu0 0
    %608 = vmatprep.subr.bf16.mxu0 0
    %609 = vmatpush1.bf16.xpose.msra.mxu0 0
    %610 = vmatprep.subr.bf16.mxu0 0
    %611 = vmatpush1.bf16.xpose.msra.mxu0 0
    %612 = vmatprep.subr.bf16.mxu0 0
    %613 = vmatpush1.bf16.xpose.msra.mxu0 0
    %614 = vmatprep.subr.bf16.mxu0 0
    %615 = vmatpush1.bf16.xpose.msra.mxu0 0
    %616 = vmatprep.subr.bf16.mxu0 0
    %617 = vmatpush1.bf16.xpose.msra.mxu0 0
    %618 = vmatprep.mubr.bf16.mxu0 0
    %619 = vmatmul.mubr.bf16.gmra.mrb[0].mxu0 %v581
    %v620 = vpop.f32.mrb[0].mxu0
    %v621 = vadd.f32 0.0, %v620
    %v622 = vpop.f32.mrb[0].mxu0
    %v623 = vpop.f32.mrb[0].mxu0
    %v624 = vpop.f32.mrb[0].mxu0
    %625 = vdwg.mxu0
    %v626 = vmul.f32 %v621, 0.35355338
    %vm627 = vcmask 36864
    %v628 = vsel %vm627, %v626, -inf
    %629 = vmax.xlane.f32.xlu0 %v628
    %v630 = vpop.xlane.xlu0 %629
    %v631 = vsub.f32 %v626, %v630
    %v632 = vmul.f32 %v631, 1.442695
    %v633 = vpow.pop %v632
    %v634 = vsel %vm627, %v633, 0.0
    %635 = vadd.xlane.f32.xlu0 %v634
    %v636 = vpop.xlane.xlu0 %635
    %v637 = vrcp.pop %v636
    %v638 = vmul.f32 %v633, %v637
    %v639 = vpack.c.bf16 %v638, %v638
    %640 = vrot.lane.b32.xlu0 %v575, 64
    %v641 = vpop.permute.xlu0 %640
    %vm642 = vcmask 39936
    %v644 = vsel %vm642, %v639, 0
    %vm646 = vcmask 1041408
    %vm647 = vcmask 1042432
    %v648 = vsel %vm646, 4294967295, 65535
    %v649 = vsel %vm647, %v648, 0
    %v651 = vand.u32 %v641, %v649
    %653 = vmatprep.subr.bf16.mxu0 0
    %654 = vmatpush1.bf16.msra.mxu0 %v651
    %655 = vmatprep.subr.bf16.mxu0 0
    %656 = vmatpush1.bf16.msra.mxu0 0
    %657 = vmatprep.subr.bf16.mxu0 0
    %658 = vmatpush1.bf16.msra.mxu0 0
    %659 = vmatprep.subr.bf16.mxu0 0
    %660 = vmatpush1.bf16.msra.mxu0 0
    %661 = vmatprep.subr.bf16.mxu0 0
    %662 = vmatpush1.bf16.msra.mxu0 0
    %663 = vmatprep.subr.bf16.mxu0 0
    %664 = vmatpush1.bf16.msra.mxu0 0
    %665 = vmatprep.subr.bf16.mxu0 0
    %666 = vmatpush1.bf16.msra.mxu0 0
    %667 = vmatprep.subr.bf16.mxu0 0
    %668 = vmatpush1.bf16.msra.mxu0 0
    %669 = vmatprep.subr.bf16.mxu0 0
    %670 = vmatpush1.bf16.msra.mxu0 0
    %671 = vmatprep.subr.bf16.mxu0 0
    %672 = vmatpush1.bf16.msra.mxu0 0
    %673 = vmatprep.subr.bf16.mxu0 0
    %674 = vmatpush1.bf16.msra.mxu0 0
    %675 = vmatprep.subr.bf16.mxu0 0
    %676 = vmatpush1.bf16.msra.mxu0 0
    %677 = vmatprep.subr.bf16.mxu0 0
    %678 = vmatpush1.bf16.msra.mxu0 0
    %679 = vmatprep.subr.bf16.mxu0 0
    %680 = vmatpush1.bf16.msra.mxu0 0
    %681 = vmatprep.subr.bf16.mxu0 0
    %682 = vmatpush1.bf16.msra.mxu0 0
    %683 = vmatprep.subr.bf16.mxu0 0
    %684 = vmatpush1.bf16.msra.mxu0 0
    %685 = vmatprep.mubr.bf16.mxu0 0
    %686 = vmatmul.mubr.bf16.gmra.mrb[0].mxu0 %v644
    %v687 = vpop.f32.mrb[0].mxu0
    %v688 = vadd.f32 0.0, %v687
    %v689 = vpop.f32.mrb[0].mxu0
    %v690 = vpop.f32.mrb[0].mxu0
    %v691 = vpop.f32.mrb[0].mxu0
    %692 = vdwg.mxu0
    %693 = vrot.lane.b32.xlu0 %v575, 120
    %v694 = vpop.permute.xlu0 %693
    %695 = vrot.lane.b32.xlu0 %v575, 88
    %v696 = vpop.permute.xlu0 %695
    %v698 = vsel %vm579, %v694, 0
    %v701 = vsel %vm579, %v696, 0
    %703 = vmatprep.subr.bf16.mxu0 0
    %704 = vmatpush1.bf16.xpose.msra.mxu0 %v701
    %705 = vmatprep.subr.bf16.mxu0 0
    %706 = vmatpush1.bf16.xpose.msra.mxu0 0
    %707 = vmatprep.subr.bf16.mxu0 0
    %708 = vmatpush1.bf16.xpose.msra.mxu0 0
    %709 = vmatprep.subr.bf16.mxu0 0
    %710 = vmatpush1.bf16.xpose.msra.mxu0 0
    %711 = vmatprep.subr.bf16.mxu0 0
    %712 = vmatpush1.bf16.xpose.msra.mxu0 0
    %713 = vmatprep.subr.bf16.mxu0 0
    %714 = vmatpush1.bf16.xpose.msra.mxu0 0
    %715 = vmatprep.subr.bf16.mxu0 0
    %716 = vmatpush1.bf16.xpose.msra.mxu0 0
    %717 = vmatprep.subr.bf16.mxu0 0
    %718 = vmatpush1.bf16.xpose.msra.mxu0 0
    %719 = vmatprep.subr.bf16.mxu0 0
    %720 = vmatpush1.bf16.xpose.msra.mxu0 0
    %721 = vmatprep.subr.bf16.mxu0 0
    %722 = vmatpush1.bf16.xpose.msra.mxu0 0
    %723 = vmatprep.subr.bf16.mxu0 0
    %724 = vmatpush1.bf16.xpose.msra.mxu0 0
    %725 = vmatprep.subr.bf16.mxu0 0
    %726 = vmatpush1.bf16.xpose.msra.mxu0 0
    %727 = vmatprep.subr.bf16.mxu0 0
    %728 = vmatpush1.bf16.xpose.msra.mxu0 0
    %729 = vmatprep.subr.bf16.mxu0 0
    %730 = vmatpush1.bf16.xpose.msra.mxu0 0
    %731 = vmatprep.subr.bf16.mxu0 0
    %732 = vmatpush1.bf16.xpose.msra.mxu0 0
    %733 = vmatprep.subr.bf16.mxu0 0
    %734 = vmatpush1.bf16.xpose.msra.mxu0 0
    %735 = vmatprep.mubr.bf16.mxu0 0
    %736 = vmatmul.mubr.bf16.gmra.mrb[0].mxu0 %v698
    %v737 = vpop.f32.mrb[0].mxu0
    %v738 = vadd.f32 0.0, %v737
    %v739 = vpop.f32.mrb[0].mxu0
    %v740 = vpop.f32.mrb[0].mxu0
    %v741 = vpop.f32.mrb[0].mxu0
    %742 = vdwg.mxu0
    %v743 = vmul.f32 %v738, 0.35355338
    %v744 = vsel %vm627, %v743, -inf
    %745 = vmax.xlane.f32.xlu0 %v744
    %v746 = vpop.xlane.xlu0 %745
    %v747 = vsub.f32 %v743, %v746
    %v748 = vmul.f32 %v747, 1.442695
    %v749 = vpow.pop %v748
    %v750 = vsel %vm627, %v749, 0.0
    %751 = vadd.xlane.f32.xlu0 %v750
    %v752 = vpop.xlane.xlu0 %751
    %v753 = vrcp.pop %v752
    %v754 = vmul.f32 %v749, %v753
    %v755 = vpack.c.bf16 %v754, %v754
    %756 = vrot.lane.b32.xlu0 %v575, 56
    %v757 = vpop.permute.xlu0 %756
    %v759 = vsel %vm642, %v755, 0
    %v762 = vand.u32 %v757, %v649
    %764 = vmatprep.subr.bf16.mxu0 0
    %765 = vmatpush1.bf16.msra.mxu0 %v762
    %766 = vmatprep.subr.bf16.mxu0 0
    %767 = vmatpush1.bf16.msra.mxu0 0
    %768 = vmatprep.subr.bf16.mxu0 0
    %769 = vmatpush1.bf16.msra.mxu0 0
    %770 = vmatprep.subr.bf16.mxu0 0
    %771 = vmatpush1.bf16.msra.mxu0 0
    %772 = vmatprep.subr.bf16.mxu0 0
    %773 = vmatpush1.bf16.msra.mxu0 0
    %774 = vmatprep.subr.bf16.mxu0 0
    %775 = vmatpush1.bf16.msra.mxu0 0
    %776 = vmatprep.subr.bf16.mxu0 0
    %777 = vmatpush1.bf16.msra.mxu0 0
    %778 = vmatprep.subr.bf16.mxu0 0
    %779 = vmatpush1.bf16.msra.mxu0 0
    %780 = vmatprep.subr.bf16.mxu0 0
    %781 = vmatpush1.bf16.msra.mxu0 0
    %782 = vmatprep.subr.bf16.mxu0 0
    %783 = vmatpush1.bf16.msra.mxu0 0
    %784 = vmatprep.subr.bf16.mxu0 0
    %785 = vmatpush1.bf16.msra.mxu0 0
    %786 = vmatprep.subr.bf16.mxu0 0
    %787 = vmatpush1.bf16.msra.mxu0 0
    %788 = vmatprep.subr.bf16.mxu0 0
    %789 = vmatpush1.bf16.msra.mxu0 0
    %790 = vmatprep.subr.bf16.mxu0 0
    %791 = vmatpush1.bf16.msra.mxu0 0
    %792 = vmatprep.subr.bf16.mxu0 0
    %793 = vmatpush1.bf16.msra.mxu0 0
    %794 = vmatprep.subr.bf16.mxu0 0
    %795 = vmatpush1.bf16.msra.mxu0 0
    %796 = vmatprep.mubr.bf16.mxu0 0
    %797 = vmatmul.mubr.bf16.gmra.mrb[0].mxu0 %v759
    %v798 = vpop.f32.mrb[0].mxu0
    %v799 = vadd.f32 0.0, %v798
    %v800 = vpop.f32.mrb[0].mxu0
    %v801 = vpop.f32.mrb[0].mxu0
    %v802 = vpop.f32.mrb[0].mxu0
    %803 = vdwg.mxu0
    %804 = vrot.lane.b32.xlu0 %v575, 112
    %v805 = vpop.permute.xlu0 %804
    %806 = vrot.lane.b32.xlu0 %v575, 80
    %v807 = vpop.permute.xlu0 %806
    %v809 = vsel %vm579, %v805, 0
    %v812 = vsel %vm579, %v807, 0
    %814 = vmatprep.subr.bf16.mxu0 0
    %815 = vmatpush1.bf16.xpose.msra.mxu0 %v812
    %816 = vmatprep.subr.bf16.mxu0 0
    %817 = vmatpush1.bf16.xpose.msra.mxu0 0
    %818 = vmatprep.subr.bf16.mxu0 0
    %819 = vmatpush1.bf16.xpose.msra.mxu0 0
    %820 = vmatprep.subr.bf16.mxu0 0
    %821 = vmatpush1.bf16.xpose.msra.mxu0 0
    %822 = vmatprep.subr.bf16.mxu0 0
    %823 = vmatpush1.bf16.xpose.msra.mxu0 0
    %824 = vmatprep.subr.bf16.mxu0 0
    %825 = vmatpush1.bf16.xpose.msra.mxu0 0
    %826 = vmatprep.subr.bf16.mxu0 0
    %827 = vmatpush1.bf16.xpose.msra.mxu0 0
    %828 = vmatprep.subr.bf16.mxu0 0
    %829 = vmatpush1.bf16.xpose.msra.mxu0 0
    %830 = vmatprep.subr.bf16.mxu0 0
    %831 = vmatpush1.bf16.xpose.msra.mxu0 0
    %832 = vmatprep.subr.bf16.mxu0 0
    %833 = vmatpush1.bf16.xpose.msra.mxu0 0
    %834 = vmatprep.subr.bf16.mxu0 0
    %835 = vmatpush1.bf16.xpose.msra.mxu0 0
    %836 = vmatprep.subr.bf16.mxu0 0
    %837 = vmatpush1.bf16.xpose.msra.mxu0 0
    %838 = vmatprep.subr.bf16.mxu0 0
    %839 = vmatpush1.bf16.xpose.msra.mxu0 0
    %840 = vmatprep.subr.bf16.mxu0 0
    %841 = vmatpush1.bf16.xpose.msra.mxu0 0
    %842 = vmatprep.subr.bf16.mxu0 0
    %843 = vmatpush1.bf16.xpose.msra.mxu0 0
    %844 = vmatprep.subr.bf16.mxu0 0
    %845 = vmatpush1.bf16.xpose.msra.mxu0 0
    %846 = vmatprep.mubr.bf16.mxu0 0
    %847 = vmatmul.mubr.bf16.gmra.mrb[0].mxu0 %v809
    %v848 = vpop.f32.mrb[0].mxu0
    %v849 = vadd.f32 0.0, %v848
    %v850 = vpop.f32.mrb[0].mxu0
    %v851 = vpop.f32.mrb[0].mxu0
    %v852 = vpop.f32.mrb[0].mxu0
    %853 = vdwg.mxu0
    %v854 = vmul.f32 %v849, 0.35355338
    %v855 = vsel %vm627, %v854, -inf
    %856 = vmax.xlane.f32.xlu0 %v855
    %v857 = vpop.xlane.xlu0 %856
    %v858 = vsub.f32 %v854, %v857
    %v859 = vmul.f32 %v858, 1.442695
    %v860 = vpow.pop %v859
    %v861 = vsel %vm627, %v860, 0.0
    %862 = vadd.xlane.f32.xlu0 %v861
    %v863 = vpop.xlane.xlu0 %862
    %v864 = vrcp.pop %v863
    %v865 = vmul.f32 %v860, %v864
    %v866 = vpack.c.bf16 %v865, %v865
    %867 = vrot.lane.b32.xlu0 %v575, 48
    %v868 = vpop.permute.xlu0 %867
    %v870 = vsel %vm642, %v866, 0
    %v873 = vand.u32 %v868, %v649
    %875 = vmatprep.subr.bf16.mxu0 0
    %876 = vmatpush1.bf16.msra.mxu0 %v873
    %877 = vmatprep.subr.bf16.mxu0 0
    %878 = vmatpush1.bf16.msra.mxu0 0
    %879 = vmatprep.subr.bf16.mxu0 0
    %880 = vmatpush1.bf16.msra.mxu0 0
    %881 = vmatprep.subr.bf16.mxu0 0
    %882 = vmatpush1.bf16.msra.mxu0 0
    %883 = vmatprep.subr.bf16.mxu0 0
    %884 = vmatpush1.bf16.msra.mxu0 0
    %885 = vmatprep.subr.bf16.mxu0 0
    %886 = vmatpush1.bf16.msra.mxu0 0
    %887 = vmatprep.subr.bf16.mxu0 0
    %888 = vmatpush1.bf16.msra.mxu0 0
    %889 = vmatprep.subr.bf16.mxu0 0
    %890 = vmatpush1.bf16.msra.mxu0 0
    %891 = vmatprep.subr.bf16.mxu0 0
    %892 = vmatpush1.bf16.msra.mxu0 0
    %893 = vmatprep.subr.bf16.mxu0 0
    %894 = vmatpush1.bf16.msra.mxu0 0
    %895 = vmatprep.subr.bf16.mxu0 0
    %896 = vmatpush1.bf16.msra.mxu0 0
    %897 = vmatprep.subr.bf16.mxu0 0
    %898 = vmatpush1.bf16.msra.mxu0 0
    %899 = vmatprep.subr.bf16.mxu0 0
    %900 = vmatpush1.bf16.msra.mxu0 0
    %901 = vmatprep.subr.bf16.mxu0 0
    %902 = vmatpush1.bf16.msra.mxu0 0
    %903 = vmatprep.subr.bf16.mxu0 0
    %904 = vmatpush1.bf16.msra.mxu0 0
    %905 = vmatprep.subr.bf16.mxu0 0
    %906 = vmatpush1.bf16.msra.mxu0 0
    %907 = vmatprep.mubr.bf16.mxu0 0
    %908 = vmatmul.mubr.bf16.gmra.mrb[0].mxu0 %v870
    %v909 = vpop.f32.mrb[0].mxu0
    %v910 = vadd.f32 0.0, %v909
    %v911 = vpop.f32.mrb[0].mxu0
    %v912 = vpop.f32.mrb[0].mxu0
    %v913 = vpop.f32.mrb[0].mxu0
    %914 = vdwg.mxu0
    %915 = vrot.lane.b32.xlu0 %v575, 104
    %v916 = vpop.permute.xlu0 %915
    %917 = vrot.lane.b32.xlu0 %v575, 72
    %v918 = vpop.permute.xlu0 %917
    %v920 = vsel %vm579, %v916, 0
    %v923 = vsel %vm579, %v918, 0
    %925 = vmatprep.subr.bf16.mxu0 0
    %926 = vmatpush1.bf16.xpose.msra.mxu0 %v923
    %927 = vmatprep.subr.bf16.mxu0 0
    %928 = vmatpush1.bf16.xpose.msra.mxu0 0
    %929 = vmatprep.subr.bf16.mxu0 0
    %930 = vmatpush1.bf16.xpose.msra.mxu0 0
    %931 = vmatprep.subr.bf16.mxu0 0
    %932 = vmatpush1.bf16.xpose.msra.mxu0 0
    %933 = vmatprep.subr.bf16.mxu0 0
    %934 = vmatpush1.bf16.xpose.msra.mxu0 0
    %935 = vmatprep.subr.bf16.mxu0 0
    %936 = vmatpush1.bf16.xpose.msra.mxu0 0
    %937 = vmatprep.subr.bf16.mxu0 0
    %938 = vmatpush1.bf16.xpose.msra.mxu0 0
    %939 = vmatprep.subr.bf16.mxu0 0
    %940 = vmatpush1.bf16.xpose.msra.mxu0 0
    %941 = vmatprep.subr.bf16.mxu0 0
    %942 = vmatpush1.bf16.xpose.msra.mxu0 0
    %943 = vmatprep.subr.bf16.mxu0 0
    %944 = vmatpush1.bf16.xpose.msra.mxu0 0
    %945 = vmatprep.subr.bf16.mxu0 0
    %946 = vmatpush1.bf16.xpose.msra.mxu0 0
    %947 = vmatprep.subr.bf16.mxu0 0
    %948 = vmatpush1.bf16.xpose.msra.mxu0 0
    %949 = vmatprep.subr.bf16.mxu0 0
    %950 = vmatpush1.bf16.xpose.msra.mxu0 0
    %951 = vmatprep.subr.bf16.mxu0 0
    %952 = vmatpush1.bf16.xpose.msra.mxu0 0
    %953 = vmatprep.subr.bf16.mxu0 0
    %954 = vmatpush1.bf16.xpose.msra.mxu0 0
    %955 = vmatprep.subr.bf16.mxu0 0
    %956 = vmatpush1.bf16.xpose.msra.mxu0 0
    %957 = vmatprep.mubr.bf16.mxu0 0
    %958 = vmatmul.mubr.bf16.gmra.mrb[0].mxu0 %v920
    %v959 = vpop.f32.mrb[0].mxu0
    %v960 = vadd.f32 0.0, %v959
    %v961 = vpop.f32.mrb[0].mxu0
    %v962 = vpop.f32.mrb[0].mxu0
    %v963 = vpop.f32.mrb[0].mxu0
    %964 = vdwg.mxu0
    %v965 = vmul.f32 %v960, 0.35355338
    %v966 = vsel %vm627, %v965, -inf
    %967 = vmax.xlane.f32.xlu0 %v966
    %v968 = vpop.xlane.xlu0 %967
    %v969 = vsub.f32 %v965, %v968
    %v970 = vmul.f32 %v969, 1.442695
    %v971 = vpow.pop %v970
    %v972 = vsel %vm627, %v971, 0.0
    %973 = vadd.xlane.f32.xlu0 %v972
    %v974 = vpop.xlane.xlu0 %973
    %v975 = vrcp.pop %v974
    %v976 = vmul.f32 %v971, %v975
    %v977 = vpack.c.bf16 %v976, %v976
    %978 = vrot.lane.b32.xlu0 %v575, 40
    %v979 = vpop.permute.xlu0 %978
    %v981 = vsel %vm642, %v977, 0
    %v984 = vand.u32 %v979, %v649
    %986 = vmatprep.subr.bf16.mxu0 0
    %987 = vmatpush1.bf16.msra.mxu0 %v984
    %988 = vmatprep.subr.bf16.mxu0 0
    %989 = vmatpush1.bf16.msra.mxu0 0
    %990 = vmatprep.subr.bf16.mxu0 0
    %991 = vmatpush1.bf16.msra.mxu0 0
    %992 = vmatprep.subr.bf16.mxu0 0
    %993 = vmatpush1.bf16.msra.mxu0 0
    %994 = vmatprep.subr.bf16.mxu0 0
    %995 = vmatpush1.bf16.msra.mxu0 0
    %996 = vmatprep.subr.bf16.mxu0 0
    %997 = vmatpush1.bf16.msra.mxu0 0
    %998 = vmatprep.subr.bf16.mxu0 0
    %999 = vmatpush1.bf16.msra.mxu0 0
    %1000 = vmatprep.subr.bf16.mxu0 0
    %1001 = vmatpush1.bf16.msra.mxu0 0
    %1002 = vmatprep.subr.bf16.mxu0 0
    %1003 = vmatpush1.bf16.msra.mxu0 0
    %1004 = vmatprep.subr.bf16.mxu0 0
    %1005 = vmatpush1.bf16.msra.mxu0 0
    %1006 = vmatprep.subr.bf16.mxu0 0
    %1007 = vmatpush1.bf16.msra.mxu0 0
    %1008 = vmatprep.subr.bf16.mxu0 0
    %1009 = vmatpush1.bf16.msra.mxu0 0
    %1010 = vmatprep.subr.bf16.mxu0 0
    %1011 = vmatpush1.bf16.msra.mxu0 0
    %1012 = vmatprep.subr.bf16.mxu0 0
    %1013 = vmatpush1.bf16.msra.mxu0 0
    %1014 = vmatprep.subr.bf16.mxu0 0
    %1015 = vmatpush1.bf16.msra.mxu0 0
    %1016 = vmatprep.subr.bf16.mxu0 0
    %1017 = vmatpush1.bf16.msra.mxu0 0
    %1018 = vmatprep.mubr.bf16.mxu0 0
    %1019 = vmatmul.mubr.bf16.gmra.mrb[0].mxu0 %v981
    %v1020 = vpop.f32.mrb[0].mxu0
    %v1021 = vadd.f32 0.0, %v1020
    %v1022 = vpop.f32.mrb[0].mxu0
    %v1023 = vpop.f32.mrb[0].mxu0
    %v1024 = vpop.f32.mrb[0].mxu0
    %1025 = vdwg.mxu0
    %1027 = vrot.lane.b32.xlu0 %v799, 8
    %v1028 = vpop.permute.xlu0 %1027
    %1031 = vrot.lane.b32.xlu0 %v910, 16
    %v1032 = vpop.permute.xlu0 %1031
    %1035 = vrot.lane.b32.xlu0 %v1021, 24
    %v1036 = vpop.permute.xlu0 %1035
    %v1038 = vsel %vm579, %v688, %v1028
    %vm1039 = vcmask 130048
    %v1040 = vsel %vm1039, %v1038, %v1032
    %vm1041 = vcmask 195584
    %v1042 = vsel %vm1041, %v1040, %v1036
    %v1043 = vpack.c.bf16 %v1042, %v1042
    %v1044 = vld [vmem:[%s29] sm:$0xf]
    %v1045 = vld [vmem:[%s29 + $0x4] sm:$0xf]
    %v1046 = vld [vmem:[%s29 + $0x8] sm:$0xf]
    %v1047 = vld [vmem:[%s29 + $0xc] sm:$0xf]
    %v1048 = vld [vmem:[%s9] sm:$0x1]
    %v1050 = vlaneseq
    %v1051 = vshrl.u32 %v1050, 7
    %v1052 = vsub.s32 0, %v1051
    %v1053 = vrot.slane %v1048, %v1052
    %v1059 = vunpack.c.l.b16 %v1044
    %v1060 = vunpack.c.l.b16 %v1045
    %v1061 = vunpack.c.l.b16 %v1046
    %v1062 = vunpack.c.l.b16 %v1047
    %v1063 = vpack.c.b16 %v1060, %v1059
    %v1064 = vpack.c.b16 %v1062, %v1061
    %v1068 = vsel %vm531, %v1043, 0
    %1070 = vmatprep.subr.bf16.mxu0 0
    %1071 = vmatpush1.bf16.msra.mxu0 %v1063
    %1072 = vmatprep.subr.bf16.mxu0 0
    %1073 = vmatpush1.bf16.msra.mxu0 %v1064
    %1074 = vmatprep.subr.bf16.mxu0 0
    %1075 = vmatpush1.bf16.msra.mxu0 0
    %1076 = vmatprep.subr.bf16.mxu0 0
    %1077 = vmatpush1.bf16.msra.mxu0 0
    %1078 = vmatprep.subr.bf16.mxu0 0
    %1079 = vmatpush1.bf16.msra.mxu0 0
    %1080 = vmatprep.subr.bf16.mxu0 0
    %1081 = vmatpush1.bf16.msra.mxu0 0
    %1082 = vmatprep.subr.bf16.mxu0 0
    %1083 = vmatpush1.bf16.msra.mxu0 0
    %1084 = vmatprep.subr.bf16.mxu0 0
    %1085 = vmatpush1.bf16.msra.mxu0 0
    %1086 = vmatprep.subr.bf16.mxu0 0
    %1087 = vmatpush1.bf16.msra.mxu0 0
    %1088 = vmatprep.subr.bf16.mxu0 0
    %1089 = vmatpush1.bf16.msra.mxu0 0
    %1090 = vmatprep.subr.bf16.mxu0 0
    %1091 = vmatpush1.bf16.msra.mxu0 0
    %1092 = vmatprep.subr.bf16.mxu0 0
    %1093 = vmatpush1.bf16.msra.mxu0 0
    %1094 = vmatprep.subr.bf16.mxu0 0
    %1095 = vmatpush1.bf16.msra.mxu0 0
    %1096 = vmatprep.subr.bf16.mxu0 0
    %1097 = vmatpush1.bf16.msra.mxu0 0
    %1098 = vmatprep.subr.bf16.mxu0 0
    %1099 = vmatpush1.bf16.msra.mxu0 0
    %1100 = vmatprep.subr.bf16.mxu0 0
    %1101 = vmatpush1.bf16.msra.mxu0 0
    %1102 = vmatprep.mubr.bf16.mxu0 0
    %1103 = vmatmul.mubr.bf16.gmra.mrb[0].mxu0 %v1068
    %v1104 = vpop.f32.mrb[0].mxu0
    %v1105 = vadd.f32 %v1053, %v1104
    %v1106 = vpop.f32.mrb[0].mxu0
    %v1107 = vpop.f32.mrb[0].mxu0
    %v1108 = vpop.f32.mrb[0].mxu0
    %1109 = vdwg.mxu0
    %v1110 = vld [vmem:[%s21] sm:$0x1]
    %v1112 = vlaneseq
    %v1113 = vshrl.u32 %v1112, 7
    %v1114 = vsub.s32 0, %v1113
    %v1115 = vrot.slane %v1110, %v1114
    %v1117 = vmul.f32 %v1105, %v1115
    %v1118 = vadd.f32 %v475, %v1117
    %v1119 = vsel %vm476, %v1118, 0.0
    %1120 = vadd.xlane.f32.xlu0 %v1119
    %v1121 = vpop.xlane.xlu0 %1120
    %v1122 = vmul.f32 %v1121, %v480
    %v1123 = vsub.f32 %v1118, %v1122
    %v1124 = vmul.f32 %v1123, %v1123
    %v1125 = vsel %vm476, %v1124, 0.0
    %1126 = vadd.xlane.f32.xlu0 %v1125
    %v1127 = vpop.xlane.xlu0 %1126
    %v1128 = vmul.f32 %v1127, %v480
    %v1129 = vadd.f32 %v1128, 1e-06
    %v1130 = vrsqrt.pop %v1129
    %v1131 = vmul.f32 %v1123, %v1130
    %v1132 = vld [vmem:[%s19] sm:$0x1]
    %v1134 = vlaneseq
    %v1135 = vshrl.u32 %v1134, 7
    %v1136 = vsub.s32 0, %v1135
    %v1137 = vrot.slane %v1132, %v1136
    %v1139 = vmul.f32 %v1131, %v1137
    %v1140 = vld [vmem:[%s17] sm:$0x1]
    %v1142 = vlaneseq
    %v1143 = vshrl.u32 %v1142, 7
    %v1144 = vsub.s32 0, %v1143
    %v1145 = vrot.slane %v1140, %v1144
    %v1147 = vadd.f32 %v1139, %v1145
    %v1148 = vpack.c.bf16 %v1147, %v1147
    %v1149 = vld [vmem:[%s25] sm:$0xf]
    %v1150 = vld [vmem:[%s25 + $0x4] sm:$0xf]
    %v1151 = vld [vmem:[%s25 + $0x8] sm:$0xf]
    %v1152 = vld [vmem:[%s25 + $0xc] sm:$0xf]
    %v1153 = vld [vmem:[%s5] sm:$0x1]
    %v1155 = vlaneseq
    %v1156 = vshrl.u32 %v1155, 7
    %v1157 = vsub.s32 0, %v1156
    %v1158 = vrot.slane %v1153, %v1157
    %v1164 = vunpack.c.l.b16 %v1149
    %v1165 = vunpack.c.l.b16 %v1150
    %v1166 = vunpack.c.l.b16 %v1151
    %v1167 = vunpack.c.l.b16 %v1152
    %v1168 = vpack.c.b16 %v1165, %v1164
    %v1169 = vpack.c.b16 %v1167, %v1166
    %v1173 = vsel %vm531, %v1148, 0
    %1175 = vmatprep.subr.bf16.mxu0 0
    %1176 = vmatpush1.bf16.msra.mxu0 %v1168
    %1177 = vmatprep.subr.bf16.mxu0 0
    %1178 = vmatpush1.bf16.msra.mxu0 %v1169
    %1179 = vmatprep.subr.bf16.mxu0 0
    %1180 = vmatpush1.bf16.msra.mxu0 0
    %1181 = vmatprep.subr.bf16.mxu0 0
    %1182 = vmatpush1.bf16.msra.mxu0 0
    %1183 = vmatprep.subr.bf16.mxu0 0
    %1184 = vmatpush1.bf16.msra.mxu0 0
    %1185 = vmatprep.subr.bf16.mxu0 0
    %1186 = vmatpush1.bf16.msra.mxu0 0
    %1187 = vmatprep.subr.bf16.mxu0 0
    %1188 = vmatpush1.bf16.msra.mxu0 0
    %1189 = vmatprep.subr.bf16.mxu0 0
    %1190 = vmatpush1.bf16.msra.mxu0 0
    %1191 = vmatprep.subr.bf16.mxu0 0
    %1192 = vmatpush1.bf16.msra.mxu0 0
    %1193 = vmatprep.subr.bf16.mxu0 0
    %1194 = vmatpush1.bf16.msra.mxu0 0
    %1195 = vmatprep.subr.bf16.mxu0 0
    %1196 = vmatpush1.bf16.msra.mxu0 0
    %1197 = vmatprep.subr.bf16.mxu0 0
    %1198 = vmatpush1.bf16.msra.mxu0 0
    %1199 = vmatprep.subr.bf16.mxu0 0
    %1200 = vmatpush1.bf16.msra.mxu0 0
    %1201 = vmatprep.subr.bf16.mxu0 0
    %1202 = vmatpush1.bf16.msra.mxu0 0
    %1203 = vmatprep.subr.bf16.mxu0 0
    %1204 = vmatpush1.bf16.msra.mxu0 0
    %1205 = vmatprep.subr.bf16.mxu0 0
    %1206 = vmatpush1.bf16.msra.mxu0 0
    %1207 = vmatprep.mubr.bf16.mxu0 0
    %1208 = vmatmul.mubr.bf16.gmra.mrb[0].mxu0 %v1173
    %v1209 = vpop.f32.mrb[0].mxu0
    %v1210 = vadd.f32 %v1158, %v1209
    %v1211 = vpop.f32.mrb[0].mxu0
    %v1212 = vpop.f32.mrb[0].mxu0
    %v1213 = vpop.f32.mrb[0].mxu0
    %1214 = vdwg.mxu0
    %v1215 = vmul.f32 %v1210, %v1210
    %v1216 = vmul.f32 %v1210, %v1215
    %v1217 = vmul.f32 %v1216, 0.044715
    %v1218 = vadd.f32 %v1210, %v1217
    %v1219 = vmul.f32 %v1218, 0.7978846
    %v1220 = vtanh.pop %v1219
    %v1221 = vadd.f32 %v1220, 1.0
    %v1222 = vmul.f32 %v1221, 0.5
    %v1223 = vmul.f32 %v1210, %v1222
    %v1224 = vpack.c.bf16 %v1223, %v1223
    %v1225 = vld [vmem:[%s27] sm:$0xf]
    %v1226 = vld [vmem:[%s27 + $0x4] sm:$0xf]
    %v1227 = vld [vmem:[%s27 + $0x8] sm:$0xf]
    %v1228 = vld [vmem:[%s27 + $0xc] sm:$0xf]
    %v1229 = vld [vmem:[%s27 + $0x10] sm:$0xf]
    %v1230 = vld [vmem:[%s27 + $0x14] sm:$0xf]
    %v1231 = vld [vmem:[%s27 + $0x18] sm:$0xf]
    %v1232 = vld [vmem:[%s27 + $0x1c] sm:$0xf]
    %v1233 = vld [vmem:[%s27 + $0x20] sm:$0xf]
    %v1234 = vld [vmem:[%s27 + $0x24] sm:$0xf]
    %v1235 = vld [vmem:[%s27 + $0x28] sm:$0xf]
    %v1236 = vld [vmem:[%s27 + $0x2c] sm:$0xf]
    %v1237 = vld [vmem:[%s27 + $0x30] sm:$0xf]
    %v1238 = vld [vmem:[%s27 + $0x34] sm:$0xf]
    %v1239 = vld [vmem:[%s27 + $0x38] sm:$0xf]
    %v1240 = vld [vmem:[%s27 + $0x3c] sm:$0xf]
    %v1241 = vld [vmem:[%s7] sm:$0x1]
    %v1243 = vlaneseq
    %v1244 = vshrl.u32 %v1243, 7
    %v1245 = vsub.s32 0, %v1244
    %v1246 = vrot.slane %v1241, %v1245
    %v1264 = vunpack.c.l.b16 %v1225
    %v1265 = vunpack.c.l.b16 %v1226
    %v1266 = vunpack.c.l.b16 %v1227
    %v1267 = vunpack.c.l.b16 %v1228
    %v1268 = vunpack.c.l.b16 %v1229
    %v1269 = vunpack.c.l.b16 %v1230
    %v1270 = vunpack.c.l.b16 %v1231
    %v1271 = vunpack.c.l.b16 %v1232
    %v1272 = vunpack.c.l.b16 %v1233
    %v1273 = vunpack.c.l.b16 %v1234
    %v1274 = vunpack.c.l.b16 %v1235
    %v1275 = vunpack.c.l.b16 %v1236
    %v1276 = vunpack.c.l.b16 %v1237
    %v1277 = vunpack.c.l.b16 %v1238
    %v1278 = vunpack.c.l.b16 %v1239
    %v1279 = vunpack.c.l.b16 %v1240
    %v1280 = vpack.c.b16 %v1265, %v1264
    %v1281 = vpack.c.b16 %v1267, %v1266
    %v1282 = vpack.c.b16 %v1269, %v1268
    %v1283 = vpack.c.b16 %v1271, %v1270
    %v1284 = vpack.c.b16 %v1273, %v1272
    %v1285 = vpack.c.b16 %v1275, %v1274
    %v1286 = vpack.c.b16 %v1277, %v1276
    %v1287 = vpack.c.b16 %v1279, %v1278
    %1296 = vmatprep.subr.bf16.mxu0 0
    %1297 = vmatpush1.bf16.msra.mxu0 %v1280
    %1298 = vmatprep.subr.bf16.mxu0 0
    %1299 = vmatpush1.bf16.msra.mxu0 %v1281
    %1300 = vmatprep.subr.bf16.mxu0 0
    %1301 = vmatpush1.bf16.msra.mxu0 %v1282
    %1302 = vmatprep.subr.bf16.mxu0 0
    %1303 = vmatpush1.bf16.msra.mxu0 %v1283
    %1304 = vmatprep.subr.bf16.mxu0 0
    %1305 = vmatpush1.bf16.msra.mxu0 %v1284
    %1306 = vmatprep.subr.bf16.mxu0 0
    %1307 = vmatpush1.bf16.msra.mxu0 %v1285
    %1308 = vmatprep.subr.bf16.mxu0 0
    %1309 = vmatpush1.bf16.msra.mxu0 %v1286
    %1310 = vmatprep.subr.bf16.mxu0 0
    %1311 = vmatpush1.bf16.msra.mxu0 %v1287
    %1312 = vmatprep.subr.bf16.mxu0 0
    %1313 = vmatpush1.bf16.msra.mxu0 0
    %1314 = vmatprep.subr.bf16.mxu0 0
    %1315 = vmatpush1.bf16.msra.mxu0 0
    %1316 = vmatprep.subr.bf16.mxu0 0
    %1317 = vmatpush1.bf16.msra.mxu0 0
    %1318 = vmatprep.subr.bf16.mxu0 0
    %1319 = vmatpush1.bf16.msra.mxu0 0
    %1320 = vmatprep.subr.bf16.mxu0 0
    %1321 = vmatpush1.bf16.msra.mxu0 0
    %1322 = vmatprep.subr.bf16.mxu0 0
    %1323 = vmatpush1.bf16.msra.mxu0 0
    %1324 = vmatprep.subr.bf16.mxu0 0
    %1325 = vmatpush1.bf16.msra.mxu0 0
    %1326 = vmatprep.subr.bf16.mxu0 0
    %1327 = vmatpush1.bf16.msra.mxu0 0
    %1328 = vmatprep.mubr.bf16.mxu0 0
    %1329 = vmatmul.mubr.bf16.gmra.mrb[0].mxu0 %v1224
    %v1330 = vpop.f32.mrb[0].mxu0
    %v1331 = vadd.f32 %v1246, %v1330
    %v1332 = vpop.f32.mrb[0].mxu0
    %v1333 = vpop.f32.mrb[0].mxu0
    %v1334 = vpop.f32.mrb[0].mxu0
    %1335 = vdwg.mxu0
    %v1336 = vld [vmem:[%s23] sm:$0x1]
    %v1338 = vlaneseq
    %v1339 = vshrl.u32 %v1338, 7
    %v1340 = vsub.s32 0, %v1339
    %v1341 = vrot.slane %v1336, %v1340
    %v1343 = vmul.f32 %v1331, %v1341
    %v1344 = vadd.f32 %v1118, %v1343
    %v1345 = vsel %vm476, %v1344, 0.0
    %1346 = vadd.xlane.f32.xlu0 %v1345
    %v1347 = vpop.xlane.xlu0 %1346
    %v1348 = vmul.f32 %v1347, %v480
    %v1349 = vsub.f32 %v1344, %v1348
    %v1350 = vmul.f32 %v1349, %v1349
    %v1351 = vsel %vm476, %v1350, 0.0
    %1352 = vadd.xlane.f32.xlu0 %v1351
    %v1353 = vpop.xlane.xlu0 %1352
    %v1354 = vmul.f32 %v1353, %v480
    %v1355 = vadd.f32 %v1354, 1e-06
    %v1356 = vrsqrt.pop %v1355
    %v1357 = vmul.f32 %v1349, %v1356
    %v1358 = vld [vmem:[%s43] sm:$0x1]
    %v1360 = vlaneseq
    %v1361 = vshrl.u32 %v1360, 7
    %v1362 = vsub.s32 0, %v1361
    %v1363 = vrot.slane %v1358, %v1362
    %v1365 = vmul.f32 %v1357, %v1363
    %v1366 = vld [vmem:[%s41] sm:$0x1]
    %v1368 = vlaneseq
    %v1369 = vshrl.u32 %v1368, 7
    %v1370 = vsub.s32 0, %v1369
    %v1371 = vrot.slane %v1366, %v1370
    %v1373 = vadd.f32 %v1365, %v1371
    %v1374 = vpack.c.bf16 %v1373, %v1373
    %v1375 = vld [vmem:[%s59] sm:$0xf]
    %v1376 = vld [vmem:[%s59 + $0x4] sm:$0xf]
    %v1377 = vld [vmem:[%s59 + $0x8] sm:$0xf]
    %v1378 = vld [vmem:[%s59 + $0xc] sm:$0xf]
    %v1379 = vld [vmem:[%s39] sm:$0x1]
    %v1381 = vlaneseq
    %v1382 = vshrl.u32 %v1381, 7
    %v1383 = vsub.s32 0, %v1382
    %v1384 = vrot.slane %v1379, %v1383
    %v1390 = vunpack.c.l.b16 %v1375
    %v1391 = vunpack.c.l.b16 %v1376
    %v1392 = vunpack.c.l.b16 %v1377
    %v1393 = vunpack.c.l.b16 %v1378
    %v1394 = vpack.c.b16 %v1391, %v1390
    %v1395 = vpack.c.b16 %v1393, %v1392
    %v1399 = vsel %vm531, %v1374, 0
    %1401 = vmatprep.subr.bf16.mxu0 0
    %1402 = vmatpush1.bf16.msra.mxu0 %v1394
    %1403 = vmatprep.subr.bf16.mxu0 0
    %1404 = vmatpush1.bf16.msra.mxu0 %v1395
    %1405 = vmatprep.subr.bf16.mxu0 0
    %1406 = vmatpush1.bf16.msra.mxu0 0
    %1407 = vmatprep.subr.bf16.mxu0 0
    %1408 = vmatpush1.bf16.msra.mxu0 0
    %1409 = vmatprep.subr.bf16.mxu0 0
    %1410 = vmatpush1.bf16.msra.mxu0 0
    %1411 = vmatprep.subr.bf16.mxu0 0
    %1412 = vmatpush1.bf16.msra.mxu0 0
    %1413 = vmatprep.subr.bf16.mxu0 0
    %1414 = vmatpush1.bf16.msra.mxu0 0
    %1415 = vmatprep.subr.bf16.mxu0 0
    %1416 = vmatpush1.bf16.msra.mxu0 0
    %1417 = vmatprep.subr.bf16.mxu0 0
    %1418 = vmatpush1.bf16.msra.mxu0 0
    %1419 = vmatprep.subr.bf16.mxu0 0
    %1420 = vmatpush1.bf16.msra.mxu0 0
    %1421 = vmatprep.subr.bf16.mxu0 0
    %1422 = vmatpush1.bf16.msra.mxu0 0
    %1423 = vmatprep.subr.bf16.mxu0 0
    %1424 = vmatpush1.bf16.msra.mxu0 0
    %1425 = vmatprep.subr.bf16.mxu0 0
    %1426 = vmatpush1.bf16.msra.mxu0 0
    %1427 = vmatprep.subr.bf16.mxu0 0
    %1428 = vmatpush1.bf16.msra.mxu0 0
    %1429 = vmatprep.subr.bf16.mxu0 0
    %1430 = vmatpush1.bf16.msra.mxu0 0
    %1431 = vmatprep.subr.bf16.mxu0 0
    %1432 = vmatpush1.bf16.msra.mxu0 0
    %1433 = vmatprep.mubr.bf16.mxu0 0
    %1434 = vmatmul.mubr.bf16.gmra.mrb[0].mxu0 %v1399
    %v1435 = vpop.f32.mrb[0].mxu0
    %v1436 = vadd.f32 %v1384, %v1435
    %v1437 = vpop.f32.mrb[0].mxu0
    %v1438 = vpop.f32.mrb[0].mxu0
    %v1439 = vpop.f32.mrb[0].mxu0
    %1440 = vdwg.mxu0
    %v1441 = vpack.c.bf16 %v1436, %v1436
    %1443 = vrot.lane.b32.xlu0 %v1441, 96
    %v1444 = vpop.permute.xlu0 %1443
    %v1446 = vsel %vm579, %v1441, 0
    %v1449 = vsel %vm579, %v1444, 0
    %1451 = vmatprep.subr.bf16.mxu0 0
    %1452 = vmatpush1.bf16.xpose.msra.mxu0 %v1449
    %1453 = vmatprep.subr.bf16.mxu0 0
    %1454 = vmatpush1.bf16.xpose.msra.mxu0 0
    %1455 = vmatprep.subr.bf16.mxu0 0
    %1456 = vmatpush1.bf16.xpose.msra.mxu0 0
    %1457 = vmatprep.subr.bf16.mxu0 0
    %1458 = vmatpush1.bf16.xpose.msra.mxu0 0
    %1459 = vmatprep.subr.bf16.mxu0 0
    %1460 = vmatpush1.bf16.xpose.msra.mxu0 0
    %1461 = vmatprep.subr.bf16.mxu0 0
    %1462 = vmatpush1.bf16.xpose.msra.mxu0 0
    %1463 = vmatprep.subr.bf16.mxu0 0
    %1464 = vmatpush1.bf16.xpose.msra.mxu0 0
    %1465 = vmatprep.subr.bf16.mxu0 0
    %1466 = vmatpush1.bf16.xpose.msra.mxu0 0
    %1467 = vmatprep.subr.bf16.mxu0 0
    %1468 = vmatpush1.bf16.xpose.msra.mxu0 0
    %1469 = vmatprep.subr.bf16.mxu0 0
    %1470 = vmatpush1.bf16.xpose.msra.mxu0 0
    %1471 = vmatprep.subr.bf16.mxu0 0
    %1472 = vmatpush1.bf16.xpose.msra.mxu0 0
    %1473 = vmatprep.subr.bf16.mxu0 0
    %1474 = vmatpush1.bf16.xpose.msra.mxu0 0
    %1475 = vmatprep.subr.bf16.mxu0 0
    %1476 = vmatpush1.bf16.xpose.msra.mxu0 0
    %1477 = vmatprep.subr.bf16.mxu0 0
    %1478 = vmatpush1.bf16.xpose.msra.mxu0 0
    %1479 = vmatprep.subr.bf16.mxu0 0
    %1480 = vmatpush1.bf16.xpose.msra.mxu0 0
    %1481 = vmatprep.subr.bf16.mxu0 0
    %1482 = vmatpush1.bf16.xpose.msra.mxu0 0
    %1483 = vmatprep.mubr.bf16.mxu0 0
    %1484 = vmatmul.mubr.bf16.gmra.mrb[0].mxu0 %v1446
    %v1485 = vpop.f32.mrb[0].mxu0
    %v1486 = vadd.f32 0.0, %v1485
    %v1487 = vpop.f32.mrb[0].mxu0
    %v1488 = vpop.f32.mrb[0].mxu0
    %v1489 = vpop.f32.mrb[0].mxu0
    %1490 = vdwg.mxu0
    %v1491 = vmul.f32 %v1486, 0.35355338
    %v1492 = vsel %vm627, %v1491, -inf
    %1493 = vmax.xlane.f32.xlu0 %v1492
    %v1494 = vpop.xlane.xlu0 %1493
    %v1495 = vsub.f32 %v1491, %v1494
    %v1496 = vmul.f32 %v1495, 1.442695
    %v1497 = vpow.pop %v1496
    %v1498 = vsel %vm627, %v1497, 0.0
    %1499 = vadd.xlane.f32.xlu0 %v1498
    %v1500 = vpop.xlane.xlu0 %1499
    %v1501 = vrcp.pop %v1500
    %v1502 = vmul.f32 %v1497, %v1501
    %v1503 = vpack.c.bf16 %v1502, %v1502
    %1504 = vrot.lane.b32.xlu0 %v1441, 64
    %v1505 = vpop.permute.xlu0 %1504
    %v1507 = vsel %vm642, %v1503, 0
    %v1510 = vand.u32 %v1505, %v649
    %1512 = vmatprep.subr.bf16.mxu0 0
    %1513 = vmatpush1.bf16.msra.mxu0 %v1510
    %1514 = vmatprep.subr.bf16.mxu0 0
    %1515 = vmatpush1.bf16.msra.mxu0 0
    %1516 = vmatprep.subr.bf16.mxu0 0
    %1517 = vmatpush1.bf16.msra.mxu0 0
    %1518 = vmatprep.subr.bf16.mxu0 0
    %1519 = vmatpush1.bf16.msra.mxu0 0
    %1520 = vmatprep.subr.bf16.mxu0 0
    %1521 = vmatpush1.bf16.msra.mxu0 0
    %1522 = vmatprep.subr.bf16.mxu0 0
    %1523 = vmatpush1.bf16.msra.mxu0 0
    %1524 = vmatprep.subr.bf16.mxu0 0
    %1525 = vmatpush1.bf16.msra.mxu0 0
    %1526 = vmatprep.subr.bf16.mxu0 0
    %1527 = vmatpush1.bf16.msra.mxu0 0
    %1528 = vmatprep.subr.bf16.mxu0 0
    %1529 = vmatpush1.bf16.msra.mxu0 0
    %1530 = vmatprep.subr.bf16.mxu0 0
    %1531 = vmatpush1.bf16.msra.mxu0 0
    %1532 = vmatprep.subr.bf16.mxu0 0
    %1533 = vmatpush1.bf16.msra.mxu0 0
    %1534 = vmatprep.subr.bf16.mxu0 0
    %1535 = vmatpush1.bf16.msra.mxu0 0
    %1536 = vmatprep.subr.bf16.mxu0 0
    %1537 = vmatpush1.bf16.msra.mxu0 0
    %1538 = vmatprep.subr.bf16.mxu0 0
    %1539 = vmatpush1.bf16.msra.mxu0 0
    %1540 = vmatprep.subr.bf16.mxu0 0
    %1541 = vmatpush1.bf16.msra.mxu0 0
    %1542 = vmatprep.subr.bf16.mxu0 0
    %1543 = vmatpush1.bf16.msra.mxu0 0
    %1544 = vmatprep.mubr.bf16.mxu0 0
    %1545 = vmatmul.mubr.bf16.gmra.mrb[0].mxu0 %v1507
    %v1546 = vpop.f32.mrb[0].mxu0
    %v1547 = vadd.f32 0.0, %v1546
    %v1548 = vpop.f32.mrb[0].mxu0
    %v1549 = vpop.f32.mrb[0].mxu0
    %v1550 = vpop.f32.mrb[0].mxu0
    %1551 = vdwg.mxu0
    %1552 = vrot.lane.b32.xlu0 %v1441, 120
    %v1553 = vpop.permute.xlu0 %1552
    %1554 = vrot.lane.b32.xlu0 %v1441, 88
    %v1555 = vpop.permute.xlu0 %1554
    %v1557 = vsel %vm579, %v1553, 0
    %v1560 = vsel %vm579, %v1555, 0
    %1562 = vmatprep.subr.bf16.mxu0 0
    %1563 = vmatpush1.bf16.xpose.msra.mxu0 %v1560
    %1564 = vmatprep.subr.bf16.mxu0 0
    %1565 = vmatpush1.bf16.xpose.msra.mxu0 0
    %1566 = vmatprep.subr.bf16.mxu0 0
    %1567 = vmatpush1.bf16.xpose.msra.mxu0 0
    %1568 = vmatprep.subr.bf16.mxu0 0
    %1569 = vmatpush1.bf16.xpose.msra.mxu0 0
    %1570 = vmatprep.subr.bf16.mxu0 0
    %1571 = vmatpush1.bf16.xpose.msra.mxu0 0
    %1572 = vmatprep.subr.bf16.mxu0 0
    %1573 = vmatpush1.bf16.xpose.msra.mxu0 0
    %1574 = vmatprep.subr.bf16.mxu0 0
    %1575 = vmatpush1.bf16.xpose.msra.mxu0 0
    %1576 = vmatprep.subr.bf16.mxu0 0
    %1577 = vmatpush1.bf16.xpose.msra.mxu0 0
    %1578 = vmatprep.subr.bf16.mxu0 0
    %1579 = vmatpush1.bf16.xpose.msra.mxu0 0
    %1580 = vmatprep.subr.bf16.mxu0 0
    %1581 = vmatpush1.bf16.xpose.msra.mxu0 0
    %1582 = vmatprep.subr.bf16.mxu0 0
    %1583 = vmatpush1.bf16.xpose.msra.mxu0 0
    %1584 = vmatprep.subr.bf16.mxu0 0
    %1585 = vmatpush1.bf16.xpose.msra.mxu0 0
    %1586 = vmatprep.subr.bf16.mxu0 0
    %1587 = vmatpush1.bf16.xpose.msra.mxu0 0
    %1588 = vmatprep.subr.bf16.mxu0 0
    %1589 = vmatpush1.bf16.xpose.msra.mxu0 0
    %1590 = vmatprep.subr.bf16.mxu0 0
    %1591 = vmatpush1.bf16.xpose.msra.mxu0 0
    %1592 = vmatprep.subr.bf16.mxu0 0
    %1593 = vmatpush1.bf16.xpose.msra.mxu0 0
    %1594 = vmatprep.mubr.bf16.mxu0 0
    %1595 = vmatmul.mubr.bf16.gmra.mrb[0].mxu0 %v1557
    %v1596 = vpop.f32.mrb[0].mxu0
    %v1597 = vadd.f32 0.0, %v1596
    %v1598 = vpop.f32.mrb[0].mxu0
    %v1599 = vpop.f32.mrb[0].mxu0
    %v1600 = vpop.f32.mrb[0].mxu0
    %1601 = vdwg.mxu0
    %v1602 = vmul.f32 %v1597, 0.35355338
    %v1603 = vsel %vm627, %v1602, -inf
    %1604 = vmax.xlane.f32.xlu0 %v1603
    %v1605 = vpop.xlane.xlu0 %1604
    %v1606 = vsub.f32 %v1602, %v1605
    %v1607 = vmul.f32 %v1606, 1.442695
    %v1608 = vpow.pop %v1607
    %v1609 = vsel %vm627, %v1608, 0.0
    %1610 = vadd.xlane.f32.xlu0 %v1609
    %v1611 = vpop.xlane.xlu0 %1610
    %v1612 = vrcp.pop %v1611
    %v1613 = vmul.f32 %v1608, %v1612
    %v1614 = vpack.c.bf16 %v1613, %v1613
    %1615 = vrot.lane.b32.xlu0 %v1441, 56
    %v1616 = vpop.permute.xlu0 %1615
    %v1618 = vsel %vm642, %v1614, 0
    %v1621 = vand.u32 %v1616, %v649
    %1623 = vmatprep.subr.bf16.mxu0 0
    %1624 = vmatpush1.bf16.msra.mxu0 %v1621
    %1625 = vmatprep.subr.bf16.mxu0 0
    %1626 = vmatpush1.bf16.msra.mxu0 0
    %1627 = vmatprep.subr.bf16.mxu0 0
    %1628 = vmatpush1.bf16.msra.mxu0 0
    %1629 = vmatprep.subr.bf16.mxu0 0
    %1630 = vmatpush1.bf16.msra.mxu0 0
    %1631 = vmatprep.subr.bf16.mxu0 0
    %1632 = vmatpush1.bf16.msra.mxu0 0
    %1633 = vmatprep.subr.bf16.mxu0 0
    %1634 = vmatpush1.bf16.msra.mxu0 0
    %1635 = vmatprep.subr.bf16.mxu0 0
    %1636 = vmatpush1.bf16.msra.mxu0 0
    %1637 = vmatprep.subr.bf16.mxu0 0
    %1638 = vmatpush1.bf16.msra.mxu0 0
    %1639 = vmatprep.subr.bf16.mxu0 0
    %1640 = vmatpush1.bf16.msra.mxu0 0
    %1641 = vmatprep.subr.bf16.mxu0 0
    %1642 = vmatpush1.bf16.msra.mxu0 0
    %1643 = vmatprep.subr.bf16.mxu0 0
    %1644 = vmatpush1.bf16.msra.mxu0 0
    %1645 = vmatprep.subr.bf16.mxu0 0
    %1646 = vmatpush1.bf16.msra.mxu0 0
    %1647 = vmatprep.subr.bf16.mxu0 0
    %1648 = vmatpush1.bf16.msra.mxu0 0
    %1649 = vmatprep.subr.bf16.mxu0 0
    %1650 = vmatpush1.bf16.msra.mxu0 0
    %1651 = vmatprep.subr.bf16.mxu0 0
    %1652 = vmatpush1.bf16.msra.mxu0 0
    %1653 = vmatprep.subr.bf16.mxu0 0
    %1654 = vmatpush1.bf16.msra.mxu0 0
    %1655 = vmatprep.mubr.bf16.mxu0 0
    %1656 = vmatmul.mubr.bf16.gmra.mrb[0].mxu0 %v1618
    %v1657 = vpop.f32.mrb[0].mxu0
    %v1658 = vadd.f32 0.0, %v1657
    %v1659 = vpop.f32.mrb[0].mxu0
    %v1660 = vpop.f32.mrb[0].mxu0
    %v1661 = vpop.f32.mrb[0].mxu0
    %1662 = vdwg.mxu0
    %1663 = vrot.lane.b32.xlu0 %v1441, 112
    %v1664 = vpop.permute.xlu0 %1663
    %1665 = vrot.lane.b32.xlu0 %v1441, 80
    %v1666 = vpop.permute.xlu0 %1665
    %v1668 = vsel %vm579, %v1664, 0
    %v1671 = vsel %vm579, %v1666, 0
    %1673 = vmatprep.subr.bf16.mxu0 0
    %1674 = vmatpush1.bf16.xpose.msra.mxu0 %v1671
    %1675 = vmatprep.subr.bf16.mxu0 0
    %1676 = vmatpush1.bf16.xpose.msra.mxu0 0
    %1677 = vmatprep.subr.bf16.mxu0 0
    %1678 = vmatpush1.bf16.xpose.msra.mxu0 0
    %1679 = vmatprep.subr.bf16.mxu0 0
    %1680 = vmatpush1.bf16.xpose.msra.mxu0 0
    %1681 = vmatprep.subr.bf16.mxu0 0
    %1682 = vmatpush1.bf16.xpose.msra.mxu0 0
    %1683 = vmatprep.subr.bf16.mxu0 0
    %1684 = vmatpush1.bf16.xpose.msra.mxu0 0
    %1685 = vmatprep.subr.bf16.mxu0 0
    %1686 = vmatpush1.bf16.xpose.msra.mxu0 0
    %1687 = vmatprep.subr.bf16.mxu0 0
    %1688 = vmatpush1.bf16.xpose.msra.mxu0 0
    %1689 = vmatprep.subr.bf16.mxu0 0
    %1690 = vmatpush1.bf16.xpose.msra.mxu0 0
    %1691 = vmatprep.subr.bf16.mxu0 0
    %1692 = vmatpush1.bf16.xpose.msra.mxu0 0
    %1693 = vmatprep.subr.bf16.mxu0 0
    %1694 = vmatpush1.bf16.xpose.msra.mxu0 0
    %1695 = vmatprep.subr.bf16.mxu0 0
    %1696 = vmatpush1.bf16.xpose.msra.mxu0 0
    %1697 = vmatprep.subr.bf16.mxu0 0
    %1698 = vmatpush1.bf16.xpose.msra.mxu0 0
    %1699 = vmatprep.subr.bf16.mxu0 0
    %1700 = vmatpush1.bf16.xpose.msra.mxu0 0
    %1701 = vmatprep.subr.bf16.mxu0 0
    %1702 = vmatpush1.bf16.xpose.msra.mxu0 0
    %1703 = vmatprep.subr.bf16.mxu0 0
    %1704 = vmatpush1.bf16.xpose.msra.mxu0 0
    %1705 = vmatprep.mubr.bf16.mxu0 0
    %1706 = vmatmul.mubr.bf16.gmra.mrb[0].mxu0 %v1668
    %v1707 = vpop.f32.mrb[0].mxu0
    %v1708 = vadd.f32 0.0, %v1707
    %v1709 = vpop.f32.mrb[0].mxu0
    %v1710 = vpop.f32.mrb[0].mxu0
    %v1711 = vpop.f32.mrb[0].mxu0
    %1712 = vdwg.mxu0
    %v1713 = vmul.f32 %v1708, 0.35355338
    %v1714 = vsel %vm627, %v1713, -inf
    %1715 = vmax.xlane.f32.xlu0 %v1714
    %v1716 = vpop.xlane.xlu0 %1715
    %v1717 = vsub.f32 %v1713, %v1716
    %v1718 = vmul.f32 %v1717, 1.442695
    %v1719 = vpow.pop %v1718
    %v1720 = vsel %vm627, %v1719, 0.0
    %1721 = vadd.xlane.f32.xlu0 %v1720
    %v1722 = vpop.xlane.xlu0 %1721
    %v1723 = vrcp.pop %v1722
    %v1724 = vmul.f32 %v1719, %v1723
    %v1725 = vpack.c.bf16 %v1724, %v1724
    %1726 = vrot.lane.b32.xlu0 %v1441, 48
    %v1727 = vpop.permute.xlu0 %1726
    %v1729 = vsel %vm642, %v1725, 0
    %v1732 = vand.u32 %v1727, %v649
    %1734 = vmatprep.subr.bf16.mxu0 0
    %1735 = vmatpush1.bf16.msra.mxu0 %v1732
    %1736 = vmatprep.subr.bf16.mxu0 0
    %1737 = vmatpush1.bf16.msra.mxu0 0
    %1738 = vmatprep.subr.bf16.mxu0 0
    %1739 = vmatpush1.bf16.msra.mxu0 0
    %1740 = vmatprep.subr.bf16.mxu0 0
    %1741 = vmatpush1.bf16.msra.mxu0 0
    %1742 = vmatprep.subr.bf16.mxu0 0
    %1743 = vmatpush1.bf16.msra.mxu0 0
    %1744 = vmatprep.subr.bf16.mxu0 0
    %1745 = vmatpush1.bf16.msra.mxu0 0
    %1746 = vmatprep.subr.bf16.mxu0 0
    %1747 = vmatpush1.bf16.msra.mxu0 0
    %1748 = vmatprep.subr.bf16.mxu0 0
    %1749 = vmatpush1.bf16.msra.mxu0 0
    %1750 = vmatprep.subr.bf16.mxu0 0
    %1751 = vmatpush1.bf16.msra.mxu0 0
    %1752 = vmatprep.subr.bf16.mxu0 0
    %1753 = vmatpush1.bf16.msra.mxu0 0
    %1754 = vmatprep.subr.bf16.mxu0 0
    %1755 = vmatpush1.bf16.msra.mxu0 0
    %1756 = vmatprep.subr.bf16.mxu0 0
    %1757 = vmatpush1.bf16.msra.mxu0 0
    %1758 = vmatprep.subr.bf16.mxu0 0
    %1759 = vmatpush1.bf16.msra.mxu0 0
    %1760 = vmatprep.subr.bf16.mxu0 0
    %1761 = vmatpush1.bf16.msra.mxu0 0
    %1762 = vmatprep.subr.bf16.mxu0 0
    %1763 = vmatpush1.bf16.msra.mxu0 0
    %1764 = vmatprep.subr.bf16.mxu0 0
    %1765 = vmatpush1.bf16.msra.mxu0 0
    %1766 = vmatprep.mubr.bf16.mxu0 0
    %1767 = vmatmul.mubr.bf16.gmra.mrb[0].mxu0 %v1729
    %v1768 = vpop.f32.mrb[0].mxu0
    %v1769 = vadd.f32 0.0, %v1768
    %v1770 = vpop.f32.mrb[0].mxu0
    %v1771 = vpop.f32.mrb[0].mxu0
    %v1772 = vpop.f32.mrb[0].mxu0
    %1773 = vdwg.mxu0
    %1774 = vrot.lane.b32.xlu0 %v1441, 104
    %v1775 = vpop.permute.xlu0 %1774
    %1776 = vrot.lane.b32.xlu0 %v1441, 72
    %v1777 = vpop.permute.xlu0 %1776
    %v1779 = vsel %vm579, %v1775, 0
    %v1782 = vsel %vm579, %v1777, 0
    %1784 = vmatprep.subr.bf16.mxu0 0
    %1785 = vmatpush1.bf16.xpose.msra.mxu0 %v1782
    %1786 = vmatprep.subr.bf16.mxu0 0
    %1787 = vmatpush1.bf16.xpose.msra.mxu0 0
    %1788 = vmatprep.subr.bf16.mxu0 0
    %1789 = vmatpush1.bf16.xpose.msra.mxu0 0
    %1790 = vmatprep.subr.bf16.mxu0 0
    %1791 = vmatpush1.bf16.xpose.msra.mxu0 0
    %1792 = vmatprep.subr.bf16.mxu0 0
    %1793 = vmatpush1.bf16.xpose.msra.mxu0 0
    %1794 = vmatprep.subr.bf16.mxu0 0
    %1795 = vmatpush1.bf16.xpose.msra.mxu0 0
    %1796 = vmatprep.subr.bf16.mxu0 0
    %1797 = vmatpush1.bf16.xpose.msra.mxu0 0
    %1798 = vmatprep.subr.bf16.mxu0 0
    %1799 = vmatpush1.bf16.xpose.msra.mxu0 0
    %1800 = vmatprep.subr.bf16.mxu0 0
    %1801 = vmatpush1.bf16.xpose.msra.mxu0 0
    %1802 = vmatprep.subr.bf16.mxu0 0
    %1803 = vmatpush1.bf16.xpose.msra.mxu0 0
    %1804 = vmatprep.subr.bf16.mxu0 0
    %1805 = vmatpush1.bf16.xpose.msra.mxu0 0
    %1806 = vmatprep.subr.bf16.mxu0 0
    %1807 = vmatpush1.bf16.xpose.msra.mxu0 0
    %1808 = vmatprep.subr.bf16.mxu0 0
    %1809 = vmatpush1.bf16.xpose.msra.mxu0 0
    %1810 = vmatprep.subr.bf16.mxu0 0
    %1811 = vmatpush1.bf16.xpose.msra.mxu0 0
    %1812 = vmatprep.subr.bf16.mxu0 0
    %1813 = vmatpush1.bf16.xpose.msra.mxu0 0
    %1814 = vmatprep.subr.bf16.mxu0 0
    %1815 = vmatpush1.bf16.xpose.msra.mxu0 0
    %1816 = vmatprep.mubr.bf16.mxu0 0
    %1817 = vmatmul.mubr.bf16.gmra.mrb[0].mxu0 %v1779
    %v1818 = vpop.f32.mrb[0].mxu0
    %v1819 = vadd.f32 0.0, %v1818
    %v1820 = vpop.f32.mrb[0].mxu0
    %v1821 = vpop.f32.mrb[0].mxu0
    %v1822 = vpop.f32.mrb[0].mxu0
    %1823 = vdwg.mxu0
    %v1824 = vmul.f32 %v1819, 0.35355338
    %v1825 = vsel %vm627, %v1824, -inf
    %1826 = vmax.xlane.f32.xlu0 %v1825
    %v1827 = vpop.xlane.xlu0 %1826
    %v1828 = vsub.f32 %v1824, %v1827
    %v1829 = vmul.f32 %v1828, 1.442695
    %v1830 = vpow.pop %v1829
    %v1831 = vsel %vm627, %v1830, 0.0
    %1832 = vadd.xlane.f32.xlu0 %v1831
    %v1833 = vpop.xlane.xlu0 %1832
    %v1834 = vrcp.pop %v1833
    %v1835 = vmul.f32 %v1830, %v1834
    %v1836 = vpack.c.bf16 %v1835, %v1835
    %1837 = vrot.lane.b32.xlu0 %v1441, 40
    %v1838 = vpop.permute.xlu0 %1837
    %v1840 = vsel %vm642, %v1836, 0
    %v1843 = vand.u32 %v1838, %v649
    %1845 = vmatprep.subr.bf16.mxu0 0
    %1846 = vmatpush1.bf16.msra.mxu0 %v1843
    %1847 = vmatprep.subr.bf16.mxu0 0
    %1848 = vmatpush1.bf16.msra.mxu0 0
    %1849 = vmatprep.subr.bf16.mxu0 0
    %1850 = vmatpush1.bf16.msra.mxu0 0
    %1851 = vmatprep.subr.bf16.mxu0 0
    %1852 = vmatpush1.bf16.msra.mxu0 0
    %1853 = vmatprep.subr.bf16.mxu0 0
    %1854 = vmatpush1.bf16.msra.mxu0 0
    %1855 = vmatprep.subr.bf16.mxu0 0
    %1856 = vmatpush1.bf16.msra.mxu0 0
    %1857 = vmatprep.subr.bf16.mxu0 0
    %1858 = vmatpush1.bf16.msra.mxu0 0
    %1859 = vmatprep.subr.bf16.mxu0 0
    %1860 = vmatpush1.bf16.msra.mxu0 0
    %1861 = vmatprep.subr.bf16.mxu0 0
    %1862 = vmatpush1.bf16.msra.mxu0 0
    %1863 = vmatprep.subr.bf16.mxu0 0
    %1864 = vmatpush1.bf16.msra.mxu0 0
    %1865 = vmatprep.subr.bf16.mxu0 0
    %1866 = vmatpush1.bf16.msra.mxu0 0
    %1867 = vmatprep.subr.bf16.mxu0 0
    %1868 = vmatpush1.bf16.msra.mxu0 0
    %1869 = vmatprep.subr.bf16.mxu0 0
    %1870 = vmatpush1.bf16.msra.mxu0 0
    %1871 = vmatprep.subr.bf16.mxu0 0
    %1872 = vmatpush1.bf16.msra.mxu0 0
    %1873 = vmatprep.subr.bf16.mxu0 0
    %1874 = vmatpush1.bf16.msra.mxu0 0
    %1875 = vmatprep.subr.bf16.mxu0 0
    %1876 = vmatpush1.bf16.msra.mxu0 0
    %1877 = vmatprep.mubr.bf16.mxu0 0
    %1878 = vmatmul.mubr.bf16.gmra.mrb[0].mxu0 %v1840
    %v1879 = vpop.f32.mrb[0].mxu0
    %v1880 = vadd.f32 0.0, %v1879
    %v1881 = vpop.f32.mrb[0].mxu0
    %v1882 = vpop.f32.mrb[0].mxu0
    %v1883 = vpop.f32.mrb[0].mxu0
    %1884 = vdwg.mxu0
    %1886 = vrot.lane.b32.xlu0 %v1658, 8
    %v1887 = vpop.permute.xlu0 %1886
    %1890 = vrot.lane.b32.xlu0 %v1769, 16
    %v1891 = vpop.permute.xlu0 %1890
    %1894 = vrot.lane.b32.xlu0 %v1880, 24
    %v1895 = vpop.permute.xlu0 %1894
    %v1897 = vsel %vm579, %v1547, %v1887
    %v1898 = vsel %vm1039, %v1897, %v1891
    %v1899 = vsel %vm1041, %v1898, %v1895
    %v1900 = vpack.c.bf16 %v1899, %v1899
    %v1901 = vld [vmem:[%s57] sm:$0xf]
    %v1902 = vld [vmem:[%s57 + $0x4] sm:$0xf]
    %v1903 = vld [vmem:[%s57 + $0x8] sm:$0xf]
    %v1904 = vld [vmem:[%s57 + $0xc] sm:$0xf]
    %v1905 = vld [vmem:[%s37] sm:$0x1]
    %v1907 = vlaneseq
    %v1908 = vshrl.u32 %v1907, 7
    %v1909 = vsub.s32 0, %v1908
    %v1910 = vrot.slane %v1905, %v1909
    %v1916 = vunpack.c.l.b16 %v1901
    %v1917 = vunpack.c.l.b16 %v1902
    %v1918 = vunpack.c.l.b16 %v1903
    %v1919 = vunpack.c.l.b16 %v1904
    %v1920 = vpack.c.b16 %v1917, %v1916
    %v1921 = vpack.c.b16 %v1919, %v1918
    %v1925 = vsel %vm531, %v1900, 0
    %1927 = vmatprep.subr.bf16.mxu0 0
    %1928 = vmatpush1.bf16.msra.mxu0 %v1920
    %1929 = vmatprep.subr.bf16.mxu0 0
    %1930 = vmatpush1.bf16.msra.mxu0 %v1921
    %1931 = vmatprep.subr.bf16.mxu0 0
    %1932 = vmatpush1.bf16.msra.mxu0 0
    %1933 = vmatprep.subr.bf16.mxu0 0
    %1934 = vmatpush1.bf16.msra.mxu0 0
    %1935 = vmatprep.subr.bf16.mxu0 0
    %1936 = vmatpush1.bf16.msra.mxu0 0
    %1937 = vmatprep.subr.bf16.mxu0 0
    %1938 = vmatpush1.bf16.msra.mxu0 0
    %1939 = vmatprep.subr.bf16.mxu0 0
    %1940 = vmatpush1.bf16.msra.mxu0 0
    %1941 = vmatprep.subr.bf16.mxu0 0
    %1942 = vmatpush1.bf16.msra.mxu0 0
    %1943 = vmatprep.subr.bf16.mxu0 0
    %1944 = vmatpush1.bf16.msra.mxu0 0
    %1945 = vmatprep.subr.bf16.mxu0 0
    %1946 = vmatpush1.bf16.msra.mxu0 0
    %1947 = vmatprep.subr.bf16.mxu0 0
    %1948 = vmatpush1.bf16.msra.mxu0 0
    %1949 = vmatprep.subr.bf16.mxu0 0
    %1950 = vmatpush1.bf16.msra.mxu0 0
    %1951 = vmatprep.subr.bf16.mxu0 0
    %1952 = vmatpush1.bf16.msra.mxu0 0
    %1953 = vmatprep.subr.bf16.mxu0 0
    %1954 = vmatpush1.bf16.msra.mxu0 0
    %1955 = vmatprep.subr.bf16.mxu0 0
    %1956 = vmatpush1.bf16.msra.mxu0 0
    %1957 = vmatprep.subr.bf16.mxu0 0
    %1958 = vmatpush1.bf16.msra.mxu0 0
    %1959 = vmatprep.mubr.bf16.mxu0 0
    %1960 = vmatmul.mubr.bf16.gmra.mrb[0].mxu0 %v1925
    %v1961 = vpop.f32.mrb[0].mxu0
    %v1962 = vadd.f32 %v1910, %v1961
    %v1963 = vpop.f32.mrb[0].mxu0
    %v1964 = vpop.f32.mrb[0].mxu0
    %v1965 = vpop.f32.mrb[0].mxu0
    %1966 = vdwg.mxu0
    %v1967 = vld [vmem:[%s49] sm:$0x1]
    %v1969 = vlaneseq
    %v1970 = vshrl.u32 %v1969, 7
    %v1971 = vsub.s32 0, %v1970
    %v1972 = vrot.slane %v1967, %v1971
    %v1974 = vmul.f32 %v1962, %v1972
    %v1975 = vadd.f32 %v1344, %v1974
    %v1976 = vsel %vm476, %v1975, 0.0
    %1977 = vadd.xlane.f32.xlu0 %v1976
    %v1978 = vpop.xlane.xlu0 %1977
    %v1979 = vmul.f32 %v1978, %v480
    %v1980 = vsub.f32 %v1975, %v1979
    %v1981 = vmul.f32 %v1980, %v1980
    %v1982 = vsel %vm476, %v1981, 0.0
    %1983 = vadd.xlane.f32.xlu0 %v1982
    %v1984 = vpop.xlane.xlu0 %1983
    %v1985 = vmul.f32 %v1984, %v480
    %v1986 = vadd.f32 %v1985, 1e-06
    %v1987 = vrsqrt.pop %v1986
    %v1988 = vmul.f32 %v1980, %v1987
    %v1989 = vld [vmem:[%s47] sm:$0x1]
    %v1991 = vlaneseq
    %v1992 = vshrl.u32 %v1991, 7
    %v1993 = vsub.s32 0, %v1992
    %v1994 = vrot.slane %v1989, %v1993
    %v1996 = vmul.f32 %v1988, %v1994
    %v1997 = vld [vmem:[%s45] sm:$0x1]
    %v1999 = vlaneseq
    %v2000 = vshrl.u32 %v1999, 7
    %v2001 = vsub.s32 0, %v2000
    %v2002 = vrot.slane %v1997, %v2001
    %v2004 = vadd.f32 %v1996, %v2002
    %v2005 = vpack.c.bf16 %v2004, %v2004
    %v2006 = vld [vmem:[%s53] sm:$0xf]
    %v2007 = vld [vmem:[%s53 + $0x4] sm:$0xf]
    %v2008 = vld [vmem:[%s53 + $0x8] sm:$0xf]
    %v2009 = vld [vmem:[%s53 + $0xc] sm:$0xf]
    %v2010 = vld [vmem:[%s33] sm:$0x1]
    %v2012 = vlaneseq
    %v2013 = vshrl.u32 %v2012, 7
    %v2014 = vsub.s32 0, %v2013
    %v2015 = vrot.slane %v2010, %v2014
    %v2021 = vunpack.c.l.b16 %v2006
    %v2022 = vunpack.c.l.b16 %v2007
    %v2023 = vunpack.c.l.b16 %v2008
    %v2024 = vunpack.c.l.b16 %v2009
    %v2025 = vpack.c.b16 %v2022, %v2021
    %v2026 = vpack.c.b16 %v2024, %v2023
    %v2030 = vsel %vm531, %v2005, 0
    %2032 = vmatprep.subr.bf16.mxu0 0
    %2033 = vmatpush1.bf16.msra.mxu0 %v2025
    %2034 = vmatprep.subr.bf16.mxu0 0
    %2035 = vmatpush1.bf16.msra.mxu0 %v2026
    %2036 = vmatprep.subr.bf16.mxu0 0
    %2037 = vmatpush1.bf16.msra.mxu0 0
    %2038 = vmatprep.subr.bf16.mxu0 0
    %2039 = vmatpush1.bf16.msra.mxu0 0
    %2040 = vmatprep.subr.bf16.mxu0 0
    %2041 = vmatpush1.bf16.msra.mxu0 0
    %2042 = vmatprep.subr.bf16.mxu0 0
    %2043 = vmatpush1.bf16.msra.mxu0 0
    %2044 = vmatprep.subr.bf16.mxu0 0
    %2045 = vmatpush1.bf16.msra.mxu0 0
    %2046 = vmatprep.subr.bf16.mxu0 0
    %2047 = vmatpush1.bf16.msra.mxu0 0
    %2048 = vmatprep.subr.bf16.mxu0 0
    %2049 = vmatpush1.bf16.msra.mxu0 0
    %2050 = vmatprep.subr.bf16.mxu0 0
    %2051 = vmatpush1.bf16.msra.mxu0 0
    %2052 = vmatprep.subr.bf16.mxu0 0
    %2053 = vmatpush1.bf16.msra.mxu0 0
    %2054 = vmatprep.subr.bf16.mxu0 0
    %2055 = vmatpush1.bf16.msra.mxu0 0
    %2056 = vmatprep.subr.bf16.mxu0 0
    %2057 = vmatpush1.bf16.msra.mxu0 0
    %2058 = vmatprep.subr.bf16.mxu0 0
    %2059 = vmatpush1.bf16.msra.mxu0 0
    %2060 = vmatprep.subr.bf16.mxu0 0
    %2061 = vmatpush1.bf16.msra.mxu0 0
    %2062 = vmatprep.subr.bf16.mxu0 0
    %2063 = vmatpush1.bf16.msra.mxu0 0
    %2064 = vmatprep.mubr.bf16.mxu0 0
    %2065 = vmatmul.mubr.bf16.gmra.mrb[0].mxu0 %v2030
    %v2066 = vpop.f32.mrb[0].mxu0
    %v2067 = vadd.f32 %v2015, %v2066
    %v2068 = vpop.f32.mrb[0].mxu0
    %v2069 = vpop.f32.mrb[0].mxu0
    %v2070 = vpop.f32.mrb[0].mxu0
    %2071 = vdwg.mxu0
    %v2072 = vmul.f32 %v2067, %v2067
    %v2073 = vmul.f32 %v2067, %v2072
    %v2074 = vmul.f32 %v2073, 0.044715
    %v2075 = vadd.f32 %v2067, %v2074
    %v2076 = vmul.f32 %v2075, 0.7978846
    %v2077 = vtanh.pop %v2076
    %v2078 = vadd.f32 %v2077, 1.0
    %v2079 = vmul.f32 %v2078, 0.5
    %v2080 = vmul.f32 %v2067, %v2079
    %v2081 = vpack.c.bf16 %v2080, %v2080
    %v2082 = vld [vmem:[%s55] sm:$0xf]
    %v2083 = vld [vmem:[%s55 + $0x4] sm:$0xf]
    %v2084 = vld [vmem:[%s55 + $0x8] sm:$0xf]
    %v2085 = vld [vmem:[%s55 + $0xc] sm:$0xf]
    %v2086 = vld [vmem:[%s55 + $0x10] sm:$0xf]
    %v2087 = vld [vmem:[%s55 + $0x14] sm:$0xf]
    %v2088 = vld [vmem:[%s55 + $0x18] sm:$0xf]
    %v2089 = vld [vmem:[%s55 + $0x1c] sm:$0xf]
    %v2090 = vld [vmem:[%s55 + $0x20] sm:$0xf]
    %v2091 = vld [vmem:[%s55 + $0x24] sm:$0xf]
    %v2092 = vld [vmem:[%s55 + $0x28] sm:$0xf]
    %v2093 = vld [vmem:[%s55 + $0x2c] sm:$0xf]
    %v2094 = vld [vmem:[%s55 + $0x30] sm:$0xf]
    %v2095 = vld [vmem:[%s55 + $0x34] sm:$0xf]
    %v2096 = vld [vmem:[%s55 + $0x38] sm:$0xf]
    %v2097 = vld [vmem:[%s55 + $0x3c] sm:$0xf]
    %v2098 = vld [vmem:[%s35] sm:$0x1]
    %v2100 = vlaneseq
    %v2101 = vshrl.u32 %v2100, 7
    %v2102 = vsub.s32 0, %v2101
    %v2103 = vrot.slane %v2098, %v2102
    %v2121 = vunpack.c.l.b16 %v2082
    %v2122 = vunpack.c.l.b16 %v2083
    %v2123 = vunpack.c.l.b16 %v2084
    %v2124 = vunpack.c.l.b16 %v2085
    %v2125 = vunpack.c.l.b16 %v2086
    %v2126 = vunpack.c.l.b16 %v2087
    %v2127 = vunpack.c.l.b16 %v2088
    %v2128 = vunpack.c.l.b16 %v2089
    %v2129 = vunpack.c.l.b16 %v2090
    %v2130 = vunpack.c.l.b16 %v2091
    %v2131 = vunpack.c.l.b16 %v2092
    %v2132 = vunpack.c.l.b16 %v2093
    %v2133 = vunpack.c.l.b16 %v2094
    %v2134 = vunpack.c.l.b16 %v2095
    %v2135 = vunpack.c.l.b16 %v2096
    %v2136 = vunpack.c.l.b16 %v2097
    %v2137 = vpack.c.b16 %v2122, %v2121
    %v2138 = vpack.c.b16 %v2124, %v2123
    %v2139 = vpack.c.b16 %v2126, %v2125
    %v2140 = vpack.c.b16 %v2128, %v2127
    %v2141 = vpack.c.b16 %v2130, %v2129
    %v2142 = vpack.c.b16 %v2132, %v2131
    %v2143 = vpack.c.b16 %v2134, %v2133
    %v2144 = vpack.c.b16 %v2136, %v2135
    %2153 = vmatprep.subr.bf16.mxu0 0
    %2154 = vmatpush1.bf16.msra.mxu0 %v2137
    %2155 = vmatprep.subr.bf16.mxu0 0
    %2156 = vmatpush1.bf16.msra.mxu0 %v2138
    %2157 = vmatprep.subr.bf16.mxu0 0
    %2158 = vmatpush1.bf16.msra.mxu0 %v2139
    %2159 = vmatprep.subr.bf16.mxu0 0
    %2160 = vmatpush1.bf16.msra.mxu0 %v2140
    %2161 = vmatprep.subr.bf16.mxu0 0
    %2162 = vmatpush1.bf16.msra.mxu0 %v2141
    %2163 = vmatprep.subr.bf16.mxu0 0
    %2164 = vmatpush1.bf16.msra.mxu0 %v2142
    %2165 = vmatprep.subr.bf16.mxu0 0
    %2166 = vmatpush1.bf16.msra.mxu0 %v2143
    %2167 = vmatprep.subr.bf16.mxu0 0
    %2168 = vmatpush1.bf16.msra.mxu0 %v2144
    %2169 = vmatprep.subr.bf16.mxu0 0
    %2170 = vmatpush1.bf16.msra.mxu0 0
    %2171 = vmatprep.subr.bf16.mxu0 0
    %2172 = vmatpush1.bf16.msra.mxu0 0
    %2173 = vmatprep.subr.bf16.mxu0 0
    %2174 = vmatpush1.bf16.msra.mxu0 0
    %2175 = vmatprep.subr.bf16.mxu0 0
    %2176 = vmatpush1.bf16.msra.mxu0 0
    %2177 = vmatprep.subr.bf16.mxu0 0
    %2178 = vmatpush1.bf16.msra.mxu0 0
    %2179 = vmatprep.subr.bf16.mxu0 0
    %2180 = vmatpush1.bf16.msra.mxu0 0
    %2181 = vmatprep.subr.bf16.mxu0 0
    %2182 = vmatpush1.bf16.msra.mxu0 0
    %2183 = vmatprep.subr.bf16.mxu0 0
    %2184 = vmatpush1.bf16.msra.mxu0 0
    %2185 = vmatprep.mubr.bf16.mxu0 0
    %2186 = vmatmul.mubr.bf16.gmra.mrb[0].mxu0 %v2081
    %v2187 = vpop.f32.mrb[0].mxu0
    %v2188 = vadd.f32 %v2103, %v2187
    %v2189 = vpop.f32.mrb[0].mxu0
    %v2190 = vpop.f32.mrb[0].mxu0
    %v2191 = vpop.f32.mrb[0].mxu0
    %2192 = vdwg.mxu0
    %v2193 = vld [vmem:[%s51] sm:$0x1]
    %v2195 = vlaneseq
    %v2196 = vshrl.u32 %v2195, 7
    %v2197 = vsub.s32 0, %v2196
    %v2198 = vrot.slane %v2193, %v2197
    %v2200 = vmul.f32 %v2188, %v2198
    %v2201 = vadd.f32 %v1975, %v2200
    %v2202 = vld [vmem:[%s3] sm:$0xf]
    %v2203 = vld [vmem:[%s119] sm:$0xf]
    %v2204 = vld [vmem:[%s119 + $0x4] sm:$0xf]
    %v2205 = vld [vmem:[%s119 + $0x8] sm:$0xf]
    %v2206 = vld [vmem:[%s119 + $0xc] sm:$0xf]
    %v2207 = vld [vmem:[%s119 + $0x10] sm:$0xf]
    %v2208 = vld [vmem:[%s119 + $0x14] sm:$0xf]
    %v2209 = vld [vmem:[%s119 + $0x18] sm:$0xf]
    %v2210 = vld [vmem:[%s119 + $0x1c] sm:$0xf]
    %v2211 = vld [vmem:[%s119 + $0x20] sm:$0xf]
    %v2212 = vld [vmem:[%s119 + $0x24] sm:$0xf]
    %v2213 = vld [vmem:[%s119 + $0x28] sm:$0xf]
    %v2214 = vld [vmem:[%s119 + $0x2c] sm:$0xf]
    %v2215 = vld [vmem:[%s119 + $0x30] sm:$0xf]
    %v2216 = vld [vmem:[%s119 + $0x34] sm:$0xf]
    %v2217 = vld [vmem:[%s119 + $0x38] sm:$0xf]
    %v2218 = vld [vmem:[%s119 + $0x3c] sm:$0xf]
    %v2219 = vld [vmem:[%s119 + $0x40] sm:$0xf]
    %v2220 = vld [vmem:[%s119 + $0x44] sm:$0xf]
    %v2221 = vld [vmem:[%s119 + $0x48] sm:$0xf]
    %v2222 = vld [vmem:[%s119 + $0x4c] sm:$0xf]
    %v2223 = vld [vmem:[%s119 + $0x50] sm:$0xf]
    %v2224 = vld [vmem:[%s119 + $0x54] sm:$0xf]
    %v2225 = vld [vmem:[%s119 + $0x58] sm:$0xf]
    %v2226 = vld [vmem:[%s119 + $0x5c] sm:$0xf]
    %v2227 = vld [vmem:[#allocation2] sm:$0x1]
    %v2229 = vlaneseq
    %v2230 = vshrl.u32 %v2229, 7
    %v2231 = vsub.s32 0, %v2230
    %v2232 = vrot.slane %v2227, %v2231
    %v2236 = vunpack.c.l.s4 1983009808
    %v2237 = vunpack.c.0.s8 %v2236
    %v2238 = vlaneseq
    %v2239 = vshrl.u32 %v2238, 7
    %v2240 = vsub.s32 %v2237, %v2239
    %v2241 = vrot.slane %v2202, %v2240
    %v2242 = vcombine.high %v2241, %v2241
    %v2268 = vunpack.c.l.b16 %v2203
    %v2269 = vunpack.c.l.b16 %v2204
    %v2270 = vunpack.c.l.b16 %v2205
    %v2271 = vunpack.c.l.b16 %v2206
    %v2272 = vunpack.c.l.b16 %v2207
    %v2273 = vunpack.c.l.b16 %v2208
    %v2274 = vunpack.c.l.b16 %v2209
    %v2275 = vunpack.c.l.b16 %v2210
    %v2276 = vunpack.c.l.b16 %v2211
    %v2277 = vunpack.c.l.b16 %v2212
    %v2278 = vunpack.c.l.b16 %v2213
    %v2279 = vunpack.c.l.b16 %v2214
    %v2280 = vunpack.c.l.b16 %v2215
    %v2281 = vunpack.c.l.b16 %v2216
    %v2282 = vunpack.c.l.b16 %v2217
    %v2283 = vunpack.c.l.b16 %v2218
    %v2284 = vunpack.c.l.b16 %v2219
    %v2285 = vunpack.c.l.b16 %v2220
    %v2286 = vunpack.c.l.b16 %v2221
    %v2287 = vunpack.c.l.b16 %v2222
    %v2288 = vunpack.c.l.b16 %v2223
    %v2289 = vunpack.c.l.b16 %v2224
    %v2290 = vunpack.c.l.b16 %v2225
    %v2291 = vunpack.c.l.b16 %v2226
    %v2292 = vpack.c.b16 %v2269, %v2268
    %v2293 = vpack.c.b16 %v2271, %v2270
    %v2294 = vpack.c.b16 %v2273, %v2272
    %v2295 = vpack.c.b16 %v2275, %v2274
    %v2296 = vpack.c.b16 %v2277, %v2276
    %v2297 = vpack.c.b16 %v2279, %v2278
    %v2298 = vpack.c.b16 %v2281, %v2280
    %v2299 = vpack.c.b16 %v2283, %v2282
    %v2300 = vpack.c.b16 %v2285, %v2284
    %v2301 = vpack.c.b16 %v2287, %v2286
    %v2302 = vpack.c.b16 %v2289, %v2288
    %v2303 = vpack.c.b16 %v2291, %v2290
    %v2317 = vsel %vm424, %v2242, 0
    %2319 = vmatprep.subr.bf16.mxu0 0
    %2320 = vmatpush1.bf16.msra.mxu0 %v2292
    %2321 = vmatprep.subr.bf16.mxu0 0
    %2322 = vmatpush1.bf16.msra.mxu0 %v2293
    %2323 = vmatprep.subr.bf16.mxu0 0
    %2324 = vmatpush1.bf16.msra.mxu0 %v2294
    %2325 = vmatprep.subr.bf16.mxu0 0
    %2326 = vmatpush1.bf16.msra.mxu0 %v2295
    %2327 = vmatprep.subr.bf16.mxu0 0
    %2328 = vmatpush1.bf16.msra.mxu0 %v2296
    %2329 = vmatprep.subr.bf16.mxu0 0
    %2330 = vmatpush1.bf16.msra.mxu0 %v2297
    %2331 = vmatprep.subr.bf16.mxu0 0
    %2332 = vmatpush1.bf16.msra.mxu0 %v2298
    %2333 = vmatprep.subr.bf16.mxu0 0
    %2334 = vmatpush1.bf16.msra.mxu0 %v2299
    %2335 = vmatprep.subr.bf16.mxu0 0
    %2336 = vmatpush1.bf16.msra.mxu0 %v2300
    %2337 = vmatprep.subr.bf16.mxu0 0
    %2338 = vmatpush1.bf16.msra.mxu0 %v2301
    %2339 = vmatprep.subr.bf16.mxu0 0
    %2340 = vmatpush1.bf16.msra.mxu0 %v2302
    %2341 = vmatprep.subr.bf16.mxu0 0
    %2342 = vmatpush1.bf16.msra.mxu0 %v2303
    %2343 = vmatprep.subr.bf16.mxu0 0
    %2344 = vmatpush1.bf16.msra.mxu0 0
    %2345 = vmatprep.subr.bf16.mxu0 0
    %2346 = vmatpush1.bf16.msra.mxu0 0
    %2347 = vmatprep.subr.bf16.mxu0 0
    %2348 = vmatpush1.bf16.msra.mxu0 0
    %2349 = vmatprep.subr.bf16.mxu0 0
    %2350 = vmatpush1.bf16.msra.mxu0 0
    %2351 = vmatprep.mubr.bf16.mxu0 %v2317
    %2352 = vmatmul.mubr.bf16.gmra.mrb[0].mxu0 %v2241
    %v2353 = vpop.f32.mrb[0].mxu0
    %v2354 = vadd.f32 %v2232, %v2353
    %v2355 = vpop.f32.mrb[0].mxu0
    %v2356 = vpop.f32.mrb[0].mxu0
    %v2357 = vpop.f32.mrb[0].mxu0
    %2358 = vdwg.mxu0
    %v2359 = vld [vmem:[%s121] sm:$0xf]
    %v2360 = vadd.f32 %v2354, %v2359
    %vm2361 = vcmask 257024
    %v2362 = vsel %vm2361, %v2360, 0.0
    %2363 = vadd.xlane.f32.xlu0 %v2362
    %v2364 = vpop.xlane.xlu0 %2363
    %v2365 = vmul.f32 %v2364, %v480
    %v2366 = vsub.f32 %v2360, %v2365
    %v2367 = vmul.f32 %v2366, %v2366
    %v2368 = vsel %vm2361, %v2367, 0.0
    %2369 = vadd.xlane.f32.xlu0 %v2368
    %v2370 = vpop.xlane.xlu0 %2369
    %v2371 = vmul.f32 %v2370, %v480
    %v2372 = vadd.f32 %v2371, 1e-06
    %v2373 = vrsqrt.pop %v2372
    %v2374 = vmul.f32 %v2366, %v2373
    %v2375 = vld [vmem:[%s79] sm:$0x1]
    %v2377 = vlaneseq
    %v2378 = vshrl.u32 %v2377, 7
    %v2379 = vsub.s32 0, %v2378
    %v2380 = vrot.slane %v2375, %v2379
    %v2382 = vmul.f32 %v2374, %v2380
    %v2383 = vld [vmem:[%s77] sm:$0x1]
    %v2385 = vlaneseq
    %v2386 = vshrl.u32 %v2385, 7
    %v2387 = vsub.s32 0, %v2386
    %v2388 = vrot.slane %v2383, %v2387
    %v2390 = vadd.f32 %v2382, %v2388
    %v2391 = vpack.c.bf16 %v2390, %v2390
    %v2392 = vld [vmem:[%s91] sm:$0xf]
    %v2393 = vld [vmem:[%s91 + $0x4] sm:$0xf]
    %v2394 = vld [vmem:[%s91 + $0x8] sm:$0xf]
    %v2395 = vld [vmem:[%s91 + $0xc] sm:$0xf]
    %v2396 = vld [vmem:[%s75] sm:$0x1]
    %v2398 = vlaneseq
    %v2399 = vshrl.u32 %v2398, 7
    %v2400 = vsub.s32 0, %v2399
    %v2401 = vrot.slane %v2396, %v2400
    %v2407 = vunpack.c.l.b16 %v2392
    %v2408 = vunpack.c.l.b16 %v2393
    %v2409 = vunpack.c.l.b16 %v2394
    %v2410 = vunpack.c.l.b16 %v2395
    %v2411 = vpack.c.b16 %v2408, %v2407
    %v2412 = vpack.c.b16 %v2410, %v2409
    %v2416 = vsel %vm531, %v2391, 0
    %2418 = vmatprep.subr.bf16.mxu0 0
    %2419 = vmatpush1.bf16.msra.mxu0 %v2411
    %2420 = vmatprep.subr.bf16.mxu0 0
    %2421 = vmatpush1.bf16.msra.mxu0 %v2412
    %2422 = vmatprep.subr.bf16.mxu0 0
    %2423 = vmatpush1.bf16.msra.mxu0 0
    %2424 = vmatprep.subr.bf16.mxu0 0
    %2425 = vmatpush1.bf16.msra.mxu0 0
    %2426 = vmatprep.subr.bf16.mxu0 0
    %2427 = vmatpush1.bf16.msra.mxu0 0
    %2428 = vmatprep.subr.bf16.mxu0 0
    %2429 = vmatpush1.bf16.msra.mxu0 0
    %2430 = vmatprep.subr.bf16.mxu0 0
    %2431 = vmatpush1.bf16.msra.mxu0 0
    %2432 = vmatprep.subr.bf16.mxu0 0
    %2433 = vmatpush1.bf16.msra.mxu0 0
    %2434 = vmatprep.subr.bf16.mxu0 0
    %2435 = vmatpush1.bf16.msra.mxu0 0
    %2436 = vmatprep.subr.bf16.mxu0 0
    %2437 = vmatpush1.bf16.msra.mxu0 0
    %2438 = vmatprep.subr.bf16.mxu0 0
    %2439 = vmatpush1.bf16.msra.mxu0 0
    %2440 = vmatprep.subr.bf16.mxu0 0
    %2441 = vmatpush1.bf16.msra.mxu0 0
    %2442 = vmatprep.subr.bf16.mxu0 0
    %2443 = vmatpush1.bf16.msra.mxu0 0
    %2444 = vmatprep.subr.bf16.mxu0 0
    %2445 = vmatpush1.bf16.msra.mxu0 0
    %2446 = vmatprep.subr.bf16.mxu0 0
    %2447 = vmatpush1.bf16.msra.mxu0 0
    %2448 = vmatprep.subr.bf16.mxu0 0
    %2449 = vmatpush1.bf16.msra.mxu0 0
    %2450 = vmatprep.mubr.bf16.mxu0 0
    %2451 = vmatmul.mubr.bf16.gmra.mrb[0].mxu0 %v2416
    %v2452 = vpop.f32.mrb[0].mxu0
    %v2453 = vadd.f32 %v2401, %v2452
    %v2454 = vpop.f32.mrb[0].mxu0
    %v2455 = vpop.f32.mrb[0].mxu0
    %v2456 = vpop.f32.mrb[0].mxu0
    %2457 = vdwg.mxu0
    %v2458 = vpack.c.bf16 %v2453, %v2453
    %2460 = vrot.lane.b32.xlu0 %v2458, 96
    %v2461 = vpop.permute.xlu0 %2460
    %v2463 = vsel %vm579, %v2458, 0
    %v2466 = vsel %vm579, %v2461, 0
    %2468 = vmatprep.subr.bf16.mxu0 0
    %2469 = vmatpush1.bf16.xpose.msra.mxu0 %v2466
    %2470 = vmatprep.subr.bf16.mxu0 0
    %2471 = vmatpush1.bf16.xpose.msra.mxu0 0
    %2472 = vmatprep.subr.bf16.mxu0 0
    %2473 = vmatpush1.bf16.xpose.msra.mxu0 0
    %2474 = vmatprep.subr.bf16.mxu0 0
    %2475 = vmatpush1.bf16.xpose.msra.mxu0 0
    %2476 = vmatprep.subr.bf16.mxu0 0
    %2477 = vmatpush1.bf16.xpose.msra.mxu0 0
    %2478 = vmatprep.subr.bf16.mxu0 0
    %2479 = vmatpush1.bf16.xpose.msra.mxu0 0
    %2480 = vmatprep.subr.bf16.mxu0 0
    %2481 = vmatpush1.bf16.xpose.msra.mxu0 0
    %2482 = vmatprep.subr.bf16.mxu0 0
    %2483 = vmatpush1.bf16.xpose.msra.mxu0 0
    %2484 = vmatprep.subr.bf16.mxu0 0
    %2485 = vmatpush1.bf16.xpose.msra.mxu0 0
    %2486 = vmatprep.subr.bf16.mxu0 0
    %2487 = vmatpush1.bf16.xpose.msra.mxu0 0
    %2488 = vmatprep.subr.bf16.mxu0 0
    %2489 = vmatpush1.bf16.xpose.msra.mxu0 0
    %2490 = vmatprep.subr.bf16.mxu0 0
    %2491 = vmatpush1.bf16.xpose.msra.mxu0 0
    %2492 = vmatprep.subr.bf16.mxu0 0
    %2493 = vmatpush1.bf16.xpose.msra.mxu0 0
    %2494 = vmatprep.subr.bf16.mxu0 0
    %2495 = vmatpush1.bf16.xpose.msra.mxu0 0
    %2496 = vmatprep.subr.bf16.mxu0 0
    %2497 = vmatpush1.bf16.xpose.msra.mxu0 0
    %2498 = vmatprep.subr.bf16.mxu0 0
    %2499 = vmatpush1.bf16.xpose.msra.mxu0 0
    %2500 = vmatprep.mubr.bf16.mxu0 0
    %2501 = vmatmul.mubr.bf16.gmra.mrb[0].mxu0 %v2463
    %v2502 = vpop.f32.mrb[0].mxu0
    %v2503 = vadd.f32 0.0, %v2502
    %v2504 = vpop.f32.mrb[0].mxu0
    %v2505 = vpop.f32.mrb[0].mxu0
    %v2506 = vpop.f32.mrb[0].mxu0
    %2507 = vdwg.mxu0
    %v2508 = vmul.f32 %v2503, 0.35355338
    %vm2509 = vcmask 27648
    %v2510 = vsel %vm2509, %v2508, -inf
    %2511 = vmax.xlane.f32.xlu0 %v2510
    %v2512 = vpop.xlane.xlu0 %2511
    %v2513 = vsub.f32 %v2508, %v2512
    %v2514 = vmul.f32 %v2513, 1.442695
    %v2515 = vpow.pop %v2514
    %v2516 = vsel %vm2509, %v2515, 0.0
    %2517 = vadd.xlane.f32.xlu0 %v2516
    %v2518 = vpop.xlane.xlu0 %2517
    %v2519 = vrcp.pop %v2518
    %v2520 = vmul.f32 %v2515, %v2519
    %v2521 = vpack.c.bf16 %v2520, %v2520
    %2522 = vrot.lane.b32.xlu0 %v2458, 64
    %v2523 = vpop.permute.xlu0 %2522
    %vm2524 = vcmask 31744
    %v2526 = vsel %vm2524, %v2521, 0
    %v2529 = vsel %vm646, %v2523, 0
    %2531 = vmatprep.subr.bf16.mxu0 0
    %2532 = vmatpush1.bf16.msra.mxu0 %v2529
    %2533 = vmatprep.subr.bf16.mxu0 0
    %2534 = vmatpush1.bf16.msra.mxu0 0
    %2535 = vmatprep.subr.bf16.mxu0 0
    %2536 = vmatpush1.bf16.msra.mxu0 0
    %2537 = vmatprep.subr.bf16.mxu0 0
    %2538 = vmatpush1.bf16.msra.mxu0 0
    %2539 = vmatprep.subr.bf16.mxu0 0
    %2540 = vmatpush1.bf16.msra.mxu0 0
    %2541 = vmatprep.subr.bf16.mxu0 0
    %2542 = vmatpush1.bf16.msra.mxu0 0
    %2543 = vmatprep.subr.bf16.mxu0 0
    %2544 = vmatpush1.bf16.msra.mxu0 0
    %2545 = vmatprep.subr.bf16.mxu0 0
    %2546 = vmatpush1.bf16.msra.mxu0 0
    %2547 = vmatprep.subr.bf16.mxu0 0
    %2548 = vmatpush1.bf16.msra.mxu0 0
    %2549 = vmatprep.subr.bf16.mxu0 0
    %2550 = vmatpush1.bf16.msra.mxu0 0
    %2551 = vmatprep.subr.bf16.mxu0 0
    %2552 = vmatpush1.bf16.msra.mxu0 0
    %2553 = vmatprep.subr.bf16.mxu0 0
    %2554 = vmatpush1.bf16.msra.mxu0 0
    %2555 = vmatprep.subr.bf16.mxu0 0
    %2556 = vmatpush1.bf16.msra.mxu0 0
    %2557 = vmatprep.subr.bf16.mxu0 0
    %2558 = vmatpush1.bf16.msra.mxu0 0
    %2559 = vmatprep.subr.bf16.mxu0 0
    %2560 = vmatpush1.bf16.msra.mxu0 0
    %2561 = vmatprep.subr.bf16.mxu0 0
    %2562 = vmatpush1.bf16.msra.mxu0 0
    %2563 = vmatprep.mubr.bf16.mxu0 0
    %2564 = vmatmul.mubr.bf16.gmra.mrb[0].mxu0 %v2526
    %v2565 = vpop.f32.mrb[0].mxu0
    %v2566 = vadd.f32 0.0, %v2565
    %v2567 = vpop.f32.mrb[0].mxu0
    %v2568 = vpop.f32.mrb[0].mxu0
    %v2569 = vpop.f32.mrb[0].mxu0
    %2570 = vdwg.mxu0
    %2571 = vrot.lane.b32.xlu0 %v2458, 120
    %v2572 = vpop.permute.xlu0 %2571
    %2573 = vrot.lane.b32.xlu0 %v2458, 88
    %v2574 = vpop.permute.xlu0 %2573
    %v2576 = vsel %vm579, %v2572, 0
    %v2579 = vsel %vm579, %v2574, 0
    %2581 = vmatprep.subr.bf16.mxu0 0
    %2582 = vmatpush1.bf16.xpose.msra.mxu0 %v2579
    %2583 = vmatprep.subr.bf16.mxu0 0
    %2584 = vmatpush1.bf16.xpose.msra.mxu0 0
    %2585 = vmatprep.subr.bf16.mxu0 0
    %2586 = vmatpush1.bf16.xpose.msra.mxu0 0
    %2587 = vmatprep.subr.bf16.mxu0 0
    %2588 = vmatpush1.bf16.xpose.msra.mxu0 0
    %2589 = vmatprep.subr.bf16.mxu0 0
    %2590 = vmatpush1.bf16.xpose.msra.mxu0 0
    %2591 = vmatprep.subr.bf16.mxu0 0
    %2592 = vmatpush1.bf16.xpose.msra.mxu0 0
    %2593 = vmatprep.subr.bf16.mxu0 0
    %2594 = vmatpush1.bf16.xpose.msra.mxu0 0
    %2595 = vmatprep.subr.bf16.mxu0 0
    %2596 = vmatpush1.bf16.xpose.msra.mxu0 0
    %2597 = vmatprep.subr.bf16.mxu0 0
    %2598 = vmatpush1.bf16.xpose.msra.mxu0 0
    %2599 = vmatprep.subr.bf16.mxu0 0
    %2600 = vmatpush1.bf16.xpose.msra.mxu0 0
    %2601 = vmatprep.subr.bf16.mxu0 0
    %2602 = vmatpush1.bf16.xpose.msra.mxu0 0
    %2603 = vmatprep.subr.bf16.mxu0 0
    %2604 = vmatpush1.bf16.xpose.msra.mxu0 0
    %2605 = vmatprep.subr.bf16.mxu0 0
    %2606 = vmatpush1.bf16.xpose.msra.mxu0 0
    %2607 = vmatprep.subr.bf16.mxu0 0
    %2608 = vmatpush1.bf16.xpose.msra.mxu0 0
    %2609 = vmatprep.subr.bf16.mxu0 0
    %2610 = vmatpush1.bf16.xpose.msra.mxu0 0
    %2611 = vmatprep.subr.bf16.mxu0 0
    %2612 = vmatpush1.bf16.xpose.msra.mxu0 0
    %2613 = vmatprep.mubr.bf16.mxu0 0
    %2614 = vmatmul.mubr.bf16.gmra.mrb[0].mxu0 %v2576
    %v2615 = vpop.f32.mrb[0].mxu0
    %v2616 = vadd.f32 0.0, %v2615
    %v2617 = vpop.f32.mrb[0].mxu0
    %v2618 = vpop.f32.mrb[0].mxu0
    %v2619 = vpop.f32.mrb[0].mxu0
    %2620 = vdwg.mxu0
    %v2621 = vmul.f32 %v2616, 0.35355338
    %v2622 = vsel %vm2509, %v2621, -inf
    %2623 = vmax.xlane.f32.xlu0 %v2622
    %v2624 = vpop.xlane.xlu0 %2623
    %v2625 = vsub.f32 %v2621, %v2624
    %v2626 = vmul.f32 %v2625, 1.442695
    %v2627 = vpow.pop %v2626
    %v2628 = vsel %vm2509, %v2627, 0.0
    %2629 = vadd.xlane.f32.xlu0 %v2628
    %v2630 = vpop.xlane.xlu0 %2629
    %v2631 = vrcp.pop %v2630
    %v2632 = vmul.f32 %v2627, %v2631
    %v2633 = vpack.c.bf16 %v2632, %v2632
    %2634 = vrot.lane.b32.xlu0 %v2458, 56
    %v2635 = vpop.permute.xlu0 %2634
    %v2637 = vsel %vm2524, %v2633, 0
    %v2640 = vsel %vm646, %v2635, 0
    %2642 = vmatprep.subr.bf16.mxu0 0
    %2643 = vmatpush1.bf16.msra.mxu0 %v2640
    %2644 = vmatprep.subr.bf16.mxu0 0
    %2645 = vmatpush1.bf16.msra.mxu0 0
    %2646 = vmatprep.subr.bf16.mxu0 0
    %2647 = vmatpush1.bf16.msra.mxu0 0
    %2648 = vmatprep.subr.bf16.mxu0 0
    %2649 = vmatpush1.bf16.msra.mxu0 0
    %2650 = vmatprep.subr.bf16.mxu0 0
    %2651 = vmatpush1.bf16.msra.mxu0 0
    %2652 = vmatprep.subr.bf16.mxu0 0
    %2653 = vmatpush1.bf16.msra.mxu0 0
    %2654 = vmatprep.subr.bf16.mxu0 0
    %2655 = vmatpush1.bf16.msra.mxu0 0
    %2656 = vmatprep.subr.bf16.mxu0 0
    %2657 = vmatpush1.bf16.msra.mxu0 0
    %2658 = vmatprep.subr.bf16.mxu0 0
    %2659 = vmatpush1.bf16.msra.mxu0 0
    %2660 = vmatprep.subr.bf16.mxu0 0
    %2661 = vmatpush1.bf16.msra.mxu0 0
    %2662 = vmatprep.subr.bf16.mxu0 0
    %2663 = vmatpush1.bf16.msra.mxu0 0
    %2664 = vmatprep.subr.bf16.mxu0 0
    %2665 = vmatpush1.bf16.msra.mxu0 0
    %2666 = vmatprep.subr.bf16.mxu0 0
    %2667 = vmatpush1.bf16.msra.mxu0 0
    %2668 = vmatprep.subr.bf16.mxu0 0
    %2669 = vmatpush1.bf16.msra.mxu0 0
    %2670 = vmatprep.subr.bf16.mxu0 0
    %2671 = vmatpush1.bf16.msra.mxu0 0
    %2672 = vmatprep.subr.bf16.mxu0 0
    %2673 = vmatpush1.bf16.msra.mxu0 0
    %2674 = vmatprep.mubr.bf16.mxu0 0
    %2675 = vmatmul.mubr.bf16.gmra.mrb[0].mxu0 %v2637
    %v2676 = vpop.f32.mrb[0].mxu0
    %v2677 = vadd.f32 0.0, %v2676
    %v2678 = vpop.f32.mrb[0].mxu0
    %v2679 = vpop.f32.mrb[0].mxu0
    %v2680 = vpop.f32.mrb[0].mxu0
    %2681 = vdwg.mxu0
    %2682 = vrot.lane.b32.xlu0 %v2458, 112
    %v2683 = vpop.permute.xlu0 %2682
    %2684 = vrot.lane.b32.xlu0 %v2458, 80
    %v2685 = vpop.permute.xlu0 %2684
    %v2687 = vsel %vm579, %v2683, 0
    %v2690 = vsel %vm579, %v2685, 0
    %2692 = vmatprep.subr.bf16.mxu0 0
    %2693 = vmatpush1.bf16.xpose.msra.mxu0 %v2690
    %2694 = vmatprep.subr.bf16.mxu0 0
    %2695 = vmatpush1.bf16.xpose.msra.mxu0 0
    %2696 = vmatprep.subr.bf16.mxu0 0
    %2697 = vmatpush1.bf16.xpose.msra.mxu0 0
    %2698 = vmatprep.subr.bf16.mxu0 0
    %2699 = vmatpush1.bf16.xpose.msra.mxu0 0
    %2700 = vmatprep.subr.bf16.mxu0 0
    %2701 = vmatpush1.bf16.xpose.msra.mxu0 0
    %2702 = vmatprep.subr.bf16.mxu0 0
    %2703 = vmatpush1.bf16.xpose.msra.mxu0 0
    %2704 = vmatprep.subr.bf16.mxu0 0
    %2705 = vmatpush1.bf16.xpose.msra.mxu0 0
    %2706 = vmatprep.subr.bf16.mxu0 0
    %2707 = vmatpush1.bf16.xpose.msra.mxu0 0
    %2708 = vmatprep.subr.bf16.mxu0 0
    %2709 = vmatpush1.bf16.xpose.msra.mxu0 0
    %2710 = vmatprep.subr.bf16.mxu0 0
    %2711 = vmatpush1.bf16.xpose.msra.mxu0 0
    %2712 = vmatprep.subr.bf16.mxu0 0
    %2713 = vmatpush1.bf16.xpose.msra.mxu0 0
    %2714 = vmatprep.subr.bf16.mxu0 0
    %2715 = vmatpush1.bf16.xpose.msra.mxu0 0
    %2716 = vmatprep.subr.bf16.mxu0 0
    %2717 = vmatpush1.bf16.xpose.msra.mxu0 0
    %2718 = vmatprep.subr.bf16.mxu0 0
    %2719 = vmatpush1.bf16.xpose.msra.mxu0 0
    %2720 = vmatprep.subr.bf16.mxu0 0
    %2721 = vmatpush1.bf16.xpose.msra.mxu0 0
    %2722 = vmatprep.subr.bf16.mxu0 0
    %2723 = vmatpush1.bf16.xpose.msra.mxu0 0
    %2724 = vmatprep.mubr.bf16.mxu0 0
    %2725 = vmatmul.mubr.bf16.gmra.mrb[0].mxu0 %v2687
    %v2726 = vpop.f32.mrb[0].mxu0
    %v2727 = vadd.f32 0.0, %v2726
    %v2728 = vpop.f32.mrb[0].mxu0
    %v2729 = vpop.f32.mrb[0].mxu0
    %v2730 = vpop.f32.mrb[0].mxu0
    %2731 = vdwg.mxu0
    %v2732 = vmul.f32 %v2727, 0.35355338
    %v2733 = vsel %vm2509, %v2732, -inf
    %2734 = vmax.xlane.f32.xlu0 %v2733
    %v2735 = vpop.xlane.xlu0 %2734
    %v2736 = vsub.f32 %v2732, %v2735
    %v2737 = vmul.f32 %v2736, 1.442695
    %v2738 = vpow.pop %v2737
    %v2739 = vsel %vm2509, %v2738, 0.0
    %2740 = vadd.xlane.f32.xlu0 %v2739
    %v2741 = vpop.xlane.xlu0 %2740
    %v2742 = vrcp.pop %v2741
    %v2743 = vmul.f32 %v2738, %v2742
    %v2744 = vpack.c.bf16 %v2743, %v2743
    %2745 = vrot.lane.b32.xlu0 %v2458, 48
    %v2746 = vpop.permute.xlu0 %2745
    %v2748 = vsel %vm2524, %v2744, 0
    %v2751 = vsel %vm646, %v2746, 0
    %2753 = vmatprep.subr.bf16.mxu0 0
    %2754 = vmatpush1.bf16.msra.mxu0 %v2751
    %2755 = vmatprep.subr.bf16.mxu0 0
    %2756 = vmatpush1.bf16.msra.mxu0 0
    %2757 = vmatprep.subr.bf16.mxu0 0
    %2758 = vmatpush1.bf16.msra.mxu0 0
    %2759 = vmatprep.subr.bf16.mxu0 0
    %2760 = vmatpush1.bf16.msra.mxu0 0
    %2761 = vmatprep.subr.bf16.mxu0 0
    %2762 = vmatpush1.bf16.msra.mxu0 0
    %2763 = vmatprep.subr.bf16.mxu0 0
    %2764 = vmatpush1.bf16.msra.mxu0 0
    %2765 = vmatprep.subr.bf16.mxu0 0
    %2766 = vmatpush1.bf16.msra.mxu0 0
    %2767 = vmatprep.subr.bf16.mxu0 0
    %2768 = vmatpush1.bf16.msra.mxu0 0
    %2769 = vmatprep.subr.bf16.mxu0 0
    %2770 = vmatpush1.bf16.msra.mxu0 0
    %2771 = vmatprep.subr.bf16.mxu0 0
    %2772 = vmatpush1.bf16.msra.mxu0 0
    %2773 = vmatprep.subr.bf16.mxu0 0
    %2774 = vmatpush1.bf16.msra.mxu0 0
    %2775 = vmatprep.subr.bf16.mxu0 0
    %2776 = vmatpush1.bf16.msra.mxu0 0
    %2777 = vmatprep.subr.bf16.mxu0 0
    %2778 = vmatpush1.bf16.msra.mxu0 0
    %2779 = vmatprep.subr.bf16.mxu0 0
    %2780 = vmatpush1.bf16.msra.mxu0 0
    %2781 = vmatprep.subr.bf16.mxu0 0
    %2782 = vmatpush1.bf16.msra.mxu0 0
    %2783 = vmatprep.subr.bf16.mxu0 0
    %2784 = vmatpush1.bf16.msra.mxu0 0
    %2785 = vmatprep.mubr.bf16.mxu0 0
    %2786 = vmatmul.mubr.bf16.gmra.mrb[0].mxu0 %v2748
    %v2787 = vpop.f32.mrb[0].mxu0
    %v2788 = vadd.f32 0.0, %v2787
    %v2789 = vpop.f32.mrb[0].mxu0
    %v2790 = vpop.f32.mrb[0].mxu0
    %v2791 = vpop.f32.mrb[0].mxu0
    %2792 = vdwg.mxu0
    %2793 = vrot.lane.b32.xlu0 %v2458, 104
    %v2794 = vpop.permute.xlu0 %2793
    %2795 = vrot.lane.b32.xlu0 %v2458, 72
    %v2796 = vpop.permute.xlu0 %2795
    %v2798 = vsel %vm579, %v2794, 0
    %v2801 = vsel %vm579, %v2796, 0
    %2803 = vmatprep.subr.bf16.mxu0 0
    %2804 = vmatpush1.bf16.xpose.msra.mxu0 %v2801
    %2805 = vmatprep.subr.bf16.mxu0 0
    %2806 = vmatpush1.bf16.xpose.msra.mxu0 0
    %2807 = vmatprep.subr.bf16.mxu0 0
    %2808 = vmatpush1.bf16.xpose.msra.mxu0 0
    %2809 = vmatprep.subr.bf16.mxu0 0
    %2810 = vmatpush1.bf16.xpose.msra.mxu0 0
    %2811 = vmatprep.subr.bf16.mxu0 0
    %2812 = vmatpush1.bf16.xpose.msra.mxu0 0
    %2813 = vmatprep.subr.bf16.mxu0 0
    %2814 = vmatpush1.bf16.xpose.msra.mxu0 0
    %2815 = vmatprep.subr.bf16.mxu0 0
    %2816 = vmatpush1.bf16.xpose.msra.mxu0 0
    %2817 = vmatprep.subr.bf16.mxu0 0
    %2818 = vmatpush1.bf16.xpose.msra.mxu0 0
    %2819 = vmatprep.subr.bf16.mxu0 0
    %2820 = vmatpush1.bf16.xpose.msra.mxu0 0
    %2821 = vmatprep.subr.bf16.mxu0 0
    %2822 = vmatpush1.bf16.xpose.msra.mxu0 0
    %2823 = vmatprep.subr.bf16.mxu0 0
    %2824 = vmatpush1.bf16.xpose.msra.mxu0 0
    %2825 = vmatprep.subr.bf16.mxu0 0
    %2826 = vmatpush1.bf16.xpose.msra.mxu0 0
    %2827 = vmatprep.subr.bf16.mxu0 0
    %2828 = vmatpush1.bf16.xpose.msra.mxu0 0
    %2829 = vmatprep.subr.bf16.mxu0 0
    %2830 = vmatpush1.bf16.xpose.msra.mxu0 0
    %2831 = vmatprep.subr.bf16.mxu0 0
    %2832 = vmatpush1.bf16.xpose.msra.mxu0 0
    %2833 = vmatprep.subr.bf16.mxu0 0
    %2834 = vmatpush1.bf16.xpose.msra.mxu0 0
    %2835 = vmatprep.mubr.bf16.mxu0 0
    %2836 = vmatmul.mubr.bf16.gmra.mrb[0].mxu0 %v2798
    %v2837 = vpop.f32.mrb[0].mxu0
    %v2838 = vadd.f32 0.0, %v2837
    %v2839 = vpop.f32.mrb[0].mxu0
    %v2840 = vpop.f32.mrb[0].mxu0
    %v2841 = vpop.f32.mrb[0].mxu0
    %2842 = vdwg.mxu0
    %v2843 = vmul.f32 %v2838, 0.35355338
    %v2844 = vsel %vm2509, %v2843, -inf
    %2845 = vmax.xlane.f32.xlu0 %v2844
    %v2846 = vpop.xlane.xlu0 %2845
    %v2847 = vsub.f32 %v2843, %v2846
    %v2848 = vmul.f32 %v2847, 1.442695
    %v2849 = vpow.pop %v2848
    %v2850 = vsel %vm2509, %v2849, 0.0
    %2851 = vadd.xlane.f32.xlu0 %v2850
    %v2852 = vpop.xlane.xlu0 %2851
    %v2853 = vrcp.pop %v2852
    %v2854 = vmul.f32 %v2849, %v2853
    %v2855 = vpack.c.bf16 %v2854, %v2854
    %2856 = vrot.lane.b32.xlu0 %v2458, 40
    %v2857 = vpop.permute.xlu0 %2856
    %v2859 = vsel %vm2524, %v2855, 0
    %v2862 = vsel %vm646, %v2857, 0
    %2864 = vmatprep.subr.bf16.mxu0 0
    %2865 = vmatpush1.bf16.msra.mxu0 %v2862
    %2866 = vmatprep.subr.bf16.mxu0 0
    %2867 = vmatpush1.bf16.msra.mxu0 0
    %2868 = vmatprep.subr.bf16.mxu0 0
    %2869 = vmatpush1.bf16.msra.mxu0 0
    %2870 = vmatprep.subr.bf16.mxu0 0
    %2871 = vmatpush1.bf16.msra.mxu0 0
    %2872 = vmatprep.subr.bf16.mxu0 0
    %2873 = vmatpush1.bf16.msra.mxu0 0
    %2874 = vmatprep.subr.bf16.mxu0 0
    %2875 = vmatpush1.bf16.msra.mxu0 0
    %2876 = vmatprep.subr.bf16.mxu0 0
    %2877 = vmatpush1.bf16.msra.mxu0 0
    %2878 = vmatprep.subr.bf16.mxu0 0
    %2879 = vmatpush1.bf16.msra.mxu0 0
    %2880 = vmatprep.subr.bf16.mxu0 0
    %2881 = vmatpush1.bf16.msra.mxu0 0
    %2882 = vmatprep.subr.bf16.mxu0 0
    %2883 = vmatpush1.bf16.msra.mxu0 0
    %2884 = vmatprep.subr.bf16.mxu0 0
    %2885 = vmatpush1.bf16.msra.mxu0 0
    %2886 = vmatprep.subr.bf16.mxu0 0
    %2887 = vmatpush1.bf16.msra.mxu0 0
    %2888 = vmatprep.subr.bf16.mxu0 0
    %2889 = vmatpush1.bf16.msra.mxu0 0
    %2890 = vmatprep.subr.bf16.mxu0 0
    %2891 = vmatpush1.bf16.msra.mxu0 0
    %2892 = vmatprep.subr.bf16.mxu0 0
    %2893 = vmatpush1.bf16.msra.mxu0 0
    %2894 = vmatprep.subr.bf16.mxu0 0
    %2895 = vmatpush1.bf16.msra.mxu0 0
    %2896 = vmatprep.mubr.bf16.mxu0 0
    %2897 = vmatmul.mubr.bf16.gmra.mrb[0].mxu0 %v2859
    %v2898 = vpop.f32.mrb[0].mxu0
    %v2899 = vadd.f32 0.0, %v2898
    %v2900 = vpop.f32.mrb[0].mxu0
    %v2901 = vpop.f32.mrb[0].mxu0
    %v2902 = vpop.f32.mrb[0].mxu0
    %2903 = vdwg.mxu0
    %2905 = vrot.lane.b32.xlu0 %v2677, 8
    %v2906 = vpop.permute.xlu0 %2905
    %2909 = vrot.lane.b32.xlu0 %v2788, 16
    %v2910 = vpop.permute.xlu0 %2909
    %2913 = vrot.lane.b32.xlu0 %v2899, 24
    %v2914 = vpop.permute.xlu0 %2913
    %v2916 = vsel %vm579, %v2566, %v2906
    %v2917 = vsel %vm1039, %v2916, %v2910
    %v2918 = vsel %vm1041, %v2917, %v2914
    %v2919 = vpack.c.bf16 %v2918, %v2918
    %v2920 = vld [vmem:[%s89] sm:$0xf]
    %v2921 = vld [vmem:[%s89 + $0x4] sm:$0xf]
    %v2922 = vld [vmem:[%s89 + $0x8] sm:$0xf]
    %v2923 = vld [vmem:[%s89 + $0xc] sm:$0xf]
    %v2924 = vld [vmem:[%s73] sm:$0x1]
    %v2926 = vlaneseq
    %v2927 = vshrl.u32 %v2926, 7
    %v2928 = vsub.s32 0, %v2927
    %v2929 = vrot.slane %v2924, %v2928
    %v2935 = vunpack.c.l.b16 %v2920
    %v2936 = vunpack.c.l.b16 %v2921
    %v2937 = vunpack.c.l.b16 %v2922
    %v2938 = vunpack.c.l.b16 %v2923
    %v2939 = vpack.c.b16 %v2936, %v2935
    %v2940 = vpack.c.b16 %v2938, %v2937
    %v2944 = vsel %vm531, %v2919, 0
    %2946 = vmatprep.subr.bf16.mxu0 0
    %2947 = vmatpush1.bf16.msra.mxu0 %v2939
    %2948 = vmatprep.subr.bf16.mxu0 0
    %2949 = vmatpush1.bf16.msra.mxu0 %v2940
    %2950 = vmatprep.subr.bf16.mxu0 0
    %2951 = vmatpush1.bf16.msra.mxu0 0
    %2952 = vmatprep.subr.bf16.mxu0 0
    %2953 = vmatpush1.bf16.msra.mxu0 0
    %2954 = vmatprep.subr.bf16.mxu0 0
    %2955 = vmatpush1.bf16.msra.mxu0 0
    %2956 = vmatprep.subr.bf16.mxu0 0
    %2957 = vmatpush1.bf16.msra.mxu0 0
    %2958 = vmatprep.subr.bf16.mxu0 0
    %2959 = vmatpush1.bf16.msra.mxu0 0
    %2960 = vmatprep.subr.bf16.mxu0 0
    %2961 = vmatpush1.bf16.msra.mxu0 0
    %2962 = vmatprep.subr.bf16.mxu0 0
    %2963 = vmatpush1.bf16.msra.mxu0 0
    %2964 = vmatprep.subr.bf16.mxu0 0
    %2965 = vmatpush1.bf16.msra.mxu0 0
    %2966 = vmatprep.subr.bf16.mxu0 0
    %2967 = vmatpush1.bf16.msra.mxu0 0
    %2968 = vmatprep.subr.bf16.mxu0 0
    %2969 = vmatpush1.bf16.msra.mxu0 0
    %2970 = vmatprep.subr.bf16.mxu0 0
    %2971 = vmatpush1.bf16.msra.mxu0 0
    %2972 = vmatprep.subr.bf16.mxu0 0
    %2973 = vmatpush1.bf16.msra.mxu0 0
    %2974 = vmatprep.subr.bf16.mxu0 0
    %2975 = vmatpush1.bf16.msra.mxu0 0
    %2976 = vmatprep.subr.bf16.mxu0 0
    %2977 = vmatpush1.bf16.msra.mxu0 0
    %2978 = vmatprep.mubr.bf16.mxu0 0
    %2979 = vmatmul.mubr.bf16.gmra.mrb[0].mxu0 %v2944
    %v2980 = vpop.f32.mrb[0].mxu0
    %v2981 = vadd.f32 %v2929, %v2980
    %v2982 = vpop.f32.mrb[0].mxu0
    %v2983 = vpop.f32.mrb[0].mxu0
    %v2984 = vpop.f32.mrb[0].mxu0
    %2985 = vdwg.mxu0
    %v2986 = vadd.f32 %v2360, %v2981
    %v2987 = vsel %vm2361, %v2986, 0.0
    %2988 = vadd.xlane.f32.xlu0 %v2987
    %v2989 = vpop.xlane.xlu0 %2988
    %v2990 = vmul.f32 %v2989, %v480
    %v2991 = vsub.f32 %v2986, %v2990
    %v2992 = vmul.f32 %v2991, %v2991
    %v2993 = vsel %vm2361, %v2992, 0.0
    %2994 = vadd.xlane.f32.xlu0 %v2993
    %v2995 = vpop.xlane.xlu0 %2994
    %v2996 = vmul.f32 %v2995, %v480
    %v2997 = vadd.f32 %v2996, 1e-06
    %v2998 = vrsqrt.pop %v2997
    %v2999 = vmul.f32 %v2991, %v2998
    %v3000 = vld [vmem:[%s83] sm:$0x1]
    %v3002 = vlaneseq
    %v3003 = vshrl.u32 %v3002, 7
    %v3004 = vsub.s32 0, %v3003
    %v3005 = vrot.slane %v3000, %v3004
    %v3007 = vmul.f32 %v2999, %v3005
    %v3008 = vld [vmem:[%s81] sm:$0x1]
    %v3010 = vlaneseq
    %v3011 = vshrl.u32 %v3010, 7
    %v3012 = vsub.s32 0, %v3011
    %v3013 = vrot.slane %v3008, %v3012
    %v3015 = vadd.f32 %v3007, %v3013
    %v3016 = vpack.c.bf16 %v3015, %v3015
    %v3017 = vld [vmem:[%s85] sm:$0xf]
    %v3018 = vld [vmem:[%s85 + $0x4] sm:$0xf]
    %v3019 = vld [vmem:[%s85 + $0x8] sm:$0xf]
    %v3020 = vld [vmem:[%s85 + $0xc] sm:$0xf]
    %v3021 = vld [vmem:[%s69] sm:$0x1]
    %v3023 = vlaneseq
    %v3024 = vshrl.u32 %v3023, 7
    %v3025 = vsub.s32 0, %v3024
    %v3026 = vrot.slane %v3021, %v3025
    %v3032 = vunpack.c.l.b16 %v3017
    %v3033 = vunpack.c.l.b16 %v3018
    %v3034 = vunpack.c.l.b16 %v3019
    %v3035 = vunpack.c.l.b16 %v3020
    %v3036 = vpack.c.b16 %v3033, %v3032
    %v3037 = vpack.c.b16 %v3035, %v3034
    %v3041 = vsel %vm531, %v3016, 0
    %3043 = vmatprep.subr.bf16.mxu0 0
    %3044 = vmatpush1.bf16.msra.mxu0 %v3036
    %3045 = vmatprep.subr.bf16.mxu0 0
    %3046 = vmatpush1.bf16.msra.mxu0 %v3037
    %3047 = vmatprep.subr.bf16.mxu0 0
    %3048 = vmatpush1.bf16.msra.mxu0 0
    %3049 = vmatprep.subr.bf16.mxu0 0
    %3050 = vmatpush1.bf16.msra.mxu0 0
    %3051 = vmatprep.subr.bf16.mxu0 0
    %3052 = vmatpush1.bf16.msra.mxu0 0
    %3053 = vmatprep.subr.bf16.mxu0 0
    %3054 = vmatpush1.bf16.msra.mxu0 0
    %3055 = vmatprep.subr.bf16.mxu0 0
    %3056 = vmatpush1.bf16.msra.mxu0 0
    %3057 = vmatprep.subr.bf16.mxu0 0
    %3058 = vmatpush1.bf16.msra.mxu0 0
    %3059 = vmatprep.subr.bf16.mxu0 0
    %3060 = vmatpush1.bf16.msra.mxu0 0
    %3061 = vmatprep.subr.bf16.mxu0 0
    %3062 = vmatpush1.bf16.msra.mxu0 0
    %3063 = vmatprep.subr.bf16.mxu0 0
    %3064 = vmatpush1.bf16.msra.mxu0 0
    %3065 = vmatprep.subr.bf16.mxu0 0
    %3066 = vmatpush1.bf16.msra.mxu0 0
    %3067 = vmatprep.subr.bf16.mxu0 0
    %3068 = vmatpush1.bf16.msra.mxu0 0
    %3069 = vmatprep.subr.bf16.mxu0 0
    %3070 = vmatpush1.bf16.msra.mxu0 0
    %3071 = vmatprep.subr.bf16.mxu0 0
    %3072 = vmatpush1.bf16.msra.mxu0 0
    %3073 = vmatprep.subr.bf16.mxu0 0
    %3074 = vmatpush1.bf16.msra.mxu0 0
    %3075 = vmatprep.mubr.bf16.mxu0 0
    %3076 = vmatmul.mubr.bf16.gmra.mrb[0].mxu0 %v3041
    %v3077 = vpop.f32.mrb[0].mxu0
    %v3078 = vadd.f32 %v3026, %v3077
    %v3079 = vpop.f32.mrb[0].mxu0
    %v3080 = vpop.f32.mrb[0].mxu0
    %v3081 = vpop.f32.mrb[0].mxu0
    %3082 = vdwg.mxu0
    %v3083 = vmul.f32 %v3078, %v3078
    %v3084 = vmul.f32 %v3078, %v3083
    %v3085 = vmul.f32 %v3084, 0.044715
    %v3086 = vadd.f32 %v3078, %v3085
    %v3087 = vmul.f32 %v3086, 0.7978846
    %v3088 = vtanh.pop %v3087
    %v3089 = vadd.f32 %v3088, 1.0
    %v3090 = vmul.f32 %v3089, 0.5
    %v3091 = vmul.f32 %v3078, %v3090
    %v3092 = vpack.c.bf16 %v3091, %v3091
    %v3093 = vld [vmem:[%s87] sm:$0xf]
    %v3094 = vld [vmem:[%s87 + $0x4] sm:$0xf]
    %v3095 = vld [vmem:[%s87 + $0x8] sm:$0xf]
    %v3096 = vld [vmem:[%s87 + $0xc] sm:$0xf]
    %v3097 = vld [vmem:[%s87 + $0x10] sm:$0xf]
    %v3098 = vld [vmem:[%s87 + $0x14] sm:$0xf]
    %v3099 = vld [vmem:[%s87 + $0x18] sm:$0xf]
    %v3100 = vld [vmem:[%s87 + $0x1c] sm:$0xf]
    %v3101 = vld [vmem:[%s87 + $0x20] sm:$0xf]
    %v3102 = vld [vmem:[%s87 + $0x24] sm:$0xf]
    %v3103 = vld [vmem:[%s87 + $0x28] sm:$0xf]
    %v3104 = vld [vmem:[%s87 + $0x2c] sm:$0xf]
    %v3105 = vld [vmem:[%s87 + $0x30] sm:$0xf]
    %v3106 = vld [vmem:[%s87 + $0x34] sm:$0xf]
    %v3107 = vld [vmem:[%s87 + $0x38] sm:$0xf]
    %v3108 = vld [vmem:[%s87 + $0x3c] sm:$0xf]
    %v3109 = vld [vmem:[%s71] sm:$0x1]
    %v3111 = vlaneseq
    %v3112 = vshrl.u32 %v3111, 7
    %v3113 = vsub.s32 0, %v3112
    %v3114 = vrot.slane %v3109, %v3113
    %v3132 = vunpack.c.l.b16 %v3093
    %v3133 = vunpack.c.l.b16 %v3094
    %v3134 = vunpack.c.l.b16 %v3095
    %v3135 = vunpack.c.l.b16 %v3096
    %v3136 = vunpack.c.l.b16 %v3097
    %v3137 = vunpack.c.l.b16 %v3098
    %v3138 = vunpack.c.l.b16 %v3099
    %v3139 = vunpack.c.l.b16 %v3100
    %v3140 = vunpack.c.l.b16 %v3101
    %v3141 = vunpack.c.l.b16 %v3102
    %v3142 = vunpack.c.l.b16 %v3103
    %v3143 = vunpack.c.l.b16 %v3104
    %v3144 = vunpack.c.l.b16 %v3105
    %v3145 = vunpack.c.l.b16 %v3106
    %v3146 = vunpack.c.l.b16 %v3107
    %v3147 = vunpack.c.l.b16 %v3108
    %v3148 = vpack.c.b16 %v3133, %v3132
    %v3149 = vpack.c.b16 %v3135, %v3134
    %v3150 = vpack.c.b16 %v3137, %v3136
    %v3151 = vpack.c.b16 %v3139, %v3138
    %v3152 = vpack.c.b16 %v3141, %v3140
    %v3153 = vpack.c.b16 %v3143, %v3142
    %v3154 = vpack.c.b16 %v3145, %v3144
    %v3155 = vpack.c.b16 %v3147, %v3146
    %3164 = vmatprep.subr.bf16.mxu0 0
    %3165 = vmatpush1.bf16.msra.mxu0 %v3148
    %3166 = vmatprep.subr.bf16.mxu0 0
    %3167 = vmatpush1.bf16.msra.mxu0 %v3149
    %3168 = vmatprep.subr.bf16.mxu0 0
    %3169 = vmatpush1.bf16.msra.mxu0 %v3150
    %3170 = vmatprep.subr.bf16.mxu0 0
    %3171 = vmatpush1.bf16.msra.mxu0 %v3151
    %3172 = vmatprep.subr.bf16.mxu0 0
    %3173 = vmatpush1.bf16.msra.mxu0 %v3152
    %3174 = vmatprep.subr.bf16.mxu0 0
    %3175 = vmatpush1.bf16.msra.mxu0 %v3153
    %3176 = vmatprep.subr.bf16.mxu0 0
    %3177 = vmatpush1.bf16.msra.mxu0 %v3154
    %3178 = vmatprep.subr.bf16.mxu0 0
    %3179 = vmatpush1.bf16.msra.mxu0 %v3155
    %3180 = vmatprep.subr.bf16.mxu0 0
    %3181 = vmatpush1.bf16.msra.mxu0 0
    %3182 = vmatprep.subr.bf16.mxu0 0
    %3183 = vmatpush1.bf16.msra.mxu0 0
    %3184 = vmatprep.subr.bf16.mxu0 0
    %3185 = vmatpush1.bf16.msra.mxu0 0
    %3186 = vmatprep.subr.bf16.mxu0 0
    %3187 = vmatpush1.bf16.msra.mxu0 0
    %3188 = vmatprep.subr.bf16.mxu0 0
    %3189 = vmatpush1.bf16.msra.mxu0 0
    %3190 = vmatprep.subr.bf16.mxu0 0
    %3191 = vmatpush1.bf16.msra.mxu0 0
    %3192 = vmatprep.subr.bf16.mxu0 0
    %3193 = vmatpush1.bf16.msra.mxu0 0
    %3194 = vmatprep.subr.bf16.mxu0 0
    %3195 = vmatpush1.bf16.msra.mxu0 0
    %3196 = vmatprep.mubr.bf16.mxu0 0
    %3197 = vmatmul.mubr.bf16.gmra.mrb[0].mxu0 %v3092
    %v3198 = vpop.f32.mrb[0].mxu0
    %v3199 = vadd.f32 %v3114, %v3198
    %v3200 = vpop.f32.mrb[0].mxu0
    %v3201 = vpop.f32.mrb[0].mxu0
    %v3202 = vpop.f32.mrb[0].mxu0
    %3203 = vdwg.mxu0
    %v3204 = vadd.f32 %v2986, %v3199
    %v3205 = vsel %vm2361, %v3204, 0.0
    %3206 = vadd.xlane.f32.xlu0 %v3205
    %v3207 = vpop.xlane.xlu0 %3206
    %v3208 = vmul.f32 %v3207, %v480
    %v3209 = vsub.f32 %v3204, %v3208
    %v3210 = vmul.f32 %v3209, %v3209
    %v3211 = vsel %vm2361, %v3210, 0.0
    %3212 = vadd.xlane.f32.xlu0 %v3211
    %v3213 = vpop.xlane.xlu0 %3212
    %v3214 = vmul.f32 %v3213, %v480
    %v3215 = vadd.f32 %v3214, 1e-06
    %v3216 = vrsqrt.pop %v3215
    %v3217 = vmul.f32 %v3209, %v3216
    %v3218 = vld [vmem:[%s103] sm:$0x1]
    %v3220 = vlaneseq
    %v3221 = vshrl.u32 %v3220, 7
    %v3222 = vsub.s32 0, %v3221
    %v3223 = vrot.slane %v3218, %v3222
    %v3225 = vmul.f32 %v3217, %v3223
    %v3226 = vld [vmem:[%s101] sm:$0x1]
    %v3228 = vlaneseq
    %v3229 = vshrl.u32 %v3228, 7
    %v3230 = vsub.s32 0, %v3229
    %v3231 = vrot.slane %v3226, %v3230
    %v3233 = vadd.f32 %v3225, %v3231
    %v3234 = vpack.c.bf16 %v3233, %v3233
    %v3235 = vld [vmem:[%s115] sm:$0xf]
    %v3236 = vld [vmem:[%s115 + $0x4] sm:$0xf]
    %v3237 = vld [vmem:[%s115 + $0x8] sm:$0xf]
    %v3238 = vld [vmem:[%s115 + $0xc] sm:$0xf]
    %v3239 = vld [vmem:[%s99] sm:$0x1]
    %v3241 = vlaneseq
    %v3242 = vshrl.u32 %v3241, 7
    %v3243 = vsub.s32 0, %v3242
    %v3244 = vrot.slane %v3239, %v3243
    %v3250 = vunpack.c.l.b16 %v3235
    %v3251 = vunpack.c.l.b16 %v3236
    %v3252 = vunpack.c.l.b16 %v3237
    %v3253 = vunpack.c.l.b16 %v3238
    %v3254 = vpack.c.b16 %v3251, %v3250
    %v3255 = vpack.c.b16 %v3253, %v3252
    %v3259 = vsel %vm531, %v3234, 0
    %3261 = vmatprep.subr.bf16.mxu0 0
    %3262 = vmatpush1.bf16.msra.mxu0 %v3254
    %3263 = vmatprep.subr.bf16.mxu0 0
    %3264 = vmatpush1.bf16.msra.mxu0 %v3255
    %3265 = vmatprep.subr.bf16.mxu0 0
    %3266 = vmatpush1.bf16.msra.mxu0 0
    %3267 = vmatprep.subr.bf16.mxu0 0
    %3268 = vmatpush1.bf16.msra.mxu0 0
    %3269 = vmatprep.subr.bf16.mxu0 0
    %3270 = vmatpush1.bf16.msra.mxu0 0
    %3271 = vmatprep.subr.bf16.mxu0 0
    %3272 = vmatpush1.bf16.msra.mxu0 0
    %3273 = vmatprep.subr.bf16.mxu0 0
    %3274 = vmatpush1.bf16.msra.mxu0 0
    %3275 = vmatprep.subr.bf16.mxu0 0
    %3276 = vmatpush1.bf16.msra.mxu0 0
    %3277 = vmatprep.subr.bf16.mxu0 0
    %3278 = vmatpush1.bf16.msra.mxu0 0
    %3279 = vmatprep.subr.bf16.mxu0 0
    %3280 = vmatpush1.bf16.msra.mxu0 0
    %3281 = vmatprep.subr.bf16.mxu0 0
    %3282 = vmatpush1.bf16.msra.mxu0 0
    %3283 = vmatprep.subr.bf16.mxu0 0
    %3284 = vmatpush1.bf16.msra.mxu0 0
    %3285 = vmatprep.subr.bf16.mxu0 0
    %3286 = vmatpush1.bf16.msra.mxu0 0
    %3287 = vmatprep.subr.bf16.mxu0 0
    %3288 = vmatpush1.bf16.msra.mxu0 0
    %3289 = vmatprep.subr.bf16.mxu0 0
    %3290 = vmatpush1.bf16.msra.mxu0 0
    %3291 = vmatprep.subr.bf16.mxu0 0
    %3292 = vmatpush1.bf16.msra.mxu0 0
    %3293 = vmatprep.mubr.bf16.mxu0 0
    %3294 = vmatmul.mubr.bf16.gmra.mrb[0].mxu0 %v3259
    %v3295 = vpop.f32.mrb[0].mxu0
    %v3296 = vadd.f32 %v3244, %v3295
    %v3297 = vpop.f32.mrb[0].mxu0
    %v3298 = vpop.f32.mrb[0].mxu0
    %v3299 = vpop.f32.mrb[0].mxu0
    %3300 = vdwg.mxu0
    %v3301 = vpack.c.bf16 %v3296, %v3296
    %3303 = vrot.lane.b32.xlu0 %v3301, 96
    %v3304 = vpop.permute.xlu0 %3303
    %v3306 = vsel %vm579, %v3301, 0
    %v3309 = vsel %vm579, %v3304, 0
    %3311 = vmatprep.subr.bf16.mxu0 0
    %3312 = vmatpush1.bf16.xpose.msra.mxu0 %v3309
    %3313 = vmatprep.subr.bf16.mxu0 0
    %3314 = vmatpush1.bf16.xpose.msra.mxu0 0
    %3315 = vmatprep.subr.bf16.mxu0 0
    %3316 = vmatpush1.bf16.xpose.msra.mxu0 0
    %3317 = vmatprep.subr.bf16.mxu0 0
    %3318 = vmatpush1.bf16.xpose.msra.mxu0 0
    %3319 = vmatprep.subr.bf16.mxu0 0
    %3320 = vmatpush1.bf16.xpose.msra.mxu0 0
    %3321 = vmatprep.subr.bf16.mxu0 0
    %3322 = vmatpush1.bf16.xpose.msra.mxu0 0
    %3323 = vmatprep.subr.bf16.mxu0 0
    %3324 = vmatpush1.bf16.xpose.msra.mxu0 0
    %3325 = vmatprep.subr.bf16.mxu0 0
    %3326 = vmatpush1.bf16.xpose.msra.mxu0 0
    %3327 = vmatprep.subr.bf16.mxu0 0
    %3328 = vmatpush1.bf16.xpose.msra.mxu0 0
    %3329 = vmatprep.subr.bf16.mxu0 0
    %3330 = vmatpush1.bf16.xpose.msra.mxu0 0
    %3331 = vmatprep.subr.bf16.mxu0 0
    %3332 = vmatpush1.bf16.xpose.msra.mxu0 0
    %3333 = vmatprep.subr.bf16.mxu0 0
    %3334 = vmatpush1.bf16.xpose.msra.mxu0 0
    %3335 = vmatprep.subr.bf16.mxu0 0
    %3336 = vmatpush1.bf16.xpose.msra.mxu0 0
    %3337 = vmatprep.subr.bf16.mxu0 0
    %3338 = vmatpush1.bf16.xpose.msra.mxu0 0
    %3339 = vmatprep.subr.bf16.mxu0 0
    %3340 = vmatpush1.bf16.xpose.msra.mxu0 0
    %3341 = vmatprep.subr.bf16.mxu0 0
    %3342 = vmatpush1.bf16.xpose.msra.mxu0 0
    %3343 = vmatprep.mubr.bf16.mxu0 0
    %3344 = vmatmul.mubr.bf16.gmra.mrb[0].mxu0 %v3306
    %v3345 = vpop.f32.mrb[0].mxu0
    %v3346 = vadd.f32 0.0, %v3345
    %v3347 = vpop.f32.mrb[0].mxu0
    %v3348 = vpop.f32.mrb[0].mxu0
    %v3349 = vpop.f32.mrb[0].mxu0
    %3350 = vdwg.mxu0
    %v3351 = vmul.f32 %v3346, 0.35355338
    %v3352 = vsel %vm2509, %v3351, -inf
    %3353 = vmax.xlane.f32.xlu0 %v3352
    %v3354 = vpop.xlane.xlu0 %3353
    %v3355 = vsub.f32 %v3351, %v3354
    %v3356 = vmul.f32 %v3355, 1.442695
    %v3357 = vpow.pop %v3356
    %v3358 = vsel %vm2509, %v3357, 0.0
    %3359 = vadd.xlane.f32.xlu0 %v3358
    %v3360 = vpop.xlane.xlu0 %3359
    %v3361 = vrcp.pop %v3360
    %v3362 = vmul.f32 %v3357, %v3361
    %v3363 = vpack.c.bf16 %v3362, %v3362
    %3364 = vrot.lane.b32.xlu0 %v3301, 64
    %v3365 = vpop.permute.xlu0 %3364
    %v3367 = vsel %vm2524, %v3363, 0
    %v3370 = vsel %vm646, %v3365, 0
    %3372 = vmatprep.subr.bf16.mxu0 0
    %3373 = vmatpush1.bf16.msra.mxu0 %v3370
    %3374 = vmatprep.subr.bf16.mxu0 0
    %3375 = vmatpush1.bf16.msra.mxu0 0
    %3376 = vmatprep.subr.bf16.mxu0 0
    %3377 = vmatpush1.bf16.msra.mxu0 0
    %3378 = vmatprep.subr.bf16.mxu0 0
    %3379 = vmatpush1.bf16.msra.mxu0 0
    %3380 = vmatprep.subr.bf16.mxu0 0
    %3381 = vmatpush1.bf16.msra.mxu0 0
    %3382 = vmatprep.subr.bf16.mxu0 0
    %3383 = vmatpush1.bf16.msra.mxu0 0
    %3384 = vmatprep.subr.bf16.mxu0 0
    %3385 = vmatpush1.bf16.msra.mxu0 0
    %3386 = vmatprep.subr.bf16.mxu0 0
    %3387 = vmatpush1.bf16.msra.mxu0 0
    %3388 = vmatprep.subr.bf16.mxu0 0
    %3389 = vmatpush1.bf16.msra.mxu0 0
    %3390 = vmatprep.subr.bf16.mxu0 0
    %3391 = vmatpush1.bf16.msra.mxu0 0
    %3392 = vmatprep.subr.bf16.mxu0 0
    %3393 = vmatpush1.bf16.msra.mxu0 0
    %3394 = vmatprep.subr.bf16.mxu0 0
    %3395 = vmatpush1.bf16.msra.mxu0 0
    %3396 = vmatprep.subr.bf16.mxu0 0
    %3397 = vmatpush1.bf16.msra.mxu0 0
    %3398 = vmatprep.subr.bf16.mxu0 0
    %3399 = vmatpush1.bf16.msra.mxu0 0
    %3400 = vmatprep.subr.bf16.mxu0 0
    %3401 = vmatpush1.bf16.msra.mxu0 0
    %3402 = vmatprep.subr.bf16.mxu0 0
    %3403 = vmatpush1.bf16.msra.mxu0 0
    %3404 = vmatprep.mubr.bf16.mxu0 0
    %3405 = vmatmul.mubr.bf16.gmra.mrb[0].mxu0 %v3367
    %v3406 = vpop.f32.mrb[0].mxu0
    %v3407 = vadd.f32 0.0, %v3406
    %v3408 = vpop.f32.mrb[0].mxu0
    %v3409 = vpop.f32.mrb[0].mxu0
    %v3410 = vpop.f32.mrb[0].mxu0
    %3411 = vdwg.mxu0
    %3412 = vrot.lane.b32.xlu0 %v3301, 120
    %v3413 = vpop.permute.xlu0 %3412
    %3414 = vrot.lane.b32.xlu0 %v3301, 88
    %v3415 = vpop.permute.xlu0 %3414
    %v3417 = vsel %vm579, %v3413, 0
    %v3420 = vsel %vm579, %v3415, 0
    %3422 = vmatprep.subr.bf16.mxu0 0
    %3423 = vmatpush1.bf16.xpose.msra.mxu0 %v3420
    %3424 = vmatprep.subr.bf16.mxu0 0
    %3425 = vmatpush1.bf16.xpose.msra.mxu0 0
    %3426 = vmatprep.subr.bf16.mxu0 0
    %3427 = vmatpush1.bf16.xpose.msra.mxu0 0
    %3428 = vmatprep.subr.bf16.mxu0 0
    %3429 = vmatpush1.bf16.xpose.msra.mxu0 0
    %3430 = vmatprep.subr.bf16.mxu0 0
    %3431 = vmatpush1.bf16.xpose.msra.mxu0 0
    %3432 = vmatprep.subr.bf16.mxu0 0
    %3433 = vmatpush1.bf16.xpose.msra.mxu0 0
    %3434 = vmatprep.subr.bf16.mxu0 0
    %3435 = vmatpush1.bf16.xpose.msra.mxu0 0
    %3436 = vmatprep.subr.bf16.mxu0 0
    %3437 = vmatpush1.bf16.xpose.msra.mxu0 0
    %3438 = vmatprep.subr.bf16.mxu0 0
    %3439 = vmatpush1.bf16.xpose.msra.mxu0 0
    %3440 = vmatprep.subr.bf16.mxu0 0
    %3441 = vmatpush1.bf16.xpose.msra.mxu0 0
    %3442 = vmatprep.subr.bf16.mxu0 0
    %3443 = vmatpush1.bf16.xpose.msra.mxu0 0
    %3444 = vmatprep.subr.bf16.mxu0 0
    %3445 = vmatpush1.bf16.xpose.msra.mxu0 0
    %3446 = vmatprep.subr.bf16.mxu0 0
    %3447 = vmatpush1.bf16.xpose.msra.mxu0 0
    %3448 = vmatprep.subr.bf16.mxu0 0
    %3449 = vmatpush1.bf16.xpose.msra.mxu0 0
    %3450 = vmatprep.subr.bf16.mxu0 0
    %3451 = vmatpush1.bf16.xpose.msra.mxu0 0
    %3452 = vmatprep.subr.bf16.mxu0 0
    %3453 = vmatpush1.bf16.xpose.msra.mxu0 0
    %3454 = vmatprep.mubr.bf16.mxu0 0
    %3455 = vmatmul.mubr.bf16.gmra.mrb[0].mxu0 %v3417
    %v3456 = vpop.f32.mrb[0].mxu0
    %v3457 = vadd.f32 0.0, %v3456
    %v3458 = vpop.f32.mrb[0].mxu0
    %v3459 = vpop.f32.mrb[0].mxu0
    %v3460 = vpop.f32.mrb[0].mxu0
    %3461 = vdwg.mxu0
    %v3462 = vmul.f32 %v3457, 0.35355338
    %v3463 = vsel %vm2509, %v3462, -inf
    %3464 = vmax.xlane.f32.xlu0 %v3463
    %v3465 = vpop.xlane.xlu0 %3464
    %v3466 = vsub.f32 %v3462, %v3465
    %v3467 = vmul.f32 %v3466, 1.442695
    %v3468 = vpow.pop %v3467
    %v3469 = vsel %vm2509, %v3468, 0.0
    %3470 = vadd.xlane.f32.xlu0 %v3469
    %v3471 = vpop.xlane.xlu0 %3470
    %v3472 = vrcp.pop %v3471
    %v3473 = vmul.f32 %v3468, %v3472
    %v3474 = vpack.c.bf16 %v3473, %v3473
    %3475 = vrot.lane.b32.xlu0 %v3301, 56
    %v3476 = vpop.permute.xlu0 %3475
    %v3478 = vsel %vm2524, %v3474, 0
    %v3481 = vsel %vm646, %v3476, 0
    %3483 = vmatprep.subr.bf16.mxu0 0
    %3484 = vmatpush1.bf16.msra.mxu0 %v3481
    %3485 = vmatprep.subr.bf16.mxu0 0
    %3486 = vmatpush1.bf16.msra.mxu0 0
    %3487 = vmatprep.subr.bf16.mxu0 0
    %3488 = vmatpush1.bf16.msra.mxu0 0
    %3489 = vmatprep.subr.bf16.mxu0 0
    %3490 = vmatpush1.bf16.msra.mxu0 0
    %3491 = vmatprep.subr.bf16.mxu0 0
    %3492 = vmatpush1.bf16.msra.mxu0 0
    %3493 = vmatprep.subr.bf16.mxu0 0
    %3494 = vmatpush1.bf16.msra.mxu0 0
    %3495 = vmatprep.subr.bf16.mxu0 0
    %3496 = vmatpush1.bf16.msra.mxu0 0
    %3497 = vmatprep.subr.bf16.mxu0 0
    %3498 = vmatpush1.bf16.msra.mxu0 0
    %3499 = vmatprep.subr.bf16.mxu0 0
    %3500 = vmatpush1.bf16.msra.mxu0 0
    %3501 = vmatprep.subr.bf16.mxu0 0
    %3502 = vmatpush1.bf16.msra.mxu0 0
    %3503 = vmatprep.subr.bf16.mxu0 0
    %3504 = vmatpush1.bf16.msra.mxu0 0
    %3505 = vmatprep.subr.bf16.mxu0 0
    %3506 = vmatpush1.bf16.msra.mxu0 0
    %3507 = vmatprep.subr.bf16.mxu0 0
    %3508 = vmatpush1.bf16.msra.mxu0 0
    %3509 = vmatprep.subr.bf16.mxu0 0
    %3510 = vmatpush1.bf16.msra.mxu0 0
    %3511 = vmatprep.subr.bf16.mxu0 0
    %3512 = vmatpush1.bf16.msra.mxu0 0
    %3513 = vmatprep.subr.bf16.mxu0 0
    %3514 = vmatpush1.bf16.msra.mxu0 0
    %3515 = vmatprep.mubr.bf16.mxu0 0
    %3516 = vmatmul.mubr.bf16.gmra.mrb[0].mxu0 %v3478
    %v3517 = vpop.f32.mrb[0].mxu0
    %v3518 = vadd.f32 0.0, %v3517
    %v3519 = vpop.f32.mrb[0].mxu0
    %v3520 = vpop.f32.mrb[0].mxu0
    %v3521 = vpop.f32.mrb[0].mxu0
    %3522 = vdwg.mxu0
    %3523 = vrot.lane.b32.xlu0 %v3301, 112
    %v3524 = vpop.permute.xlu0 %3523
    %3525 = vrot.lane.b32.xlu0 %v3301, 80
    %v3526 = vpop.permute.xlu0 %3525
    %v3528 = vsel %vm579, %v3524, 0
    %v3531 = vsel %vm579, %v3526, 0
    %3533 = vmatprep.subr.bf16.mxu0 0
    %3534 = vmatpush1.bf16.xpose.msra.mxu0 %v3531
    %3535 = vmatprep.subr.bf16.mxu0 0
    %3536 = vmatpush1.bf16.xpose.msra.mxu0 0
    %3537 = vmatprep.subr.bf16.mxu0 0
    %3538 = vmatpush1.bf16.xpose.msra.mxu0 0
    %3539 = vmatprep.subr.bf16.mxu0 0
    %3540 = vmatpush1.bf16.xpose.msra.mxu0 0
    %3541 = vmatprep.subr.bf16.mxu0 0
    %3542 = vmatpush1.bf16.xpose.msra.mxu0 0
    %3543 = vmatprep.subr.bf16.mxu0 0
    %3544 = vmatpush1.bf16.xpose.msra.mxu0 0
    %3545 = vmatprep.subr.bf16.mxu0 0
    %3546 = vmatpush1.bf16.xpose.msra.mxu0 0
    %3547 = vmatprep.subr.bf16.mxu0 0
    %3548 = vmatpush1.bf16.xpose.msra.mxu0 0
    %3549 = vmatprep.subr.bf16.mxu0 0
    %3550 = vmatpush1.bf16.xpose.msra.mxu0 0
    %3551 = vmatprep.subr.bf16.mxu0 0
    %3552 = vmatpush1.bf16.xpose.msra.mxu0 0
    %3553 = vmatprep.subr.bf16.mxu0 0
    %3554 = vmatpush1.bf16.xpose.msra.mxu0 0
    %3555 = vmatprep.subr.bf16.mxu0 0
    %3556 = vmatpush1.bf16.xpose.msra.mxu0 0
    %3557 = vmatprep.subr.bf16.mxu0 0
    %3558 = vmatpush1.bf16.xpose.msra.mxu0 0
    %3559 = vmatprep.subr.bf16.mxu0 0
    %3560 = vmatpush1.bf16.xpose.msra.mxu0 0
    %3561 = vmatprep.subr.bf16.mxu0 0
    %3562 = vmatpush1.bf16.xpose.msra.mxu0 0
    %3563 = vmatprep.subr.bf16.mxu0 0
    %3564 = vmatpush1.bf16.xpose.msra.mxu0 0
    %3565 = vmatprep.mubr.bf16.mxu0 0
    %3566 = vmatmul.mubr.bf16.gmra.mrb[0].mxu0 %v3528
    %v3567 = vpop.f32.mrb[0].mxu0
    %v3568 = vadd.f32 0.0, %v3567
    %v3569 = vpop.f32.mrb[0].mxu0
    %v3570 = vpop.f32.mrb[0].mxu0
    %v3571 = vpop.f32.mrb[0].mxu0
    %3572 = vdwg.mxu0
    %v3573 = vmul.f32 %v3568, 0.35355338
    %v3574 = vsel %vm2509, %v3573, -inf
    %3575 = vmax.xlane.f32.xlu0 %v3574
    %v3576 = vpop.xlane.xlu0 %3575
    %v3577 = vsub.f32 %v3573, %v3576
    %v3578 = vmul.f32 %v3577, 1.442695
    %v3579 = vpow.pop %v3578
    %v3580 = vsel %vm2509, %v3579, 0.0
    %3581 = vadd.xlane.f32.xlu0 %v3580
    %v3582 = vpop.xlane.xlu0 %3581
    %v3583 = vrcp.pop %v3582
    %v3584 = vmul.f32 %v3579, %v3583
    %v3585 = vpack.c.bf16 %v3584, %v3584
    %3586 = vrot.lane.b32.xlu0 %v3301, 48
    %v3587 = vpop.permute.xlu0 %3586
    %v3589 = vsel %vm2524, %v3585, 0
    %v3592 = vsel %vm646, %v3587, 0
    %3594 = vmatprep.subr.bf16.mxu0 0
    %3595 = vmatpush1.bf16.msra.mxu0 %v3592
    %3596 = vmatprep.subr.bf16.mxu0 0
    %3597 = vmatpush1.bf16.msra.mxu0 0
    %3598 = vmatprep.subr.bf16.mxu0 0
    %3599 = vmatpush1.bf16.msra.mxu0 0
    %3600 = vmatprep.subr.bf16.mxu0 0
    %3601 = vmatpush1.bf16.msra.mxu0 0
    %3602 = vmatprep.subr.bf16.mxu0 0
    %3603 = vmatpush1.bf16.msra.mxu0 0
    %3604 = vmatprep.subr.bf16.mxu0 0
    %3605 = vmatpush1.bf16.msra.mxu0 0
    %3606 = vmatprep.subr.bf16.mxu0 0
    %3607 = vmatpush1.bf16.msra.mxu0 0
    %3608 = vmatprep.subr.bf16.mxu0 0
    %3609 = vmatpush1.bf16.msra.mxu0 0
    %3610 = vmatprep.subr.bf16.mxu0 0
    %3611 = vmatpush1.bf16.msra.mxu0 0
    %3612 = vmatprep.subr.bf16.mxu0 0
    %3613 = vmatpush1.bf16.msra.mxu0 0
    %3614 = vmatprep.subr.bf16.mxu0 0
    %3615 = vmatpush1.bf16.msra.mxu0 0
    %3616 = vmatprep.subr.bf16.mxu0 0
    %3617 = vmatpush1.bf16.msra.mxu0 0
    %3618 = vmatprep.subr.bf16.mxu0 0
    %3619 = vmatpush1.bf16.msra.mxu0 0
    %3620 = vmatprep.subr.bf16.mxu0 0
    %3621 = vmatpush1.bf16.msra.mxu0 0
    %3622 = vmatprep.subr.bf16.mxu0 0
    %3623 = vmatpush1.bf16.msra.mxu0 0
    %3624 = vmatprep.subr.bf16.mxu0 0
    %3625 = vmatpush1.bf16.msra.mxu0 0
    %3626 = vmatprep.mubr.bf16.mxu0 0
    %3627 = vmatmul.mubr.bf16.gmra.mrb[0].mxu0 %v3589
    %v3628 = vpop.f32.mrb[0].mxu0
    %v3629 = vadd.f32 0.0, %v3628
    %v3630 = vpop.f32.mrb[0].mxu0
    %v3631 = vpop.f32.mrb[0].mxu0
    %v3632 = vpop.f32.mrb[0].mxu0
    %3633 = vdwg.mxu0
    %3634 = vrot.lane.b32.xlu0 %v3301, 104
    %v3635 = vpop.permute.xlu0 %3634
    %3636 = vrot.lane.b32.xlu0 %v3301, 72
    %v3637 = vpop.permute.xlu0 %3636
    %v3639 = vsel %vm579, %v3635, 0
    %v3642 = vsel %vm579, %v3637, 0
    %3644 = vmatprep.subr.bf16.mxu0 0
    %3645 = vmatpush1.bf16.xpose.msra.mxu0 %v3642
    %3646 = vmatprep.subr.bf16.mxu0 0
    %3647 = vmatpush1.bf16.xpose.msra.mxu0 0
    %3648 = vmatprep.subr.bf16.mxu0 0
    %3649 = vmatpush1.bf16.xpose.msra.mxu0 0
    %3650 = vmatprep.subr.bf16.mxu0 0
    %3651 = vmatpush1.bf16.xpose.msra.mxu0 0
    %3652 = vmatprep.subr.bf16.mxu0 0
    %3653 = vmatpush1.bf16.xpose.msra.mxu0 0
    %3654 = vmatprep.subr.bf16.mxu0 0
    %3655 = vmatpush1.bf16.xpose.msra.mxu0 0
    %3656 = vmatprep.subr.bf16.mxu0 0
    %3657 = vmatpush1.bf16.xpose.msra.mxu0 0
    %3658 = vmatprep.subr.bf16.mxu0 0
    %3659 = vmatpush1.bf16.xpose.msra.mxu0 0
    %3660 = vmatprep.subr.bf16.mxu0 0
    %3661 = vmatpush1.bf16.xpose.msra.mxu0 0
    %3662 = vmatprep.subr.bf16.mxu0 0
    %3663 = vmatpush1.bf16.xpose.msra.mxu0 0
    %3664 = vmatprep.subr.bf16.mxu0 0
    %3665 = vmatpush1.bf16.xpose.msra.mxu0 0
    %3666 = vmatprep.subr.bf16.mxu0 0
    %3667 = vmatpush1.bf16.xpose.msra.mxu0 0
    %3668 = vmatprep.subr.bf16.mxu0 0
    %3669 = vmatpush1.bf16.xpose.msra.mxu0 0
    %3670 = vmatprep.subr.bf16.mxu0 0
    %3671 = vmatpush1.bf16.xpose.msra.mxu0 0
    %3672 = vmatprep.subr.bf16.mxu0 0
    %3673 = vmatpush1.bf16.xpose.msra.mxu0 0
    %3674 = vmatprep.subr.bf16.mxu0 0
    %3675 = vmatpush1.bf16.xpose.msra.mxu0 0
    %3676 = vmatprep.mubr.bf16.mxu0 0
    %3677 = vmatmul.mubr.bf16.gmra.mrb[0].mxu0 %v3639
    %v3678 = vpop.f32.mrb[0].mxu0
    %v3679 = vadd.f32 0.0, %v3678
    %v3680 = vpop.f32.mrb[0].mxu0
    %v3681 = vpop.f32.mrb[0].mxu0
    %v3682 = vpop.f32.mrb[0].mxu0
    %3683 = vdwg.mxu0
    %v3684 = vmul.f32 %v3679, 0.35355338
    %v3685 = vsel %vm2509, %v3684, -inf
    %3686 = vmax.xlane.f32.xlu0 %v3685
    %v3687 = vpop.xlane.xlu0 %3686
    %v3688 = vsub.f32 %v3684, %v3687
    %v3689 = vmul.f32 %v3688, 1.442695
    %v3690 = vpow.pop %v3689
    %v3691 = vsel %vm2509, %v3690, 0.0
    %3692 = vadd.xlane.f32.xlu0 %v3691
    %v3693 = vpop.xlane.xlu0 %3692
    %v3694 = vrcp.pop %v3693
    %v3695 = vmul.f32 %v3690, %v3694
    %v3696 = vpack.c.bf16 %v3695, %v3695
    %3697 = vrot.lane.b32.xlu0 %v3301, 40
    %v3698 = vpop.permute.xlu0 %3697
    %v3700 = vsel %vm2524, %v3696, 0
    %v3703 = vsel %vm646, %v3698, 0
    %3705 = vmatprep.subr.bf16.mxu0 0
    %3706 = vmatpush1.bf16.msra.mxu0 %v3703
    %3707 = vmatprep.subr.bf16.mxu0 0
    %3708 = vmatpush1.bf16.msra.mxu0 0
    %3709 = vmatprep.subr.bf16.mxu0 0
    %3710 = vmatpush1.bf16.msra.mxu0 0
    %3711 = vmatprep.subr.bf16.mxu0 0
    %3712 = vmatpush1.bf16.msra.mxu0 0
    %3713 = vmatprep.subr.bf16.mxu0 0
    %3714 = vmatpush1.bf16.msra.mxu0 0
    %3715 = vmatprep.subr.bf16.mxu0 0
    %3716 = vmatpush1.bf16.msra.mxu0 0
    %3717 = vmatprep.subr.bf16.mxu0 0
    %3718 = vmatpush1.bf16.msra.mxu0 0
    %3719 = vmatprep.subr.bf16.mxu0 0
    %3720 = vmatpush1.bf16.msra.mxu0 0
    %3721 = vmatprep.subr.bf16.mxu0 0
    %3722 = vmatpush1.bf16.msra.mxu0 0
    %3723 = vmatprep.subr.bf16.mxu0 0
    %3724 = vmatpush1.bf16.msra.mxu0 0
    %3725 = vmatprep.subr.bf16.mxu0 0
    %3726 = vmatpush1.bf16.msra.mxu0 0
    %3727 = vmatprep.subr.bf16.mxu0 0
    %3728 = vmatpush1.bf16.msra.mxu0 0
    %3729 = vmatprep.subr.bf16.mxu0 0
    %3730 = vmatpush1.bf16.msra.mxu0 0
    %3731 = vmatprep.subr.bf16.mxu0 0
    %3732 = vmatpush1.bf16.msra.mxu0 0
    %3733 = vmatprep.subr.bf16.mxu0 0
    %3734 = vmatpush1.bf16.msra.mxu0 0
    %3735 = vmatprep.subr.bf16.mxu0 0
    %3736 = vmatpush1.bf16.msra.mxu0 0
    %3737 = vmatprep.mubr.bf16.mxu0 0
    %3738 = vmatmul.mubr.bf16.gmra.mrb[0].mxu0 %v3700
    %v3739 = vpop.f32.mrb[0].mxu0
    %v3740 = vadd.f32 0.0, %v3739
    %v3741 = vpop.f32.mrb[0].mxu0
    %v3742 = vpop.f32.mrb[0].mxu0
    %v3743 = vpop.f32.mrb[0].mxu0
    %3744 = vdwg.mxu0
    %3746 = vrot.lane.b32.xlu0 %v3518, 8
    %v3747 = vpop.permute.xlu0 %3746
    %3750 = vrot.lane.b32.xlu0 %v3629, 16
    %v3751 = vpop.permute.xlu0 %3750
    %3754 = vrot.lane.b32.xlu0 %v3740, 24
    %v3755 = vpop.permute.xlu0 %3754
    %v3757 = vsel %vm579, %v3407, %v3747
    %v3758 = vsel %vm1039, %v3757, %v3751
    %v3759 = vsel %vm1041, %v3758, %v3755
    %v3760 = vpack.c.bf16 %v3759, %v3759
    %v3761 = vld [vmem:[%s113] sm:$0xf]
    %v3762 = vld [vmem:[%s113 + $0x4] sm:$0xf]
    %v3763 = vld [vmem:[%s113 + $0x8] sm:$0xf]
    %v3764 = vld [vmem:[%s113 + $0xc] sm:$0xf]
    %v3765 = vld [vmem:[%s97] sm:$0x1]
    %v3767 = vlaneseq
    %v3768 = vshrl.u32 %v3767, 7
    %v3769 = vsub.s32 0, %v3768
    %v3770 = vrot.slane %v3765, %v3769
    %v3776 = vunpack.c.l.b16 %v3761
    %v3777 = vunpack.c.l.b16 %v3762
    %v3778 = vunpack.c.l.b16 %v3763
    %v3779 = vunpack.c.l.b16 %v3764
    %v3780 = vpack.c.b16 %v3777, %v3776
    %v3781 = vpack.c.b16 %v3779, %v3778
    %v3785 = vsel %vm531, %v3760, 0
    %3787 = vmatprep.subr.bf16.mxu0 0
    %3788 = vmatpush1.bf16.msra.mxu0 %v3780
    %3789 = vmatprep.subr.bf16.mxu0 0
    %3790 = vmatpush1.bf16.msra.mxu0 %v3781
    %3791 = vmatprep.subr.bf16.mxu0 0
    %3792 = vmatpush1.bf16.msra.mxu0 0
    %3793 = vmatprep.subr.bf16.mxu0 0
    %3794 = vmatpush1.bf16.msra.mxu0 0
    %3795 = vmatprep.subr.bf16.mxu0 0
    %3796 = vmatpush1.bf16.msra.mxu0 0
    %3797 = vmatprep.subr.bf16.mxu0 0
    %3798 = vmatpush1.bf16.msra.mxu0 0
    %3799 = vmatprep.subr.bf16.mxu0 0
    %3800 = vmatpush1.bf16.msra.mxu0 0
    %3801 = vmatprep.subr.bf16.mxu0 0
    %3802 = vmatpush1.bf16.msra.mxu0 0
    %3803 = vmatprep.subr.bf16.mxu0 0
    %3804 = vmatpush1.bf16.msra.mxu0 0
    %3805 = vmatprep.subr.bf16.mxu0 0
    %3806 = vmatpush1.bf16.msra.mxu0 0
    %3807 = vmatprep.subr.bf16.mxu0 0
    %3808 = vmatpush1.bf16.msra.mxu0 0
    %3809 = vmatprep.subr.bf16.mxu0 0
    %3810 = vmatpush1.bf16.msra.mxu0 0
    %3811 = vmatprep.subr.bf16.mxu0 0
    %3812 = vmatpush1.bf16.msra.mxu0 0
    %3813 = vmatprep.subr.bf16.mxu0 0
    %3814 = vmatpush1.bf16.msra.mxu0 0
    %3815 = vmatprep.subr.bf16.mxu0 0
    %3816 = vmatpush1.bf16.msra.mxu0 0
    %3817 = vmatprep.subr.bf16.mxu0 0
    %3818 = vmatpush1.bf16.msra.mxu0 0
    %3819 = vmatprep.mubr.bf16.mxu0 0
    %3820 = vmatmul.mubr.bf16.gmra.mrb[0].mxu0 %v3785
    %v3821 = vpop.f32.mrb[0].mxu0
    %v3822 = vadd.f32 %v3770, %v3821
    %v3823 = vpop.f32.mrb[0].mxu0
    %v3824 = vpop.f32.mrb[0].mxu0
    %v3825 = vpop.f32.mrb[0].mxu0
    %3826 = vdwg.mxu0
    %v3827 = vadd.f32 %v3204, %v3822
    %v3828 = vsel %vm2361, %v3827, 0.0
    %3829 = vadd.xlane.f32.xlu0 %v3828
    %v3830 = vpop.xlane.xlu0 %3829
    %v3831 = vmul.f32 %v3830, %v480
    %v3832 = vsub.f32 %v3827, %v3831
    %v3833 = vmul.f32 %v3832, %v3832
    %v3834 = vsel %vm2361, %v3833, 0.0
    %3835 = vadd.xlane.f32.xlu0 %v3834
    %v3836 = vpop.xlane.xlu0 %3835
    %v3837 = vmul.f32 %v3836, %v480
    %v3838 = vadd.f32 %v3837, 1e-06
    %v3839 = vrsqrt.pop %v3838
    %v3840 = vmul.f32 %v3832, %v3839
    %v3841 = vld [vmem:[%s107] sm:$0x1]
    %v3843 = vlaneseq
    %v3844 = vshrl.u32 %v3843, 7
    %v3845 = vsub.s32 0, %v3844
    %v3846 = vrot.slane %v3841, %v3845
    %v3848 = vmul.f32 %v3840, %v3846
    %v3849 = vld [vmem:[%s105] sm:$0x1]
    %v3851 = vlaneseq
    %v3852 = vshrl.u32 %v3851, 7
    %v3853 = vsub.s32 0, %v3852
    %v3854 = vrot.slane %v3849, %v3853
    %v3856 = vadd.f32 %v3848, %v3854
    %v3857 = vpack.c.bf16 %v3856, %v3856
    %v3858 = vld [vmem:[%s109] sm:$0xf]
    %v3859 = vld [vmem:[%s109 + $0x4] sm:$0xf]
    %v3860 = vld [vmem:[%s109 + $0x8] sm:$0xf]
    %v3861 = vld [vmem:[%s109 + $0xc] sm:$0xf]
    %v3862 = vld [vmem:[%s93] sm:$0x1]
    %v3864 = vlaneseq
    %v3865 = vshrl.u32 %v3864, 7
    %v3866 = vsub.s32 0, %v3865
    %v3867 = vrot.slane %v3862, %v3866
    %v3873 = vunpack.c.l.b16 %v3858
    %v3874 = vunpack.c.l.b16 %v3859
    %v3875 = vunpack.c.l.b16 %v3860
    %v3876 = vunpack.c.l.b16 %v3861
    %v3877 = vpack.c.b16 %v3874, %v3873
    %v3878 = vpack.c.b16 %v3876, %v3875
    %v3882 = vsel %vm531, %v3857, 0
    %3884 = vmatprep.subr.bf16.mxu0 0
    %3885 = vmatpush1.bf16.msra.mxu0 %v3877
    %3886 = vmatprep.subr.bf16.mxu0 0
    %3887 = vmatpush1.bf16.msra.mxu0 %v3878
    %3888 = vmatprep.subr.bf16.mxu0 0
    %3889 = vmatpush1.bf16.msra.mxu0 0
    %3890 = vmatprep.subr.bf16.mxu0 0
    %3891 = vmatpush1.bf16.msra.mxu0 0
    %3892 = vmatprep.subr.bf16.mxu0 0
    %3893 = vmatpush1.bf16.msra.mxu0 0
    %3894 = vmatprep.subr.bf16.mxu0 0
    %3895 = vmatpush1.bf16.msra.mxu0 0
    %3896 = vmatprep.subr.bf16.mxu0 0
    %3897 = vmatpush1.bf16.msra.mxu0 0
    %3898 = vmatprep.subr.bf16.mxu0 0
    %3899 = vmatpush1.bf16.msra.mxu0 0
    %3900 = vmatprep.subr.bf16.mxu0 0
    %3901 = vmatpush1.bf16.msra.mxu0 0
    %3902 = vmatprep.subr.bf16.mxu0 0
    %3903 = vmatpush1.bf16.msra.mxu0 0
    %3904 = vmatprep.subr.bf16.mxu0 0
    %3905 = vmatpush1.bf16.msra.mxu0 0
    %3906 = vmatprep.subr.bf16.mxu0 0
    %3907 = vmatpush1.bf16.msra.mxu0 0
    %3908 = vmatprep.subr.bf16.mxu0 0
    %3909 = vmatpush1.bf16.msra.mxu0 0
    %3910 = vmatprep.subr.bf16.mxu0 0
    %3911 = vmatpush1.bf16.msra.mxu0 0
    %3912 = vmatprep.subr.bf16.mxu0 0
    %3913 = vmatpush1.bf16.msra.mxu0 0
    %3914 = vmatprep.subr.bf16.mxu0 0
    %3915 = vmatpush1.bf16.msra.mxu0 0
    %3916 = vmatprep.mubr.bf16.mxu0 0
    %3917 = vmatmul.mubr.bf16.gmra.mrb[0].mxu0 %v3882
    %v3918 = vpop.f32.mrb[0].mxu0
    %v3919 = vadd.f32 %v3867, %v3918
    %v3920 = vpop.f32.mrb[0].mxu0
    %v3921 = vpop.f32.mrb[0].mxu0
    %v3922 = vpop.f32.mrb[0].mxu0
    %3923 = vdwg.mxu0
    %v3924 = vmul.f32 %v3919, %v3919
    %v3925 = vmul.f32 %v3919, %v3924
    %v3926 = vmul.f32 %v3925, 0.044715
    %v3927 = vadd.f32 %v3919, %v3926
    %v3928 = vmul.f32 %v3927, 0.7978846
    %v3929 = vtanh.pop %v3928
    %v3930 = vadd.f32 %v3929, 1.0
    %v3931 = vmul.f32 %v3930, 0.5
    %v3932 = vmul.f32 %v3919, %v3931
    %v3933 = vpack.c.bf16 %v3932, %v3932
    %v3934 = vld [vmem:[%s111] sm:$0xf]
    %v3935 = vld [vmem:[%s111 + $0x4] sm:$0xf]
    %v3936 = vld [vmem:[%s111 + $0x8] sm:$0xf]
    %v3937 = vld [vmem:[%s111 + $0xc] sm:$0xf]
    %v3938 = vld [vmem:[%s111 + $0x10] sm:$0xf]
    %v3939 = vld [vmem:[%s111 + $0x14] sm:$0xf]
    %v3940 = vld [vmem:[%s111 + $0x18] sm:$0xf]
    %v3941 = vld [vmem:[%s111 + $0x1c] sm:$0xf]
    %v3942 = vld [vmem:[%s111 + $0x20] sm:$0xf]
    %v3943 = vld [vmem:[%s111 + $0x24] sm:$0xf]
    %v3944 = vld [vmem:[%s111 + $0x28] sm:$0xf]
    %v3945 = vld [vmem:[%s111 + $0x2c] sm:$0xf]
    %v3946 = vld [vmem:[%s111 + $0x30] sm:$0xf]
    %v3947 = vld [vmem:[%s111 + $0x34] sm:$0xf]
    %v3948 = vld [vmem:[%s111 + $0x38] sm:$0xf]
    %v3949 = vld [vmem:[%s111 + $0x3c] sm:$0xf]
    %v3950 = vld [vmem:[%s95] sm:$0x1]
    %v3952 = vlaneseq
    %v3953 = vshrl.u32 %v3952, 7
    %v3954 = vsub.s32 0, %v3953
    %v3955 = vrot.slane %v3950, %v3954
    %v3973 = vunpack.c.l.b16 %v3934
    %v3974 = vunpack.c.l.b16 %v3935
    %v3975 = vunpack.c.l.b16 %v3936
    %v3976 = vunpack.c.l.b16 %v3937
    %v3977 = vunpack.c.l.b16 %v3938
    %v3978 = vunpack.c.l.b16 %v3939
    %v3979 = vunpack.c.l.b16 %v3940
    %v3980 = vunpack.c.l.b16 %v3941
    %v3981 = vunpack.c.l.b16 %v3942
    %v3982 = vunpack.c.l.b16 %v3943
    %v3983 = vunpack.c.l.b16 %v3944
    %v3984 = vunpack.c.l.b16 %v3945
    %v3985 = vunpack.c.l.b16 %v3946
    %v3986 = vunpack.c.l.b16 %v3947
    %v3987 = vunpack.c.l.b16 %v3948
    %v3988 = vunpack.c.l.b16 %v3949
    %v3989 = vpack.c.b16 %v3974, %v3973
    %v3990 = vpack.c.b16 %v3976, %v3975
    %v3991 = vpack.c.b16 %v3978, %v3977
    %v3992 = vpack.c.b16 %v3980, %v3979
    %v3993 = vpack.c.b16 %v3982, %v3981
    %v3994 = vpack.c.b16 %v3984, %v3983
    %v3995 = vpack.c.b16 %v3986, %v3985
    %v3996 = vpack.c.b16 %v3988, %v3987
    %4005 = vmatprep.subr.bf16.mxu0 0
    %4006 = vmatpush1.bf16.msra.mxu0 %v3989
    %4007 = vmatprep.subr.bf16.mxu0 0
    %4008 = vmatpush1.bf16.msra.mxu0 %v3990
    %4009 = vmatprep.subr.bf16.mxu0 0
    %4010 = vmatpush1.bf16.msra.mxu0 %v3991
    %4011 = vmatprep.subr.bf16.mxu0 0
    %4012 = vmatpush1.bf16.msra.mxu0 %v3992
    %4013 = vmatprep.subr.bf16.mxu0 0
    %4014 = vmatpush1.bf16.msra.mxu0 %v3993
    %4015 = vmatprep.subr.bf16.mxu0 0
    %4016 = vmatpush1.bf16.msra.mxu0 %v3994
    %4017 = vmatprep.subr.bf16.mxu0 0
    %4018 = vmatpush1.bf16.msra.mxu0 %v3995
    %4019 = vmatprep.subr.bf16.mxu0 0
    %4020 = vmatpush1.bf16.msra.mxu0 %v3996
    %4021 = vmatprep.subr.bf16.mxu0 0
    %4022 = vmatpush1.bf16.msra.mxu0 0
    %4023 = vmatprep.subr.bf16.mxu0 0
    %4024 = vmatpush1.bf16.msra.mxu0 0
    %4025 = vmatprep.subr.bf16.mxu0 0
    %4026 = vmatpush1.bf16.msra.mxu0 0
    %4027 = vmatprep.subr.bf16.mxu0 0
    %4028 = vmatpush1.bf16.msra.mxu0 0
    %4029 = vmatprep.subr.bf16.mxu0 0
    %4030 = vmatpush1.bf16.msra.mxu0 0
    %4031 = vmatprep.subr.bf16.mxu0 0
    %4032 = vmatpush1.bf16.msra.mxu0 0
    %4033 = vmatprep.subr.bf16.mxu0 0
    %4034 = vmatpush1.bf16.msra.mxu0 0
    %4035 = vmatprep.subr.bf16.mxu0 0
    %4036 = vmatpush1.bf16.msra.mxu0 0
    %4037 = vmatprep.mubr.bf16.mxu0 0
    %4038 = vmatmul.mubr.bf16.gmra.mrb[0].mxu0 %v3933
    %v4039 = vpop.f32.mrb[0].mxu0
    %v4040 = vadd.f32 %v3955, %v4039
    %v4041 = vpop.f32.mrb[0].mxu0
    %v4042 = vpop.f32.mrb[0].mxu0
    %v4043 = vpop.f32.mrb[0].mxu0
    %4044 = vdwg.mxu0
    %v4045 = vadd.f32 %v3827, %v4040
    %v4047 = vrot.slane %v4045, 7
    %4048 = vrot.lane.b32.xlu0 %v4047, 32
    %v4049 = vpop.permute.xlu0 %4048
    %v4051 = vsel %vm531, %v2201, %v4049
    %v4052 = vpack.c.bf16 %v4051, %v4051
    %v4053 = vld [vmem:[%s125] sm:$0xff]
    %v4054 = vld [vmem:[%s125 + $0x8] sm:$0xff]
    %v4055 = vld [vmem:[%s125 + $0x10] sm:$0xff]
    %v4056 = vld [vmem:[%s125 + $0x18] sm:$0xff]
    %v4057 = vld [vmem:[%s125 + $0x20] sm:$0xff]
    %v4058 = vld [vmem:[%s125 + $0x28] sm:$0xff]
    %v4059 = vld [vmem:[%s125 + $0x30] sm:$0xff]
    %v4060 = vld [vmem:[%s125 + $0x38] sm:$0xff]
    %v4061 = vld [vmem:[%s123] sm:$0x3]
    %v4063 = vlaneseq
    %v4064 = vshrl.u32 %v4063, 7
    %v4065 = vsub.s32 0, %v4064
    %v4066 = vrot.slane %v4061, %v4065
    %v4067 = vlaneseq
    %v4068 = vshrl.u32 %v4067, 7
    %v4069 = vsub.s32 1, %v4068
    %v4070 = vrot.slane %v4061, %v4069
    %v4074 = vshrl.u32 %v4052, 16
    %v4076 = vshll.u32 %v4052, 16
    %v4078 = vrot.slane %v4076, 1
    %v4079 = vor.u32 %v4074, %v4078
    %v4088 = vunpack.c.l.b16 %v4053
    %v4089 = vunpack.c.h.b16 %v4053
    %v4090 = vunpack.c.l.b16 %v4054
    %v4091 = vunpack.c.h.b16 %v4054
    %v4092 = vunpack.c.l.b16 %v4055
    %v4093 = vunpack.c.h.b16 %v4055
    %v4094 = vunpack.c.l.b16 %v4056
    %v4095 = vunpack.c.h.b16 %v4056
    %v4096 = vunpack.c.l.b16 %v4057
    %v4097 = vunpack.c.h.b16 %v4057
    %v4098 = vunpack.c.l.b16 %v4058
    %v4099 = vunpack.c.h.b16 %v4058
    %v4100 = vunpack.c.l.b16 %v4059
    %v4101 = vunpack.c.h.b16 %v4059
    %v4102 = vunpack.c.l.b16 %v4060
    %v4103 = vunpack.c.h.b16 %v4060
    %v4104 = vpack.c.b16 %v4090, %v4088
    %v4105 = vpack.c.b16 %v4091, %v4089
    %v4106 = vpack.c.b16 %v4094, %v4092
    %v4107 = vpack.c.b16 %v4095, %v4093
    %v4108 = vpack.c.b16 %v4098, %v4096
    %v4109 = vpack.c.b16 %v4099, %v4097
    %v4110 = vpack.c.b16 %v4102, %v4100
    %v4111 = vpack.c.b16 %v4103, %v4101
    %v4121 = vsel %vm424, %v4079, 0
    %4123 = vmatprep.subr.bf16.mxu0 %v4105
    %4124 = vmatpush1.bf16.msra.mxu0 %v4104
    %4125 = vmatprep.subr.bf16.mxu0 %v4107
    %4126 = vmatpush1.bf16.msra.mxu0 %v4106
    %4127 = vmatprep.subr.bf16.mxu0 %v4109
    %4128 = vmatpush1.bf16.msra.mxu0 %v4108
    %4129 = vmatprep.subr.bf16.mxu0 %v4111
    %4130 = vmatpush1.bf16.msra.mxu0 %v4110
    %4131 = vmatprep.subr.bf16.mxu0 0
    %4132 = vmatpush1.bf16.msra.mxu0 0
    %4133 = vmatprep.subr.bf16.mxu0 0
    %4134 = vmatpush1.bf16.msra.mxu0 0
    %4135 = vmatprep.subr.bf16.mxu0 0
    %4136 = vmatpush1.bf16.msra.mxu0 0
    %4137 = vmatprep.subr.bf16.mxu0 0
    %4138 = vmatpush1.bf16.msra.mxu0 0
    %4139 = vmatprep.subr.bf16.mxu0 0
    %4140 = vmatpush1.bf16.msra.mxu0 0
    %4141 = vmatprep.subr.bf16.mxu0 0
    %4142 = vmatpush1.bf16.msra.mxu0 0
    %4143 = vmatprep.subr.bf16.mxu0 0
    %4144 = vmatpush1.bf16.msra.mxu0 0
    %4145 = vmatprep.subr.bf16.mxu0 0
    %4146 = vmatpush1.bf16.msra.mxu0 0
    %4147 = vmatprep.subr.bf16.mxu0 0
    %4148 = vmatpush1.bf16.msra.mxu0 0
    %4149 = vmatprep.subr.bf16.mxu0 0
    %4150 = vmatpush1.bf16.msra.mxu0 0
    %4151 = vmatprep.subr.bf16.mxu0 0
    %4152 = vmatpush1.bf16.msra.mxu0 0
    %4153 = vmatprep.subr.bf16.mxu0 0
    %4154 = vmatpush1.bf16.msra.mxu0 0
    %4155 = vmatprep.mubr.bf16.mxu0 0
    %4156 = vmatmul.mubr.bf16.gmra.mrb[0].mxu0 %v4121
    %v4157 = vpop.f32.mrb[0].mxu0
    %v4158 = vadd.f32 %v4066, %v4157
    %v4159 = vpop.f32.mrb[0].mxu0
    %v4160 = vadd.f32 %v4070, %v4159
    %v4161 = vpop.f32.mrb[0].mxu0
    %v4162 = vpop.f32.mrb[0].mxu0
    %4163 = vdwg.mxu0
    %v4164 = vmul.f32 %v4158, %v4158
    %v4165 = vmul.f32 %v4160, %v4160
    %v4166 = vmul.f32 %v4158, %v4164
    %v4167 = vmul.f32 %v4160, %v4165
    %v4168 = vmul.f32 %v4166, 0.044715
    %v4169 = vmul.f32 %v4167, 0.044715
    %v4170 = vadd.f32 %v4158, %v4168
    %v4171 = vadd.f32 %v4160, %v4169
    %v4172 = vmul.f32 %v4170, 0.7978846
    %v4173 = vmul.f32 %v4171, 0.7978846
    %v4174 = vtanh.pop %v4172
    %v4175 = vtanh.pop %v4173
    %v4176 = vadd.f32 %v4174, 1.0
    %v4177 = vadd.f32 %v4175, 1.0
    %v4178 = vmul.f32 %v4176, 0.5
    %v4179 = vmul.f32 %v4177, 0.5
    %v4180 = vmul.f32 %v4158, %v4178
    %v4181 = vmul.f32 %v4160, %v4179
    %v4182 = vpack.c.bf16 %v4180, %v4180
    %v4183 = vpack.c.bf16 %v4181, %v4181
    %v4184 = vld [vmem:[%s129] sm:$0xf]
    %v4185 = vld [vmem:[%s129 + $0x4] sm:$0xf]
    %v4186 = vld [vmem:[%s129 + $0x8] sm:$0xf]
    %v4187 = vld [vmem:[%s129 + $0xc] sm:$0xf]
    %v4188 = vld [vmem:[%s129 + $0x10] sm:$0xf]
    %v4189 = vld [vmem:[%s129 + $0x14] sm:$0xf]
    %v4190 = vld [vmem:[%s129 + $0x18] sm:$0xf]
    %v4191 = vld [vmem:[%s129 + $0x1c] sm:$0xf]
    %v4192 = vld [vmem:[%s129 + $0x20] sm:$0xf]
    %v4193 = vld [vmem:[%s129 + $0x24] sm:$0xf]
    %v4194 = vld [vmem:[%s129 + $0x28] sm:$0xf]
    %v4195 = vld [vmem:[%s129 + $0x2c] sm:$0xf]
    %v4196 = vld [vmem:[%s129 + $0x30] sm:$0xf]
    %v4197 = vld [vmem:[%s129 + $0x34] sm:$0xf]
    %v4198 = vld [vmem:[%s129 + $0x38] sm:$0xf]
    %v4199 = vld [vmem:[%s129 + $0x3c] sm:$0xf]
    %v4200 = vld [vmem:[%s129 + $0x40] sm:$0xf]
    %v4201 = vld [vmem:[%s129 + $0x44] sm:$0xf]
    %v4202 = vld [vmem:[%s129 + $0x48] sm:$0xf]
    %v4203 = vld [vmem:[%s129 + $0x4c] sm:$0xf]
    %v4204 = vld [vmem:[%s129 + $0x50] sm:$0xf]
    %v4205 = vld [vmem:[%s129 + $0x54] sm:$0xf]
    %v4206 = vld [vmem:[%s129 + $0x58] sm:$0xf]
    %v4207 = vld [vmem:[%s129 + $0x5c] sm:$0xf]
    %v4208 = vld [vmem:[%s129 + $0x60] sm:$0xf]
    %v4209 = vld [vmem:[%s129 + $0x64] sm:$0xf]
    %v4210 = vld [vmem:[%s129 + $0x68] sm:$0xf]
    %v4211 = vld [vmem:[%s129 + $0x6c] sm:$0xf]
    %v4212 = vld [vmem:[%s129 + $0x70] sm:$0xf]
    %v4213 = vld [vmem:[%s129 + $0x74] sm:$0xf]
    %v4214 = vld [vmem:[%s129 + $0x78] sm:$0xf]
    %v4215 = vld [vmem:[%s129 + $0x7c] sm:$0xf]
    %v4216 = vld [vmem:[#allocation4] sm:$0x1]
    %v4218 = vlaneseq
    %v4219 = vshrl.u32 %v4218, 7
    %v4220 = vsub.s32 0, %v4219
    %v4221 = vrot.slane %v4216, %v4220
    %v4255 = vunpack.c.l.b16 %v4184
    %v4256 = vunpack.c.l.b16 %v4185
    %v4257 = vunpack.c.l.b16 %v4186
    %v4258 = vunpack.c.l.b16 %v4187
    %v4259 = vunpack.c.l.b16 %v4188
    %v4260 = vunpack.c.l.b16 %v4189
    %v4261 = vunpack.c.l.b16 %v4190
    %v4262 = vunpack.c.l.b16 %v4191
    %v4263 = vunpack.c.l.b16 %v4192
    %v4264 = vunpack.c.l.b16 %v4193
    %v4265 = vunpack.c.l.b16 %v4194
    %v4266 = vunpack.c.l.b16 %v4195
    %v4267 = vunpack.c.l.b16 %v4196
    %v4268 = vunpack.c.l.b16 %v4197
    %v4269 = vunpack.c.l.b16 %v4198
    %v4270 = vunpack.c.l.b16 %v4199
    %v4271 = vunpack.c.l.b16 %v4200
    %v4272 = vunpack.c.l.b16 %v4201
    %v4273 = vunpack.c.l.b16 %v4202
    %v4274 = vunpack.c.l.b16 %v4203
    %v4275 = vunpack.c.l.b16 %v4204
    %v4276 = vunpack.c.l.b16 %v4205
    %v4277 = vunpack.c.l.b16 %v4206
    %v4278 = vunpack.c.l.b16 %v4207
    %v4279 = vunpack.c.l.b16 %v4208
    %v4280 = vunpack.c.l.b16 %v4209
    %v4281 = vunpack.c.l.b16 %v4210
    %v4282 = vunpack.c.l.b16 %v4211
    %v4283 = vunpack.c.l.b16 %v4212
    %v4284 = vunpack.c.l.b16 %v4213
    %v4285 = vunpack.c.l.b16 %v4214
    %v4286 = vunpack.c.l.b16 %v4215
    %v4287 = vpack.c.b16 %v4256, %v4255
    %v4288 = vpack.c.b16 %v4258, %v4257
    %v4289 = vpack.c.b16 %v4260, %v4259
    %v4290 = vpack.c.b16 %v4262, %v4261
    %v4291 = vpack.c.b16 %v4264, %v4263
    %v4292 = vpack.c.b16 %v4266, %v4265
    %v4293 = vpack.c.b16 %v4268, %v4267
    %v4294 = vpack.c.b16 %v4270, %v4269
    %v4295 = vpack.c.b16 %v4272, %v4271
    %v4296 = vpack.c.b16 %v4274, %v4273
    %v4297 = vpack.c.b16 %v4276, %v4275
    %v4298 = vpack.c.b16 %v4278, %v4277
    %v4299 = vpack.c.b16 %v4280, %v4279
    %v4300 = vpack.c.b16 %v4282, %v4281
    %v4301 = vpack.c.b16 %v4284, %v4283
    %v4302 = vpack.c.b16 %v4286, %v4285
    %4319 = vmatprep.subr.bf16.mxu0 0
    %4320 = vmatpush1.bf16.msra.mxu0 %v4287
    %4321 = vmatprep.subr.bf16.mxu0 0
    %4322 = vmatpush1.bf16.msra.mxu0 %v4288
    %4323 = vmatprep.subr.bf16.mxu0 0
    %4324 = vmatpush1.bf16.msra.mxu0 %v4289
    %4325 = vmatprep.subr.bf16.mxu0 0
    %4326 = vmatpush1.bf16.msra.mxu0 %v4290
    %4327 = vmatprep.subr.bf16.mxu0 0
    %4328 = vmatpush1.bf16.msra.mxu0 %v4291
    %4329 = vmatprep.subr.bf16.mxu0 0
    %4330 = vmatpush1.bf16.msra.mxu0 %v4292
    %4331 = vmatprep.subr.bf16.mxu0 0
    %4332 = vmatpush1.bf16.msra.mxu0 %v4293
    %4333 = vmatprep.subr.bf16.mxu0 0
    %4334 = vmatpush1.bf16.msra.mxu0 %v4294
    %4335 = vmatprep.subr.bf16.mxu0 0
    %4336 = vmatpush1.bf16.msra.mxu0 %v4295
    %4337 = vmatprep.subr.bf16.mxu0 0
    %4338 = vmatpush1.bf16.msra.mxu0 %v4296
    %4339 = vmatprep.subr.bf16.mxu0 0
    %4340 = vmatpush1.bf16.msra.mxu0 %v4297
    %4341 = vmatprep.subr.bf16.mxu0 0
    %4342 = vmatpush1.bf16.msra.mxu0 %v4298
    %4343 = vmatprep.subr.bf16.mxu0 0
    %4344 = vmatpush1.bf16.msra.mxu0 %v4299
    %4345 = vmatprep.subr.bf16.mxu0 0
    %4346 = vmatpush1.bf16.msra.mxu0 %v4300
    %4347 = vmatprep.subr.bf16.mxu0 0
    %4348 = vmatpush1.bf16.msra.mxu0 %v4301
    %4349 = vmatprep.subr.bf16.mxu0 0
    %4350 = vmatpush1.bf16.msra.mxu0 %v4302
    %4351 = vmatprep.mubr.bf16.mxu0 %v4183
    %4352 = vmatmul.mubr.bf16.gmra.mrb[0].mxu0 %v4182
    %v4353 = vpop.f32.mrb[0].mxu0
    %v4354 = vadd.f32 %v4221, %v4353
    %v4355 = vpop.f32.mrb[0].mxu0
    %v4356 = vpop.f32.mrb[0].mxu0
    %v4357 = vpop.f32.mrb[0].mxu0
    %4358 = vdwg.mxu0
    %v4359 = vmul.f32 %v4354, %v4354
    %v4360 = vmul.f32 %v4354, %v4359
    %v4361 = vmul.f32 %v4360, 0.044715
    %v4362 = vadd.f32 %v4354, %v4361
    %v4363 = vmul.f32 %v4362, 0.7978846
    %v4364 = vtanh.pop %v4363
    %v4365 = vadd.f32 %v4364, 1.0
    %v4366 = vmul.f32 %v4365, 0.5
    %v4367 = vmul.f32 %v4354, %v4366
    %v4368 = vpack.c.bf16 %v4367, %v4367
    %v4369 = vld [vmem:[%s133] sm:$0xf]
    %v4370 = vld [vmem:[%s133 + $0x4] sm:$0xf]
    %v4371 = vld [vmem:[%s133 + $0x8] sm:$0xf]
    %v4372 = vld [vmem:[%s133 + $0xc] sm:$0xf]
    %v4373 = vld [vmem:[%s133 + $0x10] sm:$0xf]
    %v4374 = vld [vmem:[%s133 + $0x14] sm:$0xf]
    %v4375 = vld [vmem:[%s133 + $0x18] sm:$0xf]
    %v4376 = vld [vmem:[%s133 + $0x1c] sm:$0xf]
    %v4377 = vld [vmem:[#allocation6] sm:$0x1]
    %v4379 = vlaneseq
    %v4380 = vshrl.u32 %v4379, 7
    %v4381 = vsub.s32 0, %v4380
    %v4382 = vrot.slane %v4377, %v4381
    %v4392 = vunpack.c.l.b16 %v4369
    %v4393 = vunpack.c.l.b16 %v4370
    %v4394 = vunpack.c.l.b16 %v4371
    %v4395 = vunpack.c.l.b16 %v4372
    %v4396 = vunpack.c.l.b16 %v4373
    %v4397 = vunpack.c.l.b16 %v4374
    %v4398 = vunpack.c.l.b16 %v4375
    %v4399 = vunpack.c.l.b16 %v4376
    %v4400 = vpack.c.b16 %v4393, %v4392
    %v4401 = vpack.c.b16 %v4395, %v4394
    %v4402 = vpack.c.b16 %v4397, %v4396
    %v4403 = vpack.c.b16 %v4399, %v4398
    %v4409 = vsel %vm424, %v4368, 0
    %4411 = vmatprep.subr.bf16.mxu0 0
    %4412 = vmatpush1.bf16.msra.mxu0 %v4400
    %4413 = vmatprep.subr.bf16.mxu0 0
    %4414 = vmatpush1.bf16.msra.mxu0 %v4401
    %4415 = vmatprep.subr.bf16.mxu0 0
    %4416 = vmatpush1.bf16.msra.mxu0 %v4402
    %4417 = vmatprep.subr.bf16.mxu0 0
    %4418 = vmatpush1.bf16.msra.mxu0 %v4403
    %4419 = vmatprep.subr.bf16.mxu0 0
    %4420 = vmatpush1.bf16.msra.mxu0 0
    %4421 = vmatprep.subr.bf16.mxu0 0
    %4422 = vmatpush1.bf16.msra.mxu0 0
    %4423 = vmatprep.subr.bf16.mxu0 0
    %4424 = vmatpush1.bf16.msra.mxu0 0
    %4425 = vmatprep.subr.bf16.mxu0 0
    %4426 = vmatpush1.bf16.msra.mxu0 0
    %4427 = vmatprep.subr.bf16.mxu0 0
    %4428 = vmatpush1.bf16.msra.mxu0 0
    %4429 = vmatprep.subr.bf16.mxu0 0
    %4430 = vmatpush1.bf16.msra.mxu0 0
    %4431 = vmatprep.subr.bf16.mxu0 0
    %4432 = vmatpush1.bf16.msra.mxu0 0
    %4433 = vmatprep.subr.bf16.mxu0 0
    %4434 = vmatpush1.bf16.msra.mxu0 0
    %4435 = vmatprep.subr.bf16.mxu0 0
    %4436 = vmatpush1.bf16.msra.mxu0 0
    %4437 = vmatprep.subr.bf16.mxu0 0
    %4438 = vmatpush1.bf16.msra.mxu0 0
    %4439 = vmatprep.subr.bf16.mxu0 0
    %4440 = vmatpush1.bf16.msra.mxu0 0
    %4441 = vmatprep.subr.bf16.mxu0 0
    %4442 = vmatpush1.bf16.msra.mxu0 0
    %4443 = vmatprep.mubr.bf16.mxu0 0
    %4444 = vmatmul.mubr.bf16.gmra.mrb[0].mxu0 %v4409
    %v4445 = vpop.f32.mrb[0].mxu0
    %v4446 = vadd.f32 %v4382, %v4445
    %v4447 = vpop.f32.mrb[0].mxu0
    %v4448 = vpop.f32.mrb[0].mxu0
    %v4449 = vpop.f32.mrb[0].mxu0
    %4450 = vdwg.mxu0
    %v4451 = vpack.c.bf16 %v4446, %v4446
    %vm4452 = vcmask 517120
    %4453 = vst.msk [vmem:[%s135] sm:$0x3] %vm4452, %v4451
    // Predicated region
    $region282: #{openvla_forward.2} parent=1 // pred_check
      _
    $region283: #{openvla_forward.2} parent=1 // pred_check_branch
      %4455 = sbr.rel (0) target = $region285
    $region284: #{openvla_forward.2} parent=1 // pred_region
      _
    $region285: #{openvla_forward.2} parent=1 // pred_fallthru
      _
    // Predicated region
    $region286: #{openvla_forward.2} parent=1 // pred_check
      _
    $region287: #{openvla_forward.2} parent=1 // pred_check_branch
      %4457 = sbr.rel (0) target = $region289
    $region288: #{openvla_forward.2} parent=1 // pred_region
      _
    $region289: #{openvla_forward.2} parent=1 // pred_fallthru
      _
    %4458 = vsyncpa [#allocation3], 1
    %4459 = vsyncpa [#allocation5], 1

</llo_original>
